<compile_context>
chip_gen: v6e
topology: v6e:2x2x1
jax: 0.10.0
libtpu: 0.0.40
codegen_flags: <defaults>
</compile_context>

<pallas_src>
import functools

import jax
import jax.numpy as jnp
from jax.experimental import pallas as pl
from jax.experimental.pallas import tpu as pltpu

HIDDEN = 2048
RX_DIM = 128
N_CLS = 2
HEADS_W = N_CLS + RX_DIM      # 130 useful head columns
HEADS_PAD = 256               # padded up to a lane-dense multiple of 128


def pu_iic_kernel(
    x_ref,       # (TB, TK)            f32 input tile (cast to bf16 in-kernel)
    wb_ref,      # (TK, HIDDEN)        backbone weight K-slab, bf16
    bb_ref,      # (1, HIDDEN)         backbone bias, f32
    wh_ref,      # (HIDDEN, 256)       fused [ax | rx | 0-pad] head weight, bf16
    bh_ref,      # (1, 256)            fused head bias, f32
    heads_ref,   # (TB, 256)     out   [ax | rx | pad], f32
    rxm_ref,     # (TB, HIDDEN)  out   rx_m (bf16 by default)
    acc_ref,     # (TB, HIDDEN)  f32 VMEM scratch: K-reduction accumulator
):
    k = pl.program_id(1)

    @pl.when(k == 0)
    def _():
        acc_ref[...] = jnp.zeros_like(acc_ref)

    # Backbone partial matmul (bf16 MXU, f32 accumulation).  The f32 -> bf16
    # cast of x runs on the VPU, hidden under the MXU.
    acc_ref[...] += jnp.dot(
        x_ref[...].astype(jnp.bfloat16), wb_ref[...],
        preferred_element_type=jnp.float32)

    @pl.when(k == pl.num_programs(1) - 1)
    def _():
        # Synthetic PInet backbone epilogue: rx_m = relu(x @ Wb + bb)
        rx_m = jnp.maximum(acc_ref[...] + bb_ref[...], 0.0)

        # Fused ax/rx heads: single lane-dense 256-wide matmul, one bias add.
        heads = jnp.dot(rx_m.astype(jnp.bfloat16), wh_ref[...],
                        preferred_element_type=jnp.float32)
        heads_ref[...] = heads + bh_ref[...]

        # Dominant output DMA: store rx_m (bf16 by default).
        rxm_ref[...] = rx_m.astype(rxm_ref.dtype)

        # NOTE: the original PyTorch forward also computes fc1(rx_m) and
        # discards it; that dead matmul is intentionally not emitted here.


def init_params(key, in_features, hidden=HIDDEN, rx_dim=RX_DIM, n_cls=N_CLS):
    ks = jax.random.split(key, 6)

    def lin(kw, fan_in, fan_out):
        bound = 1.0 / jnp.sqrt(jnp.float32(fan_in))
        return jax.random.uniform(kw, (fan_in, fan_out), jnp.float32,
                                  -bound, bound)

    wb  = lin(ks[0], in_features, hidden)
    bb  = jax.random.uniform(ks[1], (1, hidden), jnp.float32, -0.01, 0.01)
    wax = lin(ks[2], hidden, n_cls)
    bax = jax.random.uniform(ks[3], (1, n_cls), jnp.float32, -0.01, 0.01)
    wrx = lin(ks[4], hidden, rx_dim)
    brx = jax.random.uniform(ks[5], (1, rx_dim), jnp.float32, -0.01, 0.01)
    return (wb, bb, wax, bax, wrx, brx)


def prepare_params(params):
    """One-time weight prep, hoisted out of the per-call forward path:
    bf16 cast of the backbone weight, and fusion of the ax/rx heads into a
    single lane-dense (HIDDEN, 256) bf16 matrix plus a (1, 256) f32 bias row
    (columns [0:2)=ax, [2:130)=rx, [130:256)=zero pad)."""
    wb, bb, wax, bax, wrx, brx = params
    hidden = wax.shape[0]
    wb_b = wb.astype(jnp.bfloat16)
    wh = jnp.concatenate(
        [wax.astype(jnp.bfloat16),
         wrx.astype(jnp.bfloat16),
         jnp.zeros((hidden, HEADS_PAD - HEADS_W), jnp.bfloat16)],
        axis=1)
    bh = jnp.concatenate(
        [bax, brx, jnp.zeros((1, HEADS_PAD - HEADS_W), jnp.float32)],
        axis=1)
    return (wb_b, bb, wh, bh)


def _pick_k_tile(in_features):
    """K-tile so the (tk, HIDDEN) bf16 weight slab stays a few MiB.  Only
    tile when tk divides IN evenly (padding a reduction block is unsafe)."""
    if in_features <= 4096:
        return in_features
    for tk in (4096, 2048, 1024, 512, 256, 128):
        if in_features % tk == 0:
            return tk
    return in_features  # fallback: fully resident (may need a larger VMEM limit)


@functools.partial(jax.jit, static_argnames=("rx_m_dtype",))
def pu_iic_net_forward(x_nchw, prepared, rx_m_dtype=jnp.bfloat16):
    wb_b, bb, wh, bh = prepared
    B, C, H, W = x_nchw.shape
    IN = C * H * W
    assert wb_b.shape == (IN, HIDDEN)

    # View-only flatten; the bf16 cast of x happens inside the kernel.
    x_flat = x_nchw.reshape(B, IN)

    # Batch tiling: tb=256 rows works for v5e/v6e/v7x (multiple of 128) and
    # gives >=2 "parallel" grid steps on v7x for B>=512.  Small test batches
    # use the full batch as one tile.  (v6e can profitably go to tb=512 with
    # a 64 MiB vmem limit; kept at 256 for cross-generation safety.)
    tb = B if B <= 256 else 256
    tk = _pick_k_tile(IN)
    grid = (pl.cdiv(B, tb), IN // tk)

    cost = pl.CostEstimate(
        flops=2 * B * IN * HIDDEN + 2 * B * HIDDEN * HEADS_PAD,
        transcendentals=0,
        bytes_accessed=(x_flat.size * 4 + wb_b.size * 2 + wh.size * 2
                        + bb.size * 4 + bh.size * 4
                        + B * HEADS_PAD * 4
                        + B * HIDDEN * jnp.dtype(rx_m_dtype).itemsize),
    )

    heads, rx_m = pl.pallas_call(
        pu_iic_kernel,
        out_shape=(
            jax.ShapeDtypeStruct((B, HEADS_PAD), jnp.float32),  # [ax | rx | pad]
            jax.ShapeDtypeStruct((B, HIDDEN), rx_m_dtype),      # rx_m
        ),
        grid_spec=pltpu.PrefetchScalarGridSpec(
            num_scalar_prefetch=0,
            grid=grid,
            in_specs=[
                pl.BlockSpec((tb, tk), lambda i, k: (i, k)),             # x tile
                pl.BlockSpec((tk, HIDDEN), lambda i, k: (k, 0)),         # wb slab
                pl.BlockSpec((1, HIDDEN), lambda i, k: (0, 0)),          # bb
                pl.BlockSpec((HIDDEN, HEADS_PAD), lambda i, k: (0, 0)),  # wh
                pl.BlockSpec((1, HEADS_PAD), lambda i, k: (0, 0)),       # bh
            ],
            out_specs=[
                pl.BlockSpec((tb, HEADS_PAD), lambda i, k: (i, 0)),
                pl.BlockSpec((tb, HIDDEN), lambda i, k: (i, 0)),
            ],
            scratch_shapes=[pltpu.VMEM((tb, HIDDEN), jnp.float32)],
        ),
        compiler_params=pltpu.CompilerParams(
            dimension_semantics=("parallel", "arbitrary"),
            vmem_limit_bytes=32 << 20,
        ),
        cost_estimate=cost,
    )(x_flat, wb_b, bb, wh, bh)

    # Slice the lane-dense head output back into ax / rx.
    ax = heads[:, :N_CLS]
    rx = heads[:, N_CLS:N_CLS + RX_DIM]
    # Match PU_IIC_Net.forward: fc1 output is never returned.
    return ax, rx, rx_m


def reference_forward(x_nchw, params):
    wb, bb, wax, bax, wrx, brx = params
    B = x_nchw.shape[0]
    x = x_nchw.reshape(B, -1).astype(jnp.float32)
    rx_m = jnp.maximum(x @ wb + bb, 0.0)
    ax = rx_m @ wax + bax
    rx = rx_m @ wrx + brx
    return ax, rx, rx_m


if __name__ == "__main__":
    key = jax.random.PRNGKey(0)
    k_x, k_p = jax.random.split(key)

    # Small shapes consistent with the module: NCHW input, rx_m has 2048 feats.
    B, C, H, W = 2, 4, 16, 16
    x = jax.random.normal(k_x, (B, C, H, W), jnp.float32)

    params = init_params(k_p, in_features=C * H * W)
    # Weight prep is done ONCE here, not on every forward call.
    prepared = jax.block_until_ready(prepare_params(params))

    ax, rx, rx_m = jax.block_until_ready(pu_iic_net_forward(x, prepared))

    # Correctness check against a plain-JAX f32 reference (kernel uses bf16
    # weights/activations with f32 accumulation, bf16 rx_m writeback ->
    # loosened tolerances).
    ax_r, rx_r, rxm_r = reference_forward(x, params)
    assert ax.shape == (B, 2) and rx.shape == (B, 128) and rx_m.shape == (B, 2048)
    assert jnp.allclose(ax, ax_r, atol=5e-2, rtol=5e-2)
    assert jnp.allclose(rx, rx_r, atol=5e-2, rtol=5e-2)
    assert jnp.allclose(rx_m.astype(jnp.float32), rxm_r, atol=5e-2, rtol=5e-2)

    print("KERNEL_OK")
</pallas_src>

<mosaic_0001>
module attributes {stable_mosaic.version = 11 : i64} {
  func.func @pu_iic_kernel(%arg0: i32, %arg1: i32, %arg2: memref<2x1024xf32, #tpu.memory_space<vmem>>, %arg3: memref<1024x2048xbf16, #tpu.memory_space<vmem>>, %arg4: memref<1x2048xf32, #tpu.memory_space<vmem>>, %arg5: memref<2048x256xbf16, #tpu.memory_space<vmem>>, %arg6: memref<1x256xf32, #tpu.memory_space<vmem>>, %arg7: memref<2x256xf32, #tpu.memory_space<vmem>>, %arg8: memref<2x2048xbf16, #tpu.memory_space<vmem>>, %arg9: memref<2x2048xf32, #tpu.memory_space<vmem>>) attributes {dimension_semantics = [#tpu.dimension_semantics<parallel>, #tpu.dimension_semantics<arbitrary>], iteration_bounds = array<i64: 1, 1>, scalar_prefetch = 0 : i64, scratch_operands = 1 : i64, tpu.core_type = #tpu.core_type<tc>, window_params = [{transform_indices = @transform_0, window_bounds = array<i64: 2, 1024>}, {transform_indices = @transform_1, window_bounds = array<i64: 1024, 2048>}, {pipeline_mode = #tpu.pipeline_mode<synchronous>, transform_indices = @transform_2, window_bounds = array<i64: 1, 2048>}, {pipeline_mode = #tpu.pipeline_mode<synchronous>, transform_indices = @transform_3, window_bounds = array<i64: 2048, 256>}, {pipeline_mode = #tpu.pipeline_mode<synchronous>, transform_indices = @transform_4, window_bounds = array<i64: 1, 256>}, {transform_indices = @transform_5, window_bounds = array<i64: 2, 256>}, {transform_indices = @transform_6, window_bounds = array<i64: 2, 2048>}]} {
    %c0_i32 = arith.constant 0 : i32
    %0 = arith.cmpi eq, %arg1, %c0_i32 : i32
    %1 = arith.extui %0 : i1 to i32
    %c0_i32_0 = arith.constant 0 : i32
    %2 = arith.cmpi ne, %1, %c0_i32_0 : i32
    scf.if %2 {
      %cst_10 = arith.constant 0.000000e+00 : f32
      %13 = vector.broadcast %cst_10 : f32 to vector<2x2048xf32>
      %c0_11 = arith.constant 0 : index
      %c0_12 = arith.constant 0 : index
      %14 = vector.load %arg9[%c0_11, %c0_12] : memref<2x2048xf32, #tpu.memory_space<vmem>>, vector<2x2048xf32>
      tpu.vector_store %arg9[%c0_11, %c0_12], %13 {strides = array<i32>} : memref<2x2048xf32, #tpu.memory_space<vmem>>, vector<2x2048xf32>,
    } else {
    }
    %c0 = arith.constant 0 : index
    %c0_1 = arith.constant 0 : index
    %3 = vector.load %arg9[%c0, %c0_1] : memref<2x2048xf32, #tpu.memory_space<vmem>>, vector<2x2048xf32>
    %c0_2 = arith.constant 0 : index
    %c0_3 = arith.constant 0 : index
    %4 = vector.load %arg2[%c0_2, %c0_3] : memref<2x1024xf32, #tpu.memory_space<vmem>>, vector<2x1024xf32>
    %5 = arith.truncf %4 : vector<2x1024xf32> to vector<2x1024xbf16>
    %c0_4 = arith.constant 0 : index
    %c0_5 = arith.constant 0 : index
    %6 = vector.load %arg3[%c0_4, %c0_5] : memref<1024x2048xbf16, #tpu.memory_space<vmem>>, vector<1024x2048xbf16>
    %cst = arith.constant dense<0.000000e+00> : vector<2x2048xf32>
    %7 = tpu.matmul %5, %6, %cst {dimension_numbers = #tpu.dot_dimension_numbers<[1], [0], [0], [1], [0, 0, 1, 1], [], []>} : vector<2x1024xbf16>, vector<1024x2048xbf16>, vector<2x2048xf32> -> vector<2x2048xf32>
    %8 = arith.addf %3, %7 : vector<2x2048xf32>
    %c0_6 = arith.constant 0 : index
    %c0_7 = arith.constant 0 : index
    %9 = vector.load %arg9[%c0_6, %c0_7] : memref<2x2048xf32, #tpu.memory_space<vmem>>, vector<2x2048xf32>
    tpu.vector_store %arg9[%c0_6, %c0_7], %8 {strides = array<i32>} : memref<2x2048xf32, #tpu.memory_space<vmem>>, vector<2x2048xf32>,
    %c0_i32_8 = arith.constant 0 : i32
    %10 = arith.cmpi eq, %arg1, %c0_i32_8 : i32
    %11 = arith.extui %10 : i1 to i32
    %c0_i32_9 = arith.constant 0 : i32
    %12 = arith.cmpi ne, %11, %c0_i32_9 : i32
    scf.if %12 {
      %c0_10 = arith.constant 0 : index
      %c0_11 = arith.constant 0 : index
      %13 = vector.load %arg9[%c0_10, %c0_11] : memref<2x2048xf32, #tpu.memory_space<vmem>>, vector<2x2048xf32>
      %c0_12 = arith.constant 0 : index
      %c0_13 = arith.constant 0 : index
      %14 = vector.load %arg4[%c0_12, %c0_13] : memref<1x2048xf32, #tpu.memory_space<vmem>>, vector<1x2048xf32>
      %15 = vector.broadcast %14 : vector<1x2048xf32> to vector<2x2048xf32>
      %16 = arith.addf %13, %15 : vector<2x2048xf32>
      %cst_14 = arith.constant 0.000000e+00 : f32
      %17 = vector.broadcast %cst_14 : f32 to vector<2x2048xf32>
      %18 = arith.maximumf %16, %17 : vector<2x2048xf32>
      %19 = arith.truncf %18 : vector<2x2048xf32> to vector<2x2048xbf16>
      %c0_15 = arith.constant 0 : index
      %c0_16 = arith.constant 0 : index
      %20 = vector.load %arg5[%c0_15, %c0_16] : memref<2048x256xbf16, #tpu.memory_space<vmem>>, vector<2048x256xbf16>
      %cst_17 = arith.constant dense<0.000000e+00> : vector<2x256xf32>
      %21 = tpu.matmul %19, %20, %cst_17 {dimension_numbers = #tpu.dot_dimension_numbers<[1], [0], [0], [1], [0, 0, 1, 1], [], []>} : vector<2x2048xbf16>, vector<2048x256xbf16>, vector<2x256xf32> -> vector<2x256xf32>
      %c0_18 = arith.constant 0 : index
      %c0_19 = arith.constant 0 : index
      %22 = vector.load %arg6[%c0_18, %c0_19] : memref<1x256xf32, #tpu.memory_space<vmem>>, vector<1x256xf32>
      %23 = vector.broadcast %22 : vector<1x256xf32> to vector<2x256xf32>
      %24 = arith.addf %21, %23 : vector<2x256xf32>
      %c0_20 = arith.constant 0 : index
      %c0_21 = arith.constant 0 : index
      %25 = vector.load %arg7[%c0_20, %c0_21] : memref<2x256xf32, #tpu.memory_space<vmem>>, vector<2x256xf32>
      tpu.vector_store %arg7[%c0_20, %c0_21], %24 {strides = array<i32>} : memref<2x256xf32, #tpu.memory_space<vmem>>, vector<2x256xf32>,
      %26 = arith.truncf %18 : vector<2x2048xf32> to vector<2x2048xbf16>
      %c0_22 = arith.constant 0 : index
      %c0_23 = arith.constant 0 : index
      %27 = vector.load %arg8[%c0_22, %c0_23] : memref<2x2048xbf16, #tpu.memory_space<vmem>>, vector<2x2048xbf16>
      tpu.vector_store %arg8[%c0_22, %c0_23], %26 {strides = array<i32>} : memref<2x2048xbf16, #tpu.memory_space<vmem>>, vector<2x2048xbf16>,
    } else {
    }
    return
  }
  func.func @transform_0(%arg0: i32, %arg1: i32) -> (i32, i32) {
    %c0_i32 = arith.constant 0 : i32
    return %arg0, %arg1 : i32, i32
  }
  func.func @transform_1(%arg0: i32, %arg1: i32) -> (i32, i32) {
    %c0_i32 = arith.constant 0 : i32
    %c0_i32_0 = arith.constant 0 : i32
    return %arg1, %c0_i32 : i32, i32
  }
  func.func @transform_2(%arg0: i32, %arg1: i32) -> (i32, i32) {
    %c0_i32 = arith.constant 0 : i32
    %c0_i32_0 = arith.constant 0 : i32
    %c0_i32_1 = arith.constant 0 : i32
    return %c0_i32, %c0_i32_0 : i32, i32
  }
  func.func @transform_3(%arg0: i32, %arg1: i32) -> (i32, i32) {
    %c0_i32 = arith.constant 0 : i32
    %c0_i32_0 = arith.constant 0 : i32
    %c0_i32_1 = arith.constant 0 : i32
    return %c0_i32, %c0_i32_0 : i32, i32
  }
  func.func @transform_4(%arg0: i32, %arg1: i32) -> (i32, i32) {
    %c0_i32 = arith.constant 0 : i32
    %c0_i32_0 = arith.constant 0 : i32
    %c0_i32_1 = arith.constant 0 : i32
    return %c0_i32, %c0_i32_0 : i32, i32
  }
  func.func @transform_5(%arg0: i32, %arg1: i32) -> (i32, i32) {
    %c0_i32 = arith.constant 0 : i32
    %c0_i32_0 = arith.constant 0 : i32
    return %arg0, %c0_i32 : i32, i32
  }
  func.func @transform_6(%arg0: i32, %arg1: i32) -> (i32, i32) {
    %c0_i32 = arith.constant 0 : i32
    %c0_i32_0 = arith.constant 0 : i32
    return %arg0, %c0_i32 : i32, i32
  }
}

</mosaic_0001>

<llo_original>
// kernel: pu_iic_net_forward.1
$region0: #{pu_iic_net_forward.1}
  #allocation0 [shape = 'u32[]', space=smem, size = 0x4, offset = 0x4, fixed_abs, tag = 'smem constant byte address 0x4 - core index']
  #allocation1 [shape = 'u32[144,128]{1,0:T(1,128)}', space=vmem, size = 0x12000, scoped, tag = 'internal scratch']
  #allocation2 [shape = 'f32[2,2048]{1,0:T(2,128)}', space=vmem, size = 0x4000, scoped, tag = 'scratch operand']
  %s0 = inlined_call_operand.vmem [shape: f32[2,1024], index: 0, kind: input, shape index: {}]
  %s1 = inlined_call_operand.hbm [shape: bf16[1024,2048], index: 1, kind: input, shape index: {}]
  %s2 = inlined_call_operand.hbm [shape: f32[1,2048], index: 2, kind: input, shape index: {}]
  %s3 = inlined_call_operand.hbm [shape: bf16[2048,256], index: 3, kind: input, shape index: {}]
  %s4 = inlined_call_operand.hbm [shape: f32[1,256], index: 4, kind: input, shape index: {}]
  %s5 = inlined_call_operand.vmem [shape: f32[2,256], index: 5, kind: output, shape index: {0}]
  %s6 = inlined_call_operand.hbm [shape: bf16[2,2048], index: 6, kind: output, shape index: {1}]
  %7 = xla_tuple %s5, %s6
  %s8 = sld [smem:[#allocation0]]
  $region62: #{pu_iic_net_forward.1} parent=0
    _
  %s10 = ssub.s32 1, %s8
  %s11 = scalar_select 0, %s10, %s8
  $region1: #{pu_iic_net_forward.1} parent=0
    #allocation3 [shape = 'u8[4194304]{0}', space=vmem, size = 0x400000, scoped, tag = 'input window, operand 1, single buffered']
    #allocation4 [shape = 's32[1]{0}', space=sflag, size = 0x4, scoped, tag = 'scoped memory for pu_iic_net_forward.1']
    #allocation5 [shape = 's32[1]{0}', space=sflag, size = 0x4, scoped, tag = 'scoped memory for pu_iic_net_forward.1']
    #allocation6 [shape = 'u8[8192]{0}', space=vmem, size = 0x2000, scoped, tag = 'input window, operand 2, single buffered']
    #allocation7 [shape = 's32[1]{0}', space=sflag, size = 0x4, scoped, tag = 'scoped memory for pu_iic_net_forward.1']
    #allocation8 [shape = 'u8[1048576]{0}', space=vmem, size = 0x100000, scoped, tag = 'input window, operand 3, single buffered']
    #allocation9 [shape = 'u8[1024]{0}', space=vmem, size = 0x400, scoped, tag = 'input window, operand 4, single buffered']
    #allocation10 [shape = 's32[1]{0}', space=sflag, size = 0x4, scoped, tag = 'scoped memory for pu_iic_net_forward.1']
    #allocation11 [shape = 'u8[8192]{0}', space=vmem, size = 0x2000, scoped, tag = 'output window, operand 1, single buffered']
    %12 = vsyncpa [#allocation4], 0
    %13 = vsyncpa [#allocation7], 0
    %14 = vsyncpa [#allocation10], 0
    %15 = vsyncpa [#allocation5], 0
    // Predicated region
    $region2: #{pu_iic_net_forward.1} parent=1 // pred_check
      _
    $region3: #{pu_iic_net_forward.1} parent=1 // pred_check_branch
      %17 = sbr.rel (0) target = $region5
    $region4: #{pu_iic_net_forward.1} parent=1 // pred_region
      _
    $region5: #{pu_iic_net_forward.1} parent=1 // pred_fallthru
      _
    // Predicated region
    $region6: #{pu_iic_net_forward.1} parent=1 // pred_check
      _
    $region7: #{pu_iic_net_forward.1} parent=1 // pred_check_branch
      %19 = sbr.rel (0) target = $region9
    $region8: #{pu_iic_net_forward.1} parent=1 // pred_region
      %s21 = ssub.s32 131072, 131072
      %22 = vsyncadd [#allocation4], %s21
      %s23 = sshll.u32 [#allocation3], 4
      %s24 = int_to_ptr.vmem [resolvable:$true] %s23
      %29 = dma.hbm_to_vmem [thread:$0]  %s1, 131072, %s24, [#allocation4], 1024, 1024, 64
    $region9: #{pu_iic_net_forward.1} parent=1 // pred_fallthru
      _
    // Predicated region
    $region10: #{pu_iic_net_forward.1} parent=1 // pred_check
      _
    $region11: #{pu_iic_net_forward.1} parent=1 // pred_check_branch
      %31 = sbr.rel (0) target = $region13
    $region12: #{pu_iic_net_forward.1} parent=1 // pred_region
      %s33 = ssub.s32 256, 256
      %34 = vsyncadd [#allocation7], %s33
      %s36 = sshll.u32 [#allocation6], 4
      %s37 = int_to_ptr.vmem [resolvable:$true] %s36
      %39 = dma.hbm_to_vmem [thread:$0]  %s2, 256, %s37, [#allocation7]
    $region13: #{pu_iic_net_forward.1} parent=1 // pred_fallthru
      _
    // Predicated region
    $region14: #{pu_iic_net_forward.1} parent=1 // pred_check
      _
    $region15: #{pu_iic_net_forward.1} parent=1 // pred_check_branch
      %41 = sbr.rel (0) target = $region17
    $region16: #{pu_iic_net_forward.1} parent=1 // pred_region
      %s43 = ssub.s32 32768, 32768
      %44 = vsyncadd [#allocation7], %s43
      %s45 = sshll.u32 [#allocation8], 4
      %s46 = int_to_ptr.vmem [resolvable:$true] %s45
      %51 = dma.hbm_to_vmem [thread:$0]  %s3, 32768, %s46, [#allocation7], 128, 128, 8
    $region17: #{pu_iic_net_forward.1} parent=1 // pred_fallthru
      _
    // Predicated region
    $region18: #{pu_iic_net_forward.1} parent=1 // pred_check
      _
    $region19: #{pu_iic_net_forward.1} parent=1 // pred_check_branch
      %53 = sbr.rel (0) target = $region21
    $region20: #{pu_iic_net_forward.1} parent=1 // pred_region
      %s55 = ssub.s32 32, 32
      %56 = vsyncadd [#allocation10], %s55
      %s58 = sshll.u32 [#allocation9], 4
      %s59 = int_to_ptr.vmem [resolvable:$true] %s58
      %61 = dma.hbm_to_vmem [thread:$0]  %s4, 32, %s59, [#allocation10]
    $region21: #{pu_iic_net_forward.1} parent=1 // pred_fallthru
      _
    // Predicated region
    $region22: #{pu_iic_net_forward.1} parent=1 // pred_check
      _
    $region23: #{pu_iic_net_forward.1} parent=1 // pred_check_branch
      %63 = sbr.rel (0) target = $region25
    $region24: #{pu_iic_net_forward.1} parent=1 // pred_region
      %64 = dma.done [#allocation4], 131072
    $region25: #{pu_iic_net_forward.1} parent=1 // pred_fallthru
      _
    // Predicated region
    $region26: #{pu_iic_net_forward.1} parent=1 // pred_check
      _
    $region27: #{pu_iic_net_forward.1} parent=1 // pred_check_branch
      %66 = sbr.rel (0) target = $region29
    $region28: #{pu_iic_net_forward.1} parent=1 // pred_region
      %67 = dma.done [#allocation7], 256
    $region29: #{pu_iic_net_forward.1} parent=1 // pred_fallthru
      _
    // Predicated region
    $region30: #{pu_iic_net_forward.1} parent=1 // pred_check
      _
    $region31: #{pu_iic_net_forward.1} parent=1 // pred_check_branch
      %69 = sbr.rel (0) target = $region33
    $region32: #{pu_iic_net_forward.1} parent=1 // pred_region
      %70 = dma.done [#allocation7], 32768
    $region33: #{pu_iic_net_forward.1} parent=1 // pred_fallthru
      _
    // Predicated region
    $region34: #{pu_iic_net_forward.1} parent=1 // pred_check
      _
    $region35: #{pu_iic_net_forward.1} parent=1 // pred_check_branch
      %72 = sbr.rel (0) target = $region37
    $region36: #{pu_iic_net_forward.1} parent=1 // pred_region
      %73 = dma.done [#allocation10], 32
    $region37: #{pu_iic_net_forward.1} parent=1 // pred_fallthru
      _
    %p74 = scmp.eq.s32.totalorder 0, 0
    // Predicated region
    $region38: #{pu_iic_net_forward.1} parent=1 // pred_check
      %p75 = pneg %p74
    $region39: #{pu_iic_net_forward.1} parent=1 // pred_check_branch
      %77 = sbr.rel (%p75) target = $region41
    $region40: #{pu_iic_net_forward.1} parent=1 // pred_region
      %78 = vst [vmem:[#allocation2] sm:$0xff] 0.0
      %79 = vst [vmem:[#allocation2 + $0x8] sm:$0xff] 0.0
      %80 = vst [vmem:[#allocation2 + $0x10] sm:$0xff] 0.0
      %81 = vst [vmem:[#allocation2 + $0x18] sm:$0xff] 0.0
    $region41: #{pu_iic_net_forward.1} parent=1 // pred_fallthru
      _
    %v82 = vld [vmem:[#allocation2] sm:$0xff]
    %v83 = vld [vmem:[#allocation2 + $0x8] sm:$0xff]
    %v84 = vld [vmem:[#allocation2 + $0x10] sm:$0xff]
    %v85 = vld [vmem:[#allocation2 + $0x18] sm:$0xff]
    %v86 = vld [vmem:[%s0] sm:$0xff]
    %v87 = vld [vmem:[%s0 + $0x8] sm:$0xff]
    %v90 = vcombine.high %v86, %v86
    %v92 = vunpack.c.l.s4 1983009808
    %v93 = vunpack.c.0.s8 %v92
    %v94 = vlaneseq
    %v95 = vshrl.u32 %v94, 7
    %v96 = vsub.s32 %v93, %v95
    %v97 = vrot.slane %v86, %v96
    %v99 = vunpack.c.l.s4 1983009808
    %v100 = vunpack.c.0.s8 %v99
    %v101 = vlaneseq
    %v102 = vshrl.u32 %v101, 7
    %v103 = vsub.s32 %v100, %v102
    %v104 = vrot.slane %v90, %v103
    %v105 = vcombine.high %v97, %v97
    %v106 = vcombine.high %v104, %v104
    %v107 = vcombine.high %v87, %v87
    %v109 = vunpack.c.l.s4 1983009808
    %v110 = vunpack.c.0.s8 %v109
    %v111 = vlaneseq
    %v112 = vshrl.u32 %v111, 7
    %v113 = vsub.s32 %v110, %v112
    %v114 = vrot.slane %v87, %v113
    %v116 = vunpack.c.l.s4 1983009808
    %v117 = vunpack.c.0.s8 %v116
    %v118 = vlaneseq
    %v119 = vshrl.u32 %v118, 7
    %v120 = vsub.s32 %v117, %v119
    %v121 = vrot.slane %v107, %v120
    %v122 = vcombine.high %v114, %v114
    %v123 = vcombine.high %v121, %v121
    %v132 = vpack.c.bf16 %v97, %v97
    %v133 = vpack.c.bf16 %v105, %v105
    %v134 = vpack.c.bf16 %v104, %v104
    %v135 = vpack.c.bf16 %v106, %v106
    %v136 = vpack.c.bf16 %v114, %v114
    %v137 = vpack.c.bf16 %v122, %v122
    %v138 = vpack.c.bf16 %v121, %v121
    %v139 = vpack.c.bf16 %v123, %v123
    %v140 = vld [vmem:[#allocation3] sm:$0xff]
    %v141 = vld [vmem:[#allocation3 + $0x8] sm:$0xff]
    %v142 = vld [vmem:[#allocation3 + $0x10] sm:$0xff]
    %v143 = vld [vmem:[#allocation3 + $0x18] sm:$0xff]
    %v144 = vld [vmem:[#allocation3 + $0x20] sm:$0xff]
    %v145 = vld [vmem:[#allocation3 + $0x28] sm:$0xff]
    %v146 = vld [vmem:[#allocation3 + $0x30] sm:$0xff]
    %v147 = vld [vmem:[#allocation3 + $0x38] sm:$0xff]
    %v148 = vld [vmem:[#allocation3 + $0x40] sm:$0xff]
    %v149 = vld [vmem:[#allocation3 + $0x48] sm:$0xff]
    %v150 = vld [vmem:[#allocation3 + $0x50] sm:$0xff]
    %v151 = vld [vmem:[#allocation3 + $0x58] sm:$0xff]
    %v152 = vld [vmem:[#allocation3 + $0x60] sm:$0xff]
    %v153 = vld [vmem:[#allocation3 + $0x68] sm:$0xff]
    %v154 = vld [vmem:[#allocation3 + $0x70] sm:$0xff]
    %v155 = vld [vmem:[#allocation3 + $0x78] sm:$0xff]
    %v156 = vld [vmem:[#allocation3 + $0x80] sm:$0xff]
    %v157 = vld [vmem:[#allocation3 + $0x88] sm:$0xff]
    %v158 = vld [vmem:[#allocation3 + $0x90] sm:$0xff]
    %v159 = vld [vmem:[#allocation3 + $0x98] sm:$0xff]
    %v160 = vld [vmem:[#allocation3 + $0xa0] sm:$0xff]
    %v161 = vld [vmem:[#allocation3 + $0xa8] sm:$0xff]
    %v162 = vld [vmem:[#allocation3 + $0xb0] sm:$0xff]
    %v163 = vld [vmem:[#allocation3 + $0xb8] sm:$0xff]
    %v164 = vld [vmem:[#allocation3 + $0xc0] sm:$0xff]
    %v165 = vld [vmem:[#allocation3 + $0xc8] sm:$0xff]
    %v166 = vld [vmem:[#allocation3 + $0xd0] sm:$0xff]
    %v167 = vld [vmem:[#allocation3 + $0xd8] sm:$0xff]
    %v168 = vld [vmem:[#allocation3 + $0xe0] sm:$0xff]
    %v169 = vld [vmem:[#allocation3 + $0xe8] sm:$0xff]
    %v170 = vld [vmem:[#allocation3 + $0xf0] sm:$0xff]
    %v171 = vld [vmem:[#allocation3 + $0xf8] sm:$0xff]
    %v172 = vld [vmem:[#allocation3 + $0x100] sm:$0xff]
    %v173 = vld [vmem:[#allocation3 + $0x108] sm:$0xff]
    %v174 = vld [vmem:[#allocation3 + $0x110] sm:$0xff]
    %v175 = vld [vmem:[#allocation3 + $0x118] sm:$0xff]
    %v176 = vld [vmem:[#allocation3 + $0x120] sm:$0xff]
    %v177 = vld [vmem:[#allocation3 + $0x128] sm:$0xff]
    %v178 = vld [vmem:[#allocation3 + $0x130] sm:$0xff]
    %v179 = vld [vmem:[#allocation3 + $0x138] sm:$0xff]
    %v180 = vld [vmem:[#allocation3 + $0x140] sm:$0xff]
    %v181 = vld [vmem:[#allocation3 + $0x148] sm:$0xff]
    %v182 = vld [vmem:[#allocation3 + $0x150] sm:$0xff]
    %v183 = vld [vmem:[#allocation3 + $0x158] sm:$0xff]
    %v184 = vld [vmem:[#allocation3 + $0x160] sm:$0xff]
    %v185 = vld [vmem:[#allocation3 + $0x168] sm:$0xff]
    %v186 = vld [vmem:[#allocation3 + $0x170] sm:$0xff]
    %v187 = vld [vmem:[#allocation3 + $0x178] sm:$0xff]
    %v188 = vld [vmem:[#allocation3 + $0x180] sm:$0xff]
    %v189 = vld [vmem:[#allocation3 + $0x188] sm:$0xff]
    %v190 = vld [vmem:[#allocation3 + $0x190] sm:$0xff]
    %v191 = vld [vmem:[#allocation3 + $0x198] sm:$0xff]
    %v192 = vld [vmem:[#allocation3 + $0x1a0] sm:$0xff]
    %v193 = vld [vmem:[#allocation3 + $0x1a8] sm:$0xff]
    %v194 = vld [vmem:[#allocation3 + $0x1b0] sm:$0xff]
    %v195 = vld [vmem:[#allocation3 + $0x1b8] sm:$0xff]
    %v196 = vld [vmem:[#allocation3 + $0x1c0] sm:$0xff]
    %v197 = vld [vmem:[#allocation3 + $0x1c8] sm:$0xff]
    %v198 = vld [vmem:[#allocation3 + $0x1d0] sm:$0xff]
    %v199 = vld [vmem:[#allocation3 + $0x1d8] sm:$0xff]
    %v200 = vld [vmem:[#allocation3 + $0x1e0] sm:$0xff]
    %v201 = vld [vmem:[#allocation3 + $0x1e8] sm:$0xff]
    %v202 = vld [vmem:[#allocation3 + $0x1f0] sm:$0xff]
    %v203 = vld [vmem:[#allocation3 + $0x1f8] sm:$0xff]
    %v204 = vld [vmem:[#allocation3 + $0x200] sm:$0xff]
    %v205 = vld [vmem:[#allocation3 + $0x208] sm:$0xff]
    %v206 = vld [vmem:[#allocation3 + $0x210] sm:$0xff]
    %v207 = vld [vmem:[#allocation3 + $0x218] sm:$0xff]
    %v208 = vld [vmem:[#allocation3 + $0x220] sm:$0xff]
    %v209 = vld [vmem:[#allocation3 + $0x228] sm:$0xff]
    %v210 = vld [vmem:[#allocation3 + $0x230] sm:$0xff]
    %v211 = vld [vmem:[#allocation3 + $0x238] sm:$0xff]
    %v212 = vld [vmem:[#allocation3 + $0x240] sm:$0xff]
    %v213 = vld [vmem:[#allocation3 + $0x248] sm:$0xff]
    %v214 = vld [vmem:[#allocation3 + $0x250] sm:$0xff]
    %v215 = vld [vmem:[#allocation3 + $0x258] sm:$0xff]
    %v216 = vld [vmem:[#allocation3 + $0x260] sm:$0xff]
    %v217 = vld [vmem:[#allocation3 + $0x268] sm:$0xff]
    %v218 = vld [vmem:[#allocation3 + $0x270] sm:$0xff]
    %v219 = vld [vmem:[#allocation3 + $0x278] sm:$0xff]
    %v220 = vld [vmem:[#allocation3 + $0x280] sm:$0xff]
    %v221 = vld [vmem:[#allocation3 + $0x288] sm:$0xff]
    %v222 = vld [vmem:[#allocation3 + $0x290] sm:$0xff]
    %v223 = vld [vmem:[#allocation3 + $0x298] sm:$0xff]
    %v224 = vld [vmem:[#allocation3 + $0x2a0] sm:$0xff]
    %v225 = vld [vmem:[#allocation3 + $0x2a8] sm:$0xff]
    %v226 = vld [vmem:[#allocation3 + $0x2b0] sm:$0xff]
    %v227 = vld [vmem:[#allocation3 + $0x2b8] sm:$0xff]
    %v228 = vld [vmem:[#allocation3 + $0x2c0] sm:$0xff]
    %v229 = vld [vmem:[#allocation3 + $0x2c8] sm:$0xff]
    %v230 = vld [vmem:[#allocation3 + $0x2d0] sm:$0xff]
    %v231 = vld [vmem:[#allocation3 + $0x2d8] sm:$0xff]
    %v232 = vld [vmem:[#allocation3 + $0x2e0] sm:$0xff]
    %v233 = vld [vmem:[#allocation3 + $0x2e8] sm:$0xff]
    %v234 = vld [vmem:[#allocation3 + $0x2f0] sm:$0xff]
    %v235 = vld [vmem:[#allocation3 + $0x2f8] sm:$0xff]
    %v236 = vld [vmem:[#allocation3 + $0x300] sm:$0xff]
    %v237 = vld [vmem:[#allocation3 + $0x308] sm:$0xff]
    %v238 = vld [vmem:[#allocation3 + $0x310] sm:$0xff]
    %v239 = vld [vmem:[#allocation3 + $0x318] sm:$0xff]
    %v240 = vld [vmem:[#allocation3 + $0x320] sm:$0xff]
    %v241 = vld [vmem:[#allocation3 + $0x328] sm:$0xff]
    %v242 = vld [vmem:[#allocation3 + $0x330] sm:$0xff]
    %v243 = vld [vmem:[#allocation3 + $0x338] sm:$0xff]
    %v244 = vld [vmem:[#allocation3 + $0x340] sm:$0xff]
    %v245 = vld [vmem:[#allocation3 + $0x348] sm:$0xff]
    %v246 = vld [vmem:[#allocation3 + $0x350] sm:$0xff]
    %v247 = vld [vmem:[#allocation3 + $0x358] sm:$0xff]
    %v248 = vld [vmem:[#allocation3 + $0x360] sm:$0xff]
    %v249 = vld [vmem:[#allocation3 + $0x368] sm:$0xff]
    %v250 = vld [vmem:[#allocation3 + $0x370] sm:$0xff]
    %v251 = vld [vmem:[#allocation3 + $0x378] sm:$0xff]
    %v252 = vld [vmem:[#allocation3 + $0x380] sm:$0xff]
    %v253 = vld [vmem:[#allocation3 + $0x388] sm:$0xff]
    %v254 = vld [vmem:[#allocation3 + $0x390] sm:$0xff]
    %v255 = vld [vmem:[#allocation3 + $0x398] sm:$0xff]
    %v256 = vld [vmem:[#allocation3 + $0x3a0] sm:$0xff]
    %v257 = vld [vmem:[#allocation3 + $0x3a8] sm:$0xff]
    %v258 = vld [vmem:[#allocation3 + $0x3b0] sm:$0xff]
    %v259 = vld [vmem:[#allocation3 + $0x3b8] sm:$0xff]
    %v260 = vld [vmem:[#allocation3 + $0x3c0] sm:$0xff]
    %v261 = vld [vmem:[#allocation3 + $0x3c8] sm:$0xff]
    %v262 = vld [vmem:[#allocation3 + $0x3d0] sm:$0xff]
    %v263 = vld [vmem:[#allocation3 + $0x3d8] sm:$0xff]
    %v264 = vld [vmem:[#allocation3 + $0x3e0] sm:$0xff]
    %v265 = vld [vmem:[#allocation3 + $0x3e8] sm:$0xff]
    %v266 = vld [vmem:[#allocation3 + $0x3f0] sm:$0xff]
    %v267 = vld [vmem:[#allocation3 + $0x3f8] sm:$0xff]
    %v268 = vld [vmem:[#allocation3 + $0x400] sm:$0xff]
    %v269 = vld [vmem:[#allocation3 + $0x408] sm:$0xff]
    %v270 = vld [vmem:[#allocation3 + $0x410] sm:$0xff]
    %v271 = vld [vmem:[#allocation3 + $0x418] sm:$0xff]
    %v272 = vld [vmem:[#allocation3 + $0x420] sm:$0xff]
    %v273 = vld [vmem:[#allocation3 + $0x428] sm:$0xff]
    %v274 = vld [vmem:[#allocation3 + $0x430] sm:$0xff]
    %v275 = vld [vmem:[#allocation3 + $0x438] sm:$0xff]
    %v276 = vld [vmem:[#allocation3 + $0x440] sm:$0xff]
    %v277 = vld [vmem:[#allocation3 + $0x448] sm:$0xff]
    %v278 = vld [vmem:[#allocation3 + $0x450] sm:$0xff]
    %v279 = vld [vmem:[#allocation3 + $0x458] sm:$0xff]
    %v280 = vld [vmem:[#allocation3 + $0x460] sm:$0xff]
    %v281 = vld [vmem:[#allocation3 + $0x468] sm:$0xff]
    %v282 = vld [vmem:[#allocation3 + $0x470] sm:$0xff]
    %v283 = vld [vmem:[#allocation3 + $0x478] sm:$0xff]
    %v284 = vld [vmem:[#allocation3 + $0x480] sm:$0xff]
    %v285 = vld [vmem:[#allocation3 + $0x488] sm:$0xff]
    %v286 = vld [vmem:[#allocation3 + $0x490] sm:$0xff]
    %v287 = vld [vmem:[#allocation3 + $0x498] sm:$0xff]
    %v288 = vld [vmem:[#allocation3 + $0x4a0] sm:$0xff]
    %v289 = vld [vmem:[#allocation3 + $0x4a8] sm:$0xff]
    %v290 = vld [vmem:[#allocation3 + $0x4b0] sm:$0xff]
    %v291 = vld [vmem:[#allocation3 + $0x4b8] sm:$0xff]
    %v292 = vld [vmem:[#allocation3 + $0x4c0] sm:$0xff]
    %v293 = vld [vmem:[#allocation3 + $0x4c8] sm:$0xff]
    %v294 = vld [vmem:[#allocation3 + $0x4d0] sm:$0xff]
    %v295 = vld [vmem:[#allocation3 + $0x4d8] sm:$0xff]
    %v296 = vld [vmem:[#allocation3 + $0x4e0] sm:$0xff]
    %v297 = vld [vmem:[#allocation3 + $0x4e8] sm:$0xff]
    %v298 = vld [vmem:[#allocation3 + $0x4f0] sm:$0xff]
    %v299 = vld [vmem:[#allocation3 + $0x4f8] sm:$0xff]
    %v300 = vld [vmem:[#allocation3 + $0x500] sm:$0xff]
    %v301 = vld [vmem:[#allocation3 + $0x508] sm:$0xff]
    %v302 = vld [vmem:[#allocation3 + $0x510] sm:$0xff]
    %v303 = vld [vmem:[#allocation3 + $0x518] sm:$0xff]
    %v304 = vld [vmem:[#allocation3 + $0x520] sm:$0xff]
    %v305 = vld [vmem:[#allocation3 + $0x528] sm:$0xff]
    %v306 = vld [vmem:[#allocation3 + $0x530] sm:$0xff]
    %v307 = vld [vmem:[#allocation3 + $0x538] sm:$0xff]
    %v308 = vld [vmem:[#allocation3 + $0x540] sm:$0xff]
    %v309 = vld [vmem:[#allocation3 + $0x548] sm:$0xff]
    %v310 = vld [vmem:[#allocation3 + $0x550] sm:$0xff]
    %v311 = vld [vmem:[#allocation3 + $0x558] sm:$0xff]
    %v312 = vld [vmem:[#allocation3 + $0x560] sm:$0xff]
    %v313 = vld [vmem:[#allocation3 + $0x568] sm:$0xff]
    %v314 = vld [vmem:[#allocation3 + $0x570] sm:$0xff]
    %v315 = vld [vmem:[#allocation3 + $0x578] sm:$0xff]
    %v316 = vld [vmem:[#allocation3 + $0x580] sm:$0xff]
    %v317 = vld [vmem:[#allocation3 + $0x588] sm:$0xff]
    %v318 = vld [vmem:[#allocation3 + $0x590] sm:$0xff]
    %v319 = vld [vmem:[#allocation3 + $0x598] sm:$0xff]
    %v320 = vld [vmem:[#allocation3 + $0x5a0] sm:$0xff]
    %v321 = vld [vmem:[#allocation3 + $0x5a8] sm:$0xff]
    %v322 = vld [vmem:[#allocation3 + $0x5b0] sm:$0xff]
    %v323 = vld [vmem:[#allocation3 + $0x5b8] sm:$0xff]
    %v324 = vld [vmem:[#allocation3 + $0x5c0] sm:$0xff]
    %v325 = vld [vmem:[#allocation3 + $0x5c8] sm:$0xff]
    %v326 = vld [vmem:[#allocation3 + $0x5d0] sm:$0xff]
    %v327 = vld [vmem:[#allocation3 + $0x5d8] sm:$0xff]
    %v328 = vld [vmem:[#allocation3 + $0x5e0] sm:$0xff]
    %v329 = vld [vmem:[#allocation3 + $0x5e8] sm:$0xff]
    %v330 = vld [vmem:[#allocation3 + $0x5f0] sm:$0xff]
    %v331 = vld [vmem:[#allocation3 + $0x5f8] sm:$0xff]
    %v332 = vld [vmem:[#allocation3 + $0x600] sm:$0xff]
    %v333 = vld [vmem:[#allocation3 + $0x608] sm:$0xff]
    %v334 = vld [vmem:[#allocation3 + $0x610] sm:$0xff]
    %v335 = vld [vmem:[#allocation3 + $0x618] sm:$0xff]
    %v336 = vld [vmem:[#allocation3 + $0x620] sm:$0xff]
    %v337 = vld [vmem:[#allocation3 + $0x628] sm:$0xff]
    %v338 = vld [vmem:[#allocation3 + $0x630] sm:$0xff]
    %v339 = vld [vmem:[#allocation3 + $0x638] sm:$0xff]
    %v340 = vld [vmem:[#allocation3 + $0x640] sm:$0xff]
    %v341 = vld [vmem:[#allocation3 + $0x648] sm:$0xff]
    %v342 = vld [vmem:[#allocation3 + $0x650] sm:$0xff]
    %v343 = vld [vmem:[#allocation3 + $0x658] sm:$0xff]
    %v344 = vld [vmem:[#allocation3 + $0x660] sm:$0xff]
    %v345 = vld [vmem:[#allocation3 + $0x668] sm:$0xff]
    %v346 = vld [vmem:[#allocation3 + $0x670] sm:$0xff]
    %v347 = vld [vmem:[#allocation3 + $0x678] sm:$0xff]
    %v348 = vld [vmem:[#allocation3 + $0x680] sm:$0xff]
    %v349 = vld [vmem:[#allocation3 + $0x688] sm:$0xff]
    %v350 = vld [vmem:[#allocation3 + $0x690] sm:$0xff]
    %v351 = vld [vmem:[#allocation3 + $0x698] sm:$0xff]
    %v352 = vld [vmem:[#allocation3 + $0x6a0] sm:$0xff]
    %v353 = vld [vmem:[#allocation3 + $0x6a8] sm:$0xff]
    %v354 = vld [vmem:[#allocation3 + $0x6b0] sm:$0xff]
    %v355 = vld [vmem:[#allocation3 + $0x6b8] sm:$0xff]
    %v356 = vld [vmem:[#allocation3 + $0x6c0] sm:$0xff]
    %v357 = vld [vmem:[#allocation3 + $0x6c8] sm:$0xff]
    %v358 = vld [vmem:[#allocation3 + $0x6d0] sm:$0xff]
    %v359 = vld [vmem:[#allocation3 + $0x6d8] sm:$0xff]
    %v360 = vld [vmem:[#allocation3 + $0x6e0] sm:$0xff]
    %v361 = vld [vmem:[#allocation3 + $0x6e8] sm:$0xff]
    %v362 = vld [vmem:[#allocation3 + $0x6f0] sm:$0xff]
    %v363 = vld [vmem:[#allocation3 + $0x6f8] sm:$0xff]
    %v364 = vld [vmem:[#allocation3 + $0x700] sm:$0xff]
    %v365 = vld [vmem:[#allocation3 + $0x708] sm:$0xff]
    %v366 = vld [vmem:[#allocation3 + $0x710] sm:$0xff]
    %v367 = vld [vmem:[#allocation3 + $0x718] sm:$0xff]
    %v368 = vld [vmem:[#allocation3 + $0x720] sm:$0xff]
    %v369 = vld [vmem:[#allocation3 + $0x728] sm:$0xff]
    %v370 = vld [vmem:[#allocation3 + $0x730] sm:$0xff]
    %v371 = vld [vmem:[#allocation3 + $0x738] sm:$0xff]
    %v372 = vld [vmem:[#allocation3 + $0x740] sm:$0xff]
    %v373 = vld [vmem:[#allocation3 + $0x748] sm:$0xff]
    %v374 = vld [vmem:[#allocation3 + $0x750] sm:$0xff]
    %v375 = vld [vmem:[#allocation3 + $0x758] sm:$0xff]
    %v376 = vld [vmem:[#allocation3 + $0x760] sm:$0xff]
    %v377 = vld [vmem:[#allocation3 + $0x768] sm:$0xff]
    %v378 = vld [vmem:[#allocation3 + $0x770] sm:$0xff]
    %v379 = vld [vmem:[#allocation3 + $0x778] sm:$0xff]
    %v380 = vld [vmem:[#allocation3 + $0x780] sm:$0xff]
    %v381 = vld [vmem:[#allocation3 + $0x788] sm:$0xff]
    %v382 = vld [vmem:[#allocation3 + $0x790] sm:$0xff]
    %v383 = vld [vmem:[#allocation3 + $0x798] sm:$0xff]
    %v384 = vld [vmem:[#allocation3 + $0x7a0] sm:$0xff]
    %v385 = vld [vmem:[#allocation3 + $0x7a8] sm:$0xff]
    %v386 = vld [vmem:[#allocation3 + $0x7b0] sm:$0xff]
    %v387 = vld [vmem:[#allocation3 + $0x7b8] sm:$0xff]
    %v388 = vld [vmem:[#allocation3 + $0x7c0] sm:$0xff]
    %v389 = vld [vmem:[#allocation3 + $0x7c8] sm:$0xff]
    %v390 = vld [vmem:[#allocation3 + $0x7d0] sm:$0xff]
    %v391 = vld [vmem:[#allocation3 + $0x7d8] sm:$0xff]
    %v392 = vld [vmem:[#allocation3 + $0x7e0] sm:$0xff]
    %v393 = vld [vmem:[#allocation3 + $0x7e8] sm:$0xff]
    %v394 = vld [vmem:[#allocation3 + $0x7f0] sm:$0xff]
    %v395 = vld [vmem:[#allocation3 + $0x7f8] sm:$0xff]
    %v396 = vld [vmem:[#allocation3 + $0x800] sm:$0xff]
    %v397 = vld [vmem:[#allocation3 + $0x808] sm:$0xff]
    %v398 = vld [vmem:[#allocation3 + $0x810] sm:$0xff]
    %v399 = vld [vmem:[#allocation3 + $0x818] sm:$0xff]
    %v400 = vld [vmem:[#allocation3 + $0x820] sm:$0xff]
    %v401 = vld [vmem:[#allocation3 + $0x828] sm:$0xff]
    %v402 = vld [vmem:[#allocation3 + $0x830] sm:$0xff]
    %v403 = vld [vmem:[#allocation3 + $0x838] sm:$0xff]
    %v404 = vld [vmem:[#allocation3 + $0x840] sm:$0xff]
    %v405 = vld [vmem:[#allocation3 + $0x848] sm:$0xff]
    %v406 = vld [vmem:[#allocation3 + $0x850] sm:$0xff]
    %v407 = vld [vmem:[#allocation3 + $0x858] sm:$0xff]
    %v408 = vld [vmem:[#allocation3 + $0x860] sm:$0xff]
    %v409 = vld [vmem:[#allocation3 + $0x868] sm:$0xff]
    %v410 = vld [vmem:[#allocation3 + $0x870] sm:$0xff]
    %v411 = vld [vmem:[#allocation3 + $0x878] sm:$0xff]
    %v412 = vld [vmem:[#allocation3 + $0x880] sm:$0xff]
    %v413 = vld [vmem:[#allocation3 + $0x888] sm:$0xff]
    %v414 = vld [vmem:[#allocation3 + $0x890] sm:$0xff]
    %v415 = vld [vmem:[#allocation3 + $0x898] sm:$0xff]
    %v416 = vld [vmem:[#allocation3 + $0x8a0] sm:$0xff]
    %v417 = vld [vmem:[#allocation3 + $0x8a8] sm:$0xff]
    %v418 = vld [vmem:[#allocation3 + $0x8b0] sm:$0xff]
    %v419 = vld [vmem:[#allocation3 + $0x8b8] sm:$0xff]
    %v420 = vld [vmem:[#allocation3 + $0x8c0] sm:$0xff]
    %v421 = vld [vmem:[#allocation3 + $0x8c8] sm:$0xff]
    %v422 = vld [vmem:[#allocation3 + $0x8d0] sm:$0xff]
    %v423 = vld [vmem:[#allocation3 + $0x8d8] sm:$0xff]
    %v424 = vld [vmem:[#allocation3 + $0x8e0] sm:$0xff]
    %v425 = vld [vmem:[#allocation3 + $0x8e8] sm:$0xff]
    %v426 = vld [vmem:[#allocation3 + $0x8f0] sm:$0xff]
    %v427 = vld [vmem:[#allocation3 + $0x8f8] sm:$0xff]
    %v428 = vld [vmem:[#allocation3 + $0x900] sm:$0xff]
    %v429 = vld [vmem:[#allocation3 + $0x908] sm:$0xff]
    %v430 = vld [vmem:[#allocation3 + $0x910] sm:$0xff]
    %v431 = vld [vmem:[#allocation3 + $0x918] sm:$0xff]
    %v432 = vld [vmem:[#allocation3 + $0x920] sm:$0xff]
    %v433 = vld [vmem:[#allocation3 + $0x928] sm:$0xff]
    %v434 = vld [vmem:[#allocation3 + $0x930] sm:$0xff]
    %v435 = vld [vmem:[#allocation3 + $0x938] sm:$0xff]
    %v436 = vld [vmem:[#allocation3 + $0x940] sm:$0xff]
    %v437 = vld [vmem:[#allocation3 + $0x948] sm:$0xff]
    %v438 = vld [vmem:[#allocation3 + $0x950] sm:$0xff]
    %v439 = vld [vmem:[#allocation3 + $0x958] sm:$0xff]
    %v440 = vld [vmem:[#allocation3 + $0x960] sm:$0xff]
    %v441 = vld [vmem:[#allocation3 + $0x968] sm:$0xff]
    %v442 = vld [vmem:[#allocation3 + $0x970] sm:$0xff]
    %v443 = vld [vmem:[#allocation3 + $0x978] sm:$0xff]
    %v444 = vld [vmem:[#allocation3 + $0x980] sm:$0xff]
    %v445 = vld [vmem:[#allocation3 + $0x988] sm:$0xff]
    %v446 = vld [vmem:[#allocation3 + $0x990] sm:$0xff]
    %v447 = vld [vmem:[#allocation3 + $0x998] sm:$0xff]
    %v448 = vld [vmem:[#allocation3 + $0x9a0] sm:$0xff]
    %v449 = vld [vmem:[#allocation3 + $0x9a8] sm:$0xff]
    %v450 = vld [vmem:[#allocation3 + $0x9b0] sm:$0xff]
    %v451 = vld [vmem:[#allocation3 + $0x9b8] sm:$0xff]
    %v452 = vld [vmem:[#allocation3 + $0x9c0] sm:$0xff]
    %v453 = vld [vmem:[#allocation3 + $0x9c8] sm:$0xff]
    %v454 = vld [vmem:[#allocation3 + $0x9d0] sm:$0xff]
    %v455 = vld [vmem:[#allocation3 + $0x9d8] sm:$0xff]
    %v456 = vld [vmem:[#allocation3 + $0x9e0] sm:$0xff]
    %v457 = vld [vmem:[#allocation3 + $0x9e8] sm:$0xff]
    %v458 = vld [vmem:[#allocation3 + $0x9f0] sm:$0xff]
    %v459 = vld [vmem:[#allocation3 + $0x9f8] sm:$0xff]
    %v460 = vld [vmem:[#allocation3 + $0xa00] sm:$0xff]
    %v461 = vld [vmem:[#allocation3 + $0xa08] sm:$0xff]
    %v462 = vld [vmem:[#allocation3 + $0xa10] sm:$0xff]
    %v463 = vld [vmem:[#allocation3 + $0xa18] sm:$0xff]
    %v464 = vld [vmem:[#allocation3 + $0xa20] sm:$0xff]
    %v465 = vld [vmem:[#allocation3 + $0xa28] sm:$0xff]
    %v466 = vld [vmem:[#allocation3 + $0xa30] sm:$0xff]
    %v467 = vld [vmem:[#allocation3 + $0xa38] sm:$0xff]
    %v468 = vld [vmem:[#allocation3 + $0xa40] sm:$0xff]
    %v469 = vld [vmem:[#allocation3 + $0xa48] sm:$0xff]
    %v470 = vld [vmem:[#allocation3 + $0xa50] sm:$0xff]
    %v471 = vld [vmem:[#allocation3 + $0xa58] sm:$0xff]
    %v472 = vld [vmem:[#allocation3 + $0xa60] sm:$0xff]
    %v473 = vld [vmem:[#allocation3 + $0xa68] sm:$0xff]
    %v474 = vld [vmem:[#allocation3 + $0xa70] sm:$0xff]
    %v475 = vld [vmem:[#allocation3 + $0xa78] sm:$0xff]
    %v476 = vld [vmem:[#allocation3 + $0xa80] sm:$0xff]
    %v477 = vld [vmem:[#allocation3 + $0xa88] sm:$0xff]
    %v478 = vld [vmem:[#allocation3 + $0xa90] sm:$0xff]
    %v479 = vld [vmem:[#allocation3 + $0xa98] sm:$0xff]
    %v480 = vld [vmem:[#allocation3 + $0xaa0] sm:$0xff]
    %v481 = vld [vmem:[#allocation3 + $0xaa8] sm:$0xff]
    %v482 = vld [vmem:[#allocation3 + $0xab0] sm:$0xff]
    %v483 = vld [vmem:[#allocation3 + $0xab8] sm:$0xff]
    %v484 = vld [vmem:[#allocation3 + $0xac0] sm:$0xff]
    %v485 = vld [vmem:[#allocation3 + $0xac8] sm:$0xff]
    %v486 = vld [vmem:[#allocation3 + $0xad0] sm:$0xff]
    %v487 = vld [vmem:[#allocation3 + $0xad8] sm:$0xff]
    %v488 = vld [vmem:[#allocation3 + $0xae0] sm:$0xff]
    %v489 = vld [vmem:[#allocation3 + $0xae8] sm:$0xff]
    %v490 = vld [vmem:[#allocation3 + $0xaf0] sm:$0xff]
    %v491 = vld [vmem:[#allocation3 + $0xaf8] sm:$0xff]
    %v492 = vld [vmem:[#allocation3 + $0xb00] sm:$0xff]
    %v493 = vld [vmem:[#allocation3 + $0xb08] sm:$0xff]
    %v494 = vld [vmem:[#allocation3 + $0xb10] sm:$0xff]
    %v495 = vld [vmem:[#allocation3 + $0xb18] sm:$0xff]
    %v496 = vld [vmem:[#allocation3 + $0xb20] sm:$0xff]
    %v497 = vld [vmem:[#allocation3 + $0xb28] sm:$0xff]
    %v498 = vld [vmem:[#allocation3 + $0xb30] sm:$0xff]
    %v499 = vld [vmem:[#allocation3 + $0xb38] sm:$0xff]
    %v500 = vld [vmem:[#allocation3 + $0xb40] sm:$0xff]
    %v501 = vld [vmem:[#allocation3 + $0xb48] sm:$0xff]
    %v502 = vld [vmem:[#allocation3 + $0xb50] sm:$0xff]
    %v503 = vld [vmem:[#allocation3 + $0xb58] sm:$0xff]
    %v504 = vld [vmem:[#allocation3 + $0xb60] sm:$0xff]
    %v505 = vld [vmem:[#allocation3 + $0xb68] sm:$0xff]
    %v506 = vld [vmem:[#allocation3 + $0xb70] sm:$0xff]
    %v507 = vld [vmem:[#allocation3 + $0xb78] sm:$0xff]
    %v508 = vld [vmem:[#allocation3 + $0xb80] sm:$0xff]
    %v509 = vld [vmem:[#allocation3 + $0xb88] sm:$0xff]
    %v510 = vld [vmem:[#allocation3 + $0xb90] sm:$0xff]
    %v511 = vld [vmem:[#allocation3 + $0xb98] sm:$0xff]
    %v512 = vld [vmem:[#allocation3 + $0xba0] sm:$0xff]
    %v513 = vld [vmem:[#allocation3 + $0xba8] sm:$0xff]
    %v514 = vld [vmem:[#allocation3 + $0xbb0] sm:$0xff]
    %v515 = vld [vmem:[#allocation3 + $0xbb8] sm:$0xff]
    %v516 = vld [vmem:[#allocation3 + $0xbc0] sm:$0xff]
    %v517 = vld [vmem:[#allocation3 + $0xbc8] sm:$0xff]
    %v518 = vld [vmem:[#allocation3 + $0xbd0] sm:$0xff]
    %v519 = vld [vmem:[#allocation3 + $0xbd8] sm:$0xff]
    %v520 = vld [vmem:[#allocation3 + $0xbe0] sm:$0xff]
    %v521 = vld [vmem:[#allocation3 + $0xbe8] sm:$0xff]
    %v522 = vld [vmem:[#allocation3 + $0xbf0] sm:$0xff]
    %v523 = vld [vmem:[#allocation3 + $0xbf8] sm:$0xff]
    %v524 = vld [vmem:[#allocation3 + $0xc00] sm:$0xff]
    %v525 = vld [vmem:[#allocation3 + $0xc08] sm:$0xff]
    %v526 = vld [vmem:[#allocation3 + $0xc10] sm:$0xff]
    %v527 = vld [vmem:[#allocation3 + $0xc18] sm:$0xff]
    %v528 = vld [vmem:[#allocation3 + $0xc20] sm:$0xff]
    %v529 = vld [vmem:[#allocation3 + $0xc28] sm:$0xff]
    %v530 = vld [vmem:[#allocation3 + $0xc30] sm:$0xff]
    %v531 = vld [vmem:[#allocation3 + $0xc38] sm:$0xff]
    %v532 = vld [vmem:[#allocation3 + $0xc40] sm:$0xff]
    %v533 = vld [vmem:[#allocation3 + $0xc48] sm:$0xff]
    %v534 = vld [vmem:[#allocation3 + $0xc50] sm:$0xff]
    %v535 = vld [vmem:[#allocation3 + $0xc58] sm:$0xff]
    %v536 = vld [vmem:[#allocation3 + $0xc60] sm:$0xff]
    %v537 = vld [vmem:[#allocation3 + $0xc68] sm:$0xff]
    %v538 = vld [vmem:[#allocation3 + $0xc70] sm:$0xff]
    %v539 = vld [vmem:[#allocation3 + $0xc78] sm:$0xff]
    %v540 = vld [vmem:[#allocation3 + $0xc80] sm:$0xff]
    %v541 = vld [vmem:[#allocation3 + $0xc88] sm:$0xff]
    %v542 = vld [vmem:[#allocation3 + $0xc90] sm:$0xff]
    %v543 = vld [vmem:[#allocation3 + $0xc98] sm:$0xff]
    %v544 = vld [vmem:[#allocation3 + $0xca0] sm:$0xff]
    %v545 = vld [vmem:[#allocation3 + $0xca8] sm:$0xff]
    %v546 = vld [vmem:[#allocation3 + $0xcb0] sm:$0xff]
    %v547 = vld [vmem:[#allocation3 + $0xcb8] sm:$0xff]
    %v548 = vld [vmem:[#allocation3 + $0xcc0] sm:$0xff]
    %v549 = vld [vmem:[#allocation3 + $0xcc8] sm:$0xff]
    %v550 = vld [vmem:[#allocation3 + $0xcd0] sm:$0xff]
    %v551 = vld [vmem:[#allocation3 + $0xcd8] sm:$0xff]
    %v552 = vld [vmem:[#allocation3 + $0xce0] sm:$0xff]
    %v553 = vld [vmem:[#allocation3 + $0xce8] sm:$0xff]
    %v554 = vld [vmem:[#allocation3 + $0xcf0] sm:$0xff]
    %v555 = vld [vmem:[#allocation3 + $0xcf8] sm:$0xff]
    %v556 = vld [vmem:[#allocation3 + $0xd00] sm:$0xff]
    %v557 = vld [vmem:[#allocation3 + $0xd08] sm:$0xff]
    %v558 = vld [vmem:[#allocation3 + $0xd10] sm:$0xff]
    %v559 = vld [vmem:[#allocation3 + $0xd18] sm:$0xff]
    %v560 = vld [vmem:[#allocation3 + $0xd20] sm:$0xff]
    %v561 = vld [vmem:[#allocation3 + $0xd28] sm:$0xff]
    %v562 = vld [vmem:[#allocation3 + $0xd30] sm:$0xff]
    %v563 = vld [vmem:[#allocation3 + $0xd38] sm:$0xff]
    %v564 = vld [vmem:[#allocation3 + $0xd40] sm:$0xff]
    %v565 = vld [vmem:[#allocation3 + $0xd48] sm:$0xff]
    %v566 = vld [vmem:[#allocation3 + $0xd50] sm:$0xff]
    %v567 = vld [vmem:[#allocation3 + $0xd58] sm:$0xff]
    %v568 = vld [vmem:[#allocation3 + $0xd60] sm:$0xff]
    %v569 = vld [vmem:[#allocation3 + $0xd68] sm:$0xff]
    %v570 = vld [vmem:[#allocation3 + $0xd70] sm:$0xff]
    %v571 = vld [vmem:[#allocation3 + $0xd78] sm:$0xff]
    %v572 = vld [vmem:[#allocation3 + $0xd80] sm:$0xff]
    %v573 = vld [vmem:[#allocation3 + $0xd88] sm:$0xff]
    %v574 = vld [vmem:[#allocation3 + $0xd90] sm:$0xff]
    %v575 = vld [vmem:[#allocation3 + $0xd98] sm:$0xff]
    %v576 = vld [vmem:[#allocation3 + $0xda0] sm:$0xff]
    %v577 = vld [vmem:[#allocation3 + $0xda8] sm:$0xff]
    %v578 = vld [vmem:[#allocation3 + $0xdb0] sm:$0xff]
    %v579 = vld [vmem:[#allocation3 + $0xdb8] sm:$0xff]
    %v580 = vld [vmem:[#allocation3 + $0xdc0] sm:$0xff]
    %v581 = vld [vmem:[#allocation3 + $0xdc8] sm:$0xff]
    %v582 = vld [vmem:[#allocation3 + $0xdd0] sm:$0xff]
    %v583 = vld [vmem:[#allocation3 + $0xdd8] sm:$0xff]
    %v584 = vld [vmem:[#allocation3 + $0xde0] sm:$0xff]
    %v585 = vld [vmem:[#allocation3 + $0xde8] sm:$0xff]
    %v586 = vld [vmem:[#allocation3 + $0xdf0] sm:$0xff]
    %v587 = vld [vmem:[#allocation3 + $0xdf8] sm:$0xff]
    %v588 = vld [vmem:[#allocation3 + $0xe00] sm:$0xff]
    %v589 = vld [vmem:[#allocation3 + $0xe08] sm:$0xff]
    %v590 = vld [vmem:[#allocation3 + $0xe10] sm:$0xff]
    %v591 = vld [vmem:[#allocation3 + $0xe18] sm:$0xff]
    %v592 = vld [vmem:[#allocation3 + $0xe20] sm:$0xff]
    %v593 = vld [vmem:[#allocation3 + $0xe28] sm:$0xff]
    %v594 = vld [vmem:[#allocation3 + $0xe30] sm:$0xff]
    %v595 = vld [vmem:[#allocation3 + $0xe38] sm:$0xff]
    %v596 = vld [vmem:[#allocation3 + $0xe40] sm:$0xff]
    %v597 = vld [vmem:[#allocation3 + $0xe48] sm:$0xff]
    %v598 = vld [vmem:[#allocation3 + $0xe50] sm:$0xff]
    %v599 = vld [vmem:[#allocation3 + $0xe58] sm:$0xff]
    %v600 = vld [vmem:[#allocation3 + $0xe60] sm:$0xff]
    %v601 = vld [vmem:[#allocation3 + $0xe68] sm:$0xff]
    %v602 = vld [vmem:[#allocation3 + $0xe70] sm:$0xff]
    %v603 = vld [vmem:[#allocation3 + $0xe78] sm:$0xff]
    %v604 = vld [vmem:[#allocation3 + $0xe80] sm:$0xff]
    %v605 = vld [vmem:[#allocation3 + $0xe88] sm:$0xff]
    %v606 = vld [vmem:[#allocation3 + $0xe90] sm:$0xff]
    %v607 = vld [vmem:[#allocation3 + $0xe98] sm:$0xff]
    %v608 = vld [vmem:[#allocation3 + $0xea0] sm:$0xff]
    %v609 = vld [vmem:[#allocation3 + $0xea8] sm:$0xff]
    %v610 = vld [vmem:[#allocation3 + $0xeb0] sm:$0xff]
    %v611 = vld [vmem:[#allocation3 + $0xeb8] sm:$0xff]
    %v612 = vld [vmem:[#allocation3 + $0xec0] sm:$0xff]
    %v613 = vld [vmem:[#allocation3 + $0xec8] sm:$0xff]
    %v614 = vld [vmem:[#allocation3 + $0xed0] sm:$0xff]
    %v615 = vld [vmem:[#allocation3 + $0xed8] sm:$0xff]
    %v616 = vld [vmem:[#allocation3 + $0xee0] sm:$0xff]
    %v617 = vld [vmem:[#allocation3 + $0xee8] sm:$0xff]
    %v618 = vld [vmem:[#allocation3 + $0xef0] sm:$0xff]
    %v619 = vld [vmem:[#allocation3 + $0xef8] sm:$0xff]
    %v620 = vld [vmem:[#allocation3 + $0xf00] sm:$0xff]
    %v621 = vld [vmem:[#allocation3 + $0xf08] sm:$0xff]
    %v622 = vld [vmem:[#allocation3 + $0xf10] sm:$0xff]
    %v623 = vld [vmem:[#allocation3 + $0xf18] sm:$0xff]
    %v624 = vld [vmem:[#allocation3 + $0xf20] sm:$0xff]
    %v625 = vld [vmem:[#allocation3 + $0xf28] sm:$0xff]
    %v626 = vld [vmem:[#allocation3 + $0xf30] sm:$0xff]
    %v627 = vld [vmem:[#allocation3 + $0xf38] sm:$0xff]
    %v628 = vld [vmem:[#allocation3 + $0xf40] sm:$0xff]
    %v629 = vld [vmem:[#allocation3 + $0xf48] sm:$0xff]
    %v630 = vld [vmem:[#allocation3 + $0xf50] sm:$0xff]
    %v631 = vld [vmem:[#allocation3 + $0xf58] sm:$0xff]
    %v632 = vld [vmem:[#allocation3 + $0xf60] sm:$0xff]
    %v633 = vld [vmem:[#allocation3 + $0xf68] sm:$0xff]
    %v634 = vld [vmem:[#allocation3 + $0xf70] sm:$0xff]
    %v635 = vld [vmem:[#allocation3 + $0xf78] sm:$0xff]
    %v636 = vld [vmem:[#allocation3 + $0xf80] sm:$0xff]
    %v637 = vld [vmem:[#allocation3 + $0xf88] sm:$0xff]
    %v638 = vld [vmem:[#allocation3 + $0xf90] sm:$0xff]
    %v639 = vld [vmem:[#allocation3 + $0xf98] sm:$0xff]
    %v640 = vld [vmem:[#allocation3 + $0xfa0] sm:$0xff]
    %v641 = vld [vmem:[#allocation3 + $0xfa8] sm:$0xff]
    %v642 = vld [vmem:[#allocation3 + $0xfb0] sm:$0xff]
    %v643 = vld [vmem:[#allocation3 + $0xfb8] sm:$0xff]
    %v644 = vld [vmem:[#allocation3 + $0xfc0] sm:$0xff]
    %v645 = vld [vmem:[#allocation3 + $0xfc8] sm:$0xff]
    %v646 = vld [vmem:[#allocation3 + $0xfd0] sm:$0xff]
    %v647 = vld [vmem:[#allocation3 + $0xfd8] sm:$0xff]
    %v648 = vld [vmem:[#allocation3 + $0xfe0] sm:$0xff]
    %v649 = vld [vmem:[#allocation3 + $0xfe8] sm:$0xff]
    %v650 = vld [vmem:[#allocation3 + $0xff0] sm:$0xff]
    %v651 = vld [vmem:[#allocation3 + $0xff8] sm:$0xff]
    %v652 = vld [vmem:[#allocation3 + $0x1000] sm:$0xff]
    %v653 = vld [vmem:[#allocation3 + $0x1008] sm:$0xff]
    %v654 = vld [vmem:[#allocation3 + $0x1010] sm:$0xff]
    %v655 = vld [vmem:[#allocation3 + $0x1018] sm:$0xff]
    %v656 = vld [vmem:[#allocation3 + $0x1020] sm:$0xff]
    %v657 = vld [vmem:[#allocation3 + $0x1028] sm:$0xff]
    %v658 = vld [vmem:[#allocation3 + $0x1030] sm:$0xff]
    %v659 = vld [vmem:[#allocation3 + $0x1038] sm:$0xff]
    %v660 = vld [vmem:[#allocation3 + $0x1040] sm:$0xff]
    %v661 = vld [vmem:[#allocation3 + $0x1048] sm:$0xff]
    %v662 = vld [vmem:[#allocation3 + $0x1050] sm:$0xff]
    %v663 = vld [vmem:[#allocation3 + $0x1058] sm:$0xff]
    %v664 = vld [vmem:[#allocation3 + $0x1060] sm:$0xff]
    %v665 = vld [vmem:[#allocation3 + $0x1068] sm:$0xff]
    %v666 = vld [vmem:[#allocation3 + $0x1070] sm:$0xff]
    %v667 = vld [vmem:[#allocation3 + $0x1078] sm:$0xff]
    %v668 = vld [vmem:[#allocation3 + $0x1080] sm:$0xff]
    %v669 = vld [vmem:[#allocation3 + $0x1088] sm:$0xff]
    %v670 = vld [vmem:[#allocation3 + $0x1090] sm:$0xff]
    %v671 = vld [vmem:[#allocation3 + $0x1098] sm:$0xff]
    %v672 = vld [vmem:[#allocation3 + $0x10a0] sm:$0xff]
    %v673 = vld [vmem:[#allocation3 + $0x10a8] sm:$0xff]
    %v674 = vld [vmem:[#allocation3 + $0x10b0] sm:$0xff]
    %v675 = vld [vmem:[#allocation3 + $0x10b8] sm:$0xff]
    %v676 = vld [vmem:[#allocation3 + $0x10c0] sm:$0xff]
    %v677 = vld [vmem:[#allocation3 + $0x10c8] sm:$0xff]
    %v678 = vld [vmem:[#allocation3 + $0x10d0] sm:$0xff]
    %v679 = vld [vmem:[#allocation3 + $0x10d8] sm:$0xff]
    %v680 = vld [vmem:[#allocation3 + $0x10e0] sm:$0xff]
    %v681 = vld [vmem:[#allocation3 + $0x10e8] sm:$0xff]
    %v682 = vld [vmem:[#allocation3 + $0x10f0] sm:$0xff]
    %v683 = vld [vmem:[#allocation3 + $0x10f8] sm:$0xff]
    %v684 = vld [vmem:[#allocation3 + $0x1100] sm:$0xff]
    %v685 = vld [vmem:[#allocation3 + $0x1108] sm:$0xff]
    %v686 = vld [vmem:[#allocation3 + $0x1110] sm:$0xff]
    %v687 = vld [vmem:[#allocation3 + $0x1118] sm:$0xff]
    %v688 = vld [vmem:[#allocation3 + $0x1120] sm:$0xff]
    %v689 = vld [vmem:[#allocation3 + $0x1128] sm:$0xff]
    %v690 = vld [vmem:[#allocation3 + $0x1130] sm:$0xff]
    %v691 = vld [vmem:[#allocation3 + $0x1138] sm:$0xff]
    %v692 = vld [vmem:[#allocation3 + $0x1140] sm:$0xff]
    %v693 = vld [vmem:[#allocation3 + $0x1148] sm:$0xff]
    %v694 = vld [vmem:[#allocation3 + $0x1150] sm:$0xff]
    %v695 = vld [vmem:[#allocation3 + $0x1158] sm:$0xff]
    %v696 = vld [vmem:[#allocation3 + $0x1160] sm:$0xff]
    %v697 = vld [vmem:[#allocation3 + $0x1168] sm:$0xff]
    %v698 = vld [vmem:[#allocation3 + $0x1170] sm:$0xff]
    %v699 = vld [vmem:[#allocation3 + $0x1178] sm:$0xff]
    %v700 = vld [vmem:[#allocation3 + $0x1180] sm:$0xff]
    %v701 = vld [vmem:[#allocation3 + $0x1188] sm:$0xff]
    %v702 = vld [vmem:[#allocation3 + $0x1190] sm:$0xff]
    %v703 = vld [vmem:[#allocation3 + $0x1198] sm:$0xff]
    %v704 = vld [vmem:[#allocation3 + $0x11a0] sm:$0xff]
    %v705 = vld [vmem:[#allocation3 + $0x11a8] sm:$0xff]
    %v706 = vld [vmem:[#allocation3 + $0x11b0] sm:$0xff]
    %v707 = vld [vmem:[#allocation3 + $0x11b8] sm:$0xff]
    %v708 = vld [vmem:[#allocation3 + $0x11c0] sm:$0xff]
    %v709 = vld [vmem:[#allocation3 + $0x11c8] sm:$0xff]
    %v710 = vld [vmem:[#allocation3 + $0x11d0] sm:$0xff]
    %v711 = vld [vmem:[#allocation3 + $0x11d8] sm:$0xff]
    %v712 = vld [vmem:[#allocation3 + $0x11e0] sm:$0xff]
    %v713 = vld [vmem:[#allocation3 + $0x11e8] sm:$0xff]
    %v714 = vld [vmem:[#allocation3 + $0x11f0] sm:$0xff]
    %v715 = vld [vmem:[#allocation3 + $0x11f8] sm:$0xff]
    %v716 = vld [vmem:[#allocation3 + $0x1200] sm:$0xff]
    %v717 = vld [vmem:[#allocation3 + $0x1208] sm:$0xff]
    %v718 = vld [vmem:[#allocation3 + $0x1210] sm:$0xff]
    %v719 = vld [vmem:[#allocation3 + $0x1218] sm:$0xff]
    %v720 = vld [vmem:[#allocation3 + $0x1220] sm:$0xff]
    %v721 = vld [vmem:[#allocation3 + $0x1228] sm:$0xff]
    %v722 = vld [vmem:[#allocation3 + $0x1230] sm:$0xff]
    %v723 = vld [vmem:[#allocation3 + $0x1238] sm:$0xff]
    %v724 = vld [vmem:[#allocation3 + $0x1240] sm:$0xff]
    %v725 = vld [vmem:[#allocation3 + $0x1248] sm:$0xff]
    %v726 = vld [vmem:[#allocation3 + $0x1250] sm:$0xff]
    %v727 = vld [vmem:[#allocation3 + $0x1258] sm:$0xff]
    %v728 = vld [vmem:[#allocation3 + $0x1260] sm:$0xff]
    %v729 = vld [vmem:[#allocation3 + $0x1268] sm:$0xff]
    %v730 = vld [vmem:[#allocation3 + $0x1270] sm:$0xff]
    %v731 = vld [vmem:[#allocation3 + $0x1278] sm:$0xff]
    %v732 = vld [vmem:[#allocation3 + $0x1280] sm:$0xff]
    %v733 = vld [vmem:[#allocation3 + $0x1288] sm:$0xff]
    %v734 = vld [vmem:[#allocation3 + $0x1290] sm:$0xff]
    %v735 = vld [vmem:[#allocation3 + $0x1298] sm:$0xff]
    %v736 = vld [vmem:[#allocation3 + $0x12a0] sm:$0xff]
    %v737 = vld [vmem:[#allocation3 + $0x12a8] sm:$0xff]
    %v738 = vld [vmem:[#allocation3 + $0x12b0] sm:$0xff]
    %v739 = vld [vmem:[#allocation3 + $0x12b8] sm:$0xff]
    %v740 = vld [vmem:[#allocation3 + $0x12c0] sm:$0xff]
    %v741 = vld [vmem:[#allocation3 + $0x12c8] sm:$0xff]
    %v742 = vld [vmem:[#allocation3 + $0x12d0] sm:$0xff]
    %v743 = vld [vmem:[#allocation3 + $0x12d8] sm:$0xff]
    %v744 = vld [vmem:[#allocation3 + $0x12e0] sm:$0xff]
    %v745 = vld [vmem:[#allocation3 + $0x12e8] sm:$0xff]
    %v746 = vld [vmem:[#allocation3 + $0x12f0] sm:$0xff]
    %v747 = vld [vmem:[#allocation3 + $0x12f8] sm:$0xff]
    %v748 = vld [vmem:[#allocation3 + $0x1300] sm:$0xff]
    %v749 = vld [vmem:[#allocation3 + $0x1308] sm:$0xff]
    %v750 = vld [vmem:[#allocation3 + $0x1310] sm:$0xff]
    %v751 = vld [vmem:[#allocation3 + $0x1318] sm:$0xff]
    %v752 = vld [vmem:[#allocation3 + $0x1320] sm:$0xff]
    %v753 = vld [vmem:[#allocation3 + $0x1328] sm:$0xff]
    %v754 = vld [vmem:[#allocation3 + $0x1330] sm:$0xff]
    %v755 = vld [vmem:[#allocation3 + $0x1338] sm:$0xff]
    %v756 = vld [vmem:[#allocation3 + $0x1340] sm:$0xff]
    %v757 = vld [vmem:[#allocation3 + $0x1348] sm:$0xff]
    %v758 = vld [vmem:[#allocation3 + $0x1350] sm:$0xff]
    %v759 = vld [vmem:[#allocation3 + $0x1358] sm:$0xff]
    %v760 = vld [vmem:[#allocation3 + $0x1360] sm:$0xff]
    %v761 = vld [vmem:[#allocation3 + $0x1368] sm:$0xff]
    %v762 = vld [vmem:[#allocation3 + $0x1370] sm:$0xff]
    %v763 = vld [vmem:[#allocation3 + $0x1378] sm:$0xff]
    %v764 = vld [vmem:[#allocation3 + $0x1380] sm:$0xff]
    %v765 = vld [vmem:[#allocation3 + $0x1388] sm:$0xff]
    %v766 = vld [vmem:[#allocation3 + $0x1390] sm:$0xff]
    %v767 = vld [vmem:[#allocation3 + $0x1398] sm:$0xff]
    %v768 = vld [vmem:[#allocation3 + $0x13a0] sm:$0xff]
    %v769 = vld [vmem:[#allocation3 + $0x13a8] sm:$0xff]
    %v770 = vld [vmem:[#allocation3 + $0x13b0] sm:$0xff]
    %v771 = vld [vmem:[#allocation3 + $0x13b8] sm:$0xff]
    %v772 = vld [vmem:[#allocation3 + $0x13c0] sm:$0xff]
    %v773 = vld [vmem:[#allocation3 + $0x13c8] sm:$0xff]
    %v774 = vld [vmem:[#allocation3 + $0x13d0] sm:$0xff]
    %v775 = vld [vmem:[#allocation3 + $0x13d8] sm:$0xff]
    %v776 = vld [vmem:[#allocation3 + $0x13e0] sm:$0xff]
    %v777 = vld [vmem:[#allocation3 + $0x13e8] sm:$0xff]
    %v778 = vld [vmem:[#allocation3 + $0x13f0] sm:$0xff]
    %v779 = vld [vmem:[#allocation3 + $0x13f8] sm:$0xff]
    %v780 = vld [vmem:[#allocation3 + $0x1400] sm:$0xff]
    %v781 = vld [vmem:[#allocation3 + $0x1408] sm:$0xff]
    %v782 = vld [vmem:[#allocation3 + $0x1410] sm:$0xff]
    %v783 = vld [vmem:[#allocation3 + $0x1418] sm:$0xff]
    %v784 = vld [vmem:[#allocation3 + $0x1420] sm:$0xff]
    %v785 = vld [vmem:[#allocation3 + $0x1428] sm:$0xff]
    %v786 = vld [vmem:[#allocation3 + $0x1430] sm:$0xff]
    %v787 = vld [vmem:[#allocation3 + $0x1438] sm:$0xff]
    %v788 = vld [vmem:[#allocation3 + $0x1440] sm:$0xff]
    %v789 = vld [vmem:[#allocation3 + $0x1448] sm:$0xff]
    %v790 = vld [vmem:[#allocation3 + $0x1450] sm:$0xff]
    %v791 = vld [vmem:[#allocation3 + $0x1458] sm:$0xff]
    %v792 = vld [vmem:[#allocation3 + $0x1460] sm:$0xff]
    %v793 = vld [vmem:[#allocation3 + $0x1468] sm:$0xff]
    %v794 = vld [vmem:[#allocation3 + $0x1470] sm:$0xff]
    %v795 = vld [vmem:[#allocation3 + $0x1478] sm:$0xff]
    %v796 = vld [vmem:[#allocation3 + $0x1480] sm:$0xff]
    %v797 = vld [vmem:[#allocation3 + $0x1488] sm:$0xff]
    %v798 = vld [vmem:[#allocation3 + $0x1490] sm:$0xff]
    %v799 = vld [vmem:[#allocation3 + $0x1498] sm:$0xff]
    %v800 = vld [vmem:[#allocation3 + $0x14a0] sm:$0xff]
    %v801 = vld [vmem:[#allocation3 + $0x14a8] sm:$0xff]
    %v802 = vld [vmem:[#allocation3 + $0x14b0] sm:$0xff]
    %v803 = vld [vmem:[#allocation3 + $0x14b8] sm:$0xff]
    %v804 = vld [vmem:[#allocation3 + $0x14c0] sm:$0xff]
    %v805 = vld [vmem:[#allocation3 + $0x14c8] sm:$0xff]
    %v806 = vld [vmem:[#allocation3 + $0x14d0] sm:$0xff]
    %v807 = vld [vmem:[#allocation3 + $0x14d8] sm:$0xff]
    %v808 = vld [vmem:[#allocation3 + $0x14e0] sm:$0xff]
    %v809 = vld [vmem:[#allocation3 + $0x14e8] sm:$0xff]
    %v810 = vld [vmem:[#allocation3 + $0x14f0] sm:$0xff]
    %v811 = vld [vmem:[#allocation3 + $0x14f8] sm:$0xff]
    %v812 = vld [vmem:[#allocation3 + $0x1500] sm:$0xff]
    %v813 = vld [vmem:[#allocation3 + $0x1508] sm:$0xff]
    %v814 = vld [vmem:[#allocation3 + $0x1510] sm:$0xff]
    %v815 = vld [vmem:[#allocation3 + $0x1518] sm:$0xff]
    %v816 = vld [vmem:[#allocation3 + $0x1520] sm:$0xff]
    %v817 = vld [vmem:[#allocation3 + $0x1528] sm:$0xff]
    %v818 = vld [vmem:[#allocation3 + $0x1530] sm:$0xff]
    %v819 = vld [vmem:[#allocation3 + $0x1538] sm:$0xff]
    %v820 = vld [vmem:[#allocation3 + $0x1540] sm:$0xff]
    %v821 = vld [vmem:[#allocation3 + $0x1548] sm:$0xff]
    %v822 = vld [vmem:[#allocation3 + $0x1550] sm:$0xff]
    %v823 = vld [vmem:[#allocation3 + $0x1558] sm:$0xff]
    %v824 = vld [vmem:[#allocation3 + $0x1560] sm:$0xff]
    %v825 = vld [vmem:[#allocation3 + $0x1568] sm:$0xff]
    %v826 = vld [vmem:[#allocation3 + $0x1570] sm:$0xff]
    %v827 = vld [vmem:[#allocation3 + $0x1578] sm:$0xff]
    %v828 = vld [vmem:[#allocation3 + $0x1580] sm:$0xff]
    %v829 = vld [vmem:[#allocation3 + $0x1588] sm:$0xff]
    %v830 = vld [vmem:[#allocation3 + $0x1590] sm:$0xff]
    %v831 = vld [vmem:[#allocation3 + $0x1598] sm:$0xff]
    %v832 = vld [vmem:[#allocation3 + $0x15a0] sm:$0xff]
    %v833 = vld [vmem:[#allocation3 + $0x15a8] sm:$0xff]
    %v834 = vld [vmem:[#allocation3 + $0x15b0] sm:$0xff]
    %v835 = vld [vmem:[#allocation3 + $0x15b8] sm:$0xff]
    %v836 = vld [vmem:[#allocation3 + $0x15c0] sm:$0xff]
    %v837 = vld [vmem:[#allocation3 + $0x15c8] sm:$0xff]
    %v838 = vld [vmem:[#allocation3 + $0x15d0] sm:$0xff]
    %v839 = vld [vmem:[#allocation3 + $0x15d8] sm:$0xff]
    %v840 = vld [vmem:[#allocation3 + $0x15e0] sm:$0xff]
    %v841 = vld [vmem:[#allocation3 + $0x15e8] sm:$0xff]
    %v842 = vld [vmem:[#allocation3 + $0x15f0] sm:$0xff]
    %v843 = vld [vmem:[#allocation3 + $0x15f8] sm:$0xff]
    %v844 = vld [vmem:[#allocation3 + $0x1600] sm:$0xff]
    %v845 = vld [vmem:[#allocation3 + $0x1608] sm:$0xff]
    %v846 = vld [vmem:[#allocation3 + $0x1610] sm:$0xff]
    %v847 = vld [vmem:[#allocation3 + $0x1618] sm:$0xff]
    %v848 = vld [vmem:[#allocation3 + $0x1620] sm:$0xff]
    %v849 = vld [vmem:[#allocation3 + $0x1628] sm:$0xff]
    %v850 = vld [vmem:[#allocation3 + $0x1630] sm:$0xff]
    %v851 = vld [vmem:[#allocation3 + $0x1638] sm:$0xff]
    %v852 = vld [vmem:[#allocation3 + $0x1640] sm:$0xff]
    %v853 = vld [vmem:[#allocation3 + $0x1648] sm:$0xff]
    %v854 = vld [vmem:[#allocation3 + $0x1650] sm:$0xff]
    %v855 = vld [vmem:[#allocation3 + $0x1658] sm:$0xff]
    %v856 = vld [vmem:[#allocation3 + $0x1660] sm:$0xff]
    %v857 = vld [vmem:[#allocation3 + $0x1668] sm:$0xff]
    %v858 = vld [vmem:[#allocation3 + $0x1670] sm:$0xff]
    %v859 = vld [vmem:[#allocation3 + $0x1678] sm:$0xff]
    %v860 = vld [vmem:[#allocation3 + $0x1680] sm:$0xff]
    %v861 = vld [vmem:[#allocation3 + $0x1688] sm:$0xff]
    %v862 = vld [vmem:[#allocation3 + $0x1690] sm:$0xff]
    %v863 = vld [vmem:[#allocation3 + $0x1698] sm:$0xff]
    %v864 = vld [vmem:[#allocation3 + $0x16a0] sm:$0xff]
    %v865 = vld [vmem:[#allocation3 + $0x16a8] sm:$0xff]
    %v866 = vld [vmem:[#allocation3 + $0x16b0] sm:$0xff]
    %v867 = vld [vmem:[#allocation3 + $0x16b8] sm:$0xff]
    %v868 = vld [vmem:[#allocation3 + $0x16c0] sm:$0xff]
    %v869 = vld [vmem:[#allocation3 + $0x16c8] sm:$0xff]
    %v870 = vld [vmem:[#allocation3 + $0x16d0] sm:$0xff]
    %v871 = vld [vmem:[#allocation3 + $0x16d8] sm:$0xff]
    %v872 = vld [vmem:[#allocation3 + $0x16e0] sm:$0xff]
    %v873 = vld [vmem:[#allocation3 + $0x16e8] sm:$0xff]
    %v874 = vld [vmem:[#allocation3 + $0x16f0] sm:$0xff]
    %v875 = vld [vmem:[#allocation3 + $0x16f8] sm:$0xff]
    %v876 = vld [vmem:[#allocation3 + $0x1700] sm:$0xff]
    %v877 = vld [vmem:[#allocation3 + $0x1708] sm:$0xff]
    %v878 = vld [vmem:[#allocation3 + $0x1710] sm:$0xff]
    %v879 = vld [vmem:[#allocation3 + $0x1718] sm:$0xff]
    %v880 = vld [vmem:[#allocation3 + $0x1720] sm:$0xff]
    %v881 = vld [vmem:[#allocation3 + $0x1728] sm:$0xff]
    %v882 = vld [vmem:[#allocation3 + $0x1730] sm:$0xff]
    %v883 = vld [vmem:[#allocation3 + $0x1738] sm:$0xff]
    %v884 = vld [vmem:[#allocation3 + $0x1740] sm:$0xff]
    %v885 = vld [vmem:[#allocation3 + $0x1748] sm:$0xff]
    %v886 = vld [vmem:[#allocation3 + $0x1750] sm:$0xff]
    %v887 = vld [vmem:[#allocation3 + $0x1758] sm:$0xff]
    %v888 = vld [vmem:[#allocation3 + $0x1760] sm:$0xff]
    %v889 = vld [vmem:[#allocation3 + $0x1768] sm:$0xff]
    %v890 = vld [vmem:[#allocation3 + $0x1770] sm:$0xff]
    %v891 = vld [vmem:[#allocation3 + $0x1778] sm:$0xff]
    %v892 = vld [vmem:[#allocation3 + $0x1780] sm:$0xff]
    %v893 = vld [vmem:[#allocation3 + $0x1788] sm:$0xff]
    %v894 = vld [vmem:[#allocation3 + $0x1790] sm:$0xff]
    %v895 = vld [vmem:[#allocation3 + $0x1798] sm:$0xff]
    %v896 = vld [vmem:[#allocation3 + $0x17a0] sm:$0xff]
    %v897 = vld [vmem:[#allocation3 + $0x17a8] sm:$0xff]
    %v898 = vld [vmem:[#allocation3 + $0x17b0] sm:$0xff]
    %v899 = vld [vmem:[#allocation3 + $0x17b8] sm:$0xff]
    %v900 = vld [vmem:[#allocation3 + $0x17c0] sm:$0xff]
    %v901 = vld [vmem:[#allocation3 + $0x17c8] sm:$0xff]
    %v902 = vld [vmem:[#allocation3 + $0x17d0] sm:$0xff]
    %v903 = vld [vmem:[#allocation3 + $0x17d8] sm:$0xff]
    %v904 = vld [vmem:[#allocation3 + $0x17e0] sm:$0xff]
    %v905 = vld [vmem:[#allocation3 + $0x17e8] sm:$0xff]
    %v906 = vld [vmem:[#allocation3 + $0x17f0] sm:$0xff]
    %v907 = vld [vmem:[#allocation3 + $0x17f8] sm:$0xff]
    %v908 = vld [vmem:[#allocation3 + $0x1800] sm:$0xff]
    %v909 = vld [vmem:[#allocation3 + $0x1808] sm:$0xff]
    %v910 = vld [vmem:[#allocation3 + $0x1810] sm:$0xff]
    %v911 = vld [vmem:[#allocation3 + $0x1818] sm:$0xff]
    %v912 = vld [vmem:[#allocation3 + $0x1820] sm:$0xff]
    %v913 = vld [vmem:[#allocation3 + $0x1828] sm:$0xff]
    %v914 = vld [vmem:[#allocation3 + $0x1830] sm:$0xff]
    %v915 = vld [vmem:[#allocation3 + $0x1838] sm:$0xff]
    %v916 = vld [vmem:[#allocation3 + $0x1840] sm:$0xff]
    %v917 = vld [vmem:[#allocation3 + $0x1848] sm:$0xff]
    %v918 = vld [vmem:[#allocation3 + $0x1850] sm:$0xff]
    %v919 = vld [vmem:[#allocation3 + $0x1858] sm:$0xff]
    %v920 = vld [vmem:[#allocation3 + $0x1860] sm:$0xff]
    %v921 = vld [vmem:[#allocation3 + $0x1868] sm:$0xff]
    %v922 = vld [vmem:[#allocation3 + $0x1870] sm:$0xff]
    %v923 = vld [vmem:[#allocation3 + $0x1878] sm:$0xff]
    %v924 = vld [vmem:[#allocation3 + $0x1880] sm:$0xff]
    %v925 = vld [vmem:[#allocation3 + $0x1888] sm:$0xff]
    %v926 = vld [vmem:[#allocation3 + $0x1890] sm:$0xff]
    %v927 = vld [vmem:[#allocation3 + $0x1898] sm:$0xff]
    %v928 = vld [vmem:[#allocation3 + $0x18a0] sm:$0xff]
    %v929 = vld [vmem:[#allocation3 + $0x18a8] sm:$0xff]
    %v930 = vld [vmem:[#allocation3 + $0x18b0] sm:$0xff]
    %v931 = vld [vmem:[#allocation3 + $0x18b8] sm:$0xff]
    %v932 = vld [vmem:[#allocation3 + $0x18c0] sm:$0xff]
    %v933 = vld [vmem:[#allocation3 + $0x18c8] sm:$0xff]
    %v934 = vld [vmem:[#allocation3 + $0x18d0] sm:$0xff]
    %v935 = vld [vmem:[#allocation3 + $0x18d8] sm:$0xff]
    %v936 = vld [vmem:[#allocation3 + $0x18e0] sm:$0xff]
    %v937 = vld [vmem:[#allocation3 + $0x18e8] sm:$0xff]
    %v938 = vld [vmem:[#allocation3 + $0x18f0] sm:$0xff]
    %v939 = vld [vmem:[#allocation3 + $0x18f8] sm:$0xff]
    %v940 = vld [vmem:[#allocation3 + $0x1900] sm:$0xff]
    %v941 = vld [vmem:[#allocation3 + $0x1908] sm:$0xff]
    %v942 = vld [vmem:[#allocation3 + $0x1910] sm:$0xff]
    %v943 = vld [vmem:[#allocation3 + $0x1918] sm:$0xff]
    %v944 = vld [vmem:[#allocation3 + $0x1920] sm:$0xff]
    %v945 = vld [vmem:[#allocation3 + $0x1928] sm:$0xff]
    %v946 = vld [vmem:[#allocation3 + $0x1930] sm:$0xff]
    %v947 = vld [vmem:[#allocation3 + $0x1938] sm:$0xff]
    %v948 = vld [vmem:[#allocation3 + $0x1940] sm:$0xff]
    %v949 = vld [vmem:[#allocation3 + $0x1948] sm:$0xff]
    %v950 = vld [vmem:[#allocation3 + $0x1950] sm:$0xff]
    %v951 = vld [vmem:[#allocation3 + $0x1958] sm:$0xff]
    %v952 = vld [vmem:[#allocation3 + $0x1960] sm:$0xff]
    %v953 = vld [vmem:[#allocation3 + $0x1968] sm:$0xff]
    %v954 = vld [vmem:[#allocation3 + $0x1970] sm:$0xff]
    %v955 = vld [vmem:[#allocation3 + $0x1978] sm:$0xff]
    %v956 = vld [vmem:[#allocation3 + $0x1980] sm:$0xff]
    %v957 = vld [vmem:[#allocation3 + $0x1988] sm:$0xff]
    %v958 = vld [vmem:[#allocation3 + $0x1990] sm:$0xff]
    %v959 = vld [vmem:[#allocation3 + $0x1998] sm:$0xff]
    %v960 = vld [vmem:[#allocation3 + $0x19a0] sm:$0xff]
    %v961 = vld [vmem:[#allocation3 + $0x19a8] sm:$0xff]
    %v962 = vld [vmem:[#allocation3 + $0x19b0] sm:$0xff]
    %v963 = vld [vmem:[#allocation3 + $0x19b8] sm:$0xff]
    %v964 = vld [vmem:[#allocation3 + $0x19c0] sm:$0xff]
    %v965 = vld [vmem:[#allocation3 + $0x19c8] sm:$0xff]
    %v966 = vld [vmem:[#allocation3 + $0x19d0] sm:$0xff]
    %v967 = vld [vmem:[#allocation3 + $0x19d8] sm:$0xff]
    %v968 = vld [vmem:[#allocation3 + $0x19e0] sm:$0xff]
    %v969 = vld [vmem:[#allocation3 + $0x19e8] sm:$0xff]
    %v970 = vld [vmem:[#allocation3 + $0x19f0] sm:$0xff]
    %v971 = vld [vmem:[#allocation3 + $0x19f8] sm:$0xff]
    %v972 = vld [vmem:[#allocation3 + $0x1a00] sm:$0xff]
    %v973 = vld [vmem:[#allocation3 + $0x1a08] sm:$0xff]
    %v974 = vld [vmem:[#allocation3 + $0x1a10] sm:$0xff]
    %v975 = vld [vmem:[#allocation3 + $0x1a18] sm:$0xff]
    %v976 = vld [vmem:[#allocation3 + $0x1a20] sm:$0xff]
    %v977 = vld [vmem:[#allocation3 + $0x1a28] sm:$0xff]
    %v978 = vld [vmem:[#allocation3 + $0x1a30] sm:$0xff]
    %v979 = vld [vmem:[#allocation3 + $0x1a38] sm:$0xff]
    %v980 = vld [vmem:[#allocation3 + $0x1a40] sm:$0xff]
    %v981 = vld [vmem:[#allocation3 + $0x1a48] sm:$0xff]
    %v982 = vld [vmem:[#allocation3 + $0x1a50] sm:$0xff]
    %v983 = vld [vmem:[#allocation3 + $0x1a58] sm:$0xff]
    %v984 = vld [vmem:[#allocation3 + $0x1a60] sm:$0xff]
    %v985 = vld [vmem:[#allocation3 + $0x1a68] sm:$0xff]
    %v986 = vld [vmem:[#allocation3 + $0x1a70] sm:$0xff]
    %v987 = vld [vmem:[#allocation3 + $0x1a78] sm:$0xff]
    %v988 = vld [vmem:[#allocation3 + $0x1a80] sm:$0xff]
    %v989 = vld [vmem:[#allocation3 + $0x1a88] sm:$0xff]
    %v990 = vld [vmem:[#allocation3 + $0x1a90] sm:$0xff]
    %v991 = vld [vmem:[#allocation3 + $0x1a98] sm:$0xff]
    %v992 = vld [vmem:[#allocation3 + $0x1aa0] sm:$0xff]
    %v993 = vld [vmem:[#allocation3 + $0x1aa8] sm:$0xff]
    %v994 = vld [vmem:[#allocation3 + $0x1ab0] sm:$0xff]
    %v995 = vld [vmem:[#allocation3 + $0x1ab8] sm:$0xff]
    %v996 = vld [vmem:[#allocation3 + $0x1ac0] sm:$0xff]
    %v997 = vld [vmem:[#allocation3 + $0x1ac8] sm:$0xff]
    %v998 = vld [vmem:[#allocation3 + $0x1ad0] sm:$0xff]
    %v999 = vld [vmem:[#allocation3 + $0x1ad8] sm:$0xff]
    %v1000 = vld [vmem:[#allocation3 + $0x1ae0] sm:$0xff]
    %v1001 = vld [vmem:[#allocation3 + $0x1ae8] sm:$0xff]
    %v1002 = vld [vmem:[#allocation3 + $0x1af0] sm:$0xff]
    %v1003 = vld [vmem:[#allocation3 + $0x1af8] sm:$0xff]
    %v1004 = vld [vmem:[#allocation3 + $0x1b00] sm:$0xff]
    %v1005 = vld [vmem:[#allocation3 + $0x1b08] sm:$0xff]
    %v1006 = vld [vmem:[#allocation3 + $0x1b10] sm:$0xff]
    %v1007 = vld [vmem:[#allocation3 + $0x1b18] sm:$0xff]
    %v1008 = vld [vmem:[#allocation3 + $0x1b20] sm:$0xff]
    %v1009 = vld [vmem:[#allocation3 + $0x1b28] sm:$0xff]
    %v1010 = vld [vmem:[#allocation3 + $0x1b30] sm:$0xff]
    %v1011 = vld [vmem:[#allocation3 + $0x1b38] sm:$0xff]
    %v1012 = vld [vmem:[#allocation3 + $0x1b40] sm:$0xff]
    %v1013 = vld [vmem:[#allocation3 + $0x1b48] sm:$0xff]
    %v1014 = vld [vmem:[#allocation3 + $0x1b50] sm:$0xff]
    %v1015 = vld [vmem:[#allocation3 + $0x1b58] sm:$0xff]
    %v1016 = vld [vmem:[#allocation3 + $0x1b60] sm:$0xff]
    %v1017 = vld [vmem:[#allocation3 + $0x1b68] sm:$0xff]
    %v1018 = vld [vmem:[#allocation3 + $0x1b70] sm:$0xff]
    %v1019 = vld [vmem:[#allocation3 + $0x1b78] sm:$0xff]
    %v1020 = vld [vmem:[#allocation3 + $0x1b80] sm:$0xff]
    %v1021 = vld [vmem:[#allocation3 + $0x1b88] sm:$0xff]
    %v1022 = vld [vmem:[#allocation3 + $0x1b90] sm:$0xff]
    %v1023 = vld [vmem:[#allocation3 + $0x1b98] sm:$0xff]
    %v1024 = vld [vmem:[#allocation3 + $0x1ba0] sm:$0xff]
    %v1025 = vld [vmem:[#allocation3 + $0x1ba8] sm:$0xff]
    %v1026 = vld [vmem:[#allocation3 + $0x1bb0] sm:$0xff]
    %v1027 = vld [vmem:[#allocation3 + $0x1bb8] sm:$0xff]
    %v1028 = vld [vmem:[#allocation3 + $0x1bc0] sm:$0xff]
    %v1029 = vld [vmem:[#allocation3 + $0x1bc8] sm:$0xff]
    %v1030 = vld [vmem:[#allocation3 + $0x1bd0] sm:$0xff]
    %v1031 = vld [vmem:[#allocation3 + $0x1bd8] sm:$0xff]
    %v1032 = vld [vmem:[#allocation3 + $0x1be0] sm:$0xff]
    %v1033 = vld [vmem:[#allocation3 + $0x1be8] sm:$0xff]
    %v1034 = vld [vmem:[#allocation3 + $0x1bf0] sm:$0xff]
    %v1035 = vld [vmem:[#allocation3 + $0x1bf8] sm:$0xff]
    %v1036 = vld [vmem:[#allocation3 + $0x1c00] sm:$0xff]
    %v1037 = vld [vmem:[#allocation3 + $0x1c08] sm:$0xff]
    %v1038 = vld [vmem:[#allocation3 + $0x1c10] sm:$0xff]
    %v1039 = vld [vmem:[#allocation3 + $0x1c18] sm:$0xff]
    %v1040 = vld [vmem:[#allocation3 + $0x1c20] sm:$0xff]
    %v1041 = vld [vmem:[#allocation3 + $0x1c28] sm:$0xff]
    %v1042 = vld [vmem:[#allocation3 + $0x1c30] sm:$0xff]
    %v1043 = vld [vmem:[#allocation3 + $0x1c38] sm:$0xff]
    %v1044 = vld [vmem:[#allocation3 + $0x1c40] sm:$0xff]
    %v1045 = vld [vmem:[#allocation3 + $0x1c48] sm:$0xff]
    %v1046 = vld [vmem:[#allocation3 + $0x1c50] sm:$0xff]
    %v1047 = vld [vmem:[#allocation3 + $0x1c58] sm:$0xff]
    %v1048 = vld [vmem:[#allocation3 + $0x1c60] sm:$0xff]
    %v1049 = vld [vmem:[#allocation3 + $0x1c68] sm:$0xff]
    %v1050 = vld [vmem:[#allocation3 + $0x1c70] sm:$0xff]
    %v1051 = vld [vmem:[#allocation3 + $0x1c78] sm:$0xff]
    %v1052 = vld [vmem:[#allocation3 + $0x1c80] sm:$0xff]
    %v1053 = vld [vmem:[#allocation3 + $0x1c88] sm:$0xff]
    %v1054 = vld [vmem:[#allocation3 + $0x1c90] sm:$0xff]
    %v1055 = vld [vmem:[#allocation3 + $0x1c98] sm:$0xff]
    %v1056 = vld [vmem:[#allocation3 + $0x1ca0] sm:$0xff]
    %v1057 = vld [vmem:[#allocation3 + $0x1ca8] sm:$0xff]
    %v1058 = vld [vmem:[#allocation3 + $0x1cb0] sm:$0xff]
    %v1059 = vld [vmem:[#allocation3 + $0x1cb8] sm:$0xff]
    %v1060 = vld [vmem:[#allocation3 + $0x1cc0] sm:$0xff]
    %v1061 = vld [vmem:[#allocation3 + $0x1cc8] sm:$0xff]
    %v1062 = vld [vmem:[#allocation3 + $0x1cd0] sm:$0xff]
    %v1063 = vld [vmem:[#allocation3 + $0x1cd8] sm:$0xff]
    %v1064 = vld [vmem:[#allocation3 + $0x1ce0] sm:$0xff]
    %v1065 = vld [vmem:[#allocation3 + $0x1ce8] sm:$0xff]
    %v1066 = vld [vmem:[#allocation3 + $0x1cf0] sm:$0xff]
    %v1067 = vld [vmem:[#allocation3 + $0x1cf8] sm:$0xff]
    %v1068 = vld [vmem:[#allocation3 + $0x1d00] sm:$0xff]
    %v1069 = vld [vmem:[#allocation3 + $0x1d08] sm:$0xff]
    %v1070 = vld [vmem:[#allocation3 + $0x1d10] sm:$0xff]
    %v1071 = vld [vmem:[#allocation3 + $0x1d18] sm:$0xff]
    %v1072 = vld [vmem:[#allocation3 + $0x1d20] sm:$0xff]
    %v1073 = vld [vmem:[#allocation3 + $0x1d28] sm:$0xff]
    %v1074 = vld [vmem:[#allocation3 + $0x1d30] sm:$0xff]
    %v1075 = vld [vmem:[#allocation3 + $0x1d38] sm:$0xff]
    %v1076 = vld [vmem:[#allocation3 + $0x1d40] sm:$0xff]
    %v1077 = vld [vmem:[#allocation3 + $0x1d48] sm:$0xff]
    %v1078 = vld [vmem:[#allocation3 + $0x1d50] sm:$0xff]
    %v1079 = vld [vmem:[#allocation3 + $0x1d58] sm:$0xff]
    %v1080 = vld [vmem:[#allocation3 + $0x1d60] sm:$0xff]
    %v1081 = vld [vmem:[#allocation3 + $0x1d68] sm:$0xff]
    %v1082 = vld [vmem:[#allocation3 + $0x1d70] sm:$0xff]
    %v1083 = vld [vmem:[#allocation3 + $0x1d78] sm:$0xff]
    %v1084 = vld [vmem:[#allocation3 + $0x1d80] sm:$0xff]
    %v1085 = vld [vmem:[#allocation3 + $0x1d88] sm:$0xff]
    %v1086 = vld [vmem:[#allocation3 + $0x1d90] sm:$0xff]
    %v1087 = vld [vmem:[#allocation3 + $0x1d98] sm:$0xff]
    %v1088 = vld [vmem:[#allocation3 + $0x1da0] sm:$0xff]
    %v1089 = vld [vmem:[#allocation3 + $0x1da8] sm:$0xff]
    %v1090 = vld [vmem:[#allocation3 + $0x1db0] sm:$0xff]
    %v1091 = vld [vmem:[#allocation3 + $0x1db8] sm:$0xff]
    %v1092 = vld [vmem:[#allocation3 + $0x1dc0] sm:$0xff]
    %v1093 = vld [vmem:[#allocation3 + $0x1dc8] sm:$0xff]
    %v1094 = vld [vmem:[#allocation3 + $0x1dd0] sm:$0xff]
    %v1095 = vld [vmem:[#allocation3 + $0x1dd8] sm:$0xff]
    %v1096 = vld [vmem:[#allocation3 + $0x1de0] sm:$0xff]
    %v1097 = vld [vmem:[#allocation3 + $0x1de8] sm:$0xff]
    %v1098 = vld [vmem:[#allocation3 + $0x1df0] sm:$0xff]
    %v1099 = vld [vmem:[#allocation3 + $0x1df8] sm:$0xff]
    %v1100 = vld [vmem:[#allocation3 + $0x1e00] sm:$0xff]
    %v1101 = vld [vmem:[#allocation3 + $0x1e08] sm:$0xff]
    %v1102 = vld [vmem:[#allocation3 + $0x1e10] sm:$0xff]
    %v1103 = vld [vmem:[#allocation3 + $0x1e18] sm:$0xff]
    %v1104 = vld [vmem:[#allocation3 + $0x1e20] sm:$0xff]
    %v1105 = vld [vmem:[#allocation3 + $0x1e28] sm:$0xff]
    %v1106 = vld [vmem:[#allocation3 + $0x1e30] sm:$0xff]
    %v1107 = vld [vmem:[#allocation3 + $0x1e38] sm:$0xff]
    %v1108 = vld [vmem:[#allocation3 + $0x1e40] sm:$0xff]
    %v1109 = vld [vmem:[#allocation3 + $0x1e48] sm:$0xff]
    %v1110 = vld [vmem:[#allocation3 + $0x1e50] sm:$0xff]
    %v1111 = vld [vmem:[#allocation3 + $0x1e58] sm:$0xff]
    %v1112 = vld [vmem:[#allocation3 + $0x1e60] sm:$0xff]
    %v1113 = vld [vmem:[#allocation3 + $0x1e68] sm:$0xff]
    %v1114 = vld [vmem:[#allocation3 + $0x1e70] sm:$0xff]
    %v1115 = vld [vmem:[#allocation3 + $0x1e78] sm:$0xff]
    %v1116 = vld [vmem:[#allocation3 + $0x1e80] sm:$0xff]
    %v1117 = vld [vmem:[#allocation3 + $0x1e88] sm:$0xff]
    %v1118 = vld [vmem:[#allocation3 + $0x1e90] sm:$0xff]
    %v1119 = vld [vmem:[#allocation3 + $0x1e98] sm:$0xff]
    %v1120 = vld [vmem:[#allocation3 + $0x1ea0] sm:$0xff]
    %v1121 = vld [vmem:[#allocation3 + $0x1ea8] sm:$0xff]
    %v1122 = vld [vmem:[#allocation3 + $0x1eb0] sm:$0xff]
    %v1123 = vld [vmem:[#allocation3 + $0x1eb8] sm:$0xff]
    %v1124 = vld [vmem:[#allocation3 + $0x1ec0] sm:$0xff]
    %v1125 = vld [vmem:[#allocation3 + $0x1ec8] sm:$0xff]
    %v1126 = vld [vmem:[#allocation3 + $0x1ed0] sm:$0xff]
    %v1127 = vld [vmem:[#allocation3 + $0x1ed8] sm:$0xff]
    %v1128 = vld [vmem:[#allocation3 + $0x1ee0] sm:$0xff]
    %v1129 = vld [vmem:[#allocation3 + $0x1ee8] sm:$0xff]
    %v1130 = vld [vmem:[#allocation3 + $0x1ef0] sm:$0xff]
    %v1131 = vld [vmem:[#allocation3 + $0x1ef8] sm:$0xff]
    %v1132 = vld [vmem:[#allocation3 + $0x1f00] sm:$0xff]
    %v1133 = vld [vmem:[#allocation3 + $0x1f08] sm:$0xff]
    %v1134 = vld [vmem:[#allocation3 + $0x1f10] sm:$0xff]
    %v1135 = vld [vmem:[#allocation3 + $0x1f18] sm:$0xff]
    %v1136 = vld [vmem:[#allocation3 + $0x1f20] sm:$0xff]
    %v1137 = vld [vmem:[#allocation3 + $0x1f28] sm:$0xff]
    %v1138 = vld [vmem:[#allocation3 + $0x1f30] sm:$0xff]
    %v1139 = vld [vmem:[#allocation3 + $0x1f38] sm:$0xff]
    %v1140 = vld [vmem:[#allocation3 + $0x1f40] sm:$0xff]
    %v1141 = vld [vmem:[#allocation3 + $0x1f48] sm:$0xff]
    %v1142 = vld [vmem:[#allocation3 + $0x1f50] sm:$0xff]
    %v1143 = vld [vmem:[#allocation3 + $0x1f58] sm:$0xff]
    %v1144 = vld [vmem:[#allocation3 + $0x1f60] sm:$0xff]
    %v1145 = vld [vmem:[#allocation3 + $0x1f68] sm:$0xff]
    %v1146 = vld [vmem:[#allocation3 + $0x1f70] sm:$0xff]
    %v1147 = vld [vmem:[#allocation3 + $0x1f78] sm:$0xff]
    %v1148 = vld [vmem:[#allocation3 + $0x1f80] sm:$0xff]
    %v1149 = vld [vmem:[#allocation3 + $0x1f88] sm:$0xff]
    %v1150 = vld [vmem:[#allocation3 + $0x1f90] sm:$0xff]
    %v1151 = vld [vmem:[#allocation3 + $0x1f98] sm:$0xff]
    %v1152 = vld [vmem:[#allocation3 + $0x1fa0] sm:$0xff]
    %v1153 = vld [vmem:[#allocation3 + $0x1fa8] sm:$0xff]
    %v1154 = vld [vmem:[#allocation3 + $0x1fb0] sm:$0xff]
    %v1155 = vld [vmem:[#allocation3 + $0x1fb8] sm:$0xff]
    %v1156 = vld [vmem:[#allocation3 + $0x1fc0] sm:$0xff]
    %v1157 = vld [vmem:[#allocation3 + $0x1fc8] sm:$0xff]
    %v1158 = vld [vmem:[#allocation3 + $0x1fd0] sm:$0xff]
    %v1159 = vld [vmem:[#allocation3 + $0x1fd8] sm:$0xff]
    %v1160 = vld [vmem:[#allocation3 + $0x1fe0] sm:$0xff]
    %v1161 = vld [vmem:[#allocation3 + $0x1fe8] sm:$0xff]
    %v1162 = vld [vmem:[#allocation3 + $0x1ff0] sm:$0xff]
    %v1163 = vld [vmem:[#allocation3 + $0x1ff8] sm:$0xff]
    %v2188 = vunpack.c.l.b16 %v140
    %v2189 = vunpack.c.h.b16 %v140
    %v2190 = vunpack.c.l.b16 %v141
    %v2191 = vunpack.c.h.b16 %v141
    %v2192 = vunpack.c.l.b16 %v142
    %v2193 = vunpack.c.h.b16 %v142
    %v2194 = vunpack.c.l.b16 %v143
    %v2195 = vunpack.c.h.b16 %v143
    %v2196 = vunpack.c.l.b16 %v144
    %v2197 = vunpack.c.h.b16 %v144
    %v2198 = vunpack.c.l.b16 %v145
    %v2199 = vunpack.c.h.b16 %v145
    %v2200 = vunpack.c.l.b16 %v146
    %v2201 = vunpack.c.h.b16 %v146
    %v2202 = vunpack.c.l.b16 %v147
    %v2203 = vunpack.c.h.b16 %v147
    %v2204 = vunpack.c.l.b16 %v148
    %v2205 = vunpack.c.h.b16 %v148
    %v2206 = vunpack.c.l.b16 %v149
    %v2207 = vunpack.c.h.b16 %v149
    %v2208 = vunpack.c.l.b16 %v150
    %v2209 = vunpack.c.h.b16 %v150
    %v2210 = vunpack.c.l.b16 %v151
    %v2211 = vunpack.c.h.b16 %v151
    %v2212 = vunpack.c.l.b16 %v152
    %v2213 = vunpack.c.h.b16 %v152
    %v2214 = vunpack.c.l.b16 %v153
    %v2215 = vunpack.c.h.b16 %v153
    %v2216 = vunpack.c.l.b16 %v154
    %v2217 = vunpack.c.h.b16 %v154
    %v2218 = vunpack.c.l.b16 %v155
    %v2219 = vunpack.c.h.b16 %v155
    %v2220 = vunpack.c.l.b16 %v156
    %v2221 = vunpack.c.h.b16 %v156
    %v2222 = vunpack.c.l.b16 %v157
    %v2223 = vunpack.c.h.b16 %v157
    %v2224 = vunpack.c.l.b16 %v158
    %v2225 = vunpack.c.h.b16 %v158
    %v2226 = vunpack.c.l.b16 %v159
    %v2227 = vunpack.c.h.b16 %v159
    %v2228 = vunpack.c.l.b16 %v160
    %v2229 = vunpack.c.h.b16 %v160
    %v2230 = vunpack.c.l.b16 %v161
    %v2231 = vunpack.c.h.b16 %v161
    %v2232 = vunpack.c.l.b16 %v162
    %v2233 = vunpack.c.h.b16 %v162
    %v2234 = vunpack.c.l.b16 %v163
    %v2235 = vunpack.c.h.b16 %v163
    %v2236 = vunpack.c.l.b16 %v164
    %v2237 = vunpack.c.h.b16 %v164
    %v2238 = vunpack.c.l.b16 %v165
    %v2239 = vunpack.c.h.b16 %v165
    %v2240 = vunpack.c.l.b16 %v166
    %v2241 = vunpack.c.h.b16 %v166
    %v2242 = vunpack.c.l.b16 %v167
    %v2243 = vunpack.c.h.b16 %v167
    %v2244 = vunpack.c.l.b16 %v168
    %v2245 = vunpack.c.h.b16 %v168
    %v2246 = vunpack.c.l.b16 %v169
    %v2247 = vunpack.c.h.b16 %v169
    %v2248 = vunpack.c.l.b16 %v170
    %v2249 = vunpack.c.h.b16 %v170
    %v2250 = vunpack.c.l.b16 %v171
    %v2251 = vunpack.c.h.b16 %v171
    %v2252 = vunpack.c.l.b16 %v172
    %v2253 = vunpack.c.h.b16 %v172
    %v2254 = vunpack.c.l.b16 %v173
    %v2255 = vunpack.c.h.b16 %v173
    %v2256 = vunpack.c.l.b16 %v174
    %v2257 = vunpack.c.h.b16 %v174
    %v2258 = vunpack.c.l.b16 %v175
    %v2259 = vunpack.c.h.b16 %v175
    %v2260 = vunpack.c.l.b16 %v176
    %v2261 = vunpack.c.h.b16 %v176
    %v2262 = vunpack.c.l.b16 %v177
    %v2263 = vunpack.c.h.b16 %v177
    %v2264 = vunpack.c.l.b16 %v178
    %v2265 = vunpack.c.h.b16 %v178
    %v2266 = vunpack.c.l.b16 %v179
    %v2267 = vunpack.c.h.b16 %v179
    %v2268 = vunpack.c.l.b16 %v180
    %v2269 = vunpack.c.h.b16 %v180
    %v2270 = vunpack.c.l.b16 %v181
    %v2271 = vunpack.c.h.b16 %v181
    %v2272 = vunpack.c.l.b16 %v182
    %v2273 = vunpack.c.h.b16 %v182
    %v2274 = vunpack.c.l.b16 %v183
    %v2275 = vunpack.c.h.b16 %v183
    %v2276 = vunpack.c.l.b16 %v184
    %v2277 = vunpack.c.h.b16 %v184
    %v2278 = vunpack.c.l.b16 %v185
    %v2279 = vunpack.c.h.b16 %v185
    %v2280 = vunpack.c.l.b16 %v186
    %v2281 = vunpack.c.h.b16 %v186
    %v2282 = vunpack.c.l.b16 %v187
    %v2283 = vunpack.c.h.b16 %v187
    %v2284 = vunpack.c.l.b16 %v188
    %v2285 = vunpack.c.h.b16 %v188
    %v2286 = vunpack.c.l.b16 %v189
    %v2287 = vunpack.c.h.b16 %v189
    %v2288 = vunpack.c.l.b16 %v190
    %v2289 = vunpack.c.h.b16 %v190
    %v2290 = vunpack.c.l.b16 %v191
    %v2291 = vunpack.c.h.b16 %v191
    %v2292 = vunpack.c.l.b16 %v192
    %v2293 = vunpack.c.h.b16 %v192
    %v2294 = vunpack.c.l.b16 %v193
    %v2295 = vunpack.c.h.b16 %v193
    %v2296 = vunpack.c.l.b16 %v194
    %v2297 = vunpack.c.h.b16 %v194
    %v2298 = vunpack.c.l.b16 %v195
    %v2299 = vunpack.c.h.b16 %v195
    %v2300 = vunpack.c.l.b16 %v196
    %v2301 = vunpack.c.h.b16 %v196
    %v2302 = vunpack.c.l.b16 %v197
    %v2303 = vunpack.c.h.b16 %v197
    %v2304 = vunpack.c.l.b16 %v198
    %v2305 = vunpack.c.h.b16 %v198
    %v2306 = vunpack.c.l.b16 %v199
    %v2307 = vunpack.c.h.b16 %v199
    %v2308 = vunpack.c.l.b16 %v200
    %v2309 = vunpack.c.h.b16 %v200
    %v2310 = vunpack.c.l.b16 %v201
    %v2311 = vunpack.c.h.b16 %v201
    %v2312 = vunpack.c.l.b16 %v202
    %v2313 = vunpack.c.h.b16 %v202
    %v2314 = vunpack.c.l.b16 %v203
    %v2315 = vunpack.c.h.b16 %v203
    %v2316 = vunpack.c.l.b16 %v204
    %v2317 = vunpack.c.h.b16 %v204
    %v2318 = vunpack.c.l.b16 %v205
    %v2319 = vunpack.c.h.b16 %v205
    %v2320 = vunpack.c.l.b16 %v206
    %v2321 = vunpack.c.h.b16 %v206
    %v2322 = vunpack.c.l.b16 %v207
    %v2323 = vunpack.c.h.b16 %v207
    %v2324 = vunpack.c.l.b16 %v208
    %v2325 = vunpack.c.h.b16 %v208
    %v2326 = vunpack.c.l.b16 %v209
    %v2327 = vunpack.c.h.b16 %v209
    %v2328 = vunpack.c.l.b16 %v210
    %v2329 = vunpack.c.h.b16 %v210
    %v2330 = vunpack.c.l.b16 %v211
    %v2331 = vunpack.c.h.b16 %v211
    %v2332 = vunpack.c.l.b16 %v212
    %v2333 = vunpack.c.h.b16 %v212
    %v2334 = vunpack.c.l.b16 %v213
    %v2335 = vunpack.c.h.b16 %v213
    %v2336 = vunpack.c.l.b16 %v214
    %v2337 = vunpack.c.h.b16 %v214
    %v2338 = vunpack.c.l.b16 %v215
    %v2339 = vunpack.c.h.b16 %v215
    %v2340 = vunpack.c.l.b16 %v216
    %v2341 = vunpack.c.h.b16 %v216
    %v2342 = vunpack.c.l.b16 %v217
    %v2343 = vunpack.c.h.b16 %v217
    %v2344 = vunpack.c.l.b16 %v218
    %v2345 = vunpack.c.h.b16 %v218
    %v2346 = vunpack.c.l.b16 %v219
    %v2347 = vunpack.c.h.b16 %v219
    %v2348 = vunpack.c.l.b16 %v220
    %v2349 = vunpack.c.h.b16 %v220
    %v2350 = vunpack.c.l.b16 %v221
    %v2351 = vunpack.c.h.b16 %v221
    %v2352 = vunpack.c.l.b16 %v222
    %v2353 = vunpack.c.h.b16 %v222
    %v2354 = vunpack.c.l.b16 %v223
    %v2355 = vunpack.c.h.b16 %v223
    %v2356 = vunpack.c.l.b16 %v224
    %v2357 = vunpack.c.h.b16 %v224
    %v2358 = vunpack.c.l.b16 %v225
    %v2359 = vunpack.c.h.b16 %v225
    %v2360 = vunpack.c.l.b16 %v226
    %v2361 = vunpack.c.h.b16 %v226
    %v2362 = vunpack.c.l.b16 %v227
    %v2363 = vunpack.c.h.b16 %v227
    %v2364 = vunpack.c.l.b16 %v228
    %v2365 = vunpack.c.h.b16 %v228
    %v2366 = vunpack.c.l.b16 %v229
    %v2367 = vunpack.c.h.b16 %v229
    %v2368 = vunpack.c.l.b16 %v230
    %v2369 = vunpack.c.h.b16 %v230
    %v2370 = vunpack.c.l.b16 %v231
    %v2371 = vunpack.c.h.b16 %v231
    %v2372 = vunpack.c.l.b16 %v232
    %v2373 = vunpack.c.h.b16 %v232
    %v2374 = vunpack.c.l.b16 %v233
    %v2375 = vunpack.c.h.b16 %v233
    %v2376 = vunpack.c.l.b16 %v234
    %v2377 = vunpack.c.h.b16 %v234
    %v2378 = vunpack.c.l.b16 %v235
    %v2379 = vunpack.c.h.b16 %v235
    %v2380 = vunpack.c.l.b16 %v236
    %v2381 = vunpack.c.h.b16 %v236
    %v2382 = vunpack.c.l.b16 %v237
    %v2383 = vunpack.c.h.b16 %v237
    %v2384 = vunpack.c.l.b16 %v238
    %v2385 = vunpack.c.h.b16 %v238
    %v2386 = vunpack.c.l.b16 %v239
    %v2387 = vunpack.c.h.b16 %v239
    %v2388 = vunpack.c.l.b16 %v240
    %v2389 = vunpack.c.h.b16 %v240
    %v2390 = vunpack.c.l.b16 %v241
    %v2391 = vunpack.c.h.b16 %v241
    %v2392 = vunpack.c.l.b16 %v242
    %v2393 = vunpack.c.h.b16 %v242
    %v2394 = vunpack.c.l.b16 %v243
    %v2395 = vunpack.c.h.b16 %v243
    %v2396 = vunpack.c.l.b16 %v244
    %v2397 = vunpack.c.h.b16 %v244
    %v2398 = vunpack.c.l.b16 %v245
    %v2399 = vunpack.c.h.b16 %v245
    %v2400 = vunpack.c.l.b16 %v246
    %v2401 = vunpack.c.h.b16 %v246
    %v2402 = vunpack.c.l.b16 %v247
    %v2403 = vunpack.c.h.b16 %v247
    %v2404 = vunpack.c.l.b16 %v248
    %v2405 = vunpack.c.h.b16 %v248
    %v2406 = vunpack.c.l.b16 %v249
    %v2407 = vunpack.c.h.b16 %v249
    %v2408 = vunpack.c.l.b16 %v250
    %v2409 = vunpack.c.h.b16 %v250
    %v2410 = vunpack.c.l.b16 %v251
    %v2411 = vunpack.c.h.b16 %v251
    %v2412 = vunpack.c.l.b16 %v252
    %v2413 = vunpack.c.h.b16 %v252
    %v2414 = vunpack.c.l.b16 %v253
    %v2415 = vunpack.c.h.b16 %v253
    %v2416 = vunpack.c.l.b16 %v254
    %v2417 = vunpack.c.h.b16 %v254
    %v2418 = vunpack.c.l.b16 %v255
    %v2419 = vunpack.c.h.b16 %v255
    %v2420 = vunpack.c.l.b16 %v256
    %v2421 = vunpack.c.h.b16 %v256
    %v2422 = vunpack.c.l.b16 %v257
    %v2423 = vunpack.c.h.b16 %v257
    %v2424 = vunpack.c.l.b16 %v258
    %v2425 = vunpack.c.h.b16 %v258
    %v2426 = vunpack.c.l.b16 %v259
    %v2427 = vunpack.c.h.b16 %v259
    %v2428 = vunpack.c.l.b16 %v260
    %v2429 = vunpack.c.h.b16 %v260
    %v2430 = vunpack.c.l.b16 %v261
    %v2431 = vunpack.c.h.b16 %v261
    %v2432 = vunpack.c.l.b16 %v262
    %v2433 = vunpack.c.h.b16 %v262
    %v2434 = vunpack.c.l.b16 %v263
    %v2435 = vunpack.c.h.b16 %v263
    %v2436 = vunpack.c.l.b16 %v264
    %v2437 = vunpack.c.h.b16 %v264
    %v2438 = vunpack.c.l.b16 %v265
    %v2439 = vunpack.c.h.b16 %v265
    %v2440 = vunpack.c.l.b16 %v266
    %v2441 = vunpack.c.h.b16 %v266
    %v2442 = vunpack.c.l.b16 %v267
    %v2443 = vunpack.c.h.b16 %v267
    %v2444 = vunpack.c.l.b16 %v268
    %v2445 = vunpack.c.h.b16 %v268
    %v2446 = vunpack.c.l.b16 %v269
    %v2447 = vunpack.c.h.b16 %v269
    %v2448 = vunpack.c.l.b16 %v270
    %v2449 = vunpack.c.h.b16 %v270
    %v2450 = vunpack.c.l.b16 %v271
    %v2451 = vunpack.c.h.b16 %v271
    %v2452 = vunpack.c.l.b16 %v272
    %v2453 = vunpack.c.h.b16 %v272
    %v2454 = vunpack.c.l.b16 %v273
    %v2455 = vunpack.c.h.b16 %v273
    %v2456 = vunpack.c.l.b16 %v274
    %v2457 = vunpack.c.h.b16 %v274
    %v2458 = vunpack.c.l.b16 %v275
    %v2459 = vunpack.c.h.b16 %v275
    %v2460 = vunpack.c.l.b16 %v276
    %v2461 = vunpack.c.h.b16 %v276
    %v2462 = vunpack.c.l.b16 %v277
    %v2463 = vunpack.c.h.b16 %v277
    %v2464 = vunpack.c.l.b16 %v278
    %v2465 = vunpack.c.h.b16 %v278
    %v2466 = vunpack.c.l.b16 %v279
    %v2467 = vunpack.c.h.b16 %v279
    %v2468 = vunpack.c.l.b16 %v280
    %v2469 = vunpack.c.h.b16 %v280
    %v2470 = vunpack.c.l.b16 %v281
    %v2471 = vunpack.c.h.b16 %v281
    %v2472 = vunpack.c.l.b16 %v282
    %v2473 = vunpack.c.h.b16 %v282
    %v2474 = vunpack.c.l.b16 %v283
    %v2475 = vunpack.c.h.b16 %v283
    %v2476 = vunpack.c.l.b16 %v284
    %v2477 = vunpack.c.h.b16 %v284
    %v2478 = vunpack.c.l.b16 %v285
    %v2479 = vunpack.c.h.b16 %v285
    %v2480 = vunpack.c.l.b16 %v286
    %v2481 = vunpack.c.h.b16 %v286
    %v2482 = vunpack.c.l.b16 %v287
    %v2483 = vunpack.c.h.b16 %v287
    %v2484 = vunpack.c.l.b16 %v288
    %v2485 = vunpack.c.h.b16 %v288
    %v2486 = vunpack.c.l.b16 %v289
    %v2487 = vunpack.c.h.b16 %v289
    %v2488 = vunpack.c.l.b16 %v290
    %v2489 = vunpack.c.h.b16 %v290
    %v2490 = vunpack.c.l.b16 %v291
    %v2491 = vunpack.c.h.b16 %v291
    %v2492 = vunpack.c.l.b16 %v292
    %v2493 = vunpack.c.h.b16 %v292
    %v2494 = vunpack.c.l.b16 %v293
    %v2495 = vunpack.c.h.b16 %v293
    %v2496 = vunpack.c.l.b16 %v294
    %v2497 = vunpack.c.h.b16 %v294
    %v2498 = vunpack.c.l.b16 %v295
    %v2499 = vunpack.c.h.b16 %v295
    %v2500 = vunpack.c.l.b16 %v296
    %v2501 = vunpack.c.h.b16 %v296
    %v2502 = vunpack.c.l.b16 %v297
    %v2503 = vunpack.c.h.b16 %v297
    %v2504 = vunpack.c.l.b16 %v298
    %v2505 = vunpack.c.h.b16 %v298
    %v2506 = vunpack.c.l.b16 %v299
    %v2507 = vunpack.c.h.b16 %v299
    %v2508 = vunpack.c.l.b16 %v300
    %v2509 = vunpack.c.h.b16 %v300
    %v2510 = vunpack.c.l.b16 %v301
    %v2511 = vunpack.c.h.b16 %v301
    %v2512 = vunpack.c.l.b16 %v302
    %v2513 = vunpack.c.h.b16 %v302
    %v2514 = vunpack.c.l.b16 %v303
    %v2515 = vunpack.c.h.b16 %v303
    %v2516 = vunpack.c.l.b16 %v304
    %v2517 = vunpack.c.h.b16 %v304
    %v2518 = vunpack.c.l.b16 %v305
    %v2519 = vunpack.c.h.b16 %v305
    %v2520 = vunpack.c.l.b16 %v306
    %v2521 = vunpack.c.h.b16 %v306
    %v2522 = vunpack.c.l.b16 %v307
    %v2523 = vunpack.c.h.b16 %v307
    %v2524 = vunpack.c.l.b16 %v308
    %v2525 = vunpack.c.h.b16 %v308
    %v2526 = vunpack.c.l.b16 %v309
    %v2527 = vunpack.c.h.b16 %v309
    %v2528 = vunpack.c.l.b16 %v310
    %v2529 = vunpack.c.h.b16 %v310
    %v2530 = vunpack.c.l.b16 %v311
    %v2531 = vunpack.c.h.b16 %v311
    %v2532 = vunpack.c.l.b16 %v312
    %v2533 = vunpack.c.h.b16 %v312
    %v2534 = vunpack.c.l.b16 %v313
    %v2535 = vunpack.c.h.b16 %v313
    %v2536 = vunpack.c.l.b16 %v314
    %v2537 = vunpack.c.h.b16 %v314
    %v2538 = vunpack.c.l.b16 %v315
    %v2539 = vunpack.c.h.b16 %v315
    %v2540 = vunpack.c.l.b16 %v316
    %v2541 = vunpack.c.h.b16 %v316
    %v2542 = vunpack.c.l.b16 %v317
    %v2543 = vunpack.c.h.b16 %v317
    %v2544 = vunpack.c.l.b16 %v318
    %v2545 = vunpack.c.h.b16 %v318
    %v2546 = vunpack.c.l.b16 %v319
    %v2547 = vunpack.c.h.b16 %v319
    %v2548 = vunpack.c.l.b16 %v320
    %v2549 = vunpack.c.h.b16 %v320
    %v2550 = vunpack.c.l.b16 %v321
    %v2551 = vunpack.c.h.b16 %v321
    %v2552 = vunpack.c.l.b16 %v322
    %v2553 = vunpack.c.h.b16 %v322
    %v2554 = vunpack.c.l.b16 %v323
    %v2555 = vunpack.c.h.b16 %v323
    %v2556 = vunpack.c.l.b16 %v324
    %v2557 = vunpack.c.h.b16 %v324
    %v2558 = vunpack.c.l.b16 %v325
    %v2559 = vunpack.c.h.b16 %v325
    %v2560 = vunpack.c.l.b16 %v326
    %v2561 = vunpack.c.h.b16 %v326
    %v2562 = vunpack.c.l.b16 %v327
    %v2563 = vunpack.c.h.b16 %v327
    %v2564 = vunpack.c.l.b16 %v328
    %v2565 = vunpack.c.h.b16 %v328
    %v2566 = vunpack.c.l.b16 %v329
    %v2567 = vunpack.c.h.b16 %v329
    %v2568 = vunpack.c.l.b16 %v330
    %v2569 = vunpack.c.h.b16 %v330
    %v2570 = vunpack.c.l.b16 %v331
    %v2571 = vunpack.c.h.b16 %v331
    %v2572 = vunpack.c.l.b16 %v332
    %v2573 = vunpack.c.h.b16 %v332
    %v2574 = vunpack.c.l.b16 %v333
    %v2575 = vunpack.c.h.b16 %v333
    %v2576 = vunpack.c.l.b16 %v334
    %v2577 = vunpack.c.h.b16 %v334
    %v2578 = vunpack.c.l.b16 %v335
    %v2579 = vunpack.c.h.b16 %v335
    %v2580 = vunpack.c.l.b16 %v336
    %v2581 = vunpack.c.h.b16 %v336
    %v2582 = vunpack.c.l.b16 %v337
    %v2583 = vunpack.c.h.b16 %v337
    %v2584 = vunpack.c.l.b16 %v338
    %v2585 = vunpack.c.h.b16 %v338
    %v2586 = vunpack.c.l.b16 %v339
    %v2587 = vunpack.c.h.b16 %v339
    %v2588 = vunpack.c.l.b16 %v340
    %v2589 = vunpack.c.h.b16 %v340
    %v2590 = vunpack.c.l.b16 %v341
    %v2591 = vunpack.c.h.b16 %v341
    %v2592 = vunpack.c.l.b16 %v342
    %v2593 = vunpack.c.h.b16 %v342
    %v2594 = vunpack.c.l.b16 %v343
    %v2595 = vunpack.c.h.b16 %v343
    %v2596 = vunpack.c.l.b16 %v344
    %v2597 = vunpack.c.h.b16 %v344
    %v2598 = vunpack.c.l.b16 %v345
    %v2599 = vunpack.c.h.b16 %v345
    %v2600 = vunpack.c.l.b16 %v346
    %v2601 = vunpack.c.h.b16 %v346
    %v2602 = vunpack.c.l.b16 %v347
    %v2603 = vunpack.c.h.b16 %v347
    %v2604 = vunpack.c.l.b16 %v348
    %v2605 = vunpack.c.h.b16 %v348
    %v2606 = vunpack.c.l.b16 %v349
    %v2607 = vunpack.c.h.b16 %v349
    %v2608 = vunpack.c.l.b16 %v350
    %v2609 = vunpack.c.h.b16 %v350
    %v2610 = vunpack.c.l.b16 %v351
    %v2611 = vunpack.c.h.b16 %v351
    %v2612 = vunpack.c.l.b16 %v352
    %v2613 = vunpack.c.h.b16 %v352
    %v2614 = vunpack.c.l.b16 %v353
    %v2615 = vunpack.c.h.b16 %v353
    %v2616 = vunpack.c.l.b16 %v354
    %v2617 = vunpack.c.h.b16 %v354
    %v2618 = vunpack.c.l.b16 %v355
    %v2619 = vunpack.c.h.b16 %v355
    %v2620 = vunpack.c.l.b16 %v356
    %v2621 = vunpack.c.h.b16 %v356
    %v2622 = vunpack.c.l.b16 %v357
    %v2623 = vunpack.c.h.b16 %v357
    %v2624 = vunpack.c.l.b16 %v358
    %v2625 = vunpack.c.h.b16 %v358
    %v2626 = vunpack.c.l.b16 %v359
    %v2627 = vunpack.c.h.b16 %v359
    %v2628 = vunpack.c.l.b16 %v360
    %v2629 = vunpack.c.h.b16 %v360
    %v2630 = vunpack.c.l.b16 %v361
    %v2631 = vunpack.c.h.b16 %v361
    %v2632 = vunpack.c.l.b16 %v362
    %v2633 = vunpack.c.h.b16 %v362
    %v2634 = vunpack.c.l.b16 %v363
    %v2635 = vunpack.c.h.b16 %v363
    %v2636 = vunpack.c.l.b16 %v364
    %v2637 = vunpack.c.h.b16 %v364
    %v2638 = vunpack.c.l.b16 %v365
    %v2639 = vunpack.c.h.b16 %v365
    %v2640 = vunpack.c.l.b16 %v366
    %v2641 = vunpack.c.h.b16 %v366
    %v2642 = vunpack.c.l.b16 %v367
    %v2643 = vunpack.c.h.b16 %v367
    %v2644 = vunpack.c.l.b16 %v368
    %v2645 = vunpack.c.h.b16 %v368
    %v2646 = vunpack.c.l.b16 %v369
    %v2647 = vunpack.c.h.b16 %v369
    %v2648 = vunpack.c.l.b16 %v370
    %v2649 = vunpack.c.h.b16 %v370
    %v2650 = vunpack.c.l.b16 %v371
    %v2651 = vunpack.c.h.b16 %v371
    %v2652 = vunpack.c.l.b16 %v372
    %v2653 = vunpack.c.h.b16 %v372
    %v2654 = vunpack.c.l.b16 %v373
    %v2655 = vunpack.c.h.b16 %v373
    %v2656 = vunpack.c.l.b16 %v374
    %v2657 = vunpack.c.h.b16 %v374
    %v2658 = vunpack.c.l.b16 %v375
    %v2659 = vunpack.c.h.b16 %v375
    %v2660 = vunpack.c.l.b16 %v376
    %v2661 = vunpack.c.h.b16 %v376
    %v2662 = vunpack.c.l.b16 %v377
    %v2663 = vunpack.c.h.b16 %v377
    %v2664 = vunpack.c.l.b16 %v378
    %v2665 = vunpack.c.h.b16 %v378
    %v2666 = vunpack.c.l.b16 %v379
    %v2667 = vunpack.c.h.b16 %v379
    %v2668 = vunpack.c.l.b16 %v380
    %v2669 = vunpack.c.h.b16 %v380
    %v2670 = vunpack.c.l.b16 %v381
    %v2671 = vunpack.c.h.b16 %v381
    %v2672 = vunpack.c.l.b16 %v382
    %v2673 = vunpack.c.h.b16 %v382
    %v2674 = vunpack.c.l.b16 %v383
    %v2675 = vunpack.c.h.b16 %v383
    %v2676 = vunpack.c.l.b16 %v384
    %v2677 = vunpack.c.h.b16 %v384
    %v2678 = vunpack.c.l.b16 %v385
    %v2679 = vunpack.c.h.b16 %v385
    %v2680 = vunpack.c.l.b16 %v386
    %v2681 = vunpack.c.h.b16 %v386
    %v2682 = vunpack.c.l.b16 %v387
    %v2683 = vunpack.c.h.b16 %v387
    %v2684 = vunpack.c.l.b16 %v388
    %v2685 = vunpack.c.h.b16 %v388
    %v2686 = vunpack.c.l.b16 %v389
    %v2687 = vunpack.c.h.b16 %v389
    %v2688 = vunpack.c.l.b16 %v390
    %v2689 = vunpack.c.h.b16 %v390
    %v2690 = vunpack.c.l.b16 %v391
    %v2691 = vunpack.c.h.b16 %v391
    %v2692 = vunpack.c.l.b16 %v392
    %v2693 = vunpack.c.h.b16 %v392
    %v2694 = vunpack.c.l.b16 %v393
    %v2695 = vunpack.c.h.b16 %v393
    %v2696 = vunpack.c.l.b16 %v394
    %v2697 = vunpack.c.h.b16 %v394
    %v2698 = vunpack.c.l.b16 %v395
    %v2699 = vunpack.c.h.b16 %v395
    %v2700 = vunpack.c.l.b16 %v396
    %v2701 = vunpack.c.h.b16 %v396
    %v2702 = vunpack.c.l.b16 %v397
    %v2703 = vunpack.c.h.b16 %v397
    %v2704 = vunpack.c.l.b16 %v398
    %v2705 = vunpack.c.h.b16 %v398
    %v2706 = vunpack.c.l.b16 %v399
    %v2707 = vunpack.c.h.b16 %v399
    %v2708 = vunpack.c.l.b16 %v400
    %v2709 = vunpack.c.h.b16 %v400
    %v2710 = vunpack.c.l.b16 %v401
    %v2711 = vunpack.c.h.b16 %v401
    %v2712 = vunpack.c.l.b16 %v402
    %v2713 = vunpack.c.h.b16 %v402
    %v2714 = vunpack.c.l.b16 %v403
    %v2715 = vunpack.c.h.b16 %v403
    %v2716 = vunpack.c.l.b16 %v404
    %v2717 = vunpack.c.h.b16 %v404
    %v2718 = vunpack.c.l.b16 %v405
    %v2719 = vunpack.c.h.b16 %v405
    %v2720 = vunpack.c.l.b16 %v406
    %v2721 = vunpack.c.h.b16 %v406
    %v2722 = vunpack.c.l.b16 %v407
    %v2723 = vunpack.c.h.b16 %v407
    %v2724 = vunpack.c.l.b16 %v408
    %v2725 = vunpack.c.h.b16 %v408
    %v2726 = vunpack.c.l.b16 %v409
    %v2727 = vunpack.c.h.b16 %v409
    %v2728 = vunpack.c.l.b16 %v410
    %v2729 = vunpack.c.h.b16 %v410
    %v2730 = vunpack.c.l.b16 %v411
    %v2731 = vunpack.c.h.b16 %v411
    %v2732 = vunpack.c.l.b16 %v412
    %v2733 = vunpack.c.h.b16 %v412
    %v2734 = vunpack.c.l.b16 %v413
    %v2735 = vunpack.c.h.b16 %v413
    %v2736 = vunpack.c.l.b16 %v414
    %v2737 = vunpack.c.h.b16 %v414
    %v2738 = vunpack.c.l.b16 %v415
    %v2739 = vunpack.c.h.b16 %v415
    %v2740 = vunpack.c.l.b16 %v416
    %v2741 = vunpack.c.h.b16 %v416
    %v2742 = vunpack.c.l.b16 %v417
    %v2743 = vunpack.c.h.b16 %v417
    %v2744 = vunpack.c.l.b16 %v418
    %v2745 = vunpack.c.h.b16 %v418
    %v2746 = vunpack.c.l.b16 %v419
    %v2747 = vunpack.c.h.b16 %v419
    %v2748 = vunpack.c.l.b16 %v420
    %v2749 = vunpack.c.h.b16 %v420
    %v2750 = vunpack.c.l.b16 %v421
    %v2751 = vunpack.c.h.b16 %v421
    %v2752 = vunpack.c.l.b16 %v422
    %v2753 = vunpack.c.h.b16 %v422
    %v2754 = vunpack.c.l.b16 %v423
    %v2755 = vunpack.c.h.b16 %v423
    %v2756 = vunpack.c.l.b16 %v424
    %v2757 = vunpack.c.h.b16 %v424
    %v2758 = vunpack.c.l.b16 %v425
    %v2759 = vunpack.c.h.b16 %v425
    %v2760 = vunpack.c.l.b16 %v426
    %v2761 = vunpack.c.h.b16 %v426
    %v2762 = vunpack.c.l.b16 %v427
    %v2763 = vunpack.c.h.b16 %v427
    %v2764 = vunpack.c.l.b16 %v428
    %v2765 = vunpack.c.h.b16 %v428
    %v2766 = vunpack.c.l.b16 %v429
    %v2767 = vunpack.c.h.b16 %v429
    %v2768 = vunpack.c.l.b16 %v430
    %v2769 = vunpack.c.h.b16 %v430
    %v2770 = vunpack.c.l.b16 %v431
    %v2771 = vunpack.c.h.b16 %v431
    %v2772 = vunpack.c.l.b16 %v432
    %v2773 = vunpack.c.h.b16 %v432
    %v2774 = vunpack.c.l.b16 %v433
    %v2775 = vunpack.c.h.b16 %v433
    %v2776 = vunpack.c.l.b16 %v434
    %v2777 = vunpack.c.h.b16 %v434
    %v2778 = vunpack.c.l.b16 %v435
    %v2779 = vunpack.c.h.b16 %v435
    %v2780 = vunpack.c.l.b16 %v436
    %v2781 = vunpack.c.h.b16 %v436
    %v2782 = vunpack.c.l.b16 %v437
    %v2783 = vunpack.c.h.b16 %v437
    %v2784 = vunpack.c.l.b16 %v438
    %v2785 = vunpack.c.h.b16 %v438
    %v2786 = vunpack.c.l.b16 %v439
    %v2787 = vunpack.c.h.b16 %v439
    %v2788 = vunpack.c.l.b16 %v440
    %v2789 = vunpack.c.h.b16 %v440
    %v2790 = vunpack.c.l.b16 %v441
    %v2791 = vunpack.c.h.b16 %v441
    %v2792 = vunpack.c.l.b16 %v442
    %v2793 = vunpack.c.h.b16 %v442
    %v2794 = vunpack.c.l.b16 %v443
    %v2795 = vunpack.c.h.b16 %v443
    %v2796 = vunpack.c.l.b16 %v444
    %v2797 = vunpack.c.h.b16 %v444
    %v2798 = vunpack.c.l.b16 %v445
    %v2799 = vunpack.c.h.b16 %v445
    %v2800 = vunpack.c.l.b16 %v446
    %v2801 = vunpack.c.h.b16 %v446
    %v2802 = vunpack.c.l.b16 %v447
    %v2803 = vunpack.c.h.b16 %v447
    %v2804 = vunpack.c.l.b16 %v448
    %v2805 = vunpack.c.h.b16 %v448
    %v2806 = vunpack.c.l.b16 %v449
    %v2807 = vunpack.c.h.b16 %v449
    %v2808 = vunpack.c.l.b16 %v450
    %v2809 = vunpack.c.h.b16 %v450
    %v2810 = vunpack.c.l.b16 %v451
    %v2811 = vunpack.c.h.b16 %v451
    %v2812 = vunpack.c.l.b16 %v452
    %v2813 = vunpack.c.h.b16 %v452
    %v2814 = vunpack.c.l.b16 %v453
    %v2815 = vunpack.c.h.b16 %v453
    %v2816 = vunpack.c.l.b16 %v454
    %v2817 = vunpack.c.h.b16 %v454
    %v2818 = vunpack.c.l.b16 %v455
    %v2819 = vunpack.c.h.b16 %v455
    %v2820 = vunpack.c.l.b16 %v456
    %v2821 = vunpack.c.h.b16 %v456
    %v2822 = vunpack.c.l.b16 %v457
    %v2823 = vunpack.c.h.b16 %v457
    %v2824 = vunpack.c.l.b16 %v458
    %v2825 = vunpack.c.h.b16 %v458
    %v2826 = vunpack.c.l.b16 %v459
    %v2827 = vunpack.c.h.b16 %v459
    %v2828 = vunpack.c.l.b16 %v460
    %v2829 = vunpack.c.h.b16 %v460
    %v2830 = vunpack.c.l.b16 %v461
    %v2831 = vunpack.c.h.b16 %v461
    %v2832 = vunpack.c.l.b16 %v462
    %v2833 = vunpack.c.h.b16 %v462
    %v2834 = vunpack.c.l.b16 %v463
    %v2835 = vunpack.c.h.b16 %v463
    %v2836 = vunpack.c.l.b16 %v464
    %v2837 = vunpack.c.h.b16 %v464
    %v2838 = vunpack.c.l.b16 %v465
    %v2839 = vunpack.c.h.b16 %v465
    %v2840 = vunpack.c.l.b16 %v466
    %v2841 = vunpack.c.h.b16 %v466
    %v2842 = vunpack.c.l.b16 %v467
    %v2843 = vunpack.c.h.b16 %v467
    %v2844 = vunpack.c.l.b16 %v468
    %v2845 = vunpack.c.h.b16 %v468
    %v2846 = vunpack.c.l.b16 %v469
    %v2847 = vunpack.c.h.b16 %v469
    %v2848 = vunpack.c.l.b16 %v470
    %v2849 = vunpack.c.h.b16 %v470
    %v2850 = vunpack.c.l.b16 %v471
    %v2851 = vunpack.c.h.b16 %v471
    %v2852 = vunpack.c.l.b16 %v472
    %v2853 = vunpack.c.h.b16 %v472
    %v2854 = vunpack.c.l.b16 %v473
    %v2855 = vunpack.c.h.b16 %v473
    %v2856 = vunpack.c.l.b16 %v474
    %v2857 = vunpack.c.h.b16 %v474
    %v2858 = vunpack.c.l.b16 %v475
    %v2859 = vunpack.c.h.b16 %v475
    %v2860 = vunpack.c.l.b16 %v476
    %v2861 = vunpack.c.h.b16 %v476
    %v2862 = vunpack.c.l.b16 %v477
    %v2863 = vunpack.c.h.b16 %v477
    %v2864 = vunpack.c.l.b16 %v478
    %v2865 = vunpack.c.h.b16 %v478
    %v2866 = vunpack.c.l.b16 %v479
    %v2867 = vunpack.c.h.b16 %v479
    %v2868 = vunpack.c.l.b16 %v480
    %v2869 = vunpack.c.h.b16 %v480
    %v2870 = vunpack.c.l.b16 %v481
    %v2871 = vunpack.c.h.b16 %v481
    %v2872 = vunpack.c.l.b16 %v482
    %v2873 = vunpack.c.h.b16 %v482
    %v2874 = vunpack.c.l.b16 %v483
    %v2875 = vunpack.c.h.b16 %v483
    %v2876 = vunpack.c.l.b16 %v484
    %v2877 = vunpack.c.h.b16 %v484
    %v2878 = vunpack.c.l.b16 %v485
    %v2879 = vunpack.c.h.b16 %v485
    %v2880 = vunpack.c.l.b16 %v486
    %v2881 = vunpack.c.h.b16 %v486
    %v2882 = vunpack.c.l.b16 %v487
    %v2883 = vunpack.c.h.b16 %v487
    %v2884 = vunpack.c.l.b16 %v488
    %v2885 = vunpack.c.h.b16 %v488
    %v2886 = vunpack.c.l.b16 %v489
    %v2887 = vunpack.c.h.b16 %v489
    %v2888 = vunpack.c.l.b16 %v490
    %v2889 = vunpack.c.h.b16 %v490
    %v2890 = vunpack.c.l.b16 %v491
    %v2891 = vunpack.c.h.b16 %v491
    %v2892 = vunpack.c.l.b16 %v492
    %v2893 = vunpack.c.h.b16 %v492
    %v2894 = vunpack.c.l.b16 %v493
    %v2895 = vunpack.c.h.b16 %v493
    %v2896 = vunpack.c.l.b16 %v494
    %v2897 = vunpack.c.h.b16 %v494
    %v2898 = vunpack.c.l.b16 %v495
    %v2899 = vunpack.c.h.b16 %v495
    %v2900 = vunpack.c.l.b16 %v496
    %v2901 = vunpack.c.h.b16 %v496
    %v2902 = vunpack.c.l.b16 %v497
    %v2903 = vunpack.c.h.b16 %v497
    %v2904 = vunpack.c.l.b16 %v498
    %v2905 = vunpack.c.h.b16 %v498
    %v2906 = vunpack.c.l.b16 %v499
    %v2907 = vunpack.c.h.b16 %v499
    %v2908 = vunpack.c.l.b16 %v500
    %v2909 = vunpack.c.h.b16 %v500
    %v2910 = vunpack.c.l.b16 %v501
    %v2911 = vunpack.c.h.b16 %v501
    %v2912 = vunpack.c.l.b16 %v502
    %v2913 = vunpack.c.h.b16 %v502
    %v2914 = vunpack.c.l.b16 %v503
    %v2915 = vunpack.c.h.b16 %v503
    %v2916 = vunpack.c.l.b16 %v504
    %v2917 = vunpack.c.h.b16 %v504
    %v2918 = vunpack.c.l.b16 %v505
    %v2919 = vunpack.c.h.b16 %v505
    %v2920 = vunpack.c.l.b16 %v506
    %v2921 = vunpack.c.h.b16 %v506
    %v2922 = vunpack.c.l.b16 %v507
    %v2923 = vunpack.c.h.b16 %v507
    %v2924 = vunpack.c.l.b16 %v508
    %v2925 = vunpack.c.h.b16 %v508
    %v2926 = vunpack.c.l.b16 %v509
    %v2927 = vunpack.c.h.b16 %v509
    %v2928 = vunpack.c.l.b16 %v510
    %v2929 = vunpack.c.h.b16 %v510
    %v2930 = vunpack.c.l.b16 %v511
    %v2931 = vunpack.c.h.b16 %v511
    %v2932 = vunpack.c.l.b16 %v512
    %v2933 = vunpack.c.h.b16 %v512
    %v2934 = vunpack.c.l.b16 %v513
    %v2935 = vunpack.c.h.b16 %v513
    %v2936 = vunpack.c.l.b16 %v514
    %v2937 = vunpack.c.h.b16 %v514
    %v2938 = vunpack.c.l.b16 %v515
    %v2939 = vunpack.c.h.b16 %v515
    %v2940 = vunpack.c.l.b16 %v516
    %v2941 = vunpack.c.h.b16 %v516
    %v2942 = vunpack.c.l.b16 %v517
    %v2943 = vunpack.c.h.b16 %v517
    %v2944 = vunpack.c.l.b16 %v518
    %v2945 = vunpack.c.h.b16 %v518
    %v2946 = vunpack.c.l.b16 %v519
    %v2947 = vunpack.c.h.b16 %v519
    %v2948 = vunpack.c.l.b16 %v520
    %v2949 = vunpack.c.h.b16 %v520
    %v2950 = vunpack.c.l.b16 %v521
    %v2951 = vunpack.c.h.b16 %v521
    %v2952 = vunpack.c.l.b16 %v522
    %v2953 = vunpack.c.h.b16 %v522
    %v2954 = vunpack.c.l.b16 %v523
    %v2955 = vunpack.c.h.b16 %v523
    %v2956 = vunpack.c.l.b16 %v524
    %v2957 = vunpack.c.h.b16 %v524
    %v2958 = vunpack.c.l.b16 %v525
    %v2959 = vunpack.c.h.b16 %v525
    %v2960 = vunpack.c.l.b16 %v526
    %v2961 = vunpack.c.h.b16 %v526
    %v2962 = vunpack.c.l.b16 %v527
    %v2963 = vunpack.c.h.b16 %v527
    %v2964 = vunpack.c.l.b16 %v528
    %v2965 = vunpack.c.h.b16 %v528
    %v2966 = vunpack.c.l.b16 %v529
    %v2967 = vunpack.c.h.b16 %v529
    %v2968 = vunpack.c.l.b16 %v530
    %v2969 = vunpack.c.h.b16 %v530
    %v2970 = vunpack.c.l.b16 %v531
    %v2971 = vunpack.c.h.b16 %v531
    %v2972 = vunpack.c.l.b16 %v532
    %v2973 = vunpack.c.h.b16 %v532
    %v2974 = vunpack.c.l.b16 %v533
    %v2975 = vunpack.c.h.b16 %v533
    %v2976 = vunpack.c.l.b16 %v534
    %v2977 = vunpack.c.h.b16 %v534
    %v2978 = vunpack.c.l.b16 %v535
    %v2979 = vunpack.c.h.b16 %v535
    %v2980 = vunpack.c.l.b16 %v536
    %v2981 = vunpack.c.h.b16 %v536
    %v2982 = vunpack.c.l.b16 %v537
    %v2983 = vunpack.c.h.b16 %v537
    %v2984 = vunpack.c.l.b16 %v538
    %v2985 = vunpack.c.h.b16 %v538
    %v2986 = vunpack.c.l.b16 %v539
    %v2987 = vunpack.c.h.b16 %v539
    %v2988 = vunpack.c.l.b16 %v540
    %v2989 = vunpack.c.h.b16 %v540
    %v2990 = vunpack.c.l.b16 %v541
    %v2991 = vunpack.c.h.b16 %v541
    %v2992 = vunpack.c.l.b16 %v542
    %v2993 = vunpack.c.h.b16 %v542
    %v2994 = vunpack.c.l.b16 %v543
    %v2995 = vunpack.c.h.b16 %v543
    %v2996 = vunpack.c.l.b16 %v544
    %v2997 = vunpack.c.h.b16 %v544
    %v2998 = vunpack.c.l.b16 %v545
    %v2999 = vunpack.c.h.b16 %v545
    %v3000 = vunpack.c.l.b16 %v546
    %v3001 = vunpack.c.h.b16 %v546
    %v3002 = vunpack.c.l.b16 %v547
    %v3003 = vunpack.c.h.b16 %v547
    %v3004 = vunpack.c.l.b16 %v548
    %v3005 = vunpack.c.h.b16 %v548
    %v3006 = vunpack.c.l.b16 %v549
    %v3007 = vunpack.c.h.b16 %v549
    %v3008 = vunpack.c.l.b16 %v550
    %v3009 = vunpack.c.h.b16 %v550
    %v3010 = vunpack.c.l.b16 %v551
    %v3011 = vunpack.c.h.b16 %v551
    %v3012 = vunpack.c.l.b16 %v552
    %v3013 = vunpack.c.h.b16 %v552
    %v3014 = vunpack.c.l.b16 %v553
    %v3015 = vunpack.c.h.b16 %v553
    %v3016 = vunpack.c.l.b16 %v554
    %v3017 = vunpack.c.h.b16 %v554
    %v3018 = vunpack.c.l.b16 %v555
    %v3019 = vunpack.c.h.b16 %v555
    %v3020 = vunpack.c.l.b16 %v556
    %v3021 = vunpack.c.h.b16 %v556
    %v3022 = vunpack.c.l.b16 %v557
    %v3023 = vunpack.c.h.b16 %v557
    %v3024 = vunpack.c.l.b16 %v558
    %v3025 = vunpack.c.h.b16 %v558
    %v3026 = vunpack.c.l.b16 %v559
    %v3027 = vunpack.c.h.b16 %v559
    %v3028 = vunpack.c.l.b16 %v560
    %v3029 = vunpack.c.h.b16 %v560
    %v3030 = vunpack.c.l.b16 %v561
    %v3031 = vunpack.c.h.b16 %v561
    %v3032 = vunpack.c.l.b16 %v562
    %v3033 = vunpack.c.h.b16 %v562
    %v3034 = vunpack.c.l.b16 %v563
    %v3035 = vunpack.c.h.b16 %v563
    %v3036 = vunpack.c.l.b16 %v564
    %v3037 = vunpack.c.h.b16 %v564
    %v3038 = vunpack.c.l.b16 %v565
    %v3039 = vunpack.c.h.b16 %v565
    %v3040 = vunpack.c.l.b16 %v566
    %v3041 = vunpack.c.h.b16 %v566
    %v3042 = vunpack.c.l.b16 %v567
    %v3043 = vunpack.c.h.b16 %v567
    %v3044 = vunpack.c.l.b16 %v568
    %v3045 = vunpack.c.h.b16 %v568
    %v3046 = vunpack.c.l.b16 %v569
    %v3047 = vunpack.c.h.b16 %v569
    %v3048 = vunpack.c.l.b16 %v570
    %v3049 = vunpack.c.h.b16 %v570
    %v3050 = vunpack.c.l.b16 %v571
    %v3051 = vunpack.c.h.b16 %v571
    %v3052 = vunpack.c.l.b16 %v572
    %v3053 = vunpack.c.h.b16 %v572
    %v3054 = vunpack.c.l.b16 %v573
    %v3055 = vunpack.c.h.b16 %v573
    %v3056 = vunpack.c.l.b16 %v574
    %v3057 = vunpack.c.h.b16 %v574
    %v3058 = vunpack.c.l.b16 %v575
    %v3059 = vunpack.c.h.b16 %v575
    %v3060 = vunpack.c.l.b16 %v576
    %v3061 = vunpack.c.h.b16 %v576
    %v3062 = vunpack.c.l.b16 %v577
    %v3063 = vunpack.c.h.b16 %v577
    %v3064 = vunpack.c.l.b16 %v578
    %v3065 = vunpack.c.h.b16 %v578
    %v3066 = vunpack.c.l.b16 %v579
    %v3067 = vunpack.c.h.b16 %v579
    %v3068 = vunpack.c.l.b16 %v580
    %v3069 = vunpack.c.h.b16 %v580
    %v3070 = vunpack.c.l.b16 %v581
    %v3071 = vunpack.c.h.b16 %v581
    %v3072 = vunpack.c.l.b16 %v582
    %v3073 = vunpack.c.h.b16 %v582
    %v3074 = vunpack.c.l.b16 %v583
    %v3075 = vunpack.c.h.b16 %v583
    %v3076 = vunpack.c.l.b16 %v584
    %v3077 = vunpack.c.h.b16 %v584
    %v3078 = vunpack.c.l.b16 %v585
    %v3079 = vunpack.c.h.b16 %v585
    %v3080 = vunpack.c.l.b16 %v586
    %v3081 = vunpack.c.h.b16 %v586
    %v3082 = vunpack.c.l.b16 %v587
    %v3083 = vunpack.c.h.b16 %v587
    %v3084 = vunpack.c.l.b16 %v588
    %v3085 = vunpack.c.h.b16 %v588
    %v3086 = vunpack.c.l.b16 %v589
    %v3087 = vunpack.c.h.b16 %v589
    %v3088 = vunpack.c.l.b16 %v590
    %v3089 = vunpack.c.h.b16 %v590
    %v3090 = vunpack.c.l.b16 %v591
    %v3091 = vunpack.c.h.b16 %v591
    %v3092 = vunpack.c.l.b16 %v592
    %v3093 = vunpack.c.h.b16 %v592
    %v3094 = vunpack.c.l.b16 %v593
    %v3095 = vunpack.c.h.b16 %v593
    %v3096 = vunpack.c.l.b16 %v594
    %v3097 = vunpack.c.h.b16 %v594
    %v3098 = vunpack.c.l.b16 %v595
    %v3099 = vunpack.c.h.b16 %v595
    %v3100 = vunpack.c.l.b16 %v596
    %v3101 = vunpack.c.h.b16 %v596
    %v3102 = vunpack.c.l.b16 %v597
    %v3103 = vunpack.c.h.b16 %v597
    %v3104 = vunpack.c.l.b16 %v598
    %v3105 = vunpack.c.h.b16 %v598
    %v3106 = vunpack.c.l.b16 %v599
    %v3107 = vunpack.c.h.b16 %v599
    %v3108 = vunpack.c.l.b16 %v600
    %v3109 = vunpack.c.h.b16 %v600
    %v3110 = vunpack.c.l.b16 %v601
    %v3111 = vunpack.c.h.b16 %v601
    %v3112 = vunpack.c.l.b16 %v602
    %v3113 = vunpack.c.h.b16 %v602
    %v3114 = vunpack.c.l.b16 %v603
    %v3115 = vunpack.c.h.b16 %v603
    %v3116 = vunpack.c.l.b16 %v604
    %v3117 = vunpack.c.h.b16 %v604
    %v3118 = vunpack.c.l.b16 %v605
    %v3119 = vunpack.c.h.b16 %v605
    %v3120 = vunpack.c.l.b16 %v606
    %v3121 = vunpack.c.h.b16 %v606
    %v3122 = vunpack.c.l.b16 %v607
    %v3123 = vunpack.c.h.b16 %v607
    %v3124 = vunpack.c.l.b16 %v608
    %v3125 = vunpack.c.h.b16 %v608
    %v3126 = vunpack.c.l.b16 %v609
    %v3127 = vunpack.c.h.b16 %v609
    %v3128 = vunpack.c.l.b16 %v610
    %v3129 = vunpack.c.h.b16 %v610
    %v3130 = vunpack.c.l.b16 %v611
    %v3131 = vunpack.c.h.b16 %v611
    %v3132 = vunpack.c.l.b16 %v612
    %v3133 = vunpack.c.h.b16 %v612
    %v3134 = vunpack.c.l.b16 %v613
    %v3135 = vunpack.c.h.b16 %v613
    %v3136 = vunpack.c.l.b16 %v614
    %v3137 = vunpack.c.h.b16 %v614
    %v3138 = vunpack.c.l.b16 %v615
    %v3139 = vunpack.c.h.b16 %v615
    %v3140 = vunpack.c.l.b16 %v616
    %v3141 = vunpack.c.h.b16 %v616
    %v3142 = vunpack.c.l.b16 %v617
    %v3143 = vunpack.c.h.b16 %v617
    %v3144 = vunpack.c.l.b16 %v618
    %v3145 = vunpack.c.h.b16 %v618
    %v3146 = vunpack.c.l.b16 %v619
    %v3147 = vunpack.c.h.b16 %v619
    %v3148 = vunpack.c.l.b16 %v620
    %v3149 = vunpack.c.h.b16 %v620
    %v3150 = vunpack.c.l.b16 %v621
    %v3151 = vunpack.c.h.b16 %v621
    %v3152 = vunpack.c.l.b16 %v622
    %v3153 = vunpack.c.h.b16 %v622
    %v3154 = vunpack.c.l.b16 %v623
    %v3155 = vunpack.c.h.b16 %v623
    %v3156 = vunpack.c.l.b16 %v624
    %v3157 = vunpack.c.h.b16 %v624
    %v3158 = vunpack.c.l.b16 %v625
    %v3159 = vunpack.c.h.b16 %v625
    %v3160 = vunpack.c.l.b16 %v626
    %v3161 = vunpack.c.h.b16 %v626
    %v3162 = vunpack.c.l.b16 %v627
    %v3163 = vunpack.c.h.b16 %v627
    %v3164 = vunpack.c.l.b16 %v628
    %v3165 = vunpack.c.h.b16 %v628
    %v3166 = vunpack.c.l.b16 %v629
    %v3167 = vunpack.c.h.b16 %v629
    %v3168 = vunpack.c.l.b16 %v630
    %v3169 = vunpack.c.h.b16 %v630
    %v3170 = vunpack.c.l.b16 %v631
    %v3171 = vunpack.c.h.b16 %v631
    %v3172 = vunpack.c.l.b16 %v632
    %v3173 = vunpack.c.h.b16 %v632
    %v3174 = vunpack.c.l.b16 %v633
    %v3175 = vunpack.c.h.b16 %v633
    %v3176 = vunpack.c.l.b16 %v634
    %v3177 = vunpack.c.h.b16 %v634
    %v3178 = vunpack.c.l.b16 %v635
    %v3179 = vunpack.c.h.b16 %v635
    %v3180 = vunpack.c.l.b16 %v636
    %v3181 = vunpack.c.h.b16 %v636
    %v3182 = vunpack.c.l.b16 %v637
    %v3183 = vunpack.c.h.b16 %v637
    %v3184 = vunpack.c.l.b16 %v638
    %v3185 = vunpack.c.h.b16 %v638
    %v3186 = vunpack.c.l.b16 %v639
    %v3187 = vunpack.c.h.b16 %v639
    %v3188 = vunpack.c.l.b16 %v640
    %v3189 = vunpack.c.h.b16 %v640
    %v3190 = vunpack.c.l.b16 %v641
    %v3191 = vunpack.c.h.b16 %v641
    %v3192 = vunpack.c.l.b16 %v642
    %v3193 = vunpack.c.h.b16 %v642
    %v3194 = vunpack.c.l.b16 %v643
    %v3195 = vunpack.c.h.b16 %v643
    %v3196 = vunpack.c.l.b16 %v644
    %v3197 = vunpack.c.h.b16 %v644
    %v3198 = vunpack.c.l.b16 %v645
    %v3199 = vunpack.c.h.b16 %v645
    %v3200 = vunpack.c.l.b16 %v646
    %v3201 = vunpack.c.h.b16 %v646
    %v3202 = vunpack.c.l.b16 %v647
    %v3203 = vunpack.c.h.b16 %v647
    %v3204 = vunpack.c.l.b16 %v648
    %v3205 = vunpack.c.h.b16 %v648
    %v3206 = vunpack.c.l.b16 %v649
    %v3207 = vunpack.c.h.b16 %v649
    %v3208 = vunpack.c.l.b16 %v650
    %v3209 = vunpack.c.h.b16 %v650
    %v3210 = vunpack.c.l.b16 %v651
    %v3211 = vunpack.c.h.b16 %v651
    %v3212 = vunpack.c.l.b16 %v652
    %v3213 = vunpack.c.h.b16 %v652
    %v3214 = vunpack.c.l.b16 %v653
    %v3215 = vunpack.c.h.b16 %v653
    %v3216 = vunpack.c.l.b16 %v654
    %v3217 = vunpack.c.h.b16 %v654
    %v3218 = vunpack.c.l.b16 %v655
    %v3219 = vunpack.c.h.b16 %v655
    %v3220 = vunpack.c.l.b16 %v656
    %v3221 = vunpack.c.h.b16 %v656
    %v3222 = vunpack.c.l.b16 %v657
    %v3223 = vunpack.c.h.b16 %v657
    %v3224 = vunpack.c.l.b16 %v658
    %v3225 = vunpack.c.h.b16 %v658
    %v3226 = vunpack.c.l.b16 %v659
    %v3227 = vunpack.c.h.b16 %v659
    %v3228 = vunpack.c.l.b16 %v660
    %v3229 = vunpack.c.h.b16 %v660
    %v3230 = vunpack.c.l.b16 %v661
    %v3231 = vunpack.c.h.b16 %v661
    %v3232 = vunpack.c.l.b16 %v662
    %v3233 = vunpack.c.h.b16 %v662
    %v3234 = vunpack.c.l.b16 %v663
    %v3235 = vunpack.c.h.b16 %v663
    %v3236 = vunpack.c.l.b16 %v664
    %v3237 = vunpack.c.h.b16 %v664
    %v3238 = vunpack.c.l.b16 %v665
    %v3239 = vunpack.c.h.b16 %v665
    %v3240 = vunpack.c.l.b16 %v666
    %v3241 = vunpack.c.h.b16 %v666
    %v3242 = vunpack.c.l.b16 %v667
    %v3243 = vunpack.c.h.b16 %v667
    %v3244 = vunpack.c.l.b16 %v668
    %v3245 = vunpack.c.h.b16 %v668
    %v3246 = vunpack.c.l.b16 %v669
    %v3247 = vunpack.c.h.b16 %v669
    %v3248 = vunpack.c.l.b16 %v670
    %v3249 = vunpack.c.h.b16 %v670
    %v3250 = vunpack.c.l.b16 %v671
    %v3251 = vunpack.c.h.b16 %v671
    %v3252 = vunpack.c.l.b16 %v672
    %v3253 = vunpack.c.h.b16 %v672
    %v3254 = vunpack.c.l.b16 %v673
    %v3255 = vunpack.c.h.b16 %v673
    %v3256 = vunpack.c.l.b16 %v674
    %v3257 = vunpack.c.h.b16 %v674
    %v3258 = vunpack.c.l.b16 %v675
    %v3259 = vunpack.c.h.b16 %v675
    %v3260 = vunpack.c.l.b16 %v676
    %v3261 = vunpack.c.h.b16 %v676
    %v3262 = vunpack.c.l.b16 %v677
    %v3263 = vunpack.c.h.b16 %v677
    %v3264 = vunpack.c.l.b16 %v678
    %v3265 = vunpack.c.h.b16 %v678
    %v3266 = vunpack.c.l.b16 %v679
    %v3267 = vunpack.c.h.b16 %v679
    %v3268 = vunpack.c.l.b16 %v680
    %v3269 = vunpack.c.h.b16 %v680
    %v3270 = vunpack.c.l.b16 %v681
    %v3271 = vunpack.c.h.b16 %v681
    %v3272 = vunpack.c.l.b16 %v682
    %v3273 = vunpack.c.h.b16 %v682
    %v3274 = vunpack.c.l.b16 %v683
    %v3275 = vunpack.c.h.b16 %v683
    %v3276 = vunpack.c.l.b16 %v684
    %v3277 = vunpack.c.h.b16 %v684
    %v3278 = vunpack.c.l.b16 %v685
    %v3279 = vunpack.c.h.b16 %v685
    %v3280 = vunpack.c.l.b16 %v686
    %v3281 = vunpack.c.h.b16 %v686
    %v3282 = vunpack.c.l.b16 %v687
    %v3283 = vunpack.c.h.b16 %v687
    %v3284 = vunpack.c.l.b16 %v688
    %v3285 = vunpack.c.h.b16 %v688
    %v3286 = vunpack.c.l.b16 %v689
    %v3287 = vunpack.c.h.b16 %v689
    %v3288 = vunpack.c.l.b16 %v690
    %v3289 = vunpack.c.h.b16 %v690
    %v3290 = vunpack.c.l.b16 %v691
    %v3291 = vunpack.c.h.b16 %v691
    %v3292 = vunpack.c.l.b16 %v692
    %v3293 = vunpack.c.h.b16 %v692
    %v3294 = vunpack.c.l.b16 %v693
    %v3295 = vunpack.c.h.b16 %v693
    %v3296 = vunpack.c.l.b16 %v694
    %v3297 = vunpack.c.h.b16 %v694
    %v3298 = vunpack.c.l.b16 %v695
    %v3299 = vunpack.c.h.b16 %v695
    %v3300 = vunpack.c.l.b16 %v696
    %v3301 = vunpack.c.h.b16 %v696
    %v3302 = vunpack.c.l.b16 %v697
    %v3303 = vunpack.c.h.b16 %v697
    %v3304 = vunpack.c.l.b16 %v698
    %v3305 = vunpack.c.h.b16 %v698
    %v3306 = vunpack.c.l.b16 %v699
    %v3307 = vunpack.c.h.b16 %v699
    %v3308 = vunpack.c.l.b16 %v700
    %v3309 = vunpack.c.h.b16 %v700
    %v3310 = vunpack.c.l.b16 %v701
    %v3311 = vunpack.c.h.b16 %v701
    %v3312 = vunpack.c.l.b16 %v702
    %v3313 = vunpack.c.h.b16 %v702
    %v3314 = vunpack.c.l.b16 %v703
    %v3315 = vunpack.c.h.b16 %v703
    %v3316 = vunpack.c.l.b16 %v704
    %v3317 = vunpack.c.h.b16 %v704
    %v3318 = vunpack.c.l.b16 %v705
    %v3319 = vunpack.c.h.b16 %v705
    %v3320 = vunpack.c.l.b16 %v706
    %v3321 = vunpack.c.h.b16 %v706
    %v3322 = vunpack.c.l.b16 %v707
    %v3323 = vunpack.c.h.b16 %v707
    %v3324 = vunpack.c.l.b16 %v708
    %v3325 = vunpack.c.h.b16 %v708
    %v3326 = vunpack.c.l.b16 %v709
    %v3327 = vunpack.c.h.b16 %v709
    %v3328 = vunpack.c.l.b16 %v710
    %v3329 = vunpack.c.h.b16 %v710
    %v3330 = vunpack.c.l.b16 %v711
    %v3331 = vunpack.c.h.b16 %v711
    %v3332 = vunpack.c.l.b16 %v712
    %v3333 = vunpack.c.h.b16 %v712
    %v3334 = vunpack.c.l.b16 %v713
    %v3335 = vunpack.c.h.b16 %v713
    %v3336 = vunpack.c.l.b16 %v714
    %v3337 = vunpack.c.h.b16 %v714
    %v3338 = vunpack.c.l.b16 %v715
    %v3339 = vunpack.c.h.b16 %v715
    %v3340 = vunpack.c.l.b16 %v716
    %v3341 = vunpack.c.h.b16 %v716
    %v3342 = vunpack.c.l.b16 %v717
    %v3343 = vunpack.c.h.b16 %v717
    %v3344 = vunpack.c.l.b16 %v718
    %v3345 = vunpack.c.h.b16 %v718
    %v3346 = vunpack.c.l.b16 %v719
    %v3347 = vunpack.c.h.b16 %v719
    %v3348 = vunpack.c.l.b16 %v720
    %v3349 = vunpack.c.h.b16 %v720
    %v3350 = vunpack.c.l.b16 %v721
    %v3351 = vunpack.c.h.b16 %v721
    %v3352 = vunpack.c.l.b16 %v722
    %v3353 = vunpack.c.h.b16 %v722
    %v3354 = vunpack.c.l.b16 %v723
    %v3355 = vunpack.c.h.b16 %v723
    %v3356 = vunpack.c.l.b16 %v724
    %v3357 = vunpack.c.h.b16 %v724
    %v3358 = vunpack.c.l.b16 %v725
    %v3359 = vunpack.c.h.b16 %v725
    %v3360 = vunpack.c.l.b16 %v726
    %v3361 = vunpack.c.h.b16 %v726
    %v3362 = vunpack.c.l.b16 %v727
    %v3363 = vunpack.c.h.b16 %v727
    %v3364 = vunpack.c.l.b16 %v728
    %v3365 = vunpack.c.h.b16 %v728
    %v3366 = vunpack.c.l.b16 %v729
    %v3367 = vunpack.c.h.b16 %v729
    %v3368 = vunpack.c.l.b16 %v730
    %v3369 = vunpack.c.h.b16 %v730
    %v3370 = vunpack.c.l.b16 %v731
    %v3371 = vunpack.c.h.b16 %v731
    %v3372 = vunpack.c.l.b16 %v732
    %v3373 = vunpack.c.h.b16 %v732
    %v3374 = vunpack.c.l.b16 %v733
    %v3375 = vunpack.c.h.b16 %v733
    %v3376 = vunpack.c.l.b16 %v734
    %v3377 = vunpack.c.h.b16 %v734
    %v3378 = vunpack.c.l.b16 %v735
    %v3379 = vunpack.c.h.b16 %v735
    %v3380 = vunpack.c.l.b16 %v736
    %v3381 = vunpack.c.h.b16 %v736
    %v3382 = vunpack.c.l.b16 %v737
    %v3383 = vunpack.c.h.b16 %v737
    %v3384 = vunpack.c.l.b16 %v738
    %v3385 = vunpack.c.h.b16 %v738
    %v3386 = vunpack.c.l.b16 %v739
    %v3387 = vunpack.c.h.b16 %v739
    %v3388 = vunpack.c.l.b16 %v740
    %v3389 = vunpack.c.h.b16 %v740
    %v3390 = vunpack.c.l.b16 %v741
    %v3391 = vunpack.c.h.b16 %v741
    %v3392 = vunpack.c.l.b16 %v742
    %v3393 = vunpack.c.h.b16 %v742
    %v3394 = vunpack.c.l.b16 %v743
    %v3395 = vunpack.c.h.b16 %v743
    %v3396 = vunpack.c.l.b16 %v744
    %v3397 = vunpack.c.h.b16 %v744
    %v3398 = vunpack.c.l.b16 %v745
    %v3399 = vunpack.c.h.b16 %v745
    %v3400 = vunpack.c.l.b16 %v746
    %v3401 = vunpack.c.h.b16 %v746
    %v3402 = vunpack.c.l.b16 %v747
    %v3403 = vunpack.c.h.b16 %v747
    %v3404 = vunpack.c.l.b16 %v748
    %v3405 = vunpack.c.h.b16 %v748
    %v3406 = vunpack.c.l.b16 %v749
    %v3407 = vunpack.c.h.b16 %v749
    %v3408 = vunpack.c.l.b16 %v750
    %v3409 = vunpack.c.h.b16 %v750
    %v3410 = vunpack.c.l.b16 %v751
    %v3411 = vunpack.c.h.b16 %v751
    %v3412 = vunpack.c.l.b16 %v752
    %v3413 = vunpack.c.h.b16 %v752
    %v3414 = vunpack.c.l.b16 %v753
    %v3415 = vunpack.c.h.b16 %v753
    %v3416 = vunpack.c.l.b16 %v754
    %v3417 = vunpack.c.h.b16 %v754
    %v3418 = vunpack.c.l.b16 %v755
    %v3419 = vunpack.c.h.b16 %v755
    %v3420 = vunpack.c.l.b16 %v756
    %v3421 = vunpack.c.h.b16 %v756
    %v3422 = vunpack.c.l.b16 %v757
    %v3423 = vunpack.c.h.b16 %v757
    %v3424 = vunpack.c.l.b16 %v758
    %v3425 = vunpack.c.h.b16 %v758
    %v3426 = vunpack.c.l.b16 %v759
    %v3427 = vunpack.c.h.b16 %v759
    %v3428 = vunpack.c.l.b16 %v760
    %v3429 = vunpack.c.h.b16 %v760
    %v3430 = vunpack.c.l.b16 %v761
    %v3431 = vunpack.c.h.b16 %v761
    %v3432 = vunpack.c.l.b16 %v762
    %v3433 = vunpack.c.h.b16 %v762
    %v3434 = vunpack.c.l.b16 %v763
    %v3435 = vunpack.c.h.b16 %v763
    %v3436 = vunpack.c.l.b16 %v764
    %v3437 = vunpack.c.h.b16 %v764
    %v3438 = vunpack.c.l.b16 %v765
    %v3439 = vunpack.c.h.b16 %v765
    %v3440 = vunpack.c.l.b16 %v766
    %v3441 = vunpack.c.h.b16 %v766
    %v3442 = vunpack.c.l.b16 %v767
    %v3443 = vunpack.c.h.b16 %v767
    %v3444 = vunpack.c.l.b16 %v768
    %v3445 = vunpack.c.h.b16 %v768
    %v3446 = vunpack.c.l.b16 %v769
    %v3447 = vunpack.c.h.b16 %v769
    %v3448 = vunpack.c.l.b16 %v770
    %v3449 = vunpack.c.h.b16 %v770
    %v3450 = vunpack.c.l.b16 %v771
    %v3451 = vunpack.c.h.b16 %v771
    %v3452 = vunpack.c.l.b16 %v772
    %v3453 = vunpack.c.h.b16 %v772
    %v3454 = vunpack.c.l.b16 %v773
    %v3455 = vunpack.c.h.b16 %v773
    %v3456 = vunpack.c.l.b16 %v774
    %v3457 = vunpack.c.h.b16 %v774
    %v3458 = vunpack.c.l.b16 %v775
    %v3459 = vunpack.c.h.b16 %v775
    %v3460 = vunpack.c.l.b16 %v776
    %v3461 = vunpack.c.h.b16 %v776
    %v3462 = vunpack.c.l.b16 %v777
    %v3463 = vunpack.c.h.b16 %v777
    %v3464 = vunpack.c.l.b16 %v778
    %v3465 = vunpack.c.h.b16 %v778
    %v3466 = vunpack.c.l.b16 %v779
    %v3467 = vunpack.c.h.b16 %v779
    %v3468 = vunpack.c.l.b16 %v780
    %v3469 = vunpack.c.h.b16 %v780
    %v3470 = vunpack.c.l.b16 %v781
    %v3471 = vunpack.c.h.b16 %v781
    %v3472 = vunpack.c.l.b16 %v782
    %v3473 = vunpack.c.h.b16 %v782
    %v3474 = vunpack.c.l.b16 %v783
    %v3475 = vunpack.c.h.b16 %v783
    %v3476 = vunpack.c.l.b16 %v784
    %v3477 = vunpack.c.h.b16 %v784
    %v3478 = vunpack.c.l.b16 %v785
    %v3479 = vunpack.c.h.b16 %v785
    %v3480 = vunpack.c.l.b16 %v786
    %v3481 = vunpack.c.h.b16 %v786
    %v3482 = vunpack.c.l.b16 %v787
    %v3483 = vunpack.c.h.b16 %v787
    %v3484 = vunpack.c.l.b16 %v788
    %v3485 = vunpack.c.h.b16 %v788
    %v3486 = vunpack.c.l.b16 %v789
    %v3487 = vunpack.c.h.b16 %v789
    %v3488 = vunpack.c.l.b16 %v790
    %v3489 = vunpack.c.h.b16 %v790
    %v3490 = vunpack.c.l.b16 %v791
    %v3491 = vunpack.c.h.b16 %v791
    %v3492 = vunpack.c.l.b16 %v792
    %v3493 = vunpack.c.h.b16 %v792
    %v3494 = vunpack.c.l.b16 %v793
    %v3495 = vunpack.c.h.b16 %v793
    %v3496 = vunpack.c.l.b16 %v794
    %v3497 = vunpack.c.h.b16 %v794
    %v3498 = vunpack.c.l.b16 %v795
    %v3499 = vunpack.c.h.b16 %v795
    %v3500 = vunpack.c.l.b16 %v796
    %v3501 = vunpack.c.h.b16 %v796
    %v3502 = vunpack.c.l.b16 %v797
    %v3503 = vunpack.c.h.b16 %v797
    %v3504 = vunpack.c.l.b16 %v798
    %v3505 = vunpack.c.h.b16 %v798
    %v3506 = vunpack.c.l.b16 %v799
    %v3507 = vunpack.c.h.b16 %v799
    %v3508 = vunpack.c.l.b16 %v800
    %v3509 = vunpack.c.h.b16 %v800
    %v3510 = vunpack.c.l.b16 %v801
    %v3511 = vunpack.c.h.b16 %v801
    %v3512 = vunpack.c.l.b16 %v802
    %v3513 = vunpack.c.h.b16 %v802
    %v3514 = vunpack.c.l.b16 %v803
    %v3515 = vunpack.c.h.b16 %v803
    %v3516 = vunpack.c.l.b16 %v804
    %v3517 = vunpack.c.h.b16 %v804
    %v3518 = vunpack.c.l.b16 %v805
    %v3519 = vunpack.c.h.b16 %v805
    %v3520 = vunpack.c.l.b16 %v806
    %v3521 = vunpack.c.h.b16 %v806
    %v3522 = vunpack.c.l.b16 %v807
    %v3523 = vunpack.c.h.b16 %v807
    %v3524 = vunpack.c.l.b16 %v808
    %v3525 = vunpack.c.h.b16 %v808
    %v3526 = vunpack.c.l.b16 %v809
    %v3527 = vunpack.c.h.b16 %v809
    %v3528 = vunpack.c.l.b16 %v810
    %v3529 = vunpack.c.h.b16 %v810
    %v3530 = vunpack.c.l.b16 %v811
    %v3531 = vunpack.c.h.b16 %v811
    %v3532 = vunpack.c.l.b16 %v812
    %v3533 = vunpack.c.h.b16 %v812
    %v3534 = vunpack.c.l.b16 %v813
    %v3535 = vunpack.c.h.b16 %v813
    %v3536 = vunpack.c.l.b16 %v814
    %v3537 = vunpack.c.h.b16 %v814
    %v3538 = vunpack.c.l.b16 %v815
    %v3539 = vunpack.c.h.b16 %v815
    %v3540 = vunpack.c.l.b16 %v816
    %v3541 = vunpack.c.h.b16 %v816
    %v3542 = vunpack.c.l.b16 %v817
    %v3543 = vunpack.c.h.b16 %v817
    %v3544 = vunpack.c.l.b16 %v818
    %v3545 = vunpack.c.h.b16 %v818
    %v3546 = vunpack.c.l.b16 %v819
    %v3547 = vunpack.c.h.b16 %v819
    %v3548 = vunpack.c.l.b16 %v820
    %v3549 = vunpack.c.h.b16 %v820
    %v3550 = vunpack.c.l.b16 %v821
    %v3551 = vunpack.c.h.b16 %v821
    %v3552 = vunpack.c.l.b16 %v822
    %v3553 = vunpack.c.h.b16 %v822
    %v3554 = vunpack.c.l.b16 %v823
    %v3555 = vunpack.c.h.b16 %v823
    %v3556 = vunpack.c.l.b16 %v824
    %v3557 = vunpack.c.h.b16 %v824
    %v3558 = vunpack.c.l.b16 %v825
    %v3559 = vunpack.c.h.b16 %v825
    %v3560 = vunpack.c.l.b16 %v826
    %v3561 = vunpack.c.h.b16 %v826
    %v3562 = vunpack.c.l.b16 %v827
    %v3563 = vunpack.c.h.b16 %v827
    %v3564 = vunpack.c.l.b16 %v828
    %v3565 = vunpack.c.h.b16 %v828
    %v3566 = vunpack.c.l.b16 %v829
    %v3567 = vunpack.c.h.b16 %v829
    %v3568 = vunpack.c.l.b16 %v830
    %v3569 = vunpack.c.h.b16 %v830
    %v3570 = vunpack.c.l.b16 %v831
    %v3571 = vunpack.c.h.b16 %v831
    %v3572 = vunpack.c.l.b16 %v832
    %v3573 = vunpack.c.h.b16 %v832
    %v3574 = vunpack.c.l.b16 %v833
    %v3575 = vunpack.c.h.b16 %v833
    %v3576 = vunpack.c.l.b16 %v834
    %v3577 = vunpack.c.h.b16 %v834
    %v3578 = vunpack.c.l.b16 %v835
    %v3579 = vunpack.c.h.b16 %v835
    %v3580 = vunpack.c.l.b16 %v836
    %v3581 = vunpack.c.h.b16 %v836
    %v3582 = vunpack.c.l.b16 %v837
    %v3583 = vunpack.c.h.b16 %v837
    %v3584 = vunpack.c.l.b16 %v838
    %v3585 = vunpack.c.h.b16 %v838
    %v3586 = vunpack.c.l.b16 %v839
    %v3587 = vunpack.c.h.b16 %v839
    %v3588 = vunpack.c.l.b16 %v840
    %v3589 = vunpack.c.h.b16 %v840
    %v3590 = vunpack.c.l.b16 %v841
    %v3591 = vunpack.c.h.b16 %v841
    %v3592 = vunpack.c.l.b16 %v842
    %v3593 = vunpack.c.h.b16 %v842
    %v3594 = vunpack.c.l.b16 %v843
    %v3595 = vunpack.c.h.b16 %v843
    %v3596 = vunpack.c.l.b16 %v844
    %v3597 = vunpack.c.h.b16 %v844
    %v3598 = vunpack.c.l.b16 %v845
    %v3599 = vunpack.c.h.b16 %v845
    %v3600 = vunpack.c.l.b16 %v846
    %v3601 = vunpack.c.h.b16 %v846
    %v3602 = vunpack.c.l.b16 %v847
    %v3603 = vunpack.c.h.b16 %v847
    %v3604 = vunpack.c.l.b16 %v848
    %v3605 = vunpack.c.h.b16 %v848
    %v3606 = vunpack.c.l.b16 %v849
    %v3607 = vunpack.c.h.b16 %v849
    %v3608 = vunpack.c.l.b16 %v850
    %v3609 = vunpack.c.h.b16 %v850
    %v3610 = vunpack.c.l.b16 %v851
    %v3611 = vunpack.c.h.b16 %v851
    %v3612 = vunpack.c.l.b16 %v852
    %v3613 = vunpack.c.h.b16 %v852
    %v3614 = vunpack.c.l.b16 %v853
    %v3615 = vunpack.c.h.b16 %v853
    %v3616 = vunpack.c.l.b16 %v854
    %v3617 = vunpack.c.h.b16 %v854
    %v3618 = vunpack.c.l.b16 %v855
    %v3619 = vunpack.c.h.b16 %v855
    %v3620 = vunpack.c.l.b16 %v856
    %v3621 = vunpack.c.h.b16 %v856
    %v3622 = vunpack.c.l.b16 %v857
    %v3623 = vunpack.c.h.b16 %v857
    %v3624 = vunpack.c.l.b16 %v858
    %v3625 = vunpack.c.h.b16 %v858
    %v3626 = vunpack.c.l.b16 %v859
    %v3627 = vunpack.c.h.b16 %v859
    %v3628 = vunpack.c.l.b16 %v860
    %v3629 = vunpack.c.h.b16 %v860
    %v3630 = vunpack.c.l.b16 %v861
    %v3631 = vunpack.c.h.b16 %v861
    %v3632 = vunpack.c.l.b16 %v862
    %v3633 = vunpack.c.h.b16 %v862
    %v3634 = vunpack.c.l.b16 %v863
    %v3635 = vunpack.c.h.b16 %v863
    %v3636 = vunpack.c.l.b16 %v864
    %v3637 = vunpack.c.h.b16 %v864
    %v3638 = vunpack.c.l.b16 %v865
    %v3639 = vunpack.c.h.b16 %v865
    %v3640 = vunpack.c.l.b16 %v866
    %v3641 = vunpack.c.h.b16 %v866
    %v3642 = vunpack.c.l.b16 %v867
    %v3643 = vunpack.c.h.b16 %v867
    %v3644 = vunpack.c.l.b16 %v868
    %v3645 = vunpack.c.h.b16 %v868
    %v3646 = vunpack.c.l.b16 %v869
    %v3647 = vunpack.c.h.b16 %v869
    %v3648 = vunpack.c.l.b16 %v870
    %v3649 = vunpack.c.h.b16 %v870
    %v3650 = vunpack.c.l.b16 %v871
    %v3651 = vunpack.c.h.b16 %v871
    %v3652 = vunpack.c.l.b16 %v872
    %v3653 = vunpack.c.h.b16 %v872
    %v3654 = vunpack.c.l.b16 %v873
    %v3655 = vunpack.c.h.b16 %v873
    %v3656 = vunpack.c.l.b16 %v874
    %v3657 = vunpack.c.h.b16 %v874
    %v3658 = vunpack.c.l.b16 %v875
    %v3659 = vunpack.c.h.b16 %v875
    %v3660 = vunpack.c.l.b16 %v876
    %v3661 = vunpack.c.h.b16 %v876
    %v3662 = vunpack.c.l.b16 %v877
    %v3663 = vunpack.c.h.b16 %v877
    %v3664 = vunpack.c.l.b16 %v878
    %v3665 = vunpack.c.h.b16 %v878
    %v3666 = vunpack.c.l.b16 %v879
    %v3667 = vunpack.c.h.b16 %v879
    %v3668 = vunpack.c.l.b16 %v880
    %v3669 = vunpack.c.h.b16 %v880
    %v3670 = vunpack.c.l.b16 %v881
    %v3671 = vunpack.c.h.b16 %v881
    %v3672 = vunpack.c.l.b16 %v882
    %v3673 = vunpack.c.h.b16 %v882
    %v3674 = vunpack.c.l.b16 %v883
    %v3675 = vunpack.c.h.b16 %v883
    %v3676 = vunpack.c.l.b16 %v884
    %v3677 = vunpack.c.h.b16 %v884
    %v3678 = vunpack.c.l.b16 %v885
    %v3679 = vunpack.c.h.b16 %v885
    %v3680 = vunpack.c.l.b16 %v886
    %v3681 = vunpack.c.h.b16 %v886
    %v3682 = vunpack.c.l.b16 %v887
    %v3683 = vunpack.c.h.b16 %v887
    %v3684 = vunpack.c.l.b16 %v888
    %v3685 = vunpack.c.h.b16 %v888
    %v3686 = vunpack.c.l.b16 %v889
    %v3687 = vunpack.c.h.b16 %v889
    %v3688 = vunpack.c.l.b16 %v890
    %v3689 = vunpack.c.h.b16 %v890
    %v3690 = vunpack.c.l.b16 %v891
    %v3691 = vunpack.c.h.b16 %v891
    %v3692 = vunpack.c.l.b16 %v892
    %v3693 = vunpack.c.h.b16 %v892
    %v3694 = vunpack.c.l.b16 %v893
    %v3695 = vunpack.c.h.b16 %v893
    %v3696 = vunpack.c.l.b16 %v894
    %v3697 = vunpack.c.h.b16 %v894
    %v3698 = vunpack.c.l.b16 %v895
    %v3699 = vunpack.c.h.b16 %v895
    %v3700 = vunpack.c.l.b16 %v896
    %v3701 = vunpack.c.h.b16 %v896
    %v3702 = vunpack.c.l.b16 %v897
    %v3703 = vunpack.c.h.b16 %v897
    %v3704 = vunpack.c.l.b16 %v898
    %v3705 = vunpack.c.h.b16 %v898
    %v3706 = vunpack.c.l.b16 %v899
    %v3707 = vunpack.c.h.b16 %v899
    %v3708 = vunpack.c.l.b16 %v900
    %v3709 = vunpack.c.h.b16 %v900
    %v3710 = vunpack.c.l.b16 %v901
    %v3711 = vunpack.c.h.b16 %v901
    %v3712 = vunpack.c.l.b16 %v902
    %v3713 = vunpack.c.h.b16 %v902
    %v3714 = vunpack.c.l.b16 %v903
    %v3715 = vunpack.c.h.b16 %v903
    %v3716 = vunpack.c.l.b16 %v904
    %v3717 = vunpack.c.h.b16 %v904
    %v3718 = vunpack.c.l.b16 %v905
    %v3719 = vunpack.c.h.b16 %v905
    %v3720 = vunpack.c.l.b16 %v906
    %v3721 = vunpack.c.h.b16 %v906
    %v3722 = vunpack.c.l.b16 %v907
    %v3723 = vunpack.c.h.b16 %v907
    %v3724 = vunpack.c.l.b16 %v908
    %v3725 = vunpack.c.h.b16 %v908
    %v3726 = vunpack.c.l.b16 %v909
    %v3727 = vunpack.c.h.b16 %v909
    %v3728 = vunpack.c.l.b16 %v910
    %v3729 = vunpack.c.h.b16 %v910
    %v3730 = vunpack.c.l.b16 %v911
    %v3731 = vunpack.c.h.b16 %v911
    %v3732 = vunpack.c.l.b16 %v912
    %v3733 = vunpack.c.h.b16 %v912
    %v3734 = vunpack.c.l.b16 %v913
    %v3735 = vunpack.c.h.b16 %v913
    %v3736 = vunpack.c.l.b16 %v914
    %v3737 = vunpack.c.h.b16 %v914
    %v3738 = vunpack.c.l.b16 %v915
    %v3739 = vunpack.c.h.b16 %v915
    %v3740 = vunpack.c.l.b16 %v916
    %v3741 = vunpack.c.h.b16 %v916
    %v3742 = vunpack.c.l.b16 %v917
    %v3743 = vunpack.c.h.b16 %v917
    %v3744 = vunpack.c.l.b16 %v918
    %v3745 = vunpack.c.h.b16 %v918
    %v3746 = vunpack.c.l.b16 %v919
    %v3747 = vunpack.c.h.b16 %v919
    %v3748 = vunpack.c.l.b16 %v920
    %v3749 = vunpack.c.h.b16 %v920
    %v3750 = vunpack.c.l.b16 %v921
    %v3751 = vunpack.c.h.b16 %v921
    %v3752 = vunpack.c.l.b16 %v922
    %v3753 = vunpack.c.h.b16 %v922
    %v3754 = vunpack.c.l.b16 %v923
    %v3755 = vunpack.c.h.b16 %v923
    %v3756 = vunpack.c.l.b16 %v924
    %v3757 = vunpack.c.h.b16 %v924
    %v3758 = vunpack.c.l.b16 %v925
    %v3759 = vunpack.c.h.b16 %v925
    %v3760 = vunpack.c.l.b16 %v926
    %v3761 = vunpack.c.h.b16 %v926
    %v3762 = vunpack.c.l.b16 %v927
    %v3763 = vunpack.c.h.b16 %v927
    %v3764 = vunpack.c.l.b16 %v928
    %v3765 = vunpack.c.h.b16 %v928
    %v3766 = vunpack.c.l.b16 %v929
    %v3767 = vunpack.c.h.b16 %v929
    %v3768 = vunpack.c.l.b16 %v930
    %v3769 = vunpack.c.h.b16 %v930
    %v3770 = vunpack.c.l.b16 %v931
    %v3771 = vunpack.c.h.b16 %v931
    %v3772 = vunpack.c.l.b16 %v932
    %v3773 = vunpack.c.h.b16 %v932
    %v3774 = vunpack.c.l.b16 %v933
    %v3775 = vunpack.c.h.b16 %v933
    %v3776 = vunpack.c.l.b16 %v934
    %v3777 = vunpack.c.h.b16 %v934
    %v3778 = vunpack.c.l.b16 %v935
    %v3779 = vunpack.c.h.b16 %v935
    %v3780 = vunpack.c.l.b16 %v936
    %v3781 = vunpack.c.h.b16 %v936
    %v3782 = vunpack.c.l.b16 %v937
    %v3783 = vunpack.c.h.b16 %v937
    %v3784 = vunpack.c.l.b16 %v938
    %v3785 = vunpack.c.h.b16 %v938
    %v3786 = vunpack.c.l.b16 %v939
    %v3787 = vunpack.c.h.b16 %v939
    %v3788 = vunpack.c.l.b16 %v940
    %v3789 = vunpack.c.h.b16 %v940
    %v3790 = vunpack.c.l.b16 %v941
    %v3791 = vunpack.c.h.b16 %v941
    %v3792 = vunpack.c.l.b16 %v942
    %v3793 = vunpack.c.h.b16 %v942
    %v3794 = vunpack.c.l.b16 %v943
    %v3795 = vunpack.c.h.b16 %v943
    %v3796 = vunpack.c.l.b16 %v944
    %v3797 = vunpack.c.h.b16 %v944
    %v3798 = vunpack.c.l.b16 %v945
    %v3799 = vunpack.c.h.b16 %v945
    %v3800 = vunpack.c.l.b16 %v946
    %v3801 = vunpack.c.h.b16 %v946
    %v3802 = vunpack.c.l.b16 %v947
    %v3803 = vunpack.c.h.b16 %v947
    %v3804 = vunpack.c.l.b16 %v948
    %v3805 = vunpack.c.h.b16 %v948
    %v3806 = vunpack.c.l.b16 %v949
    %v3807 = vunpack.c.h.b16 %v949
    %v3808 = vunpack.c.l.b16 %v950
    %v3809 = vunpack.c.h.b16 %v950
    %v3810 = vunpack.c.l.b16 %v951
    %v3811 = vunpack.c.h.b16 %v951
    %v3812 = vunpack.c.l.b16 %v952
    %v3813 = vunpack.c.h.b16 %v952
    %v3814 = vunpack.c.l.b16 %v953
    %v3815 = vunpack.c.h.b16 %v953
    %v3816 = vunpack.c.l.b16 %v954
    %v3817 = vunpack.c.h.b16 %v954
    %v3818 = vunpack.c.l.b16 %v955
    %v3819 = vunpack.c.h.b16 %v955
    %v3820 = vunpack.c.l.b16 %v956
    %v3821 = vunpack.c.h.b16 %v956
    %v3822 = vunpack.c.l.b16 %v957
    %v3823 = vunpack.c.h.b16 %v957
    %v3824 = vunpack.c.l.b16 %v958
    %v3825 = vunpack.c.h.b16 %v958
    %v3826 = vunpack.c.l.b16 %v959
    %v3827 = vunpack.c.h.b16 %v959
    %v3828 = vunpack.c.l.b16 %v960
    %v3829 = vunpack.c.h.b16 %v960
    %v3830 = vunpack.c.l.b16 %v961
    %v3831 = vunpack.c.h.b16 %v961
    %v3832 = vunpack.c.l.b16 %v962
    %v3833 = vunpack.c.h.b16 %v962
    %v3834 = vunpack.c.l.b16 %v963
    %v3835 = vunpack.c.h.b16 %v963
    %v3836 = vunpack.c.l.b16 %v964
    %v3837 = vunpack.c.h.b16 %v964
    %v3838 = vunpack.c.l.b16 %v965
    %v3839 = vunpack.c.h.b16 %v965
    %v3840 = vunpack.c.l.b16 %v966
    %v3841 = vunpack.c.h.b16 %v966
    %v3842 = vunpack.c.l.b16 %v967
    %v3843 = vunpack.c.h.b16 %v967
    %v3844 = vunpack.c.l.b16 %v968
    %v3845 = vunpack.c.h.b16 %v968
    %v3846 = vunpack.c.l.b16 %v969
    %v3847 = vunpack.c.h.b16 %v969
    %v3848 = vunpack.c.l.b16 %v970
    %v3849 = vunpack.c.h.b16 %v970
    %v3850 = vunpack.c.l.b16 %v971
    %v3851 = vunpack.c.h.b16 %v971
    %v3852 = vunpack.c.l.b16 %v972
    %v3853 = vunpack.c.h.b16 %v972
    %v3854 = vunpack.c.l.b16 %v973
    %v3855 = vunpack.c.h.b16 %v973
    %v3856 = vunpack.c.l.b16 %v974
    %v3857 = vunpack.c.h.b16 %v974
    %v3858 = vunpack.c.l.b16 %v975
    %v3859 = vunpack.c.h.b16 %v975
    %v3860 = vunpack.c.l.b16 %v976
    %v3861 = vunpack.c.h.b16 %v976
    %v3862 = vunpack.c.l.b16 %v977
    %v3863 = vunpack.c.h.b16 %v977
    %v3864 = vunpack.c.l.b16 %v978
    %v3865 = vunpack.c.h.b16 %v978
    %v3866 = vunpack.c.l.b16 %v979
    %v3867 = vunpack.c.h.b16 %v979
    %v3868 = vunpack.c.l.b16 %v980
    %v3869 = vunpack.c.h.b16 %v980
    %v3870 = vunpack.c.l.b16 %v981
    %v3871 = vunpack.c.h.b16 %v981
    %v3872 = vunpack.c.l.b16 %v982
    %v3873 = vunpack.c.h.b16 %v982
    %v3874 = vunpack.c.l.b16 %v983
    %v3875 = vunpack.c.h.b16 %v983
    %v3876 = vunpack.c.l.b16 %v984
    %v3877 = vunpack.c.h.b16 %v984
    %v3878 = vunpack.c.l.b16 %v985
    %v3879 = vunpack.c.h.b16 %v985
    %v3880 = vunpack.c.l.b16 %v986
    %v3881 = vunpack.c.h.b16 %v986
    %v3882 = vunpack.c.l.b16 %v987
    %v3883 = vunpack.c.h.b16 %v987
    %v3884 = vunpack.c.l.b16 %v988
    %v3885 = vunpack.c.h.b16 %v988
    %v3886 = vunpack.c.l.b16 %v989
    %v3887 = vunpack.c.h.b16 %v989
    %v3888 = vunpack.c.l.b16 %v990
    %v3889 = vunpack.c.h.b16 %v990
    %v3890 = vunpack.c.l.b16 %v991
    %v3891 = vunpack.c.h.b16 %v991
    %v3892 = vunpack.c.l.b16 %v992
    %v3893 = vunpack.c.h.b16 %v992
    %v3894 = vunpack.c.l.b16 %v993
    %v3895 = vunpack.c.h.b16 %v993
    %v3896 = vunpack.c.l.b16 %v994
    %v3897 = vunpack.c.h.b16 %v994
    %v3898 = vunpack.c.l.b16 %v995
    %v3899 = vunpack.c.h.b16 %v995
    %v3900 = vunpack.c.l.b16 %v996
    %v3901 = vunpack.c.h.b16 %v996
    %v3902 = vunpack.c.l.b16 %v997
    %v3903 = vunpack.c.h.b16 %v997
    %v3904 = vunpack.c.l.b16 %v998
    %v3905 = vunpack.c.h.b16 %v998
    %v3906 = vunpack.c.l.b16 %v999
    %v3907 = vunpack.c.h.b16 %v999
    %v3908 = vunpack.c.l.b16 %v1000
    %v3909 = vunpack.c.h.b16 %v1000
    %v3910 = vunpack.c.l.b16 %v1001
    %v3911 = vunpack.c.h.b16 %v1001
    %v3912 = vunpack.c.l.b16 %v1002
    %v3913 = vunpack.c.h.b16 %v1002
    %v3914 = vunpack.c.l.b16 %v1003
    %v3915 = vunpack.c.h.b16 %v1003
    %v3916 = vunpack.c.l.b16 %v1004
    %v3917 = vunpack.c.h.b16 %v1004
    %v3918 = vunpack.c.l.b16 %v1005
    %v3919 = vunpack.c.h.b16 %v1005
    %v3920 = vunpack.c.l.b16 %v1006
    %v3921 = vunpack.c.h.b16 %v1006
    %v3922 = vunpack.c.l.b16 %v1007
    %v3923 = vunpack.c.h.b16 %v1007
    %v3924 = vunpack.c.l.b16 %v1008
    %v3925 = vunpack.c.h.b16 %v1008
    %v3926 = vunpack.c.l.b16 %v1009
    %v3927 = vunpack.c.h.b16 %v1009
    %v3928 = vunpack.c.l.b16 %v1010
    %v3929 = vunpack.c.h.b16 %v1010
    %v3930 = vunpack.c.l.b16 %v1011
    %v3931 = vunpack.c.h.b16 %v1011
    %v3932 = vunpack.c.l.b16 %v1012
    %v3933 = vunpack.c.h.b16 %v1012
    %v3934 = vunpack.c.l.b16 %v1013
    %v3935 = vunpack.c.h.b16 %v1013
    %v3936 = vunpack.c.l.b16 %v1014
    %v3937 = vunpack.c.h.b16 %v1014
    %v3938 = vunpack.c.l.b16 %v1015
    %v3939 = vunpack.c.h.b16 %v1015
    %v3940 = vunpack.c.l.b16 %v1016
    %v3941 = vunpack.c.h.b16 %v1016
    %v3942 = vunpack.c.l.b16 %v1017
    %v3943 = vunpack.c.h.b16 %v1017
    %v3944 = vunpack.c.l.b16 %v1018
    %v3945 = vunpack.c.h.b16 %v1018
    %v3946 = vunpack.c.l.b16 %v1019
    %v3947 = vunpack.c.h.b16 %v1019
    %v3948 = vunpack.c.l.b16 %v1020
    %v3949 = vunpack.c.h.b16 %v1020
    %v3950 = vunpack.c.l.b16 %v1021
    %v3951 = vunpack.c.h.b16 %v1021
    %v3952 = vunpack.c.l.b16 %v1022
    %v3953 = vunpack.c.h.b16 %v1022
    %v3954 = vunpack.c.l.b16 %v1023
    %v3955 = vunpack.c.h.b16 %v1023
    %v3956 = vunpack.c.l.b16 %v1024
    %v3957 = vunpack.c.h.b16 %v1024
    %v3958 = vunpack.c.l.b16 %v1025
    %v3959 = vunpack.c.h.b16 %v1025
    %v3960 = vunpack.c.l.b16 %v1026
    %v3961 = vunpack.c.h.b16 %v1026
    %v3962 = vunpack.c.l.b16 %v1027
    %v3963 = vunpack.c.h.b16 %v1027
    %v3964 = vunpack.c.l.b16 %v1028
    %v3965 = vunpack.c.h.b16 %v1028
    %v3966 = vunpack.c.l.b16 %v1029
    %v3967 = vunpack.c.h.b16 %v1029
    %v3968 = vunpack.c.l.b16 %v1030
    %v3969 = vunpack.c.h.b16 %v1030
    %v3970 = vunpack.c.l.b16 %v1031
    %v3971 = vunpack.c.h.b16 %v1031
    %v3972 = vunpack.c.l.b16 %v1032
    %v3973 = vunpack.c.h.b16 %v1032
    %v3974 = vunpack.c.l.b16 %v1033
    %v3975 = vunpack.c.h.b16 %v1033
    %v3976 = vunpack.c.l.b16 %v1034
    %v3977 = vunpack.c.h.b16 %v1034
    %v3978 = vunpack.c.l.b16 %v1035
    %v3979 = vunpack.c.h.b16 %v1035
    %v3980 = vunpack.c.l.b16 %v1036
    %v3981 = vunpack.c.h.b16 %v1036
    %v3982 = vunpack.c.l.b16 %v1037
    %v3983 = vunpack.c.h.b16 %v1037
    %v3984 = vunpack.c.l.b16 %v1038
    %v3985 = vunpack.c.h.b16 %v1038
    %v3986 = vunpack.c.l.b16 %v1039
    %v3987 = vunpack.c.h.b16 %v1039
    %v3988 = vunpack.c.l.b16 %v1040
    %v3989 = vunpack.c.h.b16 %v1040
    %v3990 = vunpack.c.l.b16 %v1041
    %v3991 = vunpack.c.h.b16 %v1041
    %v3992 = vunpack.c.l.b16 %v1042
    %v3993 = vunpack.c.h.b16 %v1042
    %v3994 = vunpack.c.l.b16 %v1043
    %v3995 = vunpack.c.h.b16 %v1043
    %v3996 = vunpack.c.l.b16 %v1044
    %v3997 = vunpack.c.h.b16 %v1044
    %v3998 = vunpack.c.l.b16 %v1045
    %v3999 = vunpack.c.h.b16 %v1045
    %v4000 = vunpack.c.l.b16 %v1046
    %v4001 = vunpack.c.h.b16 %v1046
    %v4002 = vunpack.c.l.b16 %v1047
    %v4003 = vunpack.c.h.b16 %v1047
    %v4004 = vunpack.c.l.b16 %v1048
    %v4005 = vunpack.c.h.b16 %v1048
    %v4006 = vunpack.c.l.b16 %v1049
    %v4007 = vunpack.c.h.b16 %v1049
    %v4008 = vunpack.c.l.b16 %v1050
    %v4009 = vunpack.c.h.b16 %v1050
    %v4010 = vunpack.c.l.b16 %v1051
    %v4011 = vunpack.c.h.b16 %v1051
    %v4012 = vunpack.c.l.b16 %v1052
    %v4013 = vunpack.c.h.b16 %v1052
    %v4014 = vunpack.c.l.b16 %v1053
    %v4015 = vunpack.c.h.b16 %v1053
    %v4016 = vunpack.c.l.b16 %v1054
    %v4017 = vunpack.c.h.b16 %v1054
    %v4018 = vunpack.c.l.b16 %v1055
    %v4019 = vunpack.c.h.b16 %v1055
    %v4020 = vunpack.c.l.b16 %v1056
    %v4021 = vunpack.c.h.b16 %v1056
    %v4022 = vunpack.c.l.b16 %v1057
    %v4023 = vunpack.c.h.b16 %v1057
    %v4024 = vunpack.c.l.b16 %v1058
    %v4025 = vunpack.c.h.b16 %v1058
    %v4026 = vunpack.c.l.b16 %v1059
    %v4027 = vunpack.c.h.b16 %v1059
    %v4028 = vunpack.c.l.b16 %v1060
    %v4029 = vunpack.c.h.b16 %v1060
    %v4030 = vunpack.c.l.b16 %v1061
    %v4031 = vunpack.c.h.b16 %v1061
    %v4032 = vunpack.c.l.b16 %v1062
    %v4033 = vunpack.c.h.b16 %v1062
    %v4034 = vunpack.c.l.b16 %v1063
    %v4035 = vunpack.c.h.b16 %v1063
    %v4036 = vunpack.c.l.b16 %v1064
    %v4037 = vunpack.c.h.b16 %v1064
    %v4038 = vunpack.c.l.b16 %v1065
    %v4039 = vunpack.c.h.b16 %v1065
    %v4040 = vunpack.c.l.b16 %v1066
    %v4041 = vunpack.c.h.b16 %v1066
    %v4042 = vunpack.c.l.b16 %v1067
    %v4043 = vunpack.c.h.b16 %v1067
    %v4044 = vunpack.c.l.b16 %v1068
    %v4045 = vunpack.c.h.b16 %v1068
    %v4046 = vunpack.c.l.b16 %v1069
    %v4047 = vunpack.c.h.b16 %v1069
    %v4048 = vunpack.c.l.b16 %v1070
    %v4049 = vunpack.c.h.b16 %v1070
    %v4050 = vunpack.c.l.b16 %v1071
    %v4051 = vunpack.c.h.b16 %v1071
    %v4052 = vunpack.c.l.b16 %v1072
    %v4053 = vunpack.c.h.b16 %v1072
    %v4054 = vunpack.c.l.b16 %v1073
    %v4055 = vunpack.c.h.b16 %v1073
    %v4056 = vunpack.c.l.b16 %v1074
    %v4057 = vunpack.c.h.b16 %v1074
    %v4058 = vunpack.c.l.b16 %v1075
    %v4059 = vunpack.c.h.b16 %v1075
    %v4060 = vunpack.c.l.b16 %v1076
    %v4061 = vunpack.c.h.b16 %v1076
    %v4062 = vunpack.c.l.b16 %v1077
    %v4063 = vunpack.c.h.b16 %v1077
    %v4064 = vunpack.c.l.b16 %v1078
    %v4065 = vunpack.c.h.b16 %v1078
    %v4066 = vunpack.c.l.b16 %v1079
    %v4067 = vunpack.c.h.b16 %v1079
    %v4068 = vunpack.c.l.b16 %v1080
    %v4069 = vunpack.c.h.b16 %v1080
    %v4070 = vunpack.c.l.b16 %v1081
    %v4071 = vunpack.c.h.b16 %v1081
    %v4072 = vunpack.c.l.b16 %v1082
    %v4073 = vunpack.c.h.b16 %v1082
    %v4074 = vunpack.c.l.b16 %v1083
    %v4075 = vunpack.c.h.b16 %v1083
    %v4076 = vunpack.c.l.b16 %v1084
    %v4077 = vunpack.c.h.b16 %v1084
    %v4078 = vunpack.c.l.b16 %v1085
    %v4079 = vunpack.c.h.b16 %v1085
    %v4080 = vunpack.c.l.b16 %v1086
    %v4081 = vunpack.c.h.b16 %v1086
    %v4082 = vunpack.c.l.b16 %v1087
    %v4083 = vunpack.c.h.b16 %v1087
    %v4084 = vunpack.c.l.b16 %v1088
    %v4085 = vunpack.c.h.b16 %v1088
    %v4086 = vunpack.c.l.b16 %v1089
    %v4087 = vunpack.c.h.b16 %v1089
    %v4088 = vunpack.c.l.b16 %v1090
    %v4089 = vunpack.c.h.b16 %v1090
    %v4090 = vunpack.c.l.b16 %v1091
    %v4091 = vunpack.c.h.b16 %v1091
    %v4092 = vunpack.c.l.b16 %v1092
    %v4093 = vunpack.c.h.b16 %v1092
    %v4094 = vunpack.c.l.b16 %v1093
    %v4095 = vunpack.c.h.b16 %v1093
    %v4096 = vunpack.c.l.b16 %v1094
    %v4097 = vunpack.c.h.b16 %v1094
    %v4098 = vunpack.c.l.b16 %v1095
    %v4099 = vunpack.c.h.b16 %v1095
    %v4100 = vunpack.c.l.b16 %v1096
    %v4101 = vunpack.c.h.b16 %v1096
    %v4102 = vunpack.c.l.b16 %v1097
    %v4103 = vunpack.c.h.b16 %v1097
    %v4104 = vunpack.c.l.b16 %v1098
    %v4105 = vunpack.c.h.b16 %v1098
    %v4106 = vunpack.c.l.b16 %v1099
    %v4107 = vunpack.c.h.b16 %v1099
    %v4108 = vunpack.c.l.b16 %v1100
    %v4109 = vunpack.c.h.b16 %v1100
    %v4110 = vunpack.c.l.b16 %v1101
    %v4111 = vunpack.c.h.b16 %v1101
    %v4112 = vunpack.c.l.b16 %v1102
    %v4113 = vunpack.c.h.b16 %v1102
    %v4114 = vunpack.c.l.b16 %v1103
    %v4115 = vunpack.c.h.b16 %v1103
    %v4116 = vunpack.c.l.b16 %v1104
    %v4117 = vunpack.c.h.b16 %v1104
    %v4118 = vunpack.c.l.b16 %v1105
    %v4119 = vunpack.c.h.b16 %v1105
    %v4120 = vunpack.c.l.b16 %v1106
    %v4121 = vunpack.c.h.b16 %v1106
    %v4122 = vunpack.c.l.b16 %v1107
    %v4123 = vunpack.c.h.b16 %v1107
    %v4124 = vunpack.c.l.b16 %v1108
    %v4125 = vunpack.c.h.b16 %v1108
    %v4126 = vunpack.c.l.b16 %v1109
    %v4127 = vunpack.c.h.b16 %v1109
    %v4128 = vunpack.c.l.b16 %v1110
    %v4129 = vunpack.c.h.b16 %v1110
    %v4130 = vunpack.c.l.b16 %v1111
    %v4131 = vunpack.c.h.b16 %v1111
    %v4132 = vunpack.c.l.b16 %v1112
    %v4133 = vunpack.c.h.b16 %v1112
    %v4134 = vunpack.c.l.b16 %v1113
    %v4135 = vunpack.c.h.b16 %v1113
    %v4136 = vunpack.c.l.b16 %v1114
    %v4137 = vunpack.c.h.b16 %v1114
    %v4138 = vunpack.c.l.b16 %v1115
    %v4139 = vunpack.c.h.b16 %v1115
    %v4140 = vunpack.c.l.b16 %v1116
    %v4141 = vunpack.c.h.b16 %v1116
    %v4142 = vunpack.c.l.b16 %v1117
    %v4143 = vunpack.c.h.b16 %v1117
    %v4144 = vunpack.c.l.b16 %v1118
    %v4145 = vunpack.c.h.b16 %v1118
    %v4146 = vunpack.c.l.b16 %v1119
    %v4147 = vunpack.c.h.b16 %v1119
    %v4148 = vunpack.c.l.b16 %v1120
    %v4149 = vunpack.c.h.b16 %v1120
    %v4150 = vunpack.c.l.b16 %v1121
    %v4151 = vunpack.c.h.b16 %v1121
    %v4152 = vunpack.c.l.b16 %v1122
    %v4153 = vunpack.c.h.b16 %v1122
    %v4154 = vunpack.c.l.b16 %v1123
    %v4155 = vunpack.c.h.b16 %v1123
    %v4156 = vunpack.c.l.b16 %v1124
    %v4157 = vunpack.c.h.b16 %v1124
    %v4158 = vunpack.c.l.b16 %v1125
    %v4159 = vunpack.c.h.b16 %v1125
    %v4160 = vunpack.c.l.b16 %v1126
    %v4161 = vunpack.c.h.b16 %v1126
    %v4162 = vunpack.c.l.b16 %v1127
    %v4163 = vunpack.c.h.b16 %v1127
    %v4164 = vunpack.c.l.b16 %v1128
    %v4165 = vunpack.c.h.b16 %v1128
    %v4166 = vunpack.c.l.b16 %v1129
    %v4167 = vunpack.c.h.b16 %v1129
    %v4168 = vunpack.c.l.b16 %v1130
    %v4169 = vunpack.c.h.b16 %v1130
    %v4170 = vunpack.c.l.b16 %v1131
    %v4171 = vunpack.c.h.b16 %v1131
    %v4172 = vunpack.c.l.b16 %v1132
    %v4173 = vunpack.c.h.b16 %v1132
    %v4174 = vunpack.c.l.b16 %v1133
    %v4175 = vunpack.c.h.b16 %v1133
    %v4176 = vunpack.c.l.b16 %v1134
    %v4177 = vunpack.c.h.b16 %v1134
    %v4178 = vunpack.c.l.b16 %v1135
    %v4179 = vunpack.c.h.b16 %v1135
    %v4180 = vunpack.c.l.b16 %v1136
    %v4181 = vunpack.c.h.b16 %v1136
    %v4182 = vunpack.c.l.b16 %v1137
    %v4183 = vunpack.c.h.b16 %v1137
    %v4184 = vunpack.c.l.b16 %v1138
    %v4185 = vunpack.c.h.b16 %v1138
    %v4186 = vunpack.c.l.b16 %v1139
    %v4187 = vunpack.c.h.b16 %v1139
    %v4188 = vunpack.c.l.b16 %v1140
    %v4189 = vunpack.c.h.b16 %v1140
    %v4190 = vunpack.c.l.b16 %v1141
    %v4191 = vunpack.c.h.b16 %v1141
    %v4192 = vunpack.c.l.b16 %v1142
    %v4193 = vunpack.c.h.b16 %v1142
    %v4194 = vunpack.c.l.b16 %v1143
    %v4195 = vunpack.c.h.b16 %v1143
    %v4196 = vunpack.c.l.b16 %v1144
    %v4197 = vunpack.c.h.b16 %v1144
    %v4198 = vunpack.c.l.b16 %v1145
    %v4199 = vunpack.c.h.b16 %v1145
    %v4200 = vunpack.c.l.b16 %v1146
    %v4201 = vunpack.c.h.b16 %v1146
    %v4202 = vunpack.c.l.b16 %v1147
    %v4203 = vunpack.c.h.b16 %v1147
    %v4204 = vunpack.c.l.b16 %v1148
    %v4205 = vunpack.c.h.b16 %v1148
    %v4206 = vunpack.c.l.b16 %v1149
    %v4207 = vunpack.c.h.b16 %v1149
    %v4208 = vunpack.c.l.b16 %v1150
    %v4209 = vunpack.c.h.b16 %v1150
    %v4210 = vunpack.c.l.b16 %v1151
    %v4211 = vunpack.c.h.b16 %v1151
    %v4212 = vunpack.c.l.b16 %v1152
    %v4213 = vunpack.c.h.b16 %v1152
    %v4214 = vunpack.c.l.b16 %v1153
    %v4215 = vunpack.c.h.b16 %v1153
    %v4216 = vunpack.c.l.b16 %v1154
    %v4217 = vunpack.c.h.b16 %v1154
    %v4218 = vunpack.c.l.b16 %v1155
    %v4219 = vunpack.c.h.b16 %v1155
    %v4220 = vunpack.c.l.b16 %v1156
    %v4221 = vunpack.c.h.b16 %v1156
    %v4222 = vunpack.c.l.b16 %v1157
    %v4223 = vunpack.c.h.b16 %v1157
    %v4224 = vunpack.c.l.b16 %v1158
    %v4225 = vunpack.c.h.b16 %v1158
    %v4226 = vunpack.c.l.b16 %v1159
    %v4227 = vunpack.c.h.b16 %v1159
    %v4228 = vunpack.c.l.b16 %v1160
    %v4229 = vunpack.c.h.b16 %v1160
    %v4230 = vunpack.c.l.b16 %v1161
    %v4231 = vunpack.c.h.b16 %v1161
    %v4232 = vunpack.c.l.b16 %v1162
    %v4233 = vunpack.c.h.b16 %v1162
    %v4234 = vunpack.c.l.b16 %v1163
    %v4235 = vunpack.c.h.b16 %v1163
    %v4236 = vpack.c.b16 %v2204, %v2188
    %v4237 = vpack.c.b16 %v2205, %v2189
    %v4238 = vpack.c.b16 %v2206, %v2190
    %v4239 = vpack.c.b16 %v2207, %v2191
    %v4240 = vpack.c.b16 %v2208, %v2192
    %v4241 = vpack.c.b16 %v2209, %v2193
    %v4242 = vpack.c.b16 %v2210, %v2194
    %v4243 = vpack.c.b16 %v2211, %v2195
    %v4244 = vpack.c.b16 %v2212, %v2196
    %v4245 = vpack.c.b16 %v2213, %v2197
    %v4246 = vpack.c.b16 %v2214, %v2198
    %v4247 = vpack.c.b16 %v2215, %v2199
    %v4248 = vpack.c.b16 %v2216, %v2200
    %v4249 = vpack.c.b16 %v2217, %v2201
    %v4250 = vpack.c.b16 %v2218, %v2202
    %v4251 = vpack.c.b16 %v2219, %v2203
    %v4252 = vpack.c.b16 %v2236, %v2220
    %v4253 = vpack.c.b16 %v2237, %v2221
    %v4254 = vpack.c.b16 %v2238, %v2222
    %v4255 = vpack.c.b16 %v2239, %v2223
    %v4256 = vpack.c.b16 %v2240, %v2224
    %v4257 = vpack.c.b16 %v2241, %v2225
    %v4258 = vpack.c.b16 %v2242, %v2226
    %v4259 = vpack.c.b16 %v2243, %v2227
    %v4260 = vpack.c.b16 %v2244, %v2228
    %v4261 = vpack.c.b16 %v2245, %v2229
    %v4262 = vpack.c.b16 %v2246, %v2230
    %v4263 = vpack.c.b16 %v2247, %v2231
    %v4264 = vpack.c.b16 %v2248, %v2232
    %v4265 = vpack.c.b16 %v2249, %v2233
    %v4266 = vpack.c.b16 %v2250, %v2234
    %v4267 = vpack.c.b16 %v2251, %v2235
    %v4268 = vpack.c.b16 %v2268, %v2252
    %v4269 = vpack.c.b16 %v2269, %v2253
    %v4270 = vpack.c.b16 %v2270, %v2254
    %v4271 = vpack.c.b16 %v2271, %v2255
    %v4272 = vpack.c.b16 %v2272, %v2256
    %v4273 = vpack.c.b16 %v2273, %v2257
    %v4274 = vpack.c.b16 %v2274, %v2258
    %v4275 = vpack.c.b16 %v2275, %v2259
    %v4276 = vpack.c.b16 %v2276, %v2260
    %v4277 = vpack.c.b16 %v2277, %v2261
    %v4278 = vpack.c.b16 %v2278, %v2262
    %v4279 = vpack.c.b16 %v2279, %v2263
    %v4280 = vpack.c.b16 %v2280, %v2264
    %v4281 = vpack.c.b16 %v2281, %v2265
    %v4282 = vpack.c.b16 %v2282, %v2266
    %v4283 = vpack.c.b16 %v2283, %v2267
    %v4284 = vpack.c.b16 %v2300, %v2284
    %v4285 = vpack.c.b16 %v2301, %v2285
    %v4286 = vpack.c.b16 %v2302, %v2286
    %v4287 = vpack.c.b16 %v2303, %v2287
    %v4288 = vpack.c.b16 %v2304, %v2288
    %v4289 = vpack.c.b16 %v2305, %v2289
    %v4290 = vpack.c.b16 %v2306, %v2290
    %v4291 = vpack.c.b16 %v2307, %v2291
    %v4292 = vpack.c.b16 %v2308, %v2292
    %v4293 = vpack.c.b16 %v2309, %v2293
    %v4294 = vpack.c.b16 %v2310, %v2294
    %v4295 = vpack.c.b16 %v2311, %v2295
    %v4296 = vpack.c.b16 %v2312, %v2296
    %v4297 = vpack.c.b16 %v2313, %v2297
    %v4298 = vpack.c.b16 %v2314, %v2298
    %v4299 = vpack.c.b16 %v2315, %v2299
    %v4300 = vpack.c.b16 %v2332, %v2316
    %v4301 = vpack.c.b16 %v2333, %v2317
    %v4302 = vpack.c.b16 %v2334, %v2318
    %v4303 = vpack.c.b16 %v2335, %v2319
    %v4304 = vpack.c.b16 %v2336, %v2320
    %v4305 = vpack.c.b16 %v2337, %v2321
    %v4306 = vpack.c.b16 %v2338, %v2322
    %v4307 = vpack.c.b16 %v2339, %v2323
    %v4308 = vpack.c.b16 %v2340, %v2324
    %v4309 = vpack.c.b16 %v2341, %v2325
    %v4310 = vpack.c.b16 %v2342, %v2326
    %v4311 = vpack.c.b16 %v2343, %v2327
    %v4312 = vpack.c.b16 %v2344, %v2328
    %v4313 = vpack.c.b16 %v2345, %v2329
    %v4314 = vpack.c.b16 %v2346, %v2330
    %v4315 = vpack.c.b16 %v2347, %v2331
    %v4316 = vpack.c.b16 %v2364, %v2348
    %v4317 = vpack.c.b16 %v2365, %v2349
    %v4318 = vpack.c.b16 %v2366, %v2350
    %v4319 = vpack.c.b16 %v2367, %v2351
    %v4320 = vpack.c.b16 %v2368, %v2352
    %v4321 = vpack.c.b16 %v2369, %v2353
    %v4322 = vpack.c.b16 %v2370, %v2354
    %v4323 = vpack.c.b16 %v2371, %v2355
    %v4324 = vpack.c.b16 %v2372, %v2356
    %v4325 = vpack.c.b16 %v2373, %v2357
    %v4326 = vpack.c.b16 %v2374, %v2358
    %v4327 = vpack.c.b16 %v2375, %v2359
    %v4328 = vpack.c.b16 %v2376, %v2360
    %v4329 = vpack.c.b16 %v2377, %v2361
    %v4330 = vpack.c.b16 %v2378, %v2362
    %v4331 = vpack.c.b16 %v2379, %v2363
    %v4332 = vpack.c.b16 %v2396, %v2380
    %v4333 = vpack.c.b16 %v2397, %v2381
    %v4334 = vpack.c.b16 %v2398, %v2382
    %v4335 = vpack.c.b16 %v2399, %v2383
    %v4336 = vpack.c.b16 %v2400, %v2384
    %v4337 = vpack.c.b16 %v2401, %v2385
    %v4338 = vpack.c.b16 %v2402, %v2386
    %v4339 = vpack.c.b16 %v2403, %v2387
    %v4340 = vpack.c.b16 %v2404, %v2388
    %v4341 = vpack.c.b16 %v2405, %v2389
    %v4342 = vpack.c.b16 %v2406, %v2390
    %v4343 = vpack.c.b16 %v2407, %v2391
    %v4344 = vpack.c.b16 %v2408, %v2392
    %v4345 = vpack.c.b16 %v2409, %v2393
    %v4346 = vpack.c.b16 %v2410, %v2394
    %v4347 = vpack.c.b16 %v2411, %v2395
    %v4348 = vpack.c.b16 %v2428, %v2412
    %v4349 = vpack.c.b16 %v2429, %v2413
    %v4350 = vpack.c.b16 %v2430, %v2414
    %v4351 = vpack.c.b16 %v2431, %v2415
    %v4352 = vpack.c.b16 %v2432, %v2416
    %v4353 = vpack.c.b16 %v2433, %v2417
    %v4354 = vpack.c.b16 %v2434, %v2418
    %v4355 = vpack.c.b16 %v2435, %v2419
    %v4356 = vpack.c.b16 %v2436, %v2420
    %v4357 = vpack.c.b16 %v2437, %v2421
    %v4358 = vpack.c.b16 %v2438, %v2422
    %v4359 = vpack.c.b16 %v2439, %v2423
    %v4360 = vpack.c.b16 %v2440, %v2424
    %v4361 = vpack.c.b16 %v2441, %v2425
    %v4362 = vpack.c.b16 %v2442, %v2426
    %v4363 = vpack.c.b16 %v2443, %v2427
    %v4364 = vpack.c.b16 %v2460, %v2444
    %v4365 = vpack.c.b16 %v2461, %v2445
    %v4366 = vpack.c.b16 %v2462, %v2446
    %v4367 = vpack.c.b16 %v2463, %v2447
    %v4368 = vpack.c.b16 %v2464, %v2448
    %v4369 = vpack.c.b16 %v2465, %v2449
    %v4370 = vpack.c.b16 %v2466, %v2450
    %v4371 = vpack.c.b16 %v2467, %v2451
    %v4372 = vpack.c.b16 %v2468, %v2452
    %v4373 = vpack.c.b16 %v2469, %v2453
    %v4374 = vpack.c.b16 %v2470, %v2454
    %v4375 = vpack.c.b16 %v2471, %v2455
    %v4376 = vpack.c.b16 %v2472, %v2456
    %v4377 = vpack.c.b16 %v2473, %v2457
    %v4378 = vpack.c.b16 %v2474, %v2458
    %v4379 = vpack.c.b16 %v2475, %v2459
    %v4380 = vpack.c.b16 %v2492, %v2476
    %v4381 = vpack.c.b16 %v2493, %v2477
    %v4382 = vpack.c.b16 %v2494, %v2478
    %v4383 = vpack.c.b16 %v2495, %v2479
    %v4384 = vpack.c.b16 %v2496, %v2480
    %v4385 = vpack.c.b16 %v2497, %v2481
    %v4386 = vpack.c.b16 %v2498, %v2482
    %v4387 = vpack.c.b16 %v2499, %v2483
    %v4388 = vpack.c.b16 %v2500, %v2484
    %v4389 = vpack.c.b16 %v2501, %v2485
    %v4390 = vpack.c.b16 %v2502, %v2486
    %v4391 = vpack.c.b16 %v2503, %v2487
    %v4392 = vpack.c.b16 %v2504, %v2488
    %v4393 = vpack.c.b16 %v2505, %v2489
    %v4394 = vpack.c.b16 %v2506, %v2490
    %v4395 = vpack.c.b16 %v2507, %v2491
    %v4396 = vpack.c.b16 %v2524, %v2508
    %v4397 = vpack.c.b16 %v2525, %v2509
    %v4398 = vpack.c.b16 %v2526, %v2510
    %v4399 = vpack.c.b16 %v2527, %v2511
    %v4400 = vpack.c.b16 %v2528, %v2512
    %v4401 = vpack.c.b16 %v2529, %v2513
    %v4402 = vpack.c.b16 %v2530, %v2514
    %v4403 = vpack.c.b16 %v2531, %v2515
    %v4404 = vpack.c.b16 %v2532, %v2516
    %v4405 = vpack.c.b16 %v2533, %v2517
    %v4406 = vpack.c.b16 %v2534, %v2518
    %v4407 = vpack.c.b16 %v2535, %v2519
    %v4408 = vpack.c.b16 %v2536, %v2520
    %v4409 = vpack.c.b16 %v2537, %v2521
    %v4410 = vpack.c.b16 %v2538, %v2522
    %v4411 = vpack.c.b16 %v2539, %v2523
    %v4412 = vpack.c.b16 %v2556, %v2540
    %v4413 = vpack.c.b16 %v2557, %v2541
    %v4414 = vpack.c.b16 %v2558, %v2542
    %v4415 = vpack.c.b16 %v2559, %v2543
    %v4416 = vpack.c.b16 %v2560, %v2544
    %v4417 = vpack.c.b16 %v2561, %v2545
    %v4418 = vpack.c.b16 %v2562, %v2546
    %v4419 = vpack.c.b16 %v2563, %v2547
    %v4420 = vpack.c.b16 %v2564, %v2548
    %v4421 = vpack.c.b16 %v2565, %v2549
    %v4422 = vpack.c.b16 %v2566, %v2550
    %v4423 = vpack.c.b16 %v2567, %v2551
    %v4424 = vpack.c.b16 %v2568, %v2552
    %v4425 = vpack.c.b16 %v2569, %v2553
    %v4426 = vpack.c.b16 %v2570, %v2554
    %v4427 = vpack.c.b16 %v2571, %v2555
    %v4428 = vpack.c.b16 %v2588, %v2572
    %v4429 = vpack.c.b16 %v2589, %v2573
    %v4430 = vpack.c.b16 %v2590, %v2574
    %v4431 = vpack.c.b16 %v2591, %v2575
    %v4432 = vpack.c.b16 %v2592, %v2576
    %v4433 = vpack.c.b16 %v2593, %v2577
    %v4434 = vpack.c.b16 %v2594, %v2578
    %v4435 = vpack.c.b16 %v2595, %v2579
    %v4436 = vpack.c.b16 %v2596, %v2580
    %v4437 = vpack.c.b16 %v2597, %v2581
    %v4438 = vpack.c.b16 %v2598, %v2582
    %v4439 = vpack.c.b16 %v2599, %v2583
    %v4440 = vpack.c.b16 %v2600, %v2584
    %v4441 = vpack.c.b16 %v2601, %v2585
    %v4442 = vpack.c.b16 %v2602, %v2586
    %v4443 = vpack.c.b16 %v2603, %v2587
    %v4444 = vpack.c.b16 %v2620, %v2604
    %v4445 = vpack.c.b16 %v2621, %v2605
    %v4446 = vpack.c.b16 %v2622, %v2606
    %v4447 = vpack.c.b16 %v2623, %v2607
    %v4448 = vpack.c.b16 %v2624, %v2608
    %v4449 = vpack.c.b16 %v2625, %v2609
    %v4450 = vpack.c.b16 %v2626, %v2610
    %v4451 = vpack.c.b16 %v2627, %v2611
    %v4452 = vpack.c.b16 %v2628, %v2612
    %v4453 = vpack.c.b16 %v2629, %v2613
    %v4454 = vpack.c.b16 %v2630, %v2614
    %v4455 = vpack.c.b16 %v2631, %v2615
    %v4456 = vpack.c.b16 %v2632, %v2616
    %v4457 = vpack.c.b16 %v2633, %v2617
    %v4458 = vpack.c.b16 %v2634, %v2618
    %v4459 = vpack.c.b16 %v2635, %v2619
    %v4460 = vpack.c.b16 %v2652, %v2636
    %v4461 = vpack.c.b16 %v2653, %v2637
    %v4462 = vpack.c.b16 %v2654, %v2638
    %v4463 = vpack.c.b16 %v2655, %v2639
    %v4464 = vpack.c.b16 %v2656, %v2640
    %v4465 = vpack.c.b16 %v2657, %v2641
    %v4466 = vpack.c.b16 %v2658, %v2642
    %v4467 = vpack.c.b16 %v2659, %v2643
    %v4468 = vpack.c.b16 %v2660, %v2644
    %v4469 = vpack.c.b16 %v2661, %v2645
    %v4470 = vpack.c.b16 %v2662, %v2646
    %v4471 = vpack.c.b16 %v2663, %v2647
    %v4472 = vpack.c.b16 %v2664, %v2648
    %v4473 = vpack.c.b16 %v2665, %v2649
    %v4474 = vpack.c.b16 %v2666, %v2650
    %v4475 = vpack.c.b16 %v2667, %v2651
    %v4476 = vpack.c.b16 %v2684, %v2668
    %v4477 = vpack.c.b16 %v2685, %v2669
    %v4478 = vpack.c.b16 %v2686, %v2670
    %v4479 = vpack.c.b16 %v2687, %v2671
    %v4480 = vpack.c.b16 %v2688, %v2672
    %v4481 = vpack.c.b16 %v2689, %v2673
    %v4482 = vpack.c.b16 %v2690, %v2674
    %v4483 = vpack.c.b16 %v2691, %v2675
    %v4484 = vpack.c.b16 %v2692, %v2676
    %v4485 = vpack.c.b16 %v2693, %v2677
    %v4486 = vpack.c.b16 %v2694, %v2678
    %v4487 = vpack.c.b16 %v2695, %v2679
    %v4488 = vpack.c.b16 %v2696, %v2680
    %v4489 = vpack.c.b16 %v2697, %v2681
    %v4490 = vpack.c.b16 %v2698, %v2682
    %v4491 = vpack.c.b16 %v2699, %v2683
    %v4492 = vpack.c.b16 %v2716, %v2700
    %v4493 = vpack.c.b16 %v2717, %v2701
    %v4494 = vpack.c.b16 %v2718, %v2702
    %v4495 = vpack.c.b16 %v2719, %v2703
    %v4496 = vpack.c.b16 %v2720, %v2704
    %v4497 = vpack.c.b16 %v2721, %v2705
    %v4498 = vpack.c.b16 %v2722, %v2706
    %v4499 = vpack.c.b16 %v2723, %v2707
    %v4500 = vpack.c.b16 %v2724, %v2708
    %v4501 = vpack.c.b16 %v2725, %v2709
    %v4502 = vpack.c.b16 %v2726, %v2710
    %v4503 = vpack.c.b16 %v2727, %v2711
    %v4504 = vpack.c.b16 %v2728, %v2712
    %v4505 = vpack.c.b16 %v2729, %v2713
    %v4506 = vpack.c.b16 %v2730, %v2714
    %v4507 = vpack.c.b16 %v2731, %v2715
    %v4508 = vpack.c.b16 %v2748, %v2732
    %v4509 = vpack.c.b16 %v2749, %v2733
    %v4510 = vpack.c.b16 %v2750, %v2734
    %v4511 = vpack.c.b16 %v2751, %v2735
    %v4512 = vpack.c.b16 %v2752, %v2736
    %v4513 = vpack.c.b16 %v2753, %v2737
    %v4514 = vpack.c.b16 %v2754, %v2738
    %v4515 = vpack.c.b16 %v2755, %v2739
    %v4516 = vpack.c.b16 %v2756, %v2740
    %v4517 = vpack.c.b16 %v2757, %v2741
    %v4518 = vpack.c.b16 %v2758, %v2742
    %v4519 = vpack.c.b16 %v2759, %v2743
    %v4520 = vpack.c.b16 %v2760, %v2744
    %v4521 = vpack.c.b16 %v2761, %v2745
    %v4522 = vpack.c.b16 %v2762, %v2746
    %v4523 = vpack.c.b16 %v2763, %v2747
    %v4524 = vpack.c.b16 %v2780, %v2764
    %v4525 = vpack.c.b16 %v2781, %v2765
    %v4526 = vpack.c.b16 %v2782, %v2766
    %v4527 = vpack.c.b16 %v2783, %v2767
    %v4528 = vpack.c.b16 %v2784, %v2768
    %v4529 = vpack.c.b16 %v2785, %v2769
    %v4530 = vpack.c.b16 %v2786, %v2770
    %v4531 = vpack.c.b16 %v2787, %v2771
    %v4532 = vpack.c.b16 %v2788, %v2772
    %v4533 = vpack.c.b16 %v2789, %v2773
    %v4534 = vpack.c.b16 %v2790, %v2774
    %v4535 = vpack.c.b16 %v2791, %v2775
    %v4536 = vpack.c.b16 %v2792, %v2776
    %v4537 = vpack.c.b16 %v2793, %v2777
    %v4538 = vpack.c.b16 %v2794, %v2778
    %v4539 = vpack.c.b16 %v2795, %v2779
    %v4540 = vpack.c.b16 %v2812, %v2796
    %v4541 = vpack.c.b16 %v2813, %v2797
    %v4542 = vpack.c.b16 %v2814, %v2798
    %v4543 = vpack.c.b16 %v2815, %v2799
    %v4544 = vpack.c.b16 %v2816, %v2800
    %v4545 = vpack.c.b16 %v2817, %v2801
    %v4546 = vpack.c.b16 %v2818, %v2802
    %v4547 = vpack.c.b16 %v2819, %v2803
    %v4548 = vpack.c.b16 %v2820, %v2804
    %v4549 = vpack.c.b16 %v2821, %v2805
    %v4550 = vpack.c.b16 %v2822, %v2806
    %v4551 = vpack.c.b16 %v2823, %v2807
    %v4552 = vpack.c.b16 %v2824, %v2808
    %v4553 = vpack.c.b16 %v2825, %v2809
    %v4554 = vpack.c.b16 %v2826, %v2810
    %v4555 = vpack.c.b16 %v2827, %v2811
    %v4556 = vpack.c.b16 %v2844, %v2828
    %v4557 = vpack.c.b16 %v2845, %v2829
    %v4558 = vpack.c.b16 %v2846, %v2830
    %v4559 = vpack.c.b16 %v2847, %v2831
    %v4560 = vpack.c.b16 %v2848, %v2832
    %v4561 = vpack.c.b16 %v2849, %v2833
    %v4562 = vpack.c.b16 %v2850, %v2834
    %v4563 = vpack.c.b16 %v2851, %v2835
    %v4564 = vpack.c.b16 %v2852, %v2836
    %v4565 = vpack.c.b16 %v2853, %v2837
    %v4566 = vpack.c.b16 %v2854, %v2838
    %v4567 = vpack.c.b16 %v2855, %v2839
    %v4568 = vpack.c.b16 %v2856, %v2840
    %v4569 = vpack.c.b16 %v2857, %v2841
    %v4570 = vpack.c.b16 %v2858, %v2842
    %v4571 = vpack.c.b16 %v2859, %v2843
    %v4572 = vpack.c.b16 %v2876, %v2860
    %v4573 = vpack.c.b16 %v2877, %v2861
    %v4574 = vpack.c.b16 %v2878, %v2862
    %v4575 = vpack.c.b16 %v2879, %v2863
    %v4576 = vpack.c.b16 %v2880, %v2864
    %v4577 = vpack.c.b16 %v2881, %v2865
    %v4578 = vpack.c.b16 %v2882, %v2866
    %v4579 = vpack.c.b16 %v2883, %v2867
    %v4580 = vpack.c.b16 %v2884, %v2868
    %v4581 = vpack.c.b16 %v2885, %v2869
    %v4582 = vpack.c.b16 %v2886, %v2870
    %v4583 = vpack.c.b16 %v2887, %v2871
    %v4584 = vpack.c.b16 %v2888, %v2872
    %v4585 = vpack.c.b16 %v2889, %v2873
    %v4586 = vpack.c.b16 %v2890, %v2874
    %v4587 = vpack.c.b16 %v2891, %v2875
    %v4588 = vpack.c.b16 %v2908, %v2892
    %v4589 = vpack.c.b16 %v2909, %v2893
    %v4590 = vpack.c.b16 %v2910, %v2894
    %v4591 = vpack.c.b16 %v2911, %v2895
    %v4592 = vpack.c.b16 %v2912, %v2896
    %v4593 = vpack.c.b16 %v2913, %v2897
    %v4594 = vpack.c.b16 %v2914, %v2898
    %v4595 = vpack.c.b16 %v2915, %v2899
    %v4596 = vpack.c.b16 %v2916, %v2900
    %v4597 = vpack.c.b16 %v2917, %v2901
    %v4598 = vpack.c.b16 %v2918, %v2902
    %v4599 = vpack.c.b16 %v2919, %v2903
    %v4600 = vpack.c.b16 %v2920, %v2904
    %v4601 = vpack.c.b16 %v2921, %v2905
    %v4602 = vpack.c.b16 %v2922, %v2906
    %v4603 = vpack.c.b16 %v2923, %v2907
    %v4604 = vpack.c.b16 %v2940, %v2924
    %v4605 = vpack.c.b16 %v2941, %v2925
    %v4606 = vpack.c.b16 %v2942, %v2926
    %v4607 = vpack.c.b16 %v2943, %v2927
    %v4608 = vpack.c.b16 %v2944, %v2928
    %v4609 = vpack.c.b16 %v2945, %v2929
    %v4610 = vpack.c.b16 %v2946, %v2930
    %v4611 = vpack.c.b16 %v2947, %v2931
    %v4612 = vpack.c.b16 %v2948, %v2932
    %v4613 = vpack.c.b16 %v2949, %v2933
    %v4614 = vpack.c.b16 %v2950, %v2934
    %v4615 = vpack.c.b16 %v2951, %v2935
    %v4616 = vpack.c.b16 %v2952, %v2936
    %v4617 = vpack.c.b16 %v2953, %v2937
    %v4618 = vpack.c.b16 %v2954, %v2938
    %v4619 = vpack.c.b16 %v2955, %v2939
    %v4620 = vpack.c.b16 %v2972, %v2956
    %v4621 = vpack.c.b16 %v2973, %v2957
    %v4622 = vpack.c.b16 %v2974, %v2958
    %v4623 = vpack.c.b16 %v2975, %v2959
    %v4624 = vpack.c.b16 %v2976, %v2960
    %v4625 = vpack.c.b16 %v2977, %v2961
    %v4626 = vpack.c.b16 %v2978, %v2962
    %v4627 = vpack.c.b16 %v2979, %v2963
    %v4628 = vpack.c.b16 %v2980, %v2964
    %v4629 = vpack.c.b16 %v2981, %v2965
    %v4630 = vpack.c.b16 %v2982, %v2966
    %v4631 = vpack.c.b16 %v2983, %v2967
    %v4632 = vpack.c.b16 %v2984, %v2968
    %v4633 = vpack.c.b16 %v2985, %v2969
    %v4634 = vpack.c.b16 %v2986, %v2970
    %v4635 = vpack.c.b16 %v2987, %v2971
    %v4636 = vpack.c.b16 %v3004, %v2988
    %v4637 = vpack.c.b16 %v3005, %v2989
    %v4638 = vpack.c.b16 %v3006, %v2990
    %v4639 = vpack.c.b16 %v3007, %v2991
    %v4640 = vpack.c.b16 %v3008, %v2992
    %v4641 = vpack.c.b16 %v3009, %v2993
    %v4642 = vpack.c.b16 %v3010, %v2994
    %v4643 = vpack.c.b16 %v3011, %v2995
    %v4644 = vpack.c.b16 %v3012, %v2996
    %v4645 = vpack.c.b16 %v3013, %v2997
    %v4646 = vpack.c.b16 %v3014, %v2998
    %v4647 = vpack.c.b16 %v3015, %v2999
    %v4648 = vpack.c.b16 %v3016, %v3000
    %v4649 = vpack.c.b16 %v3017, %v3001
    %v4650 = vpack.c.b16 %v3018, %v3002
    %v4651 = vpack.c.b16 %v3019, %v3003
    %v4652 = vpack.c.b16 %v3036, %v3020
    %v4653 = vpack.c.b16 %v3037, %v3021
    %v4654 = vpack.c.b16 %v3038, %v3022
    %v4655 = vpack.c.b16 %v3039, %v3023
    %v4656 = vpack.c.b16 %v3040, %v3024
    %v4657 = vpack.c.b16 %v3041, %v3025
    %v4658 = vpack.c.b16 %v3042, %v3026
    %v4659 = vpack.c.b16 %v3043, %v3027
    %v4660 = vpack.c.b16 %v3044, %v3028
    %v4661 = vpack.c.b16 %v3045, %v3029
    %v4662 = vpack.c.b16 %v3046, %v3030
    %v4663 = vpack.c.b16 %v3047, %v3031
    %v4664 = vpack.c.b16 %v3048, %v3032
    %v4665 = vpack.c.b16 %v3049, %v3033
    %v4666 = vpack.c.b16 %v3050, %v3034
    %v4667 = vpack.c.b16 %v3051, %v3035
    %v4668 = vpack.c.b16 %v3068, %v3052
    %v4669 = vpack.c.b16 %v3069, %v3053
    %v4670 = vpack.c.b16 %v3070, %v3054
    %v4671 = vpack.c.b16 %v3071, %v3055
    %v4672 = vpack.c.b16 %v3072, %v3056
    %v4673 = vpack.c.b16 %v3073, %v3057
    %v4674 = vpack.c.b16 %v3074, %v3058
    %v4675 = vpack.c.b16 %v3075, %v3059
    %v4676 = vpack.c.b16 %v3076, %v3060
    %v4677 = vpack.c.b16 %v3077, %v3061
    %v4678 = vpack.c.b16 %v3078, %v3062
    %v4679 = vpack.c.b16 %v3079, %v3063
    %v4680 = vpack.c.b16 %v3080, %v3064
    %v4681 = vpack.c.b16 %v3081, %v3065
    %v4682 = vpack.c.b16 %v3082, %v3066
    %v4683 = vpack.c.b16 %v3083, %v3067
    %v4684 = vpack.c.b16 %v3100, %v3084
    %v4685 = vpack.c.b16 %v3101, %v3085
    %v4686 = vpack.c.b16 %v3102, %v3086
    %v4687 = vpack.c.b16 %v3103, %v3087
    %v4688 = vpack.c.b16 %v3104, %v3088
    %v4689 = vpack.c.b16 %v3105, %v3089
    %v4690 = vpack.c.b16 %v3106, %v3090
    %v4691 = vpack.c.b16 %v3107, %v3091
    %v4692 = vpack.c.b16 %v3108, %v3092
    %v4693 = vpack.c.b16 %v3109, %v3093
    %v4694 = vpack.c.b16 %v3110, %v3094
    %v4695 = vpack.c.b16 %v3111, %v3095
    %v4696 = vpack.c.b16 %v3112, %v3096
    %v4697 = vpack.c.b16 %v3113, %v3097
    %v4698 = vpack.c.b16 %v3114, %v3098
    %v4699 = vpack.c.b16 %v3115, %v3099
    %v4700 = vpack.c.b16 %v3132, %v3116
    %v4701 = vpack.c.b16 %v3133, %v3117
    %v4702 = vpack.c.b16 %v3134, %v3118
    %v4703 = vpack.c.b16 %v3135, %v3119
    %v4704 = vpack.c.b16 %v3136, %v3120
    %v4705 = vpack.c.b16 %v3137, %v3121
    %v4706 = vpack.c.b16 %v3138, %v3122
    %v4707 = vpack.c.b16 %v3139, %v3123
    %v4708 = vpack.c.b16 %v3140, %v3124
    %v4709 = vpack.c.b16 %v3141, %v3125
    %v4710 = vpack.c.b16 %v3142, %v3126
    %v4711 = vpack.c.b16 %v3143, %v3127
    %v4712 = vpack.c.b16 %v3144, %v3128
    %v4713 = vpack.c.b16 %v3145, %v3129
    %v4714 = vpack.c.b16 %v3146, %v3130
    %v4715 = vpack.c.b16 %v3147, %v3131
    %v4716 = vpack.c.b16 %v3164, %v3148
    %v4717 = vpack.c.b16 %v3165, %v3149
    %v4718 = vpack.c.b16 %v3166, %v3150
    %v4719 = vpack.c.b16 %v3167, %v3151
    %v4720 = vpack.c.b16 %v3168, %v3152
    %v4721 = vpack.c.b16 %v3169, %v3153
    %v4722 = vpack.c.b16 %v3170, %v3154
    %v4723 = vpack.c.b16 %v3171, %v3155
    %v4724 = vpack.c.b16 %v3172, %v3156
    %v4725 = vpack.c.b16 %v3173, %v3157
    %v4726 = vpack.c.b16 %v3174, %v3158
    %v4727 = vpack.c.b16 %v3175, %v3159
    %v4728 = vpack.c.b16 %v3176, %v3160
    %v4729 = vpack.c.b16 %v3177, %v3161
    %v4730 = vpack.c.b16 %v3178, %v3162
    %v4731 = vpack.c.b16 %v3179, %v3163
    %v4732 = vpack.c.b16 %v3196, %v3180
    %v4733 = vpack.c.b16 %v3197, %v3181
    %v4734 = vpack.c.b16 %v3198, %v3182
    %v4735 = vpack.c.b16 %v3199, %v3183
    %v4736 = vpack.c.b16 %v3200, %v3184
    %v4737 = vpack.c.b16 %v3201, %v3185
    %v4738 = vpack.c.b16 %v3202, %v3186
    %v4739 = vpack.c.b16 %v3203, %v3187
    %v4740 = vpack.c.b16 %v3204, %v3188
    %v4741 = vpack.c.b16 %v3205, %v3189
    %v4742 = vpack.c.b16 %v3206, %v3190
    %v4743 = vpack.c.b16 %v3207, %v3191
    %v4744 = vpack.c.b16 %v3208, %v3192
    %v4745 = vpack.c.b16 %v3209, %v3193
    %v4746 = vpack.c.b16 %v3210, %v3194
    %v4747 = vpack.c.b16 %v3211, %v3195
    %v4748 = vpack.c.b16 %v3228, %v3212
    %v4749 = vpack.c.b16 %v3229, %v3213
    %v4750 = vpack.c.b16 %v3230, %v3214
    %v4751 = vpack.c.b16 %v3231, %v3215
    %v4752 = vpack.c.b16 %v3232, %v3216
    %v4753 = vpack.c.b16 %v3233, %v3217
    %v4754 = vpack.c.b16 %v3234, %v3218
    %v4755 = vpack.c.b16 %v3235, %v3219
    %v4756 = vpack.c.b16 %v3236, %v3220
    %v4757 = vpack.c.b16 %v3237, %v3221
    %v4758 = vpack.c.b16 %v3238, %v3222
    %v4759 = vpack.c.b16 %v3239, %v3223
    %v4760 = vpack.c.b16 %v3240, %v3224
    %v4761 = vpack.c.b16 %v3241, %v3225
    %v4762 = vpack.c.b16 %v3242, %v3226
    %v4763 = vpack.c.b16 %v3243, %v3227
    %v4764 = vpack.c.b16 %v3260, %v3244
    %v4765 = vpack.c.b16 %v3261, %v3245
    %v4766 = vpack.c.b16 %v3262, %v3246
    %v4767 = vpack.c.b16 %v3263, %v3247
    %v4768 = vpack.c.b16 %v3264, %v3248
    %v4769 = vpack.c.b16 %v3265, %v3249
    %v4770 = vpack.c.b16 %v3266, %v3250
    %v4771 = vpack.c.b16 %v3267, %v3251
    %v4772 = vpack.c.b16 %v3268, %v3252
    %v4773 = vpack.c.b16 %v3269, %v3253
    %v4774 = vpack.c.b16 %v3270, %v3254
    %v4775 = vpack.c.b16 %v3271, %v3255
    %v4776 = vpack.c.b16 %v3272, %v3256
    %v4777 = vpack.c.b16 %v3273, %v3257
    %v4778 = vpack.c.b16 %v3274, %v3258
    %v4779 = vpack.c.b16 %v3275, %v3259
    %v4780 = vpack.c.b16 %v3292, %v3276
    %v4781 = vpack.c.b16 %v3293, %v3277
    %v4782 = vpack.c.b16 %v3294, %v3278
    %v4783 = vpack.c.b16 %v3295, %v3279
    %v4784 = vpack.c.b16 %v3296, %v3280
    %v4785 = vpack.c.b16 %v3297, %v3281
    %v4786 = vpack.c.b16 %v3298, %v3282
    %v4787 = vpack.c.b16 %v3299, %v3283
    %v4788 = vpack.c.b16 %v3300, %v3284
    %v4789 = vpack.c.b16 %v3301, %v3285
    %v4790 = vpack.c.b16 %v3302, %v3286
    %v4791 = vpack.c.b16 %v3303, %v3287
    %v4792 = vpack.c.b16 %v3304, %v3288
    %v4793 = vpack.c.b16 %v3305, %v3289
    %v4794 = vpack.c.b16 %v3306, %v3290
    %v4795 = vpack.c.b16 %v3307, %v3291
    %v4796 = vpack.c.b16 %v3324, %v3308
    %v4797 = vpack.c.b16 %v3325, %v3309
    %v4798 = vpack.c.b16 %v3326, %v3310
    %v4799 = vpack.c.b16 %v3327, %v3311
    %v4800 = vpack.c.b16 %v3328, %v3312
    %v4801 = vpack.c.b16 %v3329, %v3313
    %v4802 = vpack.c.b16 %v3330, %v3314
    %v4803 = vpack.c.b16 %v3331, %v3315
    %v4804 = vpack.c.b16 %v3332, %v3316
    %v4805 = vpack.c.b16 %v3333, %v3317
    %v4806 = vpack.c.b16 %v3334, %v3318
    %v4807 = vpack.c.b16 %v3335, %v3319
    %v4808 = vpack.c.b16 %v3336, %v3320
    %v4809 = vpack.c.b16 %v3337, %v3321
    %v4810 = vpack.c.b16 %v3338, %v3322
    %v4811 = vpack.c.b16 %v3339, %v3323
    %v4812 = vpack.c.b16 %v3356, %v3340
    %v4813 = vpack.c.b16 %v3357, %v3341
    %v4814 = vpack.c.b16 %v3358, %v3342
    %v4815 = vpack.c.b16 %v3359, %v3343
    %v4816 = vpack.c.b16 %v3360, %v3344
    %v4817 = vpack.c.b16 %v3361, %v3345
    %v4818 = vpack.c.b16 %v3362, %v3346
    %v4819 = vpack.c.b16 %v3363, %v3347
    %v4820 = vpack.c.b16 %v3364, %v3348
    %v4821 = vpack.c.b16 %v3365, %v3349
    %v4822 = vpack.c.b16 %v3366, %v3350
    %v4823 = vpack.c.b16 %v3367, %v3351
    %v4824 = vpack.c.b16 %v3368, %v3352
    %v4825 = vpack.c.b16 %v3369, %v3353
    %v4826 = vpack.c.b16 %v3370, %v3354
    %v4827 = vpack.c.b16 %v3371, %v3355
    %v4828 = vpack.c.b16 %v3388, %v3372
    %v4829 = vpack.c.b16 %v3389, %v3373
    %v4830 = vpack.c.b16 %v3390, %v3374
    %v4831 = vpack.c.b16 %v3391, %v3375
    %v4832 = vpack.c.b16 %v3392, %v3376
    %v4833 = vpack.c.b16 %v3393, %v3377
    %v4834 = vpack.c.b16 %v3394, %v3378
    %v4835 = vpack.c.b16 %v3395, %v3379
    %v4836 = vpack.c.b16 %v3396, %v3380
    %v4837 = vpack.c.b16 %v3397, %v3381
    %v4838 = vpack.c.b16 %v3398, %v3382
    %v4839 = vpack.c.b16 %v3399, %v3383
    %v4840 = vpack.c.b16 %v3400, %v3384
    %v4841 = vpack.c.b16 %v3401, %v3385
    %v4842 = vpack.c.b16 %v3402, %v3386
    %v4843 = vpack.c.b16 %v3403, %v3387
    %v4844 = vpack.c.b16 %v3420, %v3404
    %v4845 = vpack.c.b16 %v3421, %v3405
    %v4846 = vpack.c.b16 %v3422, %v3406
    %v4847 = vpack.c.b16 %v3423, %v3407
    %v4848 = vpack.c.b16 %v3424, %v3408
    %v4849 = vpack.c.b16 %v3425, %v3409
    %v4850 = vpack.c.b16 %v3426, %v3410
    %v4851 = vpack.c.b16 %v3427, %v3411
    %v4852 = vpack.c.b16 %v3428, %v3412
    %v4853 = vpack.c.b16 %v3429, %v3413
    %v4854 = vpack.c.b16 %v3430, %v3414
    %v4855 = vpack.c.b16 %v3431, %v3415
    %v4856 = vpack.c.b16 %v3432, %v3416
    %v4857 = vpack.c.b16 %v3433, %v3417
    %v4858 = vpack.c.b16 %v3434, %v3418
    %v4859 = vpack.c.b16 %v3435, %v3419
    %v4860 = vpack.c.b16 %v3452, %v3436
    %v4861 = vpack.c.b16 %v3453, %v3437
    %v4862 = vpack.c.b16 %v3454, %v3438
    %v4863 = vpack.c.b16 %v3455, %v3439
    %v4864 = vpack.c.b16 %v3456, %v3440
    %v4865 = vpack.c.b16 %v3457, %v3441
    %v4866 = vpack.c.b16 %v3458, %v3442
    %v4867 = vpack.c.b16 %v3459, %v3443
    %v4868 = vpack.c.b16 %v3460, %v3444
    %v4869 = vpack.c.b16 %v3461, %v3445
    %v4870 = vpack.c.b16 %v3462, %v3446
    %v4871 = vpack.c.b16 %v3463, %v3447
    %v4872 = vpack.c.b16 %v3464, %v3448
    %v4873 = vpack.c.b16 %v3465, %v3449
    %v4874 = vpack.c.b16 %v3466, %v3450
    %v4875 = vpack.c.b16 %v3467, %v3451
    %v4876 = vpack.c.b16 %v3484, %v3468
    %v4877 = vpack.c.b16 %v3485, %v3469
    %v4878 = vpack.c.b16 %v3486, %v3470
    %v4879 = vpack.c.b16 %v3487, %v3471
    %v4880 = vpack.c.b16 %v3488, %v3472
    %v4881 = vpack.c.b16 %v3489, %v3473
    %v4882 = vpack.c.b16 %v3490, %v3474
    %v4883 = vpack.c.b16 %v3491, %v3475
    %v4884 = vpack.c.b16 %v3492, %v3476
    %v4885 = vpack.c.b16 %v3493, %v3477
    %v4886 = vpack.c.b16 %v3494, %v3478
    %v4887 = vpack.c.b16 %v3495, %v3479
    %v4888 = vpack.c.b16 %v3496, %v3480
    %v4889 = vpack.c.b16 %v3497, %v3481
    %v4890 = vpack.c.b16 %v3498, %v3482
    %v4891 = vpack.c.b16 %v3499, %v3483
    %v4892 = vpack.c.b16 %v3516, %v3500
    %v4893 = vpack.c.b16 %v3517, %v3501
    %v4894 = vpack.c.b16 %v3518, %v3502
    %v4895 = vpack.c.b16 %v3519, %v3503
    %v4896 = vpack.c.b16 %v3520, %v3504
    %v4897 = vpack.c.b16 %v3521, %v3505
    %v4898 = vpack.c.b16 %v3522, %v3506
    %v4899 = vpack.c.b16 %v3523, %v3507
    %v4900 = vpack.c.b16 %v3524, %v3508
    %v4901 = vpack.c.b16 %v3525, %v3509
    %v4902 = vpack.c.b16 %v3526, %v3510
    %v4903 = vpack.c.b16 %v3527, %v3511
    %v4904 = vpack.c.b16 %v3528, %v3512
    %v4905 = vpack.c.b16 %v3529, %v3513
    %v4906 = vpack.c.b16 %v3530, %v3514
    %v4907 = vpack.c.b16 %v3531, %v3515
    %v4908 = vpack.c.b16 %v3548, %v3532
    %v4909 = vpack.c.b16 %v3549, %v3533
    %v4910 = vpack.c.b16 %v3550, %v3534
    %v4911 = vpack.c.b16 %v3551, %v3535
    %v4912 = vpack.c.b16 %v3552, %v3536
    %v4913 = vpack.c.b16 %v3553, %v3537
    %v4914 = vpack.c.b16 %v3554, %v3538
    %v4915 = vpack.c.b16 %v3555, %v3539
    %v4916 = vpack.c.b16 %v3556, %v3540
    %v4917 = vpack.c.b16 %v3557, %v3541
    %v4918 = vpack.c.b16 %v3558, %v3542
    %v4919 = vpack.c.b16 %v3559, %v3543
    %v4920 = vpack.c.b16 %v3560, %v3544
    %v4921 = vpack.c.b16 %v3561, %v3545
    %v4922 = vpack.c.b16 %v3562, %v3546
    %v4923 = vpack.c.b16 %v3563, %v3547
    %v4924 = vpack.c.b16 %v3580, %v3564
    %v4925 = vpack.c.b16 %v3581, %v3565
    %v4926 = vpack.c.b16 %v3582, %v3566
    %v4927 = vpack.c.b16 %v3583, %v3567
    %v4928 = vpack.c.b16 %v3584, %v3568
    %v4929 = vpack.c.b16 %v3585, %v3569
    %v4930 = vpack.c.b16 %v3586, %v3570
    %v4931 = vpack.c.b16 %v3587, %v3571
    %v4932 = vpack.c.b16 %v3588, %v3572
    %v4933 = vpack.c.b16 %v3589, %v3573
    %v4934 = vpack.c.b16 %v3590, %v3574
    %v4935 = vpack.c.b16 %v3591, %v3575
    %v4936 = vpack.c.b16 %v3592, %v3576
    %v4937 = vpack.c.b16 %v3593, %v3577
    %v4938 = vpack.c.b16 %v3594, %v3578
    %v4939 = vpack.c.b16 %v3595, %v3579
    %v4940 = vpack.c.b16 %v3612, %v3596
    %v4941 = vpack.c.b16 %v3613, %v3597
    %v4942 = vpack.c.b16 %v3614, %v3598
    %v4943 = vpack.c.b16 %v3615, %v3599
    %v4944 = vpack.c.b16 %v3616, %v3600
    %v4945 = vpack.c.b16 %v3617, %v3601
    %v4946 = vpack.c.b16 %v3618, %v3602
    %v4947 = vpack.c.b16 %v3619, %v3603
    %v4948 = vpack.c.b16 %v3620, %v3604
    %v4949 = vpack.c.b16 %v3621, %v3605
    %v4950 = vpack.c.b16 %v3622, %v3606
    %v4951 = vpack.c.b16 %v3623, %v3607
    %v4952 = vpack.c.b16 %v3624, %v3608
    %v4953 = vpack.c.b16 %v3625, %v3609
    %v4954 = vpack.c.b16 %v3626, %v3610
    %v4955 = vpack.c.b16 %v3627, %v3611
    %v4956 = vpack.c.b16 %v3644, %v3628
    %v4957 = vpack.c.b16 %v3645, %v3629
    %v4958 = vpack.c.b16 %v3646, %v3630
    %v4959 = vpack.c.b16 %v3647, %v3631
    %v4960 = vpack.c.b16 %v3648, %v3632
    %v4961 = vpack.c.b16 %v3649, %v3633
    %v4962 = vpack.c.b16 %v3650, %v3634
    %v4963 = vpack.c.b16 %v3651, %v3635
    %v4964 = vpack.c.b16 %v3652, %v3636
    %v4965 = vpack.c.b16 %v3653, %v3637
    %v4966 = vpack.c.b16 %v3654, %v3638
    %v4967 = vpack.c.b16 %v3655, %v3639
    %v4968 = vpack.c.b16 %v3656, %v3640
    %v4969 = vpack.c.b16 %v3657, %v3641
    %v4970 = vpack.c.b16 %v3658, %v3642
    %v4971 = vpack.c.b16 %v3659, %v3643
    %v4972 = vpack.c.b16 %v3676, %v3660
    %v4973 = vpack.c.b16 %v3677, %v3661
    %v4974 = vpack.c.b16 %v3678, %v3662
    %v4975 = vpack.c.b16 %v3679, %v3663
    %v4976 = vpack.c.b16 %v3680, %v3664
    %v4977 = vpack.c.b16 %v3681, %v3665
    %v4978 = vpack.c.b16 %v3682, %v3666
    %v4979 = vpack.c.b16 %v3683, %v3667
    %v4980 = vpack.c.b16 %v3684, %v3668
    %v4981 = vpack.c.b16 %v3685, %v3669
    %v4982 = vpack.c.b16 %v3686, %v3670
    %v4983 = vpack.c.b16 %v3687, %v3671
    %v4984 = vpack.c.b16 %v3688, %v3672
    %v4985 = vpack.c.b16 %v3689, %v3673
    %v4986 = vpack.c.b16 %v3690, %v3674
    %v4987 = vpack.c.b16 %v3691, %v3675
    %v4988 = vpack.c.b16 %v3708, %v3692
    %v4989 = vpack.c.b16 %v3709, %v3693
    %v4990 = vpack.c.b16 %v3710, %v3694
    %v4991 = vpack.c.b16 %v3711, %v3695
    %v4992 = vpack.c.b16 %v3712, %v3696
    %v4993 = vpack.c.b16 %v3713, %v3697
    %v4994 = vpack.c.b16 %v3714, %v3698
    %v4995 = vpack.c.b16 %v3715, %v3699
    %v4996 = vpack.c.b16 %v3716, %v3700
    %v4997 = vpack.c.b16 %v3717, %v3701
    %v4998 = vpack.c.b16 %v3718, %v3702
    %v4999 = vpack.c.b16 %v3719, %v3703
    %v5000 = vpack.c.b16 %v3720, %v3704
    %v5001 = vpack.c.b16 %v3721, %v3705
    %v5002 = vpack.c.b16 %v3722, %v3706
    %v5003 = vpack.c.b16 %v3723, %v3707
    %v5004 = vpack.c.b16 %v3740, %v3724
    %v5005 = vpack.c.b16 %v3741, %v3725
    %v5006 = vpack.c.b16 %v3742, %v3726
    %v5007 = vpack.c.b16 %v3743, %v3727
    %v5008 = vpack.c.b16 %v3744, %v3728
    %v5009 = vpack.c.b16 %v3745, %v3729
    %v5010 = vpack.c.b16 %v3746, %v3730
    %v5011 = vpack.c.b16 %v3747, %v3731
    %v5012 = vpack.c.b16 %v3748, %v3732
    %v5013 = vpack.c.b16 %v3749, %v3733
    %v5014 = vpack.c.b16 %v3750, %v3734
    %v5015 = vpack.c.b16 %v3751, %v3735
    %v5016 = vpack.c.b16 %v3752, %v3736
    %v5017 = vpack.c.b16 %v3753, %v3737
    %v5018 = vpack.c.b16 %v3754, %v3738
    %v5019 = vpack.c.b16 %v3755, %v3739
    %v5020 = vpack.c.b16 %v3772, %v3756
    %v5021 = vpack.c.b16 %v3773, %v3757
    %v5022 = vpack.c.b16 %v3774, %v3758
    %v5023 = vpack.c.b16 %v3775, %v3759
    %v5024 = vpack.c.b16 %v3776, %v3760
    %v5025 = vpack.c.b16 %v3777, %v3761
    %v5026 = vpack.c.b16 %v3778, %v3762
    %v5027 = vpack.c.b16 %v3779, %v3763
    %v5028 = vpack.c.b16 %v3780, %v3764
    %v5029 = vpack.c.b16 %v3781, %v3765
    %v5030 = vpack.c.b16 %v3782, %v3766
    %v5031 = vpack.c.b16 %v3783, %v3767
    %v5032 = vpack.c.b16 %v3784, %v3768
    %v5033 = vpack.c.b16 %v3785, %v3769
    %v5034 = vpack.c.b16 %v3786, %v3770
    %v5035 = vpack.c.b16 %v3787, %v3771
    %v5036 = vpack.c.b16 %v3804, %v3788
    %v5037 = vpack.c.b16 %v3805, %v3789
    %v5038 = vpack.c.b16 %v3806, %v3790
    %v5039 = vpack.c.b16 %v3807, %v3791
    %v5040 = vpack.c.b16 %v3808, %v3792
    %v5041 = vpack.c.b16 %v3809, %v3793
    %v5042 = vpack.c.b16 %v3810, %v3794
    %v5043 = vpack.c.b16 %v3811, %v3795
    %v5044 = vpack.c.b16 %v3812, %v3796
    %v5045 = vpack.c.b16 %v3813, %v3797
    %v5046 = vpack.c.b16 %v3814, %v3798
    %v5047 = vpack.c.b16 %v3815, %v3799
    %v5048 = vpack.c.b16 %v3816, %v3800
    %v5049 = vpack.c.b16 %v3817, %v3801
    %v5050 = vpack.c.b16 %v3818, %v3802
    %v5051 = vpack.c.b16 %v3819, %v3803
    %v5052 = vpack.c.b16 %v3836, %v3820
    %v5053 = vpack.c.b16 %v3837, %v3821
    %v5054 = vpack.c.b16 %v3838, %v3822
    %v5055 = vpack.c.b16 %v3839, %v3823
    %v5056 = vpack.c.b16 %v3840, %v3824
    %v5057 = vpack.c.b16 %v3841, %v3825
    %v5058 = vpack.c.b16 %v3842, %v3826
    %v5059 = vpack.c.b16 %v3843, %v3827
    %v5060 = vpack.c.b16 %v3844, %v3828
    %v5061 = vpack.c.b16 %v3845, %v3829
    %v5062 = vpack.c.b16 %v3846, %v3830
    %v5063 = vpack.c.b16 %v3847, %v3831
    %v5064 = vpack.c.b16 %v3848, %v3832
    %v5065 = vpack.c.b16 %v3849, %v3833
    %v5066 = vpack.c.b16 %v3850, %v3834
    %v5067 = vpack.c.b16 %v3851, %v3835
    %v5068 = vpack.c.b16 %v3868, %v3852
    %v5069 = vpack.c.b16 %v3869, %v3853
    %v5070 = vpack.c.b16 %v3870, %v3854
    %v5071 = vpack.c.b16 %v3871, %v3855
    %v5072 = vpack.c.b16 %v3872, %v3856
    %v5073 = vpack.c.b16 %v3873, %v3857
    %v5074 = vpack.c.b16 %v3874, %v3858
    %v5075 = vpack.c.b16 %v3875, %v3859
    %v5076 = vpack.c.b16 %v3876, %v3860
    %v5077 = vpack.c.b16 %v3877, %v3861
    %v5078 = vpack.c.b16 %v3878, %v3862
    %v5079 = vpack.c.b16 %v3879, %v3863
    %v5080 = vpack.c.b16 %v3880, %v3864
    %v5081 = vpack.c.b16 %v3881, %v3865
    %v5082 = vpack.c.b16 %v3882, %v3866
    %v5083 = vpack.c.b16 %v3883, %v3867
    %v5084 = vpack.c.b16 %v3900, %v3884
    %v5085 = vpack.c.b16 %v3901, %v3885
    %v5086 = vpack.c.b16 %v3902, %v3886
    %v5087 = vpack.c.b16 %v3903, %v3887
    %v5088 = vpack.c.b16 %v3904, %v3888
    %v5089 = vpack.c.b16 %v3905, %v3889
    %v5090 = vpack.c.b16 %v3906, %v3890
    %v5091 = vpack.c.b16 %v3907, %v3891
    %v5092 = vpack.c.b16 %v3908, %v3892
    %v5093 = vpack.c.b16 %v3909, %v3893
    %v5094 = vpack.c.b16 %v3910, %v3894
    %v5095 = vpack.c.b16 %v3911, %v3895
    %v5096 = vpack.c.b16 %v3912, %v3896
    %v5097 = vpack.c.b16 %v3913, %v3897
    %v5098 = vpack.c.b16 %v3914, %v3898
    %v5099 = vpack.c.b16 %v3915, %v3899
    %v5100 = vpack.c.b16 %v3932, %v3916
    %v5101 = vpack.c.b16 %v3933, %v3917
    %v5102 = vpack.c.b16 %v3934, %v3918
    %v5103 = vpack.c.b16 %v3935, %v3919
    %v5104 = vpack.c.b16 %v3936, %v3920
    %v5105 = vpack.c.b16 %v3937, %v3921
    %v5106 = vpack.c.b16 %v3938, %v3922
    %v5107 = vpack.c.b16 %v3939, %v3923
    %v5108 = vpack.c.b16 %v3940, %v3924
    %v5109 = vpack.c.b16 %v3941, %v3925
    %v5110 = vpack.c.b16 %v3942, %v3926
    %v5111 = vpack.c.b16 %v3943, %v3927
    %v5112 = vpack.c.b16 %v3944, %v3928
    %v5113 = vpack.c.b16 %v3945, %v3929
    %v5114 = vpack.c.b16 %v3946, %v3930
    %v5115 = vpack.c.b16 %v3947, %v3931
    %v5116 = vpack.c.b16 %v3964, %v3948
    %v5117 = vpack.c.b16 %v3965, %v3949
    %v5118 = vpack.c.b16 %v3966, %v3950
    %v5119 = vpack.c.b16 %v3967, %v3951
    %v5120 = vpack.c.b16 %v3968, %v3952
    %v5121 = vpack.c.b16 %v3969, %v3953
    %v5122 = vpack.c.b16 %v3970, %v3954
    %v5123 = vpack.c.b16 %v3971, %v3955
    %v5124 = vpack.c.b16 %v3972, %v3956
    %v5125 = vpack.c.b16 %v3973, %v3957
    %v5126 = vpack.c.b16 %v3974, %v3958
    %v5127 = vpack.c.b16 %v3975, %v3959
    %v5128 = vpack.c.b16 %v3976, %v3960
    %v5129 = vpack.c.b16 %v3977, %v3961
    %v5130 = vpack.c.b16 %v3978, %v3962
    %v5131 = vpack.c.b16 %v3979, %v3963
    %v5132 = vpack.c.b16 %v3996, %v3980
    %v5133 = vpack.c.b16 %v3997, %v3981
    %v5134 = vpack.c.b16 %v3998, %v3982
    %v5135 = vpack.c.b16 %v3999, %v3983
    %v5136 = vpack.c.b16 %v4000, %v3984
    %v5137 = vpack.c.b16 %v4001, %v3985
    %v5138 = vpack.c.b16 %v4002, %v3986
    %v5139 = vpack.c.b16 %v4003, %v3987
    %v5140 = vpack.c.b16 %v4004, %v3988
    %v5141 = vpack.c.b16 %v4005, %v3989
    %v5142 = vpack.c.b16 %v4006, %v3990
    %v5143 = vpack.c.b16 %v4007, %v3991
    %v5144 = vpack.c.b16 %v4008, %v3992
    %v5145 = vpack.c.b16 %v4009, %v3993
    %v5146 = vpack.c.b16 %v4010, %v3994
    %v5147 = vpack.c.b16 %v4011, %v3995
    %v5148 = vpack.c.b16 %v4028, %v4012
    %v5149 = vpack.c.b16 %v4029, %v4013
    %v5150 = vpack.c.b16 %v4030, %v4014
    %v5151 = vpack.c.b16 %v4031, %v4015
    %v5152 = vpack.c.b16 %v4032, %v4016
    %v5153 = vpack.c.b16 %v4033, %v4017
    %v5154 = vpack.c.b16 %v4034, %v4018
    %v5155 = vpack.c.b16 %v4035, %v4019
    %v5156 = vpack.c.b16 %v4036, %v4020
    %v5157 = vpack.c.b16 %v4037, %v4021
    %v5158 = vpack.c.b16 %v4038, %v4022
    %v5159 = vpack.c.b16 %v4039, %v4023
    %v5160 = vpack.c.b16 %v4040, %v4024
    %v5161 = vpack.c.b16 %v4041, %v4025
    %v5162 = vpack.c.b16 %v4042, %v4026
    %v5163 = vpack.c.b16 %v4043, %v4027
    %v5164 = vpack.c.b16 %v4060, %v4044
    %v5165 = vpack.c.b16 %v4061, %v4045
    %v5166 = vpack.c.b16 %v4062, %v4046
    %v5167 = vpack.c.b16 %v4063, %v4047
    %v5168 = vpack.c.b16 %v4064, %v4048
    %v5169 = vpack.c.b16 %v4065, %v4049
    %v5170 = vpack.c.b16 %v4066, %v4050
    %v5171 = vpack.c.b16 %v4067, %v4051
    %v5172 = vpack.c.b16 %v4068, %v4052
    %v5173 = vpack.c.b16 %v4069, %v4053
    %v5174 = vpack.c.b16 %v4070, %v4054
    %v5175 = vpack.c.b16 %v4071, %v4055
    %v5176 = vpack.c.b16 %v4072, %v4056
    %v5177 = vpack.c.b16 %v4073, %v4057
    %v5178 = vpack.c.b16 %v4074, %v4058
    %v5179 = vpack.c.b16 %v4075, %v4059
    %v5180 = vpack.c.b16 %v4092, %v4076
    %v5181 = vpack.c.b16 %v4093, %v4077
    %v5182 = vpack.c.b16 %v4094, %v4078
    %v5183 = vpack.c.b16 %v4095, %v4079
    %v5184 = vpack.c.b16 %v4096, %v4080
    %v5185 = vpack.c.b16 %v4097, %v4081
    %v5186 = vpack.c.b16 %v4098, %v4082
    %v5187 = vpack.c.b16 %v4099, %v4083
    %v5188 = vpack.c.b16 %v4100, %v4084
    %v5189 = vpack.c.b16 %v4101, %v4085
    %v5190 = vpack.c.b16 %v4102, %v4086
    %v5191 = vpack.c.b16 %v4103, %v4087
    %v5192 = vpack.c.b16 %v4104, %v4088
    %v5193 = vpack.c.b16 %v4105, %v4089
    %v5194 = vpack.c.b16 %v4106, %v4090
    %v5195 = vpack.c.b16 %v4107, %v4091
    %v5196 = vpack.c.b16 %v4124, %v4108
    %v5197 = vpack.c.b16 %v4125, %v4109
    %v5198 = vpack.c.b16 %v4126, %v4110
    %v5199 = vpack.c.b16 %v4127, %v4111
    %v5200 = vpack.c.b16 %v4128, %v4112
    %v5201 = vpack.c.b16 %v4129, %v4113
    %v5202 = vpack.c.b16 %v4130, %v4114
    %v5203 = vpack.c.b16 %v4131, %v4115
    %v5204 = vpack.c.b16 %v4132, %v4116
    %v5205 = vpack.c.b16 %v4133, %v4117
    %v5206 = vpack.c.b16 %v4134, %v4118
    %v5207 = vpack.c.b16 %v4135, %v4119
    %v5208 = vpack.c.b16 %v4136, %v4120
    %v5209 = vpack.c.b16 %v4137, %v4121
    %v5210 = vpack.c.b16 %v4138, %v4122
    %v5211 = vpack.c.b16 %v4139, %v4123
    %v5212 = vpack.c.b16 %v4156, %v4140
    %v5213 = vpack.c.b16 %v4157, %v4141
    %v5214 = vpack.c.b16 %v4158, %v4142
    %v5215 = vpack.c.b16 %v4159, %v4143
    %v5216 = vpack.c.b16 %v4160, %v4144
    %v5217 = vpack.c.b16 %v4161, %v4145
    %v5218 = vpack.c.b16 %v4162, %v4146
    %v5219 = vpack.c.b16 %v4163, %v4147
    %v5220 = vpack.c.b16 %v4164, %v4148
    %v5221 = vpack.c.b16 %v4165, %v4149
    %v5222 = vpack.c.b16 %v4166, %v4150
    %v5223 = vpack.c.b16 %v4167, %v4151
    %v5224 = vpack.c.b16 %v4168, %v4152
    %v5225 = vpack.c.b16 %v4169, %v4153
    %v5226 = vpack.c.b16 %v4170, %v4154
    %v5227 = vpack.c.b16 %v4171, %v4155
    %v5228 = vpack.c.b16 %v4188, %v4172
    %v5229 = vpack.c.b16 %v4189, %v4173
    %v5230 = vpack.c.b16 %v4190, %v4174
    %v5231 = vpack.c.b16 %v4191, %v4175
    %v5232 = vpack.c.b16 %v4192, %v4176
    %v5233 = vpack.c.b16 %v4193, %v4177
    %v5234 = vpack.c.b16 %v4194, %v4178
    %v5235 = vpack.c.b16 %v4195, %v4179
    %v5236 = vpack.c.b16 %v4196, %v4180
    %v5237 = vpack.c.b16 %v4197, %v4181
    %v5238 = vpack.c.b16 %v4198, %v4182
    %v5239 = vpack.c.b16 %v4199, %v4183
    %v5240 = vpack.c.b16 %v4200, %v4184
    %v5241 = vpack.c.b16 %v4201, %v4185
    %v5242 = vpack.c.b16 %v4202, %v4186
    %v5243 = vpack.c.b16 %v4203, %v4187
    %v5244 = vpack.c.b16 %v4220, %v4204
    %v5245 = vpack.c.b16 %v4221, %v4205
    %v5246 = vpack.c.b16 %v4222, %v4206
    %v5247 = vpack.c.b16 %v4223, %v4207
    %v5248 = vpack.c.b16 %v4224, %v4208
    %v5249 = vpack.c.b16 %v4225, %v4209
    %v5250 = vpack.c.b16 %v4226, %v4210
    %v5251 = vpack.c.b16 %v4227, %v4211
    %v5252 = vpack.c.b16 %v4228, %v4212
    %v5253 = vpack.c.b16 %v4229, %v4213
    %v5254 = vpack.c.b16 %v4230, %v4214
    %v5255 = vpack.c.b16 %v4231, %v4215
    %v5256 = vpack.c.b16 %v4232, %v4216
    %v5257 = vpack.c.b16 %v4233, %v4217
    %v5258 = vpack.c.b16 %v4234, %v4218
    %v5259 = vpack.c.b16 %v4235, %v4219
    %6284 = vmatprep.subr.bf16.mxu0 %v4349
    %6285 = vmatpush1.bf16.msra.mxu0 %v4348
    %6286 = vmatprep.subr.bf16.mxu0 %v4333
    %6287 = vmatpush1.bf16.msra.mxu0 %v4332
    %6288 = vmatprep.subr.bf16.mxu0 %v4317
    %6289 = vmatpush1.bf16.msra.mxu0 %v4316
    %6290 = vmatprep.subr.bf16.mxu0 %v4301
    %6291 = vmatpush1.bf16.msra.mxu0 %v4300
    %6292 = vmatprep.subr.bf16.mxu0 %v4285
    %6293 = vmatpush1.bf16.msra.mxu0 %v4284
    %6294 = vmatprep.subr.bf16.mxu0 %v4269
    %6295 = vmatpush1.bf16.msra.mxu0 %v4268
    %6296 = vmatprep.subr.bf16.mxu0 %v4253
    %6297 = vmatpush1.bf16.msra.mxu0 %v4252
    %6298 = vmatprep.subr.bf16.mxu0 %v4237
    %6299 = vmatpush1.bf16.msra.mxu0 %v4236
    %6300 = vmatprep.subr.bf16.mxu0 %v4477
    %6301 = vmatpush2.bf16.msra.mxu0 %v4476
    %6302 = vmatprep.subr.bf16.mxu0 %v4461
    %6303 = vmatpush2.bf16.msra.mxu0 %v4460
    %6304 = vmatprep.subr.bf16.mxu0 %v4445
    %6305 = vmatpush2.bf16.msra.mxu0 %v4444
    %6306 = vmatprep.subr.bf16.mxu0 %v4429
    %6307 = vmatpush2.bf16.msra.mxu0 %v4428
    %6308 = vmatprep.subr.bf16.mxu0 %v4413
    %6309 = vmatpush2.bf16.msra.mxu0 %v4412
    %6310 = vmatprep.subr.bf16.mxu0 %v4397
    %6311 = vmatpush2.bf16.msra.mxu0 %v4396
    %6312 = vmatprep.subr.bf16.mxu0 %v4381
    %6313 = vmatpush2.bf16.msra.mxu0 %v4380
    %6314 = vmatprep.subr.bf16.mxu0 %v4365
    %6315 = vmatpush2.bf16.msra.mxu0 %v4364
    %6316 = vmatprep.mubr.bf16.mxu0 %v133
    %6317 = vmatmul.mubr.bf16.gmra.mxu0 %v132
    %v6318 = vpop.f32.mrf.mxu0
    %v6319 = vadd.f32 0.0, %v6318
    %v6320 = vpop.f32.mrf.mxu0
    %v6321 = vadd.f32 0.0, %v6320
    %v6322 = vpop.f32.mrf.mxu0
    %v6323 = vpop.f32.mrf.mxu0
    %6324 = vdwg.mxu0
    %6325 = vmatprep.subr.bf16.mxu0 %v4605
    %6326 = vmatpush1.bf16.msra.mxu0 %v4604
    %6327 = vmatprep.subr.bf16.mxu0 %v4589
    %6328 = vmatpush1.bf16.msra.mxu0 %v4588
    %6329 = vmatprep.subr.bf16.mxu0 %v4573
    %6330 = vmatpush1.bf16.msra.mxu0 %v4572
    %6331 = vmatprep.subr.bf16.mxu0 %v4557
    %6332 = vmatpush1.bf16.msra.mxu0 %v4556
    %6333 = vmatprep.subr.bf16.mxu0 %v4541
    %6334 = vmatpush1.bf16.msra.mxu0 %v4540
    %6335 = vmatprep.subr.bf16.mxu0 %v4525
    %6336 = vmatpush1.bf16.msra.mxu0 %v4524
    %6337 = vmatprep.subr.bf16.mxu0 %v4509
    %6338 = vmatpush1.bf16.msra.mxu0 %v4508
    %6339 = vmatprep.subr.bf16.mxu0 %v4493
    %6340 = vmatpush1.bf16.msra.mxu0 %v4492
    %6341 = vmatprep.subr.bf16.mxu0 %v4733
    %6342 = vmatpush2.bf16.msra.mxu0 %v4732
    %6343 = vmatprep.subr.bf16.mxu0 %v4717
    %6344 = vmatpush2.bf16.msra.mxu0 %v4716
    %6345 = vmatprep.subr.bf16.mxu0 %v4701
    %6346 = vmatpush2.bf16.msra.mxu0 %v4700
    %6347 = vmatprep.subr.bf16.mxu0 %v4685
    %6348 = vmatpush2.bf16.msra.mxu0 %v4684
    %6349 = vmatprep.subr.bf16.mxu0 %v4669
    %6350 = vmatpush2.bf16.msra.mxu0 %v4668
    %6351 = vmatprep.subr.bf16.mxu0 %v4653
    %6352 = vmatpush2.bf16.msra.mxu0 %v4652
    %6353 = vmatprep.subr.bf16.mxu0 %v4637
    %6354 = vmatpush2.bf16.msra.mxu0 %v4636
    %6355 = vmatprep.subr.bf16.mxu0 %v4621
    %6356 = vmatpush2.bf16.msra.mxu0 %v4620
    %6357 = vmatprep.mubr.bf16.mxu0 %v135
    %6358 = vmatmul.mubr.bf16.gmra.mxu0 %v134
    %v6359 = vpop.f32.mrf.mxu0
    %v6360 = vadd.f32 %v6319, %v6359
    %v6361 = vpop.f32.mrf.mxu0
    %v6362 = vadd.f32 %v6321, %v6361
    %v6363 = vpop.f32.mrf.mxu0
    %v6364 = vpop.f32.mrf.mxu0
    %6365 = vdwg.mxu0
    %6366 = vmatprep.subr.bf16.mxu0 %v4861
    %6367 = vmatpush1.bf16.msra.mxu0 %v4860
    %6368 = vmatprep.subr.bf16.mxu0 %v4845
    %6369 = vmatpush1.bf16.msra.mxu0 %v4844
    %6370 = vmatprep.subr.bf16.mxu0 %v4829
    %6371 = vmatpush1.bf16.msra.mxu0 %v4828
    %6372 = vmatprep.subr.bf16.mxu0 %v4813
    %6373 = vmatpush1.bf16.msra.mxu0 %v4812
    %6374 = vmatprep.subr.bf16.mxu0 %v4797
    %6375 = vmatpush1.bf16.msra.mxu0 %v4796
    %6376 = vmatprep.subr.bf16.mxu0 %v4781
    %6377 = vmatpush1.bf16.msra.mxu0 %v4780
    %6378 = vmatprep.subr.bf16.mxu0 %v4765
    %6379 = vmatpush1.bf16.msra.mxu0 %v4764
    %6380 = vmatprep.subr.bf16.mxu0 %v4749
    %6381 = vmatpush1.bf16.msra.mxu0 %v4748
    %6382 = vmatprep.subr.bf16.mxu0 %v4989
    %6383 = vmatpush2.bf16.msra.mxu0 %v4988
    %6384 = vmatprep.subr.bf16.mxu0 %v4973
    %6385 = vmatpush2.bf16.msra.mxu0 %v4972
    %6386 = vmatprep.subr.bf16.mxu0 %v4957
    %6387 = vmatpush2.bf16.msra.mxu0 %v4956
    %6388 = vmatprep.subr.bf16.mxu0 %v4941
    %6389 = vmatpush2.bf16.msra.mxu0 %v4940
    %6390 = vmatprep.subr.bf16.mxu0 %v4925
    %6391 = vmatpush2.bf16.msra.mxu0 %v4924
    %6392 = vmatprep.subr.bf16.mxu0 %v4909
    %6393 = vmatpush2.bf16.msra.mxu0 %v4908
    %6394 = vmatprep.subr.bf16.mxu0 %v4893
    %6395 = vmatpush2.bf16.msra.mxu0 %v4892
    %6396 = vmatprep.subr.bf16.mxu0 %v4877
    %6397 = vmatpush2.bf16.msra.mxu0 %v4876
    %6398 = vmatprep.mubr.bf16.mxu0 %v137
    %6399 = vmatmul.mubr.bf16.gmra.mxu0 %v136
    %v6400 = vpop.f32.mrf.mxu0
    %v6401 = vadd.f32 %v6360, %v6400
    %v6402 = vpop.f32.mrf.mxu0
    %v6403 = vadd.f32 %v6362, %v6402
    %v6404 = vpop.f32.mrf.mxu0
    %v6405 = vpop.f32.mrf.mxu0
    %6406 = vdwg.mxu0
    %6407 = vmatprep.subr.bf16.mxu0 %v5117
    %6408 = vmatpush1.bf16.msra.mxu0 %v5116
    %6409 = vmatprep.subr.bf16.mxu0 %v5101
    %6410 = vmatpush1.bf16.msra.mxu0 %v5100
    %6411 = vmatprep.subr.bf16.mxu0 %v5085
    %6412 = vmatpush1.bf16.msra.mxu0 %v5084
    %6413 = vmatprep.subr.bf16.mxu0 %v5069
    %6414 = vmatpush1.bf16.msra.mxu0 %v5068
    %6415 = vmatprep.subr.bf16.mxu0 %v5053
    %6416 = vmatpush1.bf16.msra.mxu0 %v5052
    %6417 = vmatprep.subr.bf16.mxu0 %v5037
    %6418 = vmatpush1.bf16.msra.mxu0 %v5036
    %6419 = vmatprep.subr.bf16.mxu0 %v5021
    %6420 = vmatpush1.bf16.msra.mxu0 %v5020
    %6421 = vmatprep.subr.bf16.mxu0 %v5005
    %6422 = vmatpush1.bf16.msra.mxu0 %v5004
    %6423 = vmatprep.subr.bf16.mxu0 %v5245
    %6424 = vmatpush2.bf16.msra.mxu0 %v5244
    %6425 = vmatprep.subr.bf16.mxu0 %v5229
    %6426 = vmatpush2.bf16.msra.mxu0 %v5228
    %6427 = vmatprep.subr.bf16.mxu0 %v5213
    %6428 = vmatpush2.bf16.msra.mxu0 %v5212
    %6429 = vmatprep.subr.bf16.mxu0 %v5197
    %6430 = vmatpush2.bf16.msra.mxu0 %v5196
    %6431 = vmatprep.subr.bf16.mxu0 %v5181
    %6432 = vmatpush2.bf16.msra.mxu0 %v5180
    %6433 = vmatprep.subr.bf16.mxu0 %v5165
    %6434 = vmatpush2.bf16.msra.mxu0 %v5164
    %6435 = vmatprep.subr.bf16.mxu0 %v5149
    %6436 = vmatpush2.bf16.msra.mxu0 %v5148
    %6437 = vmatprep.subr.bf16.mxu0 %v5133
    %6438 = vmatpush2.bf16.msra.mxu0 %v5132
    %6439 = vmatprep.mubr.bf16.mxu0 %v139
    %6440 = vmatmul.mubr.bf16.gmra.mxu0 %v138
    %v6441 = vpop.f32.mrf.mxu0
    %v6442 = vadd.f32 %v6401, %v6441
    %v6443 = vpop.f32.mrf.mxu0
    %v6444 = vadd.f32 %v6403, %v6443
    %v6445 = vpop.f32.mrf.mxu0
    %v6446 = vpop.f32.mrf.mxu0
    %6447 = vdwg.mxu0
    %6448 = vmatprep.subr.bf16.mxu0 %v4351
    %6449 = vmatpush1.bf16.msra.mxu0 %v4350
    %6450 = vmatprep.subr.bf16.mxu0 %v4335
    %6451 = vmatpush1.bf16.msra.mxu0 %v4334
    %6452 = vmatprep.subr.bf16.mxu0 %v4319
    %6453 = vmatpush1.bf16.msra.mxu0 %v4318
    %6454 = vmatprep.subr.bf16.mxu0 %v4303
    %6455 = vmatpush1.bf16.msra.mxu0 %v4302
    %6456 = vmatprep.subr.bf16.mxu0 %v4287
    %6457 = vmatpush1.bf16.msra.mxu0 %v4286
    %6458 = vmatprep.subr.bf16.mxu0 %v4271
    %6459 = vmatpush1.bf16.msra.mxu0 %v4270
    %6460 = vmatprep.subr.bf16.mxu0 %v4255
    %6461 = vmatpush1.bf16.msra.mxu0 %v4254
    %6462 = vmatprep.subr.bf16.mxu0 %v4239
    %6463 = vmatpush1.bf16.msra.mxu0 %v4238
    %6464 = vmatprep.subr.bf16.mxu0 %v4479
    %6465 = vmatpush2.bf16.msra.mxu0 %v4478
    %6466 = vmatprep.subr.bf16.mxu0 %v4463
    %6467 = vmatpush2.bf16.msra.mxu0 %v4462
    %6468 = vmatprep.subr.bf16.mxu0 %v4447
    %6469 = vmatpush2.bf16.msra.mxu0 %v4446
    %6470 = vmatprep.subr.bf16.mxu0 %v4431
    %6471 = vmatpush2.bf16.msra.mxu0 %v4430
    %6472 = vmatprep.subr.bf16.mxu0 %v4415
    %6473 = vmatpush2.bf16.msra.mxu0 %v4414
    %6474 = vmatprep.subr.bf16.mxu0 %v4399
    %6475 = vmatpush2.bf16.msra.mxu0 %v4398
    %6476 = vmatprep.subr.bf16.mxu0 %v4383
    %6477 = vmatpush2.bf16.msra.mxu0 %v4382
    %6478 = vmatprep.subr.bf16.mxu0 %v4367
    %6479 = vmatpush2.bf16.msra.mxu0 %v4366
    %6480 = vmatprep.mubr.bf16.mxu0 %v133
    %6481 = vmatmul.mubr.bf16.gmra.mxu0 %v132
    %v6482 = vpop.f32.mrf.mxu0
    %v6483 = vadd.f32 0.0, %v6482
    %v6484 = vpop.f32.mrf.mxu0
    %v6485 = vadd.f32 0.0, %v6484
    %v6486 = vpop.f32.mrf.mxu0
    %v6487 = vpop.f32.mrf.mxu0
    %6488 = vdwg.mxu0
    %6489 = vmatprep.subr.bf16.mxu0 %v4607
    %6490 = vmatpush1.bf16.msra.mxu0 %v4606
    %6491 = vmatprep.subr.bf16.mxu0 %v4591
    %6492 = vmatpush1.bf16.msra.mxu0 %v4590
    %6493 = vmatprep.subr.bf16.mxu0 %v4575
    %6494 = vmatpush1.bf16.msra.mxu0 %v4574
    %6495 = vmatprep.subr.bf16.mxu0 %v4559
    %6496 = vmatpush1.bf16.msra.mxu0 %v4558
    %6497 = vmatprep.subr.bf16.mxu0 %v4543
    %6498 = vmatpush1.bf16.msra.mxu0 %v4542
    %6499 = vmatprep.subr.bf16.mxu0 %v4527
    %6500 = vmatpush1.bf16.msra.mxu0 %v4526
    %6501 = vmatprep.subr.bf16.mxu0 %v4511
    %6502 = vmatpush1.bf16.msra.mxu0 %v4510
    %6503 = vmatprep.subr.bf16.mxu0 %v4495
    %6504 = vmatpush1.bf16.msra.mxu0 %v4494
    %6505 = vmatprep.subr.bf16.mxu0 %v4735
    %6506 = vmatpush2.bf16.msra.mxu0 %v4734
    %6507 = vmatprep.subr.bf16.mxu0 %v4719
    %6508 = vmatpush2.bf16.msra.mxu0 %v4718
    %6509 = vmatprep.subr.bf16.mxu0 %v4703
    %6510 = vmatpush2.bf16.msra.mxu0 %v4702
    %6511 = vmatprep.subr.bf16.mxu0 %v4687
    %6512 = vmatpush2.bf16.msra.mxu0 %v4686
    %6513 = vmatprep.subr.bf16.mxu0 %v4671
    %6514 = vmatpush2.bf16.msra.mxu0 %v4670
    %6515 = vmatprep.subr.bf16.mxu0 %v4655
    %6516 = vmatpush2.bf16.msra.mxu0 %v4654
    %6517 = vmatprep.subr.bf16.mxu0 %v4639
    %6518 = vmatpush2.bf16.msra.mxu0 %v4638
    %6519 = vmatprep.subr.bf16.mxu0 %v4623
    %6520 = vmatpush2.bf16.msra.mxu0 %v4622
    %6521 = vmatprep.mubr.bf16.mxu0 %v135
    %6522 = vmatmul.mubr.bf16.gmra.mxu0 %v134
    %v6523 = vpop.f32.mrf.mxu0
    %v6524 = vadd.f32 %v6483, %v6523
    %v6525 = vpop.f32.mrf.mxu0
    %v6526 = vadd.f32 %v6485, %v6525
    %v6527 = vpop.f32.mrf.mxu0
    %v6528 = vpop.f32.mrf.mxu0
    %6529 = vdwg.mxu0
    %6530 = vmatprep.subr.bf16.mxu0 %v4863
    %6531 = vmatpush1.bf16.msra.mxu0 %v4862
    %6532 = vmatprep.subr.bf16.mxu0 %v4847
    %6533 = vmatpush1.bf16.msra.mxu0 %v4846
    %6534 = vmatprep.subr.bf16.mxu0 %v4831
    %6535 = vmatpush1.bf16.msra.mxu0 %v4830
    %6536 = vmatprep.subr.bf16.mxu0 %v4815
    %6537 = vmatpush1.bf16.msra.mxu0 %v4814
    %6538 = vmatprep.subr.bf16.mxu0 %v4799
    %6539 = vmatpush1.bf16.msra.mxu0 %v4798
    %6540 = vmatprep.subr.bf16.mxu0 %v4783
    %6541 = vmatpush1.bf16.msra.mxu0 %v4782
    %6542 = vmatprep.subr.bf16.mxu0 %v4767
    %6543 = vmatpush1.bf16.msra.mxu0 %v4766
    %6544 = vmatprep.subr.bf16.mxu0 %v4751
    %6545 = vmatpush1.bf16.msra.mxu0 %v4750
    %6546 = vmatprep.subr.bf16.mxu0 %v4991
    %6547 = vmatpush2.bf16.msra.mxu0 %v4990
    %6548 = vmatprep.subr.bf16.mxu0 %v4975
    %6549 = vmatpush2.bf16.msra.mxu0 %v4974
    %6550 = vmatprep.subr.bf16.mxu0 %v4959
    %6551 = vmatpush2.bf16.msra.mxu0 %v4958
    %6552 = vmatprep.subr.bf16.mxu0 %v4943
    %6553 = vmatpush2.bf16.msra.mxu0 %v4942
    %6554 = vmatprep.subr.bf16.mxu0 %v4927
    %6555 = vmatpush2.bf16.msra.mxu0 %v4926
    %6556 = vmatprep.subr.bf16.mxu0 %v4911
    %6557 = vmatpush2.bf16.msra.mxu0 %v4910
    %6558 = vmatprep.subr.bf16.mxu0 %v4895
    %6559 = vmatpush2.bf16.msra.mxu0 %v4894
    %6560 = vmatprep.subr.bf16.mxu0 %v4879
    %6561 = vmatpush2.bf16.msra.mxu0 %v4878
    %6562 = vmatprep.mubr.bf16.mxu0 %v137
    %6563 = vmatmul.mubr.bf16.gmra.mxu0 %v136
    %v6564 = vpop.f32.mrf.mxu0
    %v6565 = vadd.f32 %v6524, %v6564
    %v6566 = vpop.f32.mrf.mxu0
    %v6567 = vadd.f32 %v6526, %v6566
    %v6568 = vpop.f32.mrf.mxu0
    %v6569 = vpop.f32.mrf.mxu0
    %6570 = vdwg.mxu0
    %6571 = vmatprep.subr.bf16.mxu0 %v5119
    %6572 = vmatpush1.bf16.msra.mxu0 %v5118
    %6573 = vmatprep.subr.bf16.mxu0 %v5103
    %6574 = vmatpush1.bf16.msra.mxu0 %v5102
    %6575 = vmatprep.subr.bf16.mxu0 %v5087
    %6576 = vmatpush1.bf16.msra.mxu0 %v5086
    %6577 = vmatprep.subr.bf16.mxu0 %v5071
    %6578 = vmatpush1.bf16.msra.mxu0 %v5070
    %6579 = vmatprep.subr.bf16.mxu0 %v5055
    %6580 = vmatpush1.bf16.msra.mxu0 %v5054
    %6581 = vmatprep.subr.bf16.mxu0 %v5039
    %6582 = vmatpush1.bf16.msra.mxu0 %v5038
    %6583 = vmatprep.subr.bf16.mxu0 %v5023
    %6584 = vmatpush1.bf16.msra.mxu0 %v5022
    %6585 = vmatprep.subr.bf16.mxu0 %v5007
    %6586 = vmatpush1.bf16.msra.mxu0 %v5006
    %6587 = vmatprep.subr.bf16.mxu0 %v5247
    %6588 = vmatpush2.bf16.msra.mxu0 %v5246
    %6589 = vmatprep.subr.bf16.mxu0 %v5231
    %6590 = vmatpush2.bf16.msra.mxu0 %v5230
    %6591 = vmatprep.subr.bf16.mxu0 %v5215
    %6592 = vmatpush2.bf16.msra.mxu0 %v5214
    %6593 = vmatprep.subr.bf16.mxu0 %v5199
    %6594 = vmatpush2.bf16.msra.mxu0 %v5198
    %6595 = vmatprep.subr.bf16.mxu0 %v5183
    %6596 = vmatpush2.bf16.msra.mxu0 %v5182
    %6597 = vmatprep.subr.bf16.mxu0 %v5167
    %6598 = vmatpush2.bf16.msra.mxu0 %v5166
    %6599 = vmatprep.subr.bf16.mxu0 %v5151
    %6600 = vmatpush2.bf16.msra.mxu0 %v5150
    %6601 = vmatprep.subr.bf16.mxu0 %v5135
    %6602 = vmatpush2.bf16.msra.mxu0 %v5134
    %6603 = vmatprep.mubr.bf16.mxu0 %v139
    %6604 = vmatmul.mubr.bf16.gmra.mxu0 %v138
    %v6605 = vpop.f32.mrf.mxu0
    %v6606 = vadd.f32 %v6565, %v6605
    %v6607 = vpop.f32.mrf.mxu0
    %v6608 = vadd.f32 %v6567, %v6607
    %v6609 = vpop.f32.mrf.mxu0
    %v6610 = vpop.f32.mrf.mxu0
    %6611 = vdwg.mxu0
    %6612 = vmatprep.subr.bf16.mxu0 %v4353
    %6613 = vmatpush1.bf16.msra.mxu0 %v4352
    %6614 = vmatprep.subr.bf16.mxu0 %v4337
    %6615 = vmatpush1.bf16.msra.mxu0 %v4336
    %6616 = vmatprep.subr.bf16.mxu0 %v4321
    %6617 = vmatpush1.bf16.msra.mxu0 %v4320
    %6618 = vmatprep.subr.bf16.mxu0 %v4305
    %6619 = vmatpush1.bf16.msra.mxu0 %v4304
    %6620 = vmatprep.subr.bf16.mxu0 %v4289
    %6621 = vmatpush1.bf16.msra.mxu0 %v4288
    %6622 = vmatprep.subr.bf16.mxu0 %v4273
    %6623 = vmatpush1.bf16.msra.mxu0 %v4272
    %6624 = vmatprep.subr.bf16.mxu0 %v4257
    %6625 = vmatpush1.bf16.msra.mxu0 %v4256
    %6626 = vmatprep.subr.bf16.mxu0 %v4241
    %6627 = vmatpush1.bf16.msra.mxu0 %v4240
    %6628 = vmatprep.subr.bf16.mxu0 %v4481
    %6629 = vmatpush2.bf16.msra.mxu0 %v4480
    %6630 = vmatprep.subr.bf16.mxu0 %v4465
    %6631 = vmatpush2.bf16.msra.mxu0 %v4464
    %6632 = vmatprep.subr.bf16.mxu0 %v4449
    %6633 = vmatpush2.bf16.msra.mxu0 %v4448
    %6634 = vmatprep.subr.bf16.mxu0 %v4433
    %6635 = vmatpush2.bf16.msra.mxu0 %v4432
    %6636 = vmatprep.subr.bf16.mxu0 %v4417
    %6637 = vmatpush2.bf16.msra.mxu0 %v4416
    %6638 = vmatprep.subr.bf16.mxu0 %v4401
    %6639 = vmatpush2.bf16.msra.mxu0 %v4400
    %6640 = vmatprep.subr.bf16.mxu0 %v4385
    %6641 = vmatpush2.bf16.msra.mxu0 %v4384
    %6642 = vmatprep.subr.bf16.mxu0 %v4369
    %6643 = vmatpush2.bf16.msra.mxu0 %v4368
    %6644 = vmatprep.mubr.bf16.mxu0 %v133
    %6645 = vmatmul.mubr.bf16.gmra.mxu0 %v132
    %v6646 = vpop.f32.mrf.mxu0
    %v6647 = vadd.f32 0.0, %v6646
    %v6648 = vpop.f32.mrf.mxu0
    %v6649 = vadd.f32 0.0, %v6648
    %v6650 = vpop.f32.mrf.mxu0
    %v6651 = vpop.f32.mrf.mxu0
    %6652 = vdwg.mxu0
    %6653 = vmatprep.subr.bf16.mxu0 %v4609
    %6654 = vmatpush1.bf16.msra.mxu0 %v4608
    %6655 = vmatprep.subr.bf16.mxu0 %v4593
    %6656 = vmatpush1.bf16.msra.mxu0 %v4592
    %6657 = vmatprep.subr.bf16.mxu0 %v4577
    %6658 = vmatpush1.bf16.msra.mxu0 %v4576
    %6659 = vmatprep.subr.bf16.mxu0 %v4561
    %6660 = vmatpush1.bf16.msra.mxu0 %v4560
    %6661 = vmatprep.subr.bf16.mxu0 %v4545
    %6662 = vmatpush1.bf16.msra.mxu0 %v4544
    %6663 = vmatprep.subr.bf16.mxu0 %v4529
    %6664 = vmatpush1.bf16.msra.mxu0 %v4528
    %6665 = vmatprep.subr.bf16.mxu0 %v4513
    %6666 = vmatpush1.bf16.msra.mxu0 %v4512
    %6667 = vmatprep.subr.bf16.mxu0 %v4497
    %6668 = vmatpush1.bf16.msra.mxu0 %v4496
    %6669 = vmatprep.subr.bf16.mxu0 %v4737
    %6670 = vmatpush2.bf16.msra.mxu0 %v4736
    %6671 = vmatprep.subr.bf16.mxu0 %v4721
    %6672 = vmatpush2.bf16.msra.mxu0 %v4720
    %6673 = vmatprep.subr.bf16.mxu0 %v4705
    %6674 = vmatpush2.bf16.msra.mxu0 %v4704
    %6675 = vmatprep.subr.bf16.mxu0 %v4689
    %6676 = vmatpush2.bf16.msra.mxu0 %v4688
    %6677 = vmatprep.subr.bf16.mxu0 %v4673
    %6678 = vmatpush2.bf16.msra.mxu0 %v4672
    %6679 = vmatprep.subr.bf16.mxu0 %v4657
    %6680 = vmatpush2.bf16.msra.mxu0 %v4656
    %6681 = vmatprep.subr.bf16.mxu0 %v4641
    %6682 = vmatpush2.bf16.msra.mxu0 %v4640
    %6683 = vmatprep.subr.bf16.mxu0 %v4625
    %6684 = vmatpush2.bf16.msra.mxu0 %v4624
    %6685 = vmatprep.mubr.bf16.mxu0 %v135
    %6686 = vmatmul.mubr.bf16.gmra.mxu0 %v134
    %v6687 = vpop.f32.mrf.mxu0
    %v6688 = vadd.f32 %v6647, %v6687
    %v6689 = vpop.f32.mrf.mxu0
    %v6690 = vadd.f32 %v6649, %v6689
    %v6691 = vpop.f32.mrf.mxu0
    %v6692 = vpop.f32.mrf.mxu0
    %6693 = vdwg.mxu0
    %6694 = vmatprep.subr.bf16.mxu0 %v4865
    %6695 = vmatpush1.bf16.msra.mxu0 %v4864
    %6696 = vmatprep.subr.bf16.mxu0 %v4849
    %6697 = vmatpush1.bf16.msra.mxu0 %v4848
    %6698 = vmatprep.subr.bf16.mxu0 %v4833
    %6699 = vmatpush1.bf16.msra.mxu0 %v4832
    %6700 = vmatprep.subr.bf16.mxu0 %v4817
    %6701 = vmatpush1.bf16.msra.mxu0 %v4816
    %6702 = vmatprep.subr.bf16.mxu0 %v4801
    %6703 = vmatpush1.bf16.msra.mxu0 %v4800
    %6704 = vmatprep.subr.bf16.mxu0 %v4785
    %6705 = vmatpush1.bf16.msra.mxu0 %v4784
    %6706 = vmatprep.subr.bf16.mxu0 %v4769
    %6707 = vmatpush1.bf16.msra.mxu0 %v4768
    %6708 = vmatprep.subr.bf16.mxu0 %v4753
    %6709 = vmatpush1.bf16.msra.mxu0 %v4752
    %6710 = vmatprep.subr.bf16.mxu0 %v4993
    %6711 = vmatpush2.bf16.msra.mxu0 %v4992
    %6712 = vmatprep.subr.bf16.mxu0 %v4977
    %6713 = vmatpush2.bf16.msra.mxu0 %v4976
    %6714 = vmatprep.subr.bf16.mxu0 %v4961
    %6715 = vmatpush2.bf16.msra.mxu0 %v4960
    %6716 = vmatprep.subr.bf16.mxu0 %v4945
    %6717 = vmatpush2.bf16.msra.mxu0 %v4944
    %6718 = vmatprep.subr.bf16.mxu0 %v4929
    %6719 = vmatpush2.bf16.msra.mxu0 %v4928
    %6720 = vmatprep.subr.bf16.mxu0 %v4913
    %6721 = vmatpush2.bf16.msra.mxu0 %v4912
    %6722 = vmatprep.subr.bf16.mxu0 %v4897
    %6723 = vmatpush2.bf16.msra.mxu0 %v4896
    %6724 = vmatprep.subr.bf16.mxu0 %v4881
    %6725 = vmatpush2.bf16.msra.mxu0 %v4880
    %6726 = vmatprep.mubr.bf16.mxu0 %v137
    %6727 = vmatmul.mubr.bf16.gmra.mxu0 %v136
    %v6728 = vpop.f32.mrf.mxu0
    %v6729 = vadd.f32 %v6688, %v6728
    %v6730 = vpop.f32.mrf.mxu0
    %v6731 = vadd.f32 %v6690, %v6730
    %v6732 = vpop.f32.mrf.mxu0
    %v6733 = vpop.f32.mrf.mxu0
    %6734 = vdwg.mxu0
    %6735 = vmatprep.subr.bf16.mxu0 %v5121
    %6736 = vmatpush1.bf16.msra.mxu0 %v5120
    %6737 = vmatprep.subr.bf16.mxu0 %v5105
    %6738 = vmatpush1.bf16.msra.mxu0 %v5104
    %6739 = vmatprep.subr.bf16.mxu0 %v5089
    %6740 = vmatpush1.bf16.msra.mxu0 %v5088
    %6741 = vmatprep.subr.bf16.mxu0 %v5073
    %6742 = vmatpush1.bf16.msra.mxu0 %v5072
    %6743 = vmatprep.subr.bf16.mxu0 %v5057
    %6744 = vmatpush1.bf16.msra.mxu0 %v5056
    %6745 = vmatprep.subr.bf16.mxu0 %v5041
    %6746 = vmatpush1.bf16.msra.mxu0 %v5040
    %6747 = vmatprep.subr.bf16.mxu0 %v5025
    %6748 = vmatpush1.bf16.msra.mxu0 %v5024
    %6749 = vmatprep.subr.bf16.mxu0 %v5009
    %6750 = vmatpush1.bf16.msra.mxu0 %v5008
    %6751 = vmatprep.subr.bf16.mxu0 %v5249
    %6752 = vmatpush2.bf16.msra.mxu0 %v5248
    %6753 = vmatprep.subr.bf16.mxu0 %v5233
    %6754 = vmatpush2.bf16.msra.mxu0 %v5232
    %6755 = vmatprep.subr.bf16.mxu0 %v5217
    %6756 = vmatpush2.bf16.msra.mxu0 %v5216
    %6757 = vmatprep.subr.bf16.mxu0 %v5201
    %6758 = vmatpush2.bf16.msra.mxu0 %v5200
    %6759 = vmatprep.subr.bf16.mxu0 %v5185
    %6760 = vmatpush2.bf16.msra.mxu0 %v5184
    %6761 = vmatprep.subr.bf16.mxu0 %v5169
    %6762 = vmatpush2.bf16.msra.mxu0 %v5168
    %6763 = vmatprep.subr.bf16.mxu0 %v5153
    %6764 = vmatpush2.bf16.msra.mxu0 %v5152
    %6765 = vmatprep.subr.bf16.mxu0 %v5137
    %6766 = vmatpush2.bf16.msra.mxu0 %v5136
    %6767 = vmatprep.mubr.bf16.mxu0 %v139
    %6768 = vmatmul.mubr.bf16.gmra.mxu0 %v138
    %v6769 = vpop.f32.mrf.mxu0
    %v6770 = vadd.f32 %v6729, %v6769
    %v6771 = vpop.f32.mrf.mxu0
    %v6772 = vadd.f32 %v6731, %v6771
    %v6773 = vpop.f32.mrf.mxu0
    %v6774 = vpop.f32.mrf.mxu0
    %6775 = vdwg.mxu0
    %6776 = vmatprep.subr.bf16.mxu0 %v4355
    %6777 = vmatpush1.bf16.msra.mxu0 %v4354
    %6778 = vmatprep.subr.bf16.mxu0 %v4339
    %6779 = vmatpush1.bf16.msra.mxu0 %v4338
    %6780 = vmatprep.subr.bf16.mxu0 %v4323
    %6781 = vmatpush1.bf16.msra.mxu0 %v4322
    %6782 = vmatprep.subr.bf16.mxu0 %v4307
    %6783 = vmatpush1.bf16.msra.mxu0 %v4306
    %6784 = vmatprep.subr.bf16.mxu0 %v4291
    %6785 = vmatpush1.bf16.msra.mxu0 %v4290
    %6786 = vmatprep.subr.bf16.mxu0 %v4275
    %6787 = vmatpush1.bf16.msra.mxu0 %v4274
    %6788 = vmatprep.subr.bf16.mxu0 %v4259
    %6789 = vmatpush1.bf16.msra.mxu0 %v4258
    %6790 = vmatprep.subr.bf16.mxu0 %v4243
    %6791 = vmatpush1.bf16.msra.mxu0 %v4242
    %6792 = vmatprep.subr.bf16.mxu0 %v4483
    %6793 = vmatpush2.bf16.msra.mxu0 %v4482
    %6794 = vmatprep.subr.bf16.mxu0 %v4467
    %6795 = vmatpush2.bf16.msra.mxu0 %v4466
    %6796 = vmatprep.subr.bf16.mxu0 %v4451
    %6797 = vmatpush2.bf16.msra.mxu0 %v4450
    %6798 = vmatprep.subr.bf16.mxu0 %v4435
    %6799 = vmatpush2.bf16.msra.mxu0 %v4434
    %6800 = vmatprep.subr.bf16.mxu0 %v4419
    %6801 = vmatpush2.bf16.msra.mxu0 %v4418
    %6802 = vmatprep.subr.bf16.mxu0 %v4403
    %6803 = vmatpush2.bf16.msra.mxu0 %v4402
    %6804 = vmatprep.subr.bf16.mxu0 %v4387
    %6805 = vmatpush2.bf16.msra.mxu0 %v4386
    %6806 = vmatprep.subr.bf16.mxu0 %v4371
    %6807 = vmatpush2.bf16.msra.mxu0 %v4370
    %6808 = vmatprep.mubr.bf16.mxu0 %v133
    %6809 = vmatmul.mubr.bf16.gmra.mxu0 %v132
    %v6810 = vpop.f32.mrf.mxu0
    %v6811 = vadd.f32 0.0, %v6810
    %v6812 = vpop.f32.mrf.mxu0
    %v6813 = vadd.f32 0.0, %v6812
    %v6814 = vpop.f32.mrf.mxu0
    %v6815 = vpop.f32.mrf.mxu0
    %6816 = vdwg.mxu0
    %6817 = vmatprep.subr.bf16.mxu0 %v4611
    %6818 = vmatpush1.bf16.msra.mxu0 %v4610
    %6819 = vmatprep.subr.bf16.mxu0 %v4595
    %6820 = vmatpush1.bf16.msra.mxu0 %v4594
    %6821 = vmatprep.subr.bf16.mxu0 %v4579
    %6822 = vmatpush1.bf16.msra.mxu0 %v4578
    %6823 = vmatprep.subr.bf16.mxu0 %v4563
    %6824 = vmatpush1.bf16.msra.mxu0 %v4562
    %6825 = vmatprep.subr.bf16.mxu0 %v4547
    %6826 = vmatpush1.bf16.msra.mxu0 %v4546
    %6827 = vmatprep.subr.bf16.mxu0 %v4531
    %6828 = vmatpush1.bf16.msra.mxu0 %v4530
    %6829 = vmatprep.subr.bf16.mxu0 %v4515
    %6830 = vmatpush1.bf16.msra.mxu0 %v4514
    %6831 = vmatprep.subr.bf16.mxu0 %v4499
    %6832 = vmatpush1.bf16.msra.mxu0 %v4498
    %6833 = vmatprep.subr.bf16.mxu0 %v4739
    %6834 = vmatpush2.bf16.msra.mxu0 %v4738
    %6835 = vmatprep.subr.bf16.mxu0 %v4723
    %6836 = vmatpush2.bf16.msra.mxu0 %v4722
    %6837 = vmatprep.subr.bf16.mxu0 %v4707
    %6838 = vmatpush2.bf16.msra.mxu0 %v4706
    %6839 = vmatprep.subr.bf16.mxu0 %v4691
    %6840 = vmatpush2.bf16.msra.mxu0 %v4690
    %6841 = vmatprep.subr.bf16.mxu0 %v4675
    %6842 = vmatpush2.bf16.msra.mxu0 %v4674
    %6843 = vmatprep.subr.bf16.mxu0 %v4659
    %6844 = vmatpush2.bf16.msra.mxu0 %v4658
    %6845 = vmatprep.subr.bf16.mxu0 %v4643
    %6846 = vmatpush2.bf16.msra.mxu0 %v4642
    %6847 = vmatprep.subr.bf16.mxu0 %v4627
    %6848 = vmatpush2.bf16.msra.mxu0 %v4626
    %6849 = vmatprep.mubr.bf16.mxu0 %v135
    %6850 = vmatmul.mubr.bf16.gmra.mxu0 %v134
    %v6851 = vpop.f32.mrf.mxu0
    %v6852 = vadd.f32 %v6811, %v6851
    %v6853 = vpop.f32.mrf.mxu0
    %v6854 = vadd.f32 %v6813, %v6853
    %v6855 = vpop.f32.mrf.mxu0
    %v6856 = vpop.f32.mrf.mxu0
    %6857 = vdwg.mxu0
    %6858 = vmatprep.subr.bf16.mxu0 %v4867
    %6859 = vmatpush1.bf16.msra.mxu0 %v4866
    %6860 = vmatprep.subr.bf16.mxu0 %v4851
    %6861 = vmatpush1.bf16.msra.mxu0 %v4850
    %6862 = vmatprep.subr.bf16.mxu0 %v4835
    %6863 = vmatpush1.bf16.msra.mxu0 %v4834
    %6864 = vmatprep.subr.bf16.mxu0 %v4819
    %6865 = vmatpush1.bf16.msra.mxu0 %v4818
    %6866 = vmatprep.subr.bf16.mxu0 %v4803
    %6867 = vmatpush1.bf16.msra.mxu0 %v4802
    %6868 = vmatprep.subr.bf16.mxu0 %v4787
    %6869 = vmatpush1.bf16.msra.mxu0 %v4786
    %6870 = vmatprep.subr.bf16.mxu0 %v4771
    %6871 = vmatpush1.bf16.msra.mxu0 %v4770
    %6872 = vmatprep.subr.bf16.mxu0 %v4755
    %6873 = vmatpush1.bf16.msra.mxu0 %v4754
    %6874 = vmatprep.subr.bf16.mxu0 %v4995
    %6875 = vmatpush2.bf16.msra.mxu0 %v4994
    %6876 = vmatprep.subr.bf16.mxu0 %v4979
    %6877 = vmatpush2.bf16.msra.mxu0 %v4978
    %6878 = vmatprep.subr.bf16.mxu0 %v4963
    %6879 = vmatpush2.bf16.msra.mxu0 %v4962
    %6880 = vmatprep.subr.bf16.mxu0 %v4947
    %6881 = vmatpush2.bf16.msra.mxu0 %v4946
    %6882 = vmatprep.subr.bf16.mxu0 %v4931
    %6883 = vmatpush2.bf16.msra.mxu0 %v4930
    %6884 = vmatprep.subr.bf16.mxu0 %v4915
    %6885 = vmatpush2.bf16.msra.mxu0 %v4914
    %6886 = vmatprep.subr.bf16.mxu0 %v4899
    %6887 = vmatpush2.bf16.msra.mxu0 %v4898
    %6888 = vmatprep.subr.bf16.mxu0 %v4883
    %6889 = vmatpush2.bf16.msra.mxu0 %v4882
    %6890 = vmatprep.mubr.bf16.mxu0 %v137
    %6891 = vmatmul.mubr.bf16.gmra.mxu0 %v136
    %v6892 = vpop.f32.mrf.mxu0
    %v6893 = vadd.f32 %v6852, %v6892
    %v6894 = vpop.f32.mrf.mxu0
    %v6895 = vadd.f32 %v6854, %v6894
    %v6896 = vpop.f32.mrf.mxu0
    %v6897 = vpop.f32.mrf.mxu0
    %6898 = vdwg.mxu0
    %6899 = vmatprep.subr.bf16.mxu0 %v5123
    %6900 = vmatpush1.bf16.msra.mxu0 %v5122
    %6901 = vmatprep.subr.bf16.mxu0 %v5107
    %6902 = vmatpush1.bf16.msra.mxu0 %v5106
    %6903 = vmatprep.subr.bf16.mxu0 %v5091
    %6904 = vmatpush1.bf16.msra.mxu0 %v5090
    %6905 = vmatprep.subr.bf16.mxu0 %v5075
    %6906 = vmatpush1.bf16.msra.mxu0 %v5074
    %6907 = vmatprep.subr.bf16.mxu0 %v5059
    %6908 = vmatpush1.bf16.msra.mxu0 %v5058
    %6909 = vmatprep.subr.bf16.mxu0 %v5043
    %6910 = vmatpush1.bf16.msra.mxu0 %v5042
    %6911 = vmatprep.subr.bf16.mxu0 %v5027
    %6912 = vmatpush1.bf16.msra.mxu0 %v5026
    %6913 = vmatprep.subr.bf16.mxu0 %v5011
    %6914 = vmatpush1.bf16.msra.mxu0 %v5010
    %6915 = vmatprep.subr.bf16.mxu0 %v5251
    %6916 = vmatpush2.bf16.msra.mxu0 %v5250
    %6917 = vmatprep.subr.bf16.mxu0 %v5235
    %6918 = vmatpush2.bf16.msra.mxu0 %v5234
    %6919 = vmatprep.subr.bf16.mxu0 %v5219
    %6920 = vmatpush2.bf16.msra.mxu0 %v5218
    %6921 = vmatprep.subr.bf16.mxu0 %v5203
    %6922 = vmatpush2.bf16.msra.mxu0 %v5202
    %6923 = vmatprep.subr.bf16.mxu0 %v5187
    %6924 = vmatpush2.bf16.msra.mxu0 %v5186
    %6925 = vmatprep.subr.bf16.mxu0 %v5171
    %6926 = vmatpush2.bf16.msra.mxu0 %v5170
    %6927 = vmatprep.subr.bf16.mxu0 %v5155
    %6928 = vmatpush2.bf16.msra.mxu0 %v5154
    %6929 = vmatprep.subr.bf16.mxu0 %v5139
    %6930 = vmatpush2.bf16.msra.mxu0 %v5138
    %6931 = vmatprep.mubr.bf16.mxu0 %v139
    %6932 = vmatmul.mubr.bf16.gmra.mxu0 %v138
    %v6933 = vpop.f32.mrf.mxu0
    %v6934 = vadd.f32 %v6893, %v6933
    %v6935 = vpop.f32.mrf.mxu0
    %v6936 = vadd.f32 %v6895, %v6935
    %v6937 = vpop.f32.mrf.mxu0
    %v6938 = vpop.f32.mrf.mxu0
    %6939 = vdwg.mxu0
    %6940 = vmatprep.subr.bf16.mxu0 %v4357
    %6941 = vmatpush1.bf16.msra.mxu0 %v4356
    %6942 = vmatprep.subr.bf16.mxu0 %v4341
    %6943 = vmatpush1.bf16.msra.mxu0 %v4340
    %6944 = vmatprep.subr.bf16.mxu0 %v4325
    %6945 = vmatpush1.bf16.msra.mxu0 %v4324
    %6946 = vmatprep.subr.bf16.mxu0 %v4309
    %6947 = vmatpush1.bf16.msra.mxu0 %v4308
    %6948 = vmatprep.subr.bf16.mxu0 %v4293
    %6949 = vmatpush1.bf16.msra.mxu0 %v4292
    %6950 = vmatprep.subr.bf16.mxu0 %v4277
    %6951 = vmatpush1.bf16.msra.mxu0 %v4276
    %6952 = vmatprep.subr.bf16.mxu0 %v4261
    %6953 = vmatpush1.bf16.msra.mxu0 %v4260
    %6954 = vmatprep.subr.bf16.mxu0 %v4245
    %6955 = vmatpush1.bf16.msra.mxu0 %v4244
    %6956 = vmatprep.subr.bf16.mxu0 %v4485
    %6957 = vmatpush2.bf16.msra.mxu0 %v4484
    %6958 = vmatprep.subr.bf16.mxu0 %v4469
    %6959 = vmatpush2.bf16.msra.mxu0 %v4468
    %6960 = vmatprep.subr.bf16.mxu0 %v4453
    %6961 = vmatpush2.bf16.msra.mxu0 %v4452
    %6962 = vmatprep.subr.bf16.mxu0 %v4437
    %6963 = vmatpush2.bf16.msra.mxu0 %v4436
    %6964 = vmatprep.subr.bf16.mxu0 %v4421
    %6965 = vmatpush2.bf16.msra.mxu0 %v4420
    %6966 = vmatprep.subr.bf16.mxu0 %v4405
    %6967 = vmatpush2.bf16.msra.mxu0 %v4404
    %6968 = vmatprep.subr.bf16.mxu0 %v4389
    %6969 = vmatpush2.bf16.msra.mxu0 %v4388
    %6970 = vmatprep.subr.bf16.mxu0 %v4373
    %6971 = vmatpush2.bf16.msra.mxu0 %v4372
    %6972 = vmatprep.mubr.bf16.mxu0 %v133
    %6973 = vmatmul.mubr.bf16.gmra.mxu0 %v132
    %v6974 = vpop.f32.mrf.mxu0
    %v6975 = vadd.f32 0.0, %v6974
    %v6976 = vpop.f32.mrf.mxu0
    %v6977 = vadd.f32 0.0, %v6976
    %v6978 = vpop.f32.mrf.mxu0
    %v6979 = vpop.f32.mrf.mxu0
    %6980 = vdwg.mxu0
    %6981 = vmatprep.subr.bf16.mxu0 %v4613
    %6982 = vmatpush1.bf16.msra.mxu0 %v4612
    %6983 = vmatprep.subr.bf16.mxu0 %v4597
    %6984 = vmatpush1.bf16.msra.mxu0 %v4596
    %6985 = vmatprep.subr.bf16.mxu0 %v4581
    %6986 = vmatpush1.bf16.msra.mxu0 %v4580
    %6987 = vmatprep.subr.bf16.mxu0 %v4565
    %6988 = vmatpush1.bf16.msra.mxu0 %v4564
    %6989 = vmatprep.subr.bf16.mxu0 %v4549
    %6990 = vmatpush1.bf16.msra.mxu0 %v4548
    %6991 = vmatprep.subr.bf16.mxu0 %v4533
    %6992 = vmatpush1.bf16.msra.mxu0 %v4532
    %6993 = vmatprep.subr.bf16.mxu0 %v4517
    %6994 = vmatpush1.bf16.msra.mxu0 %v4516
    %6995 = vmatprep.subr.bf16.mxu0 %v4501
    %6996 = vmatpush1.bf16.msra.mxu0 %v4500
    %6997 = vmatprep.subr.bf16.mxu0 %v4741
    %6998 = vmatpush2.bf16.msra.mxu0 %v4740
    %6999 = vmatprep.subr.bf16.mxu0 %v4725
    %7000 = vmatpush2.bf16.msra.mxu0 %v4724
    %7001 = vmatprep.subr.bf16.mxu0 %v4709
    %7002 = vmatpush2.bf16.msra.mxu0 %v4708
    %7003 = vmatprep.subr.bf16.mxu0 %v4693
    %7004 = vmatpush2.bf16.msra.mxu0 %v4692
    %7005 = vmatprep.subr.bf16.mxu0 %v4677
    %7006 = vmatpush2.bf16.msra.mxu0 %v4676
    %7007 = vmatprep.subr.bf16.mxu0 %v4661
    %7008 = vmatpush2.bf16.msra.mxu0 %v4660
    %7009 = vmatprep.subr.bf16.mxu0 %v4645
    %7010 = vmatpush2.bf16.msra.mxu0 %v4644
    %7011 = vmatprep.subr.bf16.mxu0 %v4629
    %7012 = vmatpush2.bf16.msra.mxu0 %v4628
    %7013 = vmatprep.mubr.bf16.mxu0 %v135
    %7014 = vmatmul.mubr.bf16.gmra.mxu0 %v134
    %v7015 = vpop.f32.mrf.mxu0
    %v7016 = vadd.f32 %v6975, %v7015
    %v7017 = vpop.f32.mrf.mxu0
    %v7018 = vadd.f32 %v6977, %v7017
    %v7019 = vpop.f32.mrf.mxu0
    %v7020 = vpop.f32.mrf.mxu0
    %7021 = vdwg.mxu0
    %7022 = vmatprep.subr.bf16.mxu0 %v4869
    %7023 = vmatpush1.bf16.msra.mxu0 %v4868
    %7024 = vmatprep.subr.bf16.mxu0 %v4853
    %7025 = vmatpush1.bf16.msra.mxu0 %v4852
    %7026 = vmatprep.subr.bf16.mxu0 %v4837
    %7027 = vmatpush1.bf16.msra.mxu0 %v4836
    %7028 = vmatprep.subr.bf16.mxu0 %v4821
    %7029 = vmatpush1.bf16.msra.mxu0 %v4820
    %7030 = vmatprep.subr.bf16.mxu0 %v4805
    %7031 = vmatpush1.bf16.msra.mxu0 %v4804
    %7032 = vmatprep.subr.bf16.mxu0 %v4789
    %7033 = vmatpush1.bf16.msra.mxu0 %v4788
    %7034 = vmatprep.subr.bf16.mxu0 %v4773
    %7035 = vmatpush1.bf16.msra.mxu0 %v4772
    %7036 = vmatprep.subr.bf16.mxu0 %v4757
    %7037 = vmatpush1.bf16.msra.mxu0 %v4756
    %7038 = vmatprep.subr.bf16.mxu0 %v4997
    %7039 = vmatpush2.bf16.msra.mxu0 %v4996
    %7040 = vmatprep.subr.bf16.mxu0 %v4981
    %7041 = vmatpush2.bf16.msra.mxu0 %v4980
    %7042 = vmatprep.subr.bf16.mxu0 %v4965
    %7043 = vmatpush2.bf16.msra.mxu0 %v4964
    %7044 = vmatprep.subr.bf16.mxu0 %v4949
    %7045 = vmatpush2.bf16.msra.mxu0 %v4948
    %7046 = vmatprep.subr.bf16.mxu0 %v4933
    %7047 = vmatpush2.bf16.msra.mxu0 %v4932
    %7048 = vmatprep.subr.bf16.mxu0 %v4917
    %7049 = vmatpush2.bf16.msra.mxu0 %v4916
    %7050 = vmatprep.subr.bf16.mxu0 %v4901
    %7051 = vmatpush2.bf16.msra.mxu0 %v4900
    %7052 = vmatprep.subr.bf16.mxu0 %v4885
    %7053 = vmatpush2.bf16.msra.mxu0 %v4884
    %7054 = vmatprep.mubr.bf16.mxu0 %v137
    %7055 = vmatmul.mubr.bf16.gmra.mxu0 %v136
    %v7056 = vpop.f32.mrf.mxu0
    %v7057 = vadd.f32 %v7016, %v7056
    %v7058 = vpop.f32.mrf.mxu0
    %v7059 = vadd.f32 %v7018, %v7058
    %v7060 = vpop.f32.mrf.mxu0
    %v7061 = vpop.f32.mrf.mxu0
    %7062 = vdwg.mxu0
    %7063 = vmatprep.subr.bf16.mxu0 %v5125
    %7064 = vmatpush1.bf16.msra.mxu0 %v5124
    %7065 = vmatprep.subr.bf16.mxu0 %v5109
    %7066 = vmatpush1.bf16.msra.mxu0 %v5108
    %7067 = vmatprep.subr.bf16.mxu0 %v5093
    %7068 = vmatpush1.bf16.msra.mxu0 %v5092
    %7069 = vmatprep.subr.bf16.mxu0 %v5077
    %7070 = vmatpush1.bf16.msra.mxu0 %v5076
    %7071 = vmatprep.subr.bf16.mxu0 %v5061
    %7072 = vmatpush1.bf16.msra.mxu0 %v5060
    %7073 = vmatprep.subr.bf16.mxu0 %v5045
    %7074 = vmatpush1.bf16.msra.mxu0 %v5044
    %7075 = vmatprep.subr.bf16.mxu0 %v5029
    %7076 = vmatpush1.bf16.msra.mxu0 %v5028
    %7077 = vmatprep.subr.bf16.mxu0 %v5013
    %7078 = vmatpush1.bf16.msra.mxu0 %v5012
    %7079 = vmatprep.subr.bf16.mxu0 %v5253
    %7080 = vmatpush2.bf16.msra.mxu0 %v5252
    %7081 = vmatprep.subr.bf16.mxu0 %v5237
    %7082 = vmatpush2.bf16.msra.mxu0 %v5236
    %7083 = vmatprep.subr.bf16.mxu0 %v5221
    %7084 = vmatpush2.bf16.msra.mxu0 %v5220
    %7085 = vmatprep.subr.bf16.mxu0 %v5205
    %7086 = vmatpush2.bf16.msra.mxu0 %v5204
    %7087 = vmatprep.subr.bf16.mxu0 %v5189
    %7088 = vmatpush2.bf16.msra.mxu0 %v5188
    %7089 = vmatprep.subr.bf16.mxu0 %v5173
    %7090 = vmatpush2.bf16.msra.mxu0 %v5172
    %7091 = vmatprep.subr.bf16.mxu0 %v5157
    %7092 = vmatpush2.bf16.msra.mxu0 %v5156
    %7093 = vmatprep.subr.bf16.mxu0 %v5141
    %7094 = vmatpush2.bf16.msra.mxu0 %v5140
    %7095 = vmatprep.mubr.bf16.mxu0 %v139
    %7096 = vmatmul.mubr.bf16.gmra.mxu0 %v138
    %v7097 = vpop.f32.mrf.mxu0
    %v7098 = vadd.f32 %v7057, %v7097
    %v7099 = vpop.f32.mrf.mxu0
    %v7100 = vadd.f32 %v7059, %v7099
    %v7101 = vpop.f32.mrf.mxu0
    %v7102 = vpop.f32.mrf.mxu0
    %7103 = vdwg.mxu0
    %7104 = vmatprep.subr.bf16.mxu0 %v4359
    %7105 = vmatpush1.bf16.msra.mxu0 %v4358
    %7106 = vmatprep.subr.bf16.mxu0 %v4343
    %7107 = vmatpush1.bf16.msra.mxu0 %v4342
    %7108 = vmatprep.subr.bf16.mxu0 %v4327
    %7109 = vmatpush1.bf16.msra.mxu0 %v4326
    %7110 = vmatprep.subr.bf16.mxu0 %v4311
    %7111 = vmatpush1.bf16.msra.mxu0 %v4310
    %7112 = vmatprep.subr.bf16.mxu0 %v4295
    %7113 = vmatpush1.bf16.msra.mxu0 %v4294
    %7114 = vmatprep.subr.bf16.mxu0 %v4279
    %7115 = vmatpush1.bf16.msra.mxu0 %v4278
    %7116 = vmatprep.subr.bf16.mxu0 %v4263
    %7117 = vmatpush1.bf16.msra.mxu0 %v4262
    %7118 = vmatprep.subr.bf16.mxu0 %v4247
    %7119 = vmatpush1.bf16.msra.mxu0 %v4246
    %7120 = vmatprep.subr.bf16.mxu0 %v4487
    %7121 = vmatpush2.bf16.msra.mxu0 %v4486
    %7122 = vmatprep.subr.bf16.mxu0 %v4471
    %7123 = vmatpush2.bf16.msra.mxu0 %v4470
    %7124 = vmatprep.subr.bf16.mxu0 %v4455
    %7125 = vmatpush2.bf16.msra.mxu0 %v4454
    %7126 = vmatprep.subr.bf16.mxu0 %v4439
    %7127 = vmatpush2.bf16.msra.mxu0 %v4438
    %7128 = vmatprep.subr.bf16.mxu0 %v4423
    %7129 = vmatpush2.bf16.msra.mxu0 %v4422
    %7130 = vmatprep.subr.bf16.mxu0 %v4407
    %7131 = vmatpush2.bf16.msra.mxu0 %v4406
    %7132 = vmatprep.subr.bf16.mxu0 %v4391
    %7133 = vmatpush2.bf16.msra.mxu0 %v4390
    %7134 = vmatprep.subr.bf16.mxu0 %v4375
    %7135 = vmatpush2.bf16.msra.mxu0 %v4374
    %7136 = vmatprep.mubr.bf16.mxu0 %v133
    %7137 = vmatmul.mubr.bf16.gmra.mxu0 %v132
    %v7138 = vpop.f32.mrf.mxu0
    %v7139 = vadd.f32 0.0, %v7138
    %v7140 = vpop.f32.mrf.mxu0
    %v7141 = vadd.f32 0.0, %v7140
    %v7142 = vpop.f32.mrf.mxu0
    %v7143 = vpop.f32.mrf.mxu0
    %7144 = vdwg.mxu0
    %7145 = vmatprep.subr.bf16.mxu0 %v4615
    %7146 = vmatpush1.bf16.msra.mxu0 %v4614
    %7147 = vmatprep.subr.bf16.mxu0 %v4599
    %7148 = vmatpush1.bf16.msra.mxu0 %v4598
    %7149 = vmatprep.subr.bf16.mxu0 %v4583
    %7150 = vmatpush1.bf16.msra.mxu0 %v4582
    %7151 = vmatprep.subr.bf16.mxu0 %v4567
    %7152 = vmatpush1.bf16.msra.mxu0 %v4566
    %7153 = vmatprep.subr.bf16.mxu0 %v4551
    %7154 = vmatpush1.bf16.msra.mxu0 %v4550
    %7155 = vmatprep.subr.bf16.mxu0 %v4535
    %7156 = vmatpush1.bf16.msra.mxu0 %v4534
    %7157 = vmatprep.subr.bf16.mxu0 %v4519
    %7158 = vmatpush1.bf16.msra.mxu0 %v4518
    %7159 = vmatprep.subr.bf16.mxu0 %v4503
    %7160 = vmatpush1.bf16.msra.mxu0 %v4502
    %7161 = vmatprep.subr.bf16.mxu0 %v4743
    %7162 = vmatpush2.bf16.msra.mxu0 %v4742
    %7163 = vmatprep.subr.bf16.mxu0 %v4727
    %7164 = vmatpush2.bf16.msra.mxu0 %v4726
    %7165 = vmatprep.subr.bf16.mxu0 %v4711
    %7166 = vmatpush2.bf16.msra.mxu0 %v4710
    %7167 = vmatprep.subr.bf16.mxu0 %v4695
    %7168 = vmatpush2.bf16.msra.mxu0 %v4694
    %7169 = vmatprep.subr.bf16.mxu0 %v4679
    %7170 = vmatpush2.bf16.msra.mxu0 %v4678
    %7171 = vmatprep.subr.bf16.mxu0 %v4663
    %7172 = vmatpush2.bf16.msra.mxu0 %v4662
    %7173 = vmatprep.subr.bf16.mxu0 %v4647
    %7174 = vmatpush2.bf16.msra.mxu0 %v4646
    %7175 = vmatprep.subr.bf16.mxu0 %v4631
    %7176 = vmatpush2.bf16.msra.mxu0 %v4630
    %7177 = vmatprep.mubr.bf16.mxu0 %v135
    %7178 = vmatmul.mubr.bf16.gmra.mxu0 %v134
    %v7179 = vpop.f32.mrf.mxu0
    %v7180 = vadd.f32 %v7139, %v7179
    %v7181 = vpop.f32.mrf.mxu0
    %v7182 = vadd.f32 %v7141, %v7181
    %v7183 = vpop.f32.mrf.mxu0
    %v7184 = vpop.f32.mrf.mxu0
    %7185 = vdwg.mxu0
    %7186 = vmatprep.subr.bf16.mxu0 %v4871
    %7187 = vmatpush1.bf16.msra.mxu0 %v4870
    %7188 = vmatprep.subr.bf16.mxu0 %v4855
    %7189 = vmatpush1.bf16.msra.mxu0 %v4854
    %7190 = vmatprep.subr.bf16.mxu0 %v4839
    %7191 = vmatpush1.bf16.msra.mxu0 %v4838
    %7192 = vmatprep.subr.bf16.mxu0 %v4823
    %7193 = vmatpush1.bf16.msra.mxu0 %v4822
    %7194 = vmatprep.subr.bf16.mxu0 %v4807
    %7195 = vmatpush1.bf16.msra.mxu0 %v4806
    %7196 = vmatprep.subr.bf16.mxu0 %v4791
    %7197 = vmatpush1.bf16.msra.mxu0 %v4790
    %7198 = vmatprep.subr.bf16.mxu0 %v4775
    %7199 = vmatpush1.bf16.msra.mxu0 %v4774
    %7200 = vmatprep.subr.bf16.mxu0 %v4759
    %7201 = vmatpush1.bf16.msra.mxu0 %v4758
    %7202 = vmatprep.subr.bf16.mxu0 %v4999
    %7203 = vmatpush2.bf16.msra.mxu0 %v4998
    %7204 = vmatprep.subr.bf16.mxu0 %v4983
    %7205 = vmatpush2.bf16.msra.mxu0 %v4982
    %7206 = vmatprep.subr.bf16.mxu0 %v4967
    %7207 = vmatpush2.bf16.msra.mxu0 %v4966
    %7208 = vmatprep.subr.bf16.mxu0 %v4951
    %7209 = vmatpush2.bf16.msra.mxu0 %v4950
    %7210 = vmatprep.subr.bf16.mxu0 %v4935
    %7211 = vmatpush2.bf16.msra.mxu0 %v4934
    %7212 = vmatprep.subr.bf16.mxu0 %v4919
    %7213 = vmatpush2.bf16.msra.mxu0 %v4918
    %7214 = vmatprep.subr.bf16.mxu0 %v4903
    %7215 = vmatpush2.bf16.msra.mxu0 %v4902
    %7216 = vmatprep.subr.bf16.mxu0 %v4887
    %7217 = vmatpush2.bf16.msra.mxu0 %v4886
    %7218 = vmatprep.mubr.bf16.mxu0 %v137
    %7219 = vmatmul.mubr.bf16.gmra.mxu0 %v136
    %v7220 = vpop.f32.mrf.mxu0
    %v7221 = vadd.f32 %v7180, %v7220
    %v7222 = vpop.f32.mrf.mxu0
    %v7223 = vadd.f32 %v7182, %v7222
    %v7224 = vpop.f32.mrf.mxu0
    %v7225 = vpop.f32.mrf.mxu0
    %7226 = vdwg.mxu0
    %7227 = vmatprep.subr.bf16.mxu0 %v5127
    %7228 = vmatpush1.bf16.msra.mxu0 %v5126
    %7229 = vmatprep.subr.bf16.mxu0 %v5111
    %7230 = vmatpush1.bf16.msra.mxu0 %v5110
    %7231 = vmatprep.subr.bf16.mxu0 %v5095
    %7232 = vmatpush1.bf16.msra.mxu0 %v5094
    %7233 = vmatprep.subr.bf16.mxu0 %v5079
    %7234 = vmatpush1.bf16.msra.mxu0 %v5078
    %7235 = vmatprep.subr.bf16.mxu0 %v5063
    %7236 = vmatpush1.bf16.msra.mxu0 %v5062
    %7237 = vmatprep.subr.bf16.mxu0 %v5047
    %7238 = vmatpush1.bf16.msra.mxu0 %v5046
    %7239 = vmatprep.subr.bf16.mxu0 %v5031
    %7240 = vmatpush1.bf16.msra.mxu0 %v5030
    %7241 = vmatprep.subr.bf16.mxu0 %v5015
    %7242 = vmatpush1.bf16.msra.mxu0 %v5014
    %7243 = vmatprep.subr.bf16.mxu0 %v5255
    %7244 = vmatpush2.bf16.msra.mxu0 %v5254
    %7245 = vmatprep.subr.bf16.mxu0 %v5239
    %7246 = vmatpush2.bf16.msra.mxu0 %v5238
    %7247 = vmatprep.subr.bf16.mxu0 %v5223
    %7248 = vmatpush2.bf16.msra.mxu0 %v5222
    %7249 = vmatprep.subr.bf16.mxu0 %v5207
    %7250 = vmatpush2.bf16.msra.mxu0 %v5206
    %7251 = vmatprep.subr.bf16.mxu0 %v5191
    %7252 = vmatpush2.bf16.msra.mxu0 %v5190
    %7253 = vmatprep.subr.bf16.mxu0 %v5175
    %7254 = vmatpush2.bf16.msra.mxu0 %v5174
    %7255 = vmatprep.subr.bf16.mxu0 %v5159
    %7256 = vmatpush2.bf16.msra.mxu0 %v5158
    %7257 = vmatprep.subr.bf16.mxu0 %v5143
    %7258 = vmatpush2.bf16.msra.mxu0 %v5142
    %7259 = vmatprep.mubr.bf16.mxu0 %v139
    %7260 = vmatmul.mubr.bf16.gmra.mxu0 %v138
    %v7261 = vpop.f32.mrf.mxu0
    %v7262 = vadd.f32 %v7221, %v7261
    %v7263 = vpop.f32.mrf.mxu0
    %v7264 = vadd.f32 %v7223, %v7263
    %v7265 = vpop.f32.mrf.mxu0
    %v7266 = vpop.f32.mrf.mxu0
    %7267 = vdwg.mxu0
    %7268 = vmatprep.subr.bf16.mxu0 %v4361
    %7269 = vmatpush1.bf16.msra.mxu0 %v4360
    %7270 = vmatprep.subr.bf16.mxu0 %v4345
    %7271 = vmatpush1.bf16.msra.mxu0 %v4344
    %7272 = vmatprep.subr.bf16.mxu0 %v4329
    %7273 = vmatpush1.bf16.msra.mxu0 %v4328
    %7274 = vmatprep.subr.bf16.mxu0 %v4313
    %7275 = vmatpush1.bf16.msra.mxu0 %v4312
    %7276 = vmatprep.subr.bf16.mxu0 %v4297
    %7277 = vmatpush1.bf16.msra.mxu0 %v4296
    %7278 = vmatprep.subr.bf16.mxu0 %v4281
    %7279 = vmatpush1.bf16.msra.mxu0 %v4280
    %7280 = vmatprep.subr.bf16.mxu0 %v4265
    %7281 = vmatpush1.bf16.msra.mxu0 %v4264
    %7282 = vmatprep.subr.bf16.mxu0 %v4249
    %7283 = vmatpush1.bf16.msra.mxu0 %v4248
    %7284 = vmatprep.subr.bf16.mxu0 %v4489
    %7285 = vmatpush2.bf16.msra.mxu0 %v4488
    %7286 = vmatprep.subr.bf16.mxu0 %v4473
    %7287 = vmatpush2.bf16.msra.mxu0 %v4472
    %7288 = vmatprep.subr.bf16.mxu0 %v4457
    %7289 = vmatpush2.bf16.msra.mxu0 %v4456
    %7290 = vmatprep.subr.bf16.mxu0 %v4441
    %7291 = vmatpush2.bf16.msra.mxu0 %v4440
    %7292 = vmatprep.subr.bf16.mxu0 %v4425
    %7293 = vmatpush2.bf16.msra.mxu0 %v4424
    %7294 = vmatprep.subr.bf16.mxu0 %v4409
    %7295 = vmatpush2.bf16.msra.mxu0 %v4408
    %7296 = vmatprep.subr.bf16.mxu0 %v4393
    %7297 = vmatpush2.bf16.msra.mxu0 %v4392
    %7298 = vmatprep.subr.bf16.mxu0 %v4377
    %7299 = vmatpush2.bf16.msra.mxu0 %v4376
    %7300 = vmatprep.mubr.bf16.mxu0 %v133
    %7301 = vmatmul.mubr.bf16.gmra.mxu0 %v132
    %v7302 = vpop.f32.mrf.mxu0
    %v7303 = vadd.f32 0.0, %v7302
    %v7304 = vpop.f32.mrf.mxu0
    %v7305 = vadd.f32 0.0, %v7304
    %v7306 = vpop.f32.mrf.mxu0
    %v7307 = vpop.f32.mrf.mxu0
    %7308 = vdwg.mxu0
    %7309 = vmatprep.subr.bf16.mxu0 %v4617
    %7310 = vmatpush1.bf16.msra.mxu0 %v4616
    %7311 = vmatprep.subr.bf16.mxu0 %v4601
    %7312 = vmatpush1.bf16.msra.mxu0 %v4600
    %7313 = vmatprep.subr.bf16.mxu0 %v4585
    %7314 = vmatpush1.bf16.msra.mxu0 %v4584
    %7315 = vmatprep.subr.bf16.mxu0 %v4569
    %7316 = vmatpush1.bf16.msra.mxu0 %v4568
    %7317 = vmatprep.subr.bf16.mxu0 %v4553
    %7318 = vmatpush1.bf16.msra.mxu0 %v4552
    %7319 = vmatprep.subr.bf16.mxu0 %v4537
    %7320 = vmatpush1.bf16.msra.mxu0 %v4536
    %7321 = vmatprep.subr.bf16.mxu0 %v4521
    %7322 = vmatpush1.bf16.msra.mxu0 %v4520
    %7323 = vmatprep.subr.bf16.mxu0 %v4505
    %7324 = vmatpush1.bf16.msra.mxu0 %v4504
    %7325 = vmatprep.subr.bf16.mxu0 %v4745
    %7326 = vmatpush2.bf16.msra.mxu0 %v4744
    %7327 = vmatprep.subr.bf16.mxu0 %v4729
    %7328 = vmatpush2.bf16.msra.mxu0 %v4728
    %7329 = vmatprep.subr.bf16.mxu0 %v4713
    %7330 = vmatpush2.bf16.msra.mxu0 %v4712
    %7331 = vmatprep.subr.bf16.mxu0 %v4697
    %7332 = vmatpush2.bf16.msra.mxu0 %v4696
    %7333 = vmatprep.subr.bf16.mxu0 %v4681
    %7334 = vmatpush2.bf16.msra.mxu0 %v4680
    %7335 = vmatprep.subr.bf16.mxu0 %v4665
    %7336 = vmatpush2.bf16.msra.mxu0 %v4664
    %7337 = vmatprep.subr.bf16.mxu0 %v4649
    %7338 = vmatpush2.bf16.msra.mxu0 %v4648
    %7339 = vmatprep.subr.bf16.mxu0 %v4633
    %7340 = vmatpush2.bf16.msra.mxu0 %v4632
    %7341 = vmatprep.mubr.bf16.mxu0 %v135
    %7342 = vmatmul.mubr.bf16.gmra.mxu0 %v134
    %v7343 = vpop.f32.mrf.mxu0
    %v7344 = vadd.f32 %v7303, %v7343
    %v7345 = vpop.f32.mrf.mxu0
    %v7346 = vadd.f32 %v7305, %v7345
    %v7347 = vpop.f32.mrf.mxu0
    %v7348 = vpop.f32.mrf.mxu0
    %7349 = vdwg.mxu0
    %7350 = vmatprep.subr.bf16.mxu0 %v4873
    %7351 = vmatpush1.bf16.msra.mxu0 %v4872
    %7352 = vmatprep.subr.bf16.mxu0 %v4857
    %7353 = vmatpush1.bf16.msra.mxu0 %v4856
    %7354 = vmatprep.subr.bf16.mxu0 %v4841
    %7355 = vmatpush1.bf16.msra.mxu0 %v4840
    %7356 = vmatprep.subr.bf16.mxu0 %v4825
    %7357 = vmatpush1.bf16.msra.mxu0 %v4824
    %7358 = vmatprep.subr.bf16.mxu0 %v4809
    %7359 = vmatpush1.bf16.msra.mxu0 %v4808
    %7360 = vmatprep.subr.bf16.mxu0 %v4793
    %7361 = vmatpush1.bf16.msra.mxu0 %v4792
    %7362 = vmatprep.subr.bf16.mxu0 %v4777
    %7363 = vmatpush1.bf16.msra.mxu0 %v4776
    %7364 = vmatprep.subr.bf16.mxu0 %v4761
    %7365 = vmatpush1.bf16.msra.mxu0 %v4760
    %7366 = vmatprep.subr.bf16.mxu0 %v5001
    %7367 = vmatpush2.bf16.msra.mxu0 %v5000
    %7368 = vmatprep.subr.bf16.mxu0 %v4985
    %7369 = vmatpush2.bf16.msra.mxu0 %v4984
    %7370 = vmatprep.subr.bf16.mxu0 %v4969
    %7371 = vmatpush2.bf16.msra.mxu0 %v4968
    %7372 = vmatprep.subr.bf16.mxu0 %v4953
    %7373 = vmatpush2.bf16.msra.mxu0 %v4952
    %7374 = vmatprep.subr.bf16.mxu0 %v4937
    %7375 = vmatpush2.bf16.msra.mxu0 %v4936
    %7376 = vmatprep.subr.bf16.mxu0 %v4921
    %7377 = vmatpush2.bf16.msra.mxu0 %v4920
    %7378 = vmatprep.subr.bf16.mxu0 %v4905
    %7379 = vmatpush2.bf16.msra.mxu0 %v4904
    %7380 = vmatprep.subr.bf16.mxu0 %v4889
    %7381 = vmatpush2.bf16.msra.mxu0 %v4888
    %7382 = vmatprep.mubr.bf16.mxu0 %v137
    %7383 = vmatmul.mubr.bf16.gmra.mxu0 %v136
    %v7384 = vpop.f32.mrf.mxu0
    %v7385 = vadd.f32 %v7344, %v7384
    %v7386 = vpop.f32.mrf.mxu0
    %v7387 = vadd.f32 %v7346, %v7386
    %v7388 = vpop.f32.mrf.mxu0
    %v7389 = vpop.f32.mrf.mxu0
    %7390 = vdwg.mxu0
    %7391 = vmatprep.subr.bf16.mxu0 %v5129
    %7392 = vmatpush1.bf16.msra.mxu0 %v5128
    %7393 = vmatprep.subr.bf16.mxu0 %v5113
    %7394 = vmatpush1.bf16.msra.mxu0 %v5112
    %7395 = vmatprep.subr.bf16.mxu0 %v5097
    %7396 = vmatpush1.bf16.msra.mxu0 %v5096
    %7397 = vmatprep.subr.bf16.mxu0 %v5081
    %7398 = vmatpush1.bf16.msra.mxu0 %v5080
    %7399 = vmatprep.subr.bf16.mxu0 %v5065
    %7400 = vmatpush1.bf16.msra.mxu0 %v5064
    %7401 = vmatprep.subr.bf16.mxu0 %v5049
    %7402 = vmatpush1.bf16.msra.mxu0 %v5048
    %7403 = vmatprep.subr.bf16.mxu0 %v5033
    %7404 = vmatpush1.bf16.msra.mxu0 %v5032
    %7405 = vmatprep.subr.bf16.mxu0 %v5017
    %7406 = vmatpush1.bf16.msra.mxu0 %v5016
    %7407 = vmatprep.subr.bf16.mxu0 %v5257
    %7408 = vmatpush2.bf16.msra.mxu0 %v5256
    %7409 = vmatprep.subr.bf16.mxu0 %v5241
    %7410 = vmatpush2.bf16.msra.mxu0 %v5240
    %7411 = vmatprep.subr.bf16.mxu0 %v5225
    %7412 = vmatpush2.bf16.msra.mxu0 %v5224
    %7413 = vmatprep.subr.bf16.mxu0 %v5209
    %7414 = vmatpush2.bf16.msra.mxu0 %v5208
    %7415 = vmatprep.subr.bf16.mxu0 %v5193
    %7416 = vmatpush2.bf16.msra.mxu0 %v5192
    %7417 = vmatprep.subr.bf16.mxu0 %v5177
    %7418 = vmatpush2.bf16.msra.mxu0 %v5176
    %7419 = vmatprep.subr.bf16.mxu0 %v5161
    %7420 = vmatpush2.bf16.msra.mxu0 %v5160
    %7421 = vmatprep.subr.bf16.mxu0 %v5145
    %7422 = vmatpush2.bf16.msra.mxu0 %v5144
    %7423 = vmatprep.mubr.bf16.mxu0 %v139
    %7424 = vmatmul.mubr.bf16.gmra.mxu0 %v138
    %v7425 = vpop.f32.mrf.mxu0
    %v7426 = vadd.f32 %v7385, %v7425
    %v7427 = vpop.f32.mrf.mxu0
    %v7428 = vadd.f32 %v7387, %v7427
    %v7429 = vpop.f32.mrf.mxu0
    %v7430 = vpop.f32.mrf.mxu0
    %7431 = vdwg.mxu0
    %7432 = vmatprep.subr.bf16.mxu0 %v4363
    %7433 = vmatpush1.bf16.msra.mxu0 %v4362
    %7434 = vmatprep.subr.bf16.mxu0 %v4347
    %7435 = vmatpush1.bf16.msra.mxu0 %v4346
    %7436 = vmatprep.subr.bf16.mxu0 %v4331
    %7437 = vmatpush1.bf16.msra.mxu0 %v4330
    %7438 = vmatprep.subr.bf16.mxu0 %v4315
    %7439 = vmatpush1.bf16.msra.mxu0 %v4314
    %7440 = vmatprep.subr.bf16.mxu0 %v4299
    %7441 = vmatpush1.bf16.msra.mxu0 %v4298
    %7442 = vmatprep.subr.bf16.mxu0 %v4283
    %7443 = vmatpush1.bf16.msra.mxu0 %v4282
    %7444 = vmatprep.subr.bf16.mxu0 %v4267
    %7445 = vmatpush1.bf16.msra.mxu0 %v4266
    %7446 = vmatprep.subr.bf16.mxu0 %v4251
    %7447 = vmatpush1.bf16.msra.mxu0 %v4250
    %7448 = vmatprep.subr.bf16.mxu0 %v4491
    %7449 = vmatpush2.bf16.msra.mxu0 %v4490
    %7450 = vmatprep.subr.bf16.mxu0 %v4475
    %7451 = vmatpush2.bf16.msra.mxu0 %v4474
    %7452 = vmatprep.subr.bf16.mxu0 %v4459
    %7453 = vmatpush2.bf16.msra.mxu0 %v4458
    %7454 = vmatprep.subr.bf16.mxu0 %v4443
    %7455 = vmatpush2.bf16.msra.mxu0 %v4442
    %7456 = vmatprep.subr.bf16.mxu0 %v4427
    %7457 = vmatpush2.bf16.msra.mxu0 %v4426
    %7458 = vmatprep.subr.bf16.mxu0 %v4411
    %7459 = vmatpush2.bf16.msra.mxu0 %v4410
    %7460 = vmatprep.subr.bf16.mxu0 %v4395
    %7461 = vmatpush2.bf16.msra.mxu0 %v4394
    %7462 = vmatprep.subr.bf16.mxu0 %v4379
    %7463 = vmatpush2.bf16.msra.mxu0 %v4378
    %7464 = vmatprep.mubr.bf16.mxu0 %v133
    %7465 = vmatmul.mubr.bf16.gmra.mxu0 %v132
    %v7466 = vpop.f32.mrf.mxu0
    %v7467 = vadd.f32 0.0, %v7466
    %v7468 = vpop.f32.mrf.mxu0
    %v7469 = vadd.f32 0.0, %v7468
    %v7470 = vpop.f32.mrf.mxu0
    %v7471 = vpop.f32.mrf.mxu0
    %7472 = vdwg.mxu0
    %7473 = vmatprep.subr.bf16.mxu0 %v4619
    %7474 = vmatpush1.bf16.msra.mxu0 %v4618
    %7475 = vmatprep.subr.bf16.mxu0 %v4603
    %7476 = vmatpush1.bf16.msra.mxu0 %v4602
    %7477 = vmatprep.subr.bf16.mxu0 %v4587
    %7478 = vmatpush1.bf16.msra.mxu0 %v4586
    %7479 = vmatprep.subr.bf16.mxu0 %v4571
    %7480 = vmatpush1.bf16.msra.mxu0 %v4570
    %7481 = vmatprep.subr.bf16.mxu0 %v4555
    %7482 = vmatpush1.bf16.msra.mxu0 %v4554
    %7483 = vmatprep.subr.bf16.mxu0 %v4539
    %7484 = vmatpush1.bf16.msra.mxu0 %v4538
    %7485 = vmatprep.subr.bf16.mxu0 %v4523
    %7486 = vmatpush1.bf16.msra.mxu0 %v4522
    %7487 = vmatprep.subr.bf16.mxu0 %v4507
    %7488 = vmatpush1.bf16.msra.mxu0 %v4506
    %7489 = vmatprep.subr.bf16.mxu0 %v4747
    %7490 = vmatpush2.bf16.msra.mxu0 %v4746
    %7491 = vmatprep.subr.bf16.mxu0 %v4731
    %7492 = vmatpush2.bf16.msra.mxu0 %v4730
    %7493 = vmatprep.subr.bf16.mxu0 %v4715
    %7494 = vmatpush2.bf16.msra.mxu0 %v4714
    %7495 = vmatprep.subr.bf16.mxu0 %v4699
    %7496 = vmatpush2.bf16.msra.mxu0 %v4698
    %7497 = vmatprep.subr.bf16.mxu0 %v4683
    %7498 = vmatpush2.bf16.msra.mxu0 %v4682
    %7499 = vmatprep.subr.bf16.mxu0 %v4667
    %7500 = vmatpush2.bf16.msra.mxu0 %v4666
    %7501 = vmatprep.subr.bf16.mxu0 %v4651
    %7502 = vmatpush2.bf16.msra.mxu0 %v4650
    %7503 = vmatprep.subr.bf16.mxu0 %v4635
    %7504 = vmatpush2.bf16.msra.mxu0 %v4634
    %7505 = vmatprep.mubr.bf16.mxu0 %v135
    %7506 = vmatmul.mubr.bf16.gmra.mxu0 %v134
    %v7507 = vpop.f32.mrf.mxu0
    %v7508 = vadd.f32 %v7467, %v7507
    %v7509 = vpop.f32.mrf.mxu0
    %v7510 = vadd.f32 %v7469, %v7509
    %v7511 = vpop.f32.mrf.mxu0
    %v7512 = vpop.f32.mrf.mxu0
    %7513 = vdwg.mxu0
    %7514 = vmatprep.subr.bf16.mxu0 %v4875
    %7515 = vmatpush1.bf16.msra.mxu0 %v4874
    %7516 = vmatprep.subr.bf16.mxu0 %v4859
    %7517 = vmatpush1.bf16.msra.mxu0 %v4858
    %7518 = vmatprep.subr.bf16.mxu0 %v4843
    %7519 = vmatpush1.bf16.msra.mxu0 %v4842
    %7520 = vmatprep.subr.bf16.mxu0 %v4827
    %7521 = vmatpush1.bf16.msra.mxu0 %v4826
    %7522 = vmatprep.subr.bf16.mxu0 %v4811
    %7523 = vmatpush1.bf16.msra.mxu0 %v4810
    %7524 = vmatprep.subr.bf16.mxu0 %v4795
    %7525 = vmatpush1.bf16.msra.mxu0 %v4794
    %7526 = vmatprep.subr.bf16.mxu0 %v4779
    %7527 = vmatpush1.bf16.msra.mxu0 %v4778
    %7528 = vmatprep.subr.bf16.mxu0 %v4763
    %7529 = vmatpush1.bf16.msra.mxu0 %v4762
    %7530 = vmatprep.subr.bf16.mxu0 %v5003
    %7531 = vmatpush2.bf16.msra.mxu0 %v5002
    %7532 = vmatprep.subr.bf16.mxu0 %v4987
    %7533 = vmatpush2.bf16.msra.mxu0 %v4986
    %7534 = vmatprep.subr.bf16.mxu0 %v4971
    %7535 = vmatpush2.bf16.msra.mxu0 %v4970
    %7536 = vmatprep.subr.bf16.mxu0 %v4955
    %7537 = vmatpush2.bf16.msra.mxu0 %v4954
    %7538 = vmatprep.subr.bf16.mxu0 %v4939
    %7539 = vmatpush2.bf16.msra.mxu0 %v4938
    %7540 = vmatprep.subr.bf16.mxu0 %v4923
    %7541 = vmatpush2.bf16.msra.mxu0 %v4922
    %7542 = vmatprep.subr.bf16.mxu0 %v4907
    %7543 = vmatpush2.bf16.msra.mxu0 %v4906
    %7544 = vmatprep.subr.bf16.mxu0 %v4891
    %7545 = vmatpush2.bf16.msra.mxu0 %v4890
    %7546 = vmatprep.mubr.bf16.mxu0 %v137
    %7547 = vmatmul.mubr.bf16.gmra.mxu0 %v136
    %v7548 = vpop.f32.mrf.mxu0
    %v7549 = vadd.f32 %v7508, %v7548
    %v7550 = vpop.f32.mrf.mxu0
    %v7551 = vadd.f32 %v7510, %v7550
    %v7552 = vpop.f32.mrf.mxu0
    %v7553 = vpop.f32.mrf.mxu0
    %7554 = vdwg.mxu0
    %7555 = vmatprep.subr.bf16.mxu0 %v5131
    %7556 = vmatpush1.bf16.msra.mxu0 %v5130
    %7557 = vmatprep.subr.bf16.mxu0 %v5115
    %7558 = vmatpush1.bf16.msra.mxu0 %v5114
    %7559 = vmatprep.subr.bf16.mxu0 %v5099
    %7560 = vmatpush1.bf16.msra.mxu0 %v5098
    %7561 = vmatprep.subr.bf16.mxu0 %v5083
    %7562 = vmatpush1.bf16.msra.mxu0 %v5082
    %7563 = vmatprep.subr.bf16.mxu0 %v5067
    %7564 = vmatpush1.bf16.msra.mxu0 %v5066
    %7565 = vmatprep.subr.bf16.mxu0 %v5051
    %7566 = vmatpush1.bf16.msra.mxu0 %v5050
    %7567 = vmatprep.subr.bf16.mxu0 %v5035
    %7568 = vmatpush1.bf16.msra.mxu0 %v5034
    %7569 = vmatprep.subr.bf16.mxu0 %v5019
    %7570 = vmatpush1.bf16.msra.mxu0 %v5018
    %7571 = vmatprep.subr.bf16.mxu0 %v5259
    %7572 = vmatpush2.bf16.msra.mxu0 %v5258
    %7573 = vmatprep.subr.bf16.mxu0 %v5243
    %7574 = vmatpush2.bf16.msra.mxu0 %v5242
    %7575 = vmatprep.subr.bf16.mxu0 %v5227
    %7576 = vmatpush2.bf16.msra.mxu0 %v5226
    %7577 = vmatprep.subr.bf16.mxu0 %v5211
    %7578 = vmatpush2.bf16.msra.mxu0 %v5210
    %7579 = vmatprep.subr.bf16.mxu0 %v5195
    %7580 = vmatpush2.bf16.msra.mxu0 %v5194
    %7581 = vmatprep.subr.bf16.mxu0 %v5179
    %7582 = vmatpush2.bf16.msra.mxu0 %v5178
    %7583 = vmatprep.subr.bf16.mxu0 %v5163
    %7584 = vmatpush2.bf16.msra.mxu0 %v5162
    %7585 = vmatprep.subr.bf16.mxu0 %v5147
    %7586 = vmatpush2.bf16.msra.mxu0 %v5146
    %7587 = vmatprep.mubr.bf16.mxu0 %v139
    %7588 = vmatmul.mubr.bf16.gmra.mxu0 %v138
    %v7589 = vpop.f32.mrf.mxu0
    %v7590 = vadd.f32 %v7549, %v7589
    %v7591 = vpop.f32.mrf.mxu0
    %v7592 = vadd.f32 %v7551, %v7591
    %v7593 = vpop.f32.mrf.mxu0
    %v7594 = vpop.f32.mrf.mxu0
    %7595 = vdwg.mxu0
    %v7612 = vcombine.low %v6442, %v6444
    %v7613 = vcombine.low %v6606, %v6608
    %v7615 = vunpack.c.l.s4 1983009808
    %v7616 = vunpack.c.0.s8 %v7615
    %v7617 = vlaneseq
    %v7618 = vshrl.u32 %v7617, 7
    %v7619 = vsub.s32 %v7616, %v7618
    %v7620 = vrot.slane %v7612, %v7619
    %v7622 = vunpack.c.l.s4 1983009808
    %v7623 = vunpack.c.0.s8 %v7622
    %v7624 = vlaneseq
    %v7625 = vshrl.u32 %v7624, 7
    %v7626 = vsub.s32 %v7623, %v7625
    %v7627 = vrot.slane %v7613, %v7626
    %v7628 = vcombine.low %v7620, %v7627
    %v7629 = vcombine.low %v6770, %v6772
    %v7630 = vcombine.low %v6934, %v6936
    %v7632 = vunpack.c.l.s4 1983009808
    %v7633 = vunpack.c.0.s8 %v7632
    %v7634 = vlaneseq
    %v7635 = vshrl.u32 %v7634, 7
    %v7636 = vsub.s32 %v7633, %v7635
    %v7637 = vrot.slane %v7629, %v7636
    %v7639 = vunpack.c.l.s4 1983009808
    %v7640 = vunpack.c.0.s8 %v7639
    %v7641 = vlaneseq
    %v7642 = vshrl.u32 %v7641, 7
    %v7643 = vsub.s32 %v7640, %v7642
    %v7644 = vrot.slane %v7630, %v7643
    %v7645 = vcombine.low %v7637, %v7644
    %v7646 = vcombine.low %v7098, %v7100
    %v7647 = vcombine.low %v7262, %v7264
    %v7649 = vunpack.c.l.s4 1983009808
    %v7650 = vunpack.c.0.s8 %v7649
    %v7651 = vlaneseq
    %v7652 = vshrl.u32 %v7651, 7
    %v7653 = vsub.s32 %v7650, %v7652
    %v7654 = vrot.slane %v7646, %v7653
    %v7656 = vunpack.c.l.s4 1983009808
    %v7657 = vunpack.c.0.s8 %v7656
    %v7658 = vlaneseq
    %v7659 = vshrl.u32 %v7658, 7
    %v7660 = vsub.s32 %v7657, %v7659
    %v7661 = vrot.slane %v7647, %v7660
    %v7662 = vcombine.low %v7654, %v7661
    %v7663 = vcombine.low %v7426, %v7428
    %v7664 = vcombine.low %v7590, %v7592
    %v7666 = vunpack.c.l.s4 1983009808
    %v7667 = vunpack.c.0.s8 %v7666
    %v7668 = vlaneseq
    %v7669 = vshrl.u32 %v7668, 7
    %v7670 = vsub.s32 %v7667, %v7669
    %v7671 = vrot.slane %v7663, %v7670
    %v7673 = vunpack.c.l.s4 1983009808
    %v7674 = vunpack.c.0.s8 %v7673
    %v7675 = vlaneseq
    %v7676 = vshrl.u32 %v7675, 7
    %v7677 = vsub.s32 %v7674, %v7676
    %v7678 = vrot.slane %v7664, %v7677
    %v7679 = vcombine.low %v7671, %v7678
    %v7684 = vadd.f32 %v82, %v7628
    %v7685 = vadd.f32 %v83, %v7645
    %v7686 = vadd.f32 %v84, %v7662
    %v7687 = vadd.f32 %v85, %v7679
    %7688 = vst [vmem:[#allocation2] sm:$0xff] %v7684
    %7689 = vst [vmem:[#allocation2 + $0x8] sm:$0xff] %v7685
    %7690 = vst [vmem:[#allocation2 + $0x10] sm:$0xff] %v7686
    %7691 = vst [vmem:[#allocation2 + $0x18] sm:$0xff] %v7687
    // Predicated region
    $region42: #{pu_iic_net_forward.1} parent=1 // pred_check
      %p7692 = pneg %p74
    $region43: #{pu_iic_net_forward.1} parent=1 // pred_check_branch
      %7694 = sbr.rel (%p7692) target = $region45
    $region44: #{pu_iic_net_forward.1} parent=1 // pred_region
      %v7695 = vld [vmem:[#allocation2] sm:$0xff]
      %v7696 = vld [vmem:[#allocation2 + $0x8] sm:$0xff]
      %v7697 = vld [vmem:[#allocation2 + $0x10] sm:$0xff]
      %v7698 = vld [vmem:[#allocation2 + $0x18] sm:$0xff]
      %v7699 = vld [vmem:[#allocation6] sm:$0xff]
      %v7700 = vld [vmem:[#allocation6 + $0x8] sm:$0xff]
      %v7703 = vlaneseq
      %v7704 = vshrl.u32 %v7703, 7
      %v7705 = vsub.s32 0, %v7704
      %v7706 = vrot.slane %v7699, %v7705
      %v7707 = vlaneseq
      %v7708 = vshrl.u32 %v7707, 7
      %v7709 = vsub.s32 1, %v7708
      %v7710 = vrot.slane %v7699, %v7709
      %v7711 = vlaneseq
      %v7712 = vshrl.u32 %v7711, 7
      %v7713 = vsub.s32 2, %v7712
      %v7714 = vrot.slane %v7699, %v7713
      %v7715 = vlaneseq
      %v7716 = vshrl.u32 %v7715, 7
      %v7717 = vsub.s32 3, %v7716
      %v7718 = vrot.slane %v7699, %v7717
      %v7719 = vlaneseq
      %v7720 = vshrl.u32 %v7719, 7
      %v7721 = vsub.s32 4, %v7720
      %v7722 = vrot.slane %v7699, %v7721
      %v7723 = vlaneseq
      %v7724 = vshrl.u32 %v7723, 7
      %v7725 = vsub.s32 5, %v7724
      %v7726 = vrot.slane %v7699, %v7725
      %v7727 = vlaneseq
      %v7728 = vshrl.u32 %v7727, 7
      %v7729 = vsub.s32 6, %v7728
      %v7730 = vrot.slane %v7699, %v7729
      %v7731 = vlaneseq
      %v7732 = vshrl.u32 %v7731, 7
      %v7733 = vsub.s32 7, %v7732
      %v7734 = vrot.slane %v7699, %v7733
      %v7735 = vlaneseq
      %v7736 = vshrl.u32 %v7735, 7
      %v7737 = vsub.s32 0, %v7736
      %v7738 = vrot.slane %v7700, %v7737
      %v7739 = vlaneseq
      %v7740 = vshrl.u32 %v7739, 7
      %v7741 = vsub.s32 1, %v7740
      %v7742 = vrot.slane %v7700, %v7741
      %v7743 = vlaneseq
      %v7744 = vshrl.u32 %v7743, 7
      %v7745 = vsub.s32 2, %v7744
      %v7746 = vrot.slane %v7700, %v7745
      %v7747 = vlaneseq
      %v7748 = vshrl.u32 %v7747, 7
      %v7749 = vsub.s32 3, %v7748
      %v7750 = vrot.slane %v7700, %v7749
      %v7751 = vlaneseq
      %v7752 = vshrl.u32 %v7751, 7
      %v7753 = vsub.s32 4, %v7752
      %v7754 = vrot.slane %v7700, %v7753
      %v7755 = vlaneseq
      %v7756 = vshrl.u32 %v7755, 7
      %v7757 = vsub.s32 5, %v7756
      %v7758 = vrot.slane %v7700, %v7757
      %v7759 = vlaneseq
      %v7760 = vshrl.u32 %v7759, 7
      %v7761 = vsub.s32 6, %v7760
      %v7762 = vrot.slane %v7700, %v7761
      %v7763 = vlaneseq
      %v7764 = vshrl.u32 %v7763, 7
      %v7765 = vsub.s32 7, %v7764
      %v7766 = vrot.slane %v7700, %v7765
      %v7767 = vcombine.low %v7706, %v7710
      %v7768 = vcombine.low %v7714, %v7718
      %v7770 = vunpack.c.l.s4 1983009808
      %v7771 = vunpack.c.0.s8 %v7770
      %v7772 = vlaneseq
      %v7773 = vshrl.u32 %v7772, 7
      %v7774 = vsub.s32 %v7771, %v7773
      %v7775 = vrot.slane %v7767, %v7774
      %v7777 = vunpack.c.l.s4 1983009808
      %v7778 = vunpack.c.0.s8 %v7777
      %v7779 = vlaneseq
      %v7780 = vshrl.u32 %v7779, 7
      %v7781 = vsub.s32 %v7778, %v7780
      %v7782 = vrot.slane %v7768, %v7781
      %v7783 = vcombine.low %v7775, %v7782
      %v7784 = vcombine.low %v7722, %v7726
      %v7785 = vcombine.low %v7730, %v7734
      %v7787 = vunpack.c.l.s4 1983009808
      %v7788 = vunpack.c.0.s8 %v7787
      %v7789 = vlaneseq
      %v7790 = vshrl.u32 %v7789, 7
      %v7791 = vsub.s32 %v7788, %v7790
      %v7792 = vrot.slane %v7784, %v7791
      %v7794 = vunpack.c.l.s4 1983009808
      %v7795 = vunpack.c.0.s8 %v7794
      %v7796 = vlaneseq
      %v7797 = vshrl.u32 %v7796, 7
      %v7798 = vsub.s32 %v7795, %v7797
      %v7799 = vrot.slane %v7785, %v7798
      %v7800 = vcombine.low %v7792, %v7799
      %v7801 = vcombine.low %v7738, %v7742
      %v7802 = vcombine.low %v7746, %v7750
      %v7804 = vunpack.c.l.s4 1983009808
      %v7805 = vunpack.c.0.s8 %v7804
      %v7806 = vlaneseq
      %v7807 = vshrl.u32 %v7806, 7
      %v7808 = vsub.s32 %v7805, %v7807
      %v7809 = vrot.slane %v7801, %v7808
      %v7811 = vunpack.c.l.s4 1983009808
      %v7812 = vunpack.c.0.s8 %v7811
      %v7813 = vlaneseq
      %v7814 = vshrl.u32 %v7813, 7
      %v7815 = vsub.s32 %v7812, %v7814
      %v7816 = vrot.slane %v7802, %v7815
      %v7817 = vcombine.low %v7809, %v7816
      %v7818 = vcombine.low %v7754, %v7758
      %v7819 = vcombine.low %v7762, %v7766
      %v7821 = vunpack.c.l.s4 1983009808
      %v7822 = vunpack.c.0.s8 %v7821
      %v7823 = vlaneseq
      %v7824 = vshrl.u32 %v7823, 7
      %v7825 = vsub.s32 %v7822, %v7824
      %v7826 = vrot.slane %v7818, %v7825
      %v7828 = vunpack.c.l.s4 1983009808
      %v7829 = vunpack.c.0.s8 %v7828
      %v7830 = vlaneseq
      %v7831 = vshrl.u32 %v7830, 7
      %v7832 = vsub.s32 %v7829, %v7831
      %v7833 = vrot.slane %v7819, %v7832
      %v7834 = vcombine.low %v7826, %v7833
      %v7839 = vadd.f32 %v7695, %v7783
      %v7840 = vadd.f32 %v7696, %v7800
      %v7841 = vadd.f32 %v7697, %v7817
      %v7842 = vadd.f32 %v7698, %v7834
      %v7843 = vmax.f32 %v7839, 0.0
      %v7844 = vmax.f32 %v7840, 0.0
      %v7845 = vmax.f32 %v7841, 0.0
      %v7846 = vmax.f32 %v7842, 0.0
      %v7851 = vcombine.high %v7843, %v7843
      %v7853 = vunpack.c.l.s4 1983009808
      %v7854 = vunpack.c.0.s8 %v7853
      %v7855 = vlaneseq
      %v7856 = vshrl.u32 %v7855, 7
      %v7857 = vsub.s32 %v7854, %v7856
      %v7858 = vrot.slane %v7843, %v7857
      %v7860 = vunpack.c.l.s4 1983009808
      %v7861 = vunpack.c.0.s8 %v7860
      %v7862 = vlaneseq
      %v7863 = vshrl.u32 %v7862, 7
      %v7864 = vsub.s32 %v7861, %v7863
      %v7865 = vrot.slane %v7851, %v7864
      %v7866 = vcombine.high %v7858, %v7858
      %v7867 = vcombine.high %v7865, %v7865
      %v7868 = vcombine.high %v7844, %v7844
      %v7870 = vunpack.c.l.s4 1983009808
      %v7871 = vunpack.c.0.s8 %v7870
      %v7872 = vlaneseq
      %v7873 = vshrl.u32 %v7872, 7
      %v7874 = vsub.s32 %v7871, %v7873
      %v7875 = vrot.slane %v7844, %v7874
      %v7877 = vunpack.c.l.s4 1983009808
      %v7878 = vunpack.c.0.s8 %v7877
      %v7879 = vlaneseq
      %v7880 = vshrl.u32 %v7879, 7
      %v7881 = vsub.s32 %v7878, %v7880
      %v7882 = vrot.slane %v7868, %v7881
      %v7883 = vcombine.high %v7875, %v7875
      %v7884 = vcombine.high %v7882, %v7882
      %v7885 = vcombine.high %v7845, %v7845
      %v7887 = vunpack.c.l.s4 1983009808
      %v7888 = vunpack.c.0.s8 %v7887
      %v7889 = vlaneseq
      %v7890 = vshrl.u32 %v7889, 7
      %v7891 = vsub.s32 %v7888, %v7890
      %v7892 = vrot.slane %v7845, %v7891
      %v7894 = vunpack.c.l.s4 1983009808
      %v7895 = vunpack.c.0.s8 %v7894
      %v7896 = vlaneseq
      %v7897 = vshrl.u32 %v7896, 7
      %v7898 = vsub.s32 %v7895, %v7897
      %v7899 = vrot.slane %v7885, %v7898
      %v7900 = vcombine.high %v7892, %v7892
      %v7901 = vcombine.high %v7899, %v7899
      %v7902 = vcombine.high %v7846, %v7846
      %v7904 = vunpack.c.l.s4 1983009808
      %v7905 = vunpack.c.0.s8 %v7904
      %v7906 = vlaneseq
      %v7907 = vshrl.u32 %v7906, 7
      %v7908 = vsub.s32 %v7905, %v7907
      %v7909 = vrot.slane %v7846, %v7908
      %v7911 = vunpack.c.l.s4 1983009808
      %v7912 = vunpack.c.0.s8 %v7911
      %v7913 = vlaneseq
      %v7914 = vshrl.u32 %v7913, 7
      %v7915 = vsub.s32 %v7912, %v7914
      %v7916 = vrot.slane %v7902, %v7915
      %v7917 = vcombine.high %v7909, %v7909
      %v7918 = vcombine.high %v7916, %v7916
      %v7935 = vpack.c.bf16 %v7858, %v7858
      %v7936 = vpack.c.bf16 %v7866, %v7866
      %v7937 = vpack.c.bf16 %v7865, %v7865
      %v7938 = vpack.c.bf16 %v7867, %v7867
      %v7939 = vpack.c.bf16 %v7875, %v7875
      %v7940 = vpack.c.bf16 %v7883, %v7883
      %v7941 = vpack.c.bf16 %v7882, %v7882
      %v7942 = vpack.c.bf16 %v7884, %v7884
      %v7943 = vpack.c.bf16 %v7892, %v7892
      %v7944 = vpack.c.bf16 %v7900, %v7900
      %v7945 = vpack.c.bf16 %v7899, %v7899
      %v7946 = vpack.c.bf16 %v7901, %v7901
      %v7947 = vpack.c.bf16 %v7909, %v7909
      %v7948 = vpack.c.bf16 %v7917, %v7917
      %v7949 = vpack.c.bf16 %v7916, %v7916
      %v7950 = vpack.c.bf16 %v7918, %v7918
      %v7951 = vld [vmem:[#allocation8] sm:$0xff]
      %v7952 = vld [vmem:[#allocation8 + $0x8] sm:$0xff]
      %v7953 = vld [vmem:[#allocation8 + $0x10] sm:$0xff]
      %v7954 = vld [vmem:[#allocation8 + $0x18] sm:$0xff]
      %v7955 = vld [vmem:[#allocation8 + $0x20] sm:$0xff]
      %v7956 = vld [vmem:[#allocation8 + $0x28] sm:$0xff]
      %v7957 = vld [vmem:[#allocation8 + $0x30] sm:$0xff]
      %v7958 = vld [vmem:[#allocation8 + $0x38] sm:$0xff]
      %v7959 = vld [vmem:[#allocation8 + $0x40] sm:$0xff]
      %v7960 = vld [vmem:[#allocation8 + $0x48] sm:$0xff]
      %v7961 = vld [vmem:[#allocation8 + $0x50] sm:$0xff]
      %v7962 = vld [vmem:[#allocation8 + $0x58] sm:$0xff]
      %v7963 = vld [vmem:[#allocation8 + $0x60] sm:$0xff]
      %v7964 = vld [vmem:[#allocation8 + $0x68] sm:$0xff]
      %v7965 = vld [vmem:[#allocation8 + $0x70] sm:$0xff]
      %v7966 = vld [vmem:[#allocation8 + $0x78] sm:$0xff]
      %v7967 = vld [vmem:[#allocation8 + $0x80] sm:$0xff]
      %v7968 = vld [vmem:[#allocation8 + $0x88] sm:$0xff]
      %v7969 = vld [vmem:[#allocation8 + $0x90] sm:$0xff]
      %v7970 = vld [vmem:[#allocation8 + $0x98] sm:$0xff]
      %v7971 = vld [vmem:[#allocation8 + $0xa0] sm:$0xff]
      %v7972 = vld [vmem:[#allocation8 + $0xa8] sm:$0xff]
      %v7973 = vld [vmem:[#allocation8 + $0xb0] sm:$0xff]
      %v7974 = vld [vmem:[#allocation8 + $0xb8] sm:$0xff]
      %v7975 = vld [vmem:[#allocation8 + $0xc0] sm:$0xff]
      %v7976 = vld [vmem:[#allocation8 + $0xc8] sm:$0xff]
      %v7977 = vld [vmem:[#allocation8 + $0xd0] sm:$0xff]
      %v7978 = vld [vmem:[#allocation8 + $0xd8] sm:$0xff]
      %v7979 = vld [vmem:[#allocation8 + $0xe0] sm:$0xff]
      %v7980 = vld [vmem:[#allocation8 + $0xe8] sm:$0xff]
      %v7981 = vld [vmem:[#allocation8 + $0xf0] sm:$0xff]
      %v7982 = vld [vmem:[#allocation8 + $0xf8] sm:$0xff]
      %v7983 = vld [vmem:[#allocation8 + $0x100] sm:$0xff]
      %v7984 = vld [vmem:[#allocation8 + $0x108] sm:$0xff]
      %v7985 = vld [vmem:[#allocation8 + $0x110] sm:$0xff]
      %v7986 = vld [vmem:[#allocation8 + $0x118] sm:$0xff]
      %v7987 = vld [vmem:[#allocation8 + $0x120] sm:$0xff]
      %v7988 = vld [vmem:[#allocation8 + $0x128] sm:$0xff]
      %v7989 = vld [vmem:[#allocation8 + $0x130] sm:$0xff]
      %v7990 = vld [vmem:[#allocation8 + $0x138] sm:$0xff]
      %v7991 = vld [vmem:[#allocation8 + $0x140] sm:$0xff]
      %v7992 = vld [vmem:[#allocation8 + $0x148] sm:$0xff]
      %v7993 = vld [vmem:[#allocation8 + $0x150] sm:$0xff]
      %v7994 = vld [vmem:[#allocation8 + $0x158] sm:$0xff]
      %v7995 = vld [vmem:[#allocation8 + $0x160] sm:$0xff]
      %v7996 = vld [vmem:[#allocation8 + $0x168] sm:$0xff]
      %v7997 = vld [vmem:[#allocation8 + $0x170] sm:$0xff]
      %v7998 = vld [vmem:[#allocation8 + $0x178] sm:$0xff]
      %v7999 = vld [vmem:[#allocation8 + $0x180] sm:$0xff]
      %v8000 = vld [vmem:[#allocation8 + $0x188] sm:$0xff]
      %v8001 = vld [vmem:[#allocation8 + $0x190] sm:$0xff]
      %v8002 = vld [vmem:[#allocation8 + $0x198] sm:$0xff]
      %v8003 = vld [vmem:[#allocation8 + $0x1a0] sm:$0xff]
      %v8004 = vld [vmem:[#allocation8 + $0x1a8] sm:$0xff]
      %v8005 = vld [vmem:[#allocation8 + $0x1b0] sm:$0xff]
      %v8006 = vld [vmem:[#allocation8 + $0x1b8] sm:$0xff]
      %v8007 = vld [vmem:[#allocation8 + $0x1c0] sm:$0xff]
      %v8008 = vld [vmem:[#allocation8 + $0x1c8] sm:$0xff]
      %v8009 = vld [vmem:[#allocation8 + $0x1d0] sm:$0xff]
      %v8010 = vld [vmem:[#allocation8 + $0x1d8] sm:$0xff]
      %v8011 = vld [vmem:[#allocation8 + $0x1e0] sm:$0xff]
      %v8012 = vld [vmem:[#allocation8 + $0x1e8] sm:$0xff]
      %v8013 = vld [vmem:[#allocation8 + $0x1f0] sm:$0xff]
      %v8014 = vld [vmem:[#allocation8 + $0x1f8] sm:$0xff]
      %v8015 = vld [vmem:[#allocation8 + $0x200] sm:$0xff]
      %v8016 = vld [vmem:[#allocation8 + $0x208] sm:$0xff]
      %v8017 = vld [vmem:[#allocation8 + $0x210] sm:$0xff]
      %v8018 = vld [vmem:[#allocation8 + $0x218] sm:$0xff]
      %v8019 = vld [vmem:[#allocation8 + $0x220] sm:$0xff]
      %v8020 = vld [vmem:[#allocation8 + $0x228] sm:$0xff]
      %v8021 = vld [vmem:[#allocation8 + $0x230] sm:$0xff]
      %v8022 = vld [vmem:[#allocation8 + $0x238] sm:$0xff]
      %v8023 = vld [vmem:[#allocation8 + $0x240] sm:$0xff]
      %v8024 = vld [vmem:[#allocation8 + $0x248] sm:$0xff]
      %v8025 = vld [vmem:[#allocation8 + $0x250] sm:$0xff]
      %v8026 = vld [vmem:[#allocation8 + $0x258] sm:$0xff]
      %v8027 = vld [vmem:[#allocation8 + $0x260] sm:$0xff]
      %v8028 = vld [vmem:[#allocation8 + $0x268] sm:$0xff]
      %v8029 = vld [vmem:[#allocation8 + $0x270] sm:$0xff]
      %v8030 = vld [vmem:[#allocation8 + $0x278] sm:$0xff]
      %v8031 = vld [vmem:[#allocation8 + $0x280] sm:$0xff]
      %v8032 = vld [vmem:[#allocation8 + $0x288] sm:$0xff]
      %v8033 = vld [vmem:[#allocation8 + $0x290] sm:$0xff]
      %v8034 = vld [vmem:[#allocation8 + $0x298] sm:$0xff]
      %v8035 = vld [vmem:[#allocation8 + $0x2a0] sm:$0xff]
      %v8036 = vld [vmem:[#allocation8 + $0x2a8] sm:$0xff]
      %v8037 = vld [vmem:[#allocation8 + $0x2b0] sm:$0xff]
      %v8038 = vld [vmem:[#allocation8 + $0x2b8] sm:$0xff]
      %v8039 = vld [vmem:[#allocation8 + $0x2c0] sm:$0xff]
      %v8040 = vld [vmem:[#allocation8 + $0x2c8] sm:$0xff]
      %v8041 = vld [vmem:[#allocation8 + $0x2d0] sm:$0xff]
      %v8042 = vld [vmem:[#allocation8 + $0x2d8] sm:$0xff]
      %v8043 = vld [vmem:[#allocation8 + $0x2e0] sm:$0xff]
      %v8044 = vld [vmem:[#allocation8 + $0x2e8] sm:$0xff]
      %v8045 = vld [vmem:[#allocation8 + $0x2f0] sm:$0xff]
      %v8046 = vld [vmem:[#allocation8 + $0x2f8] sm:$0xff]
      %v8047 = vld [vmem:[#allocation8 + $0x300] sm:$0xff]
      %v8048 = vld [vmem:[#allocation8 + $0x308] sm:$0xff]
      %v8049 = vld [vmem:[#allocation8 + $0x310] sm:$0xff]
      %v8050 = vld [vmem:[#allocation8 + $0x318] sm:$0xff]
      %v8051 = vld [vmem:[#allocation8 + $0x320] sm:$0xff]
      %v8052 = vld [vmem:[#allocation8 + $0x328] sm:$0xff]
      %v8053 = vld [vmem:[#allocation8 + $0x330] sm:$0xff]
      %v8054 = vld [vmem:[#allocation8 + $0x338] sm:$0xff]
      %v8055 = vld [vmem:[#allocation8 + $0x340] sm:$0xff]
      %v8056 = vld [vmem:[#allocation8 + $0x348] sm:$0xff]
      %v8057 = vld [vmem:[#allocation8 + $0x350] sm:$0xff]
      %v8058 = vld [vmem:[#allocation8 + $0x358] sm:$0xff]
      %v8059 = vld [vmem:[#allocation8 + $0x360] sm:$0xff]
      %v8060 = vld [vmem:[#allocation8 + $0x368] sm:$0xff]
      %v8061 = vld [vmem:[#allocation8 + $0x370] sm:$0xff]
      %v8062 = vld [vmem:[#allocation8 + $0x378] sm:$0xff]
      %v8063 = vld [vmem:[#allocation8 + $0x380] sm:$0xff]
      %v8064 = vld [vmem:[#allocation8 + $0x388] sm:$0xff]
      %v8065 = vld [vmem:[#allocation8 + $0x390] sm:$0xff]
      %v8066 = vld [vmem:[#allocation8 + $0x398] sm:$0xff]
      %v8067 = vld [vmem:[#allocation8 + $0x3a0] sm:$0xff]
      %v8068 = vld [vmem:[#allocation8 + $0x3a8] sm:$0xff]
      %v8069 = vld [vmem:[#allocation8 + $0x3b0] sm:$0xff]
      %v8070 = vld [vmem:[#allocation8 + $0x3b8] sm:$0xff]
      %v8071 = vld [vmem:[#allocation8 + $0x3c0] sm:$0xff]
      %v8072 = vld [vmem:[#allocation8 + $0x3c8] sm:$0xff]
      %v8073 = vld [vmem:[#allocation8 + $0x3d0] sm:$0xff]
      %v8074 = vld [vmem:[#allocation8 + $0x3d8] sm:$0xff]
      %v8075 = vld [vmem:[#allocation8 + $0x3e0] sm:$0xff]
      %v8076 = vld [vmem:[#allocation8 + $0x3e8] sm:$0xff]
      %v8077 = vld [vmem:[#allocation8 + $0x3f0] sm:$0xff]
      %v8078 = vld [vmem:[#allocation8 + $0x3f8] sm:$0xff]
      %v8079 = vld [vmem:[#allocation8 + $0x400] sm:$0xff]
      %v8080 = vld [vmem:[#allocation8 + $0x408] sm:$0xff]
      %v8081 = vld [vmem:[#allocation8 + $0x410] sm:$0xff]
      %v8082 = vld [vmem:[#allocation8 + $0x418] sm:$0xff]
      %v8083 = vld [vmem:[#allocation8 + $0x420] sm:$0xff]
      %v8084 = vld [vmem:[#allocation8 + $0x428] sm:$0xff]
      %v8085 = vld [vmem:[#allocation8 + $0x430] sm:$0xff]
      %v8086 = vld [vmem:[#allocation8 + $0x438] sm:$0xff]
      %v8087 = vld [vmem:[#allocation8 + $0x440] sm:$0xff]
      %v8088 = vld [vmem:[#allocation8 + $0x448] sm:$0xff]
      %v8089 = vld [vmem:[#allocation8 + $0x450] sm:$0xff]
      %v8090 = vld [vmem:[#allocation8 + $0x458] sm:$0xff]
      %v8091 = vld [vmem:[#allocation8 + $0x460] sm:$0xff]
      %v8092 = vld [vmem:[#allocation8 + $0x468] sm:$0xff]
      %v8093 = vld [vmem:[#allocation8 + $0x470] sm:$0xff]
      %v8094 = vld [vmem:[#allocation8 + $0x478] sm:$0xff]
      %v8095 = vld [vmem:[#allocation8 + $0x480] sm:$0xff]
      %v8096 = vld [vmem:[#allocation8 + $0x488] sm:$0xff]
      %v8097 = vld [vmem:[#allocation8 + $0x490] sm:$0xff]
      %v8098 = vld [vmem:[#allocation8 + $0x498] sm:$0xff]
      %v8099 = vld [vmem:[#allocation8 + $0x4a0] sm:$0xff]
      %v8100 = vld [vmem:[#allocation8 + $0x4a8] sm:$0xff]
      %v8101 = vld [vmem:[#allocation8 + $0x4b0] sm:$0xff]
      %v8102 = vld [vmem:[#allocation8 + $0x4b8] sm:$0xff]
      %v8103 = vld [vmem:[#allocation8 + $0x4c0] sm:$0xff]
      %v8104 = vld [vmem:[#allocation8 + $0x4c8] sm:$0xff]
      %v8105 = vld [vmem:[#allocation8 + $0x4d0] sm:$0xff]
      %v8106 = vld [vmem:[#allocation8 + $0x4d8] sm:$0xff]
      %v8107 = vld [vmem:[#allocation8 + $0x4e0] sm:$0xff]
      %v8108 = vld [vmem:[#allocation8 + $0x4e8] sm:$0xff]
      %v8109 = vld [vmem:[#allocation8 + $0x4f0] sm:$0xff]
      %v8110 = vld [vmem:[#allocation8 + $0x4f8] sm:$0xff]
      %v8111 = vld [vmem:[#allocation8 + $0x500] sm:$0xff]
      %v8112 = vld [vmem:[#allocation8 + $0x508] sm:$0xff]
      %v8113 = vld [vmem:[#allocation8 + $0x510] sm:$0xff]
      %v8114 = vld [vmem:[#allocation8 + $0x518] sm:$0xff]
      %v8115 = vld [vmem:[#allocation8 + $0x520] sm:$0xff]
      %v8116 = vld [vmem:[#allocation8 + $0x528] sm:$0xff]
      %v8117 = vld [vmem:[#allocation8 + $0x530] sm:$0xff]
      %v8118 = vld [vmem:[#allocation8 + $0x538] sm:$0xff]
      %v8119 = vld [vmem:[#allocation8 + $0x540] sm:$0xff]
      %v8120 = vld [vmem:[#allocation8 + $0x548] sm:$0xff]
      %v8121 = vld [vmem:[#allocation8 + $0x550] sm:$0xff]
      %v8122 = vld [vmem:[#allocation8 + $0x558] sm:$0xff]
      %v8123 = vld [vmem:[#allocation8 + $0x560] sm:$0xff]
      %v8124 = vld [vmem:[#allocation8 + $0x568] sm:$0xff]
      %v8125 = vld [vmem:[#allocation8 + $0x570] sm:$0xff]
      %v8126 = vld [vmem:[#allocation8 + $0x578] sm:$0xff]
      %v8127 = vld [vmem:[#allocation8 + $0x580] sm:$0xff]
      %v8128 = vld [vmem:[#allocation8 + $0x588] sm:$0xff]
      %v8129 = vld [vmem:[#allocation8 + $0x590] sm:$0xff]
      %v8130 = vld [vmem:[#allocation8 + $0x598] sm:$0xff]
      %v8131 = vld [vmem:[#allocation8 + $0x5a0] sm:$0xff]
      %v8132 = vld [vmem:[#allocation8 + $0x5a8] sm:$0xff]
      %v8133 = vld [vmem:[#allocation8 + $0x5b0] sm:$0xff]
      %v8134 = vld [vmem:[#allocation8 + $0x5b8] sm:$0xff]
      %v8135 = vld [vmem:[#allocation8 + $0x5c0] sm:$0xff]
      %v8136 = vld [vmem:[#allocation8 + $0x5c8] sm:$0xff]
      %v8137 = vld [vmem:[#allocation8 + $0x5d0] sm:$0xff]
      %v8138 = vld [vmem:[#allocation8 + $0x5d8] sm:$0xff]
      %v8139 = vld [vmem:[#allocation8 + $0x5e0] sm:$0xff]
      %v8140 = vld [vmem:[#allocation8 + $0x5e8] sm:$0xff]
      %v8141 = vld [vmem:[#allocation8 + $0x5f0] sm:$0xff]
      %v8142 = vld [vmem:[#allocation8 + $0x5f8] sm:$0xff]
      %v8143 = vld [vmem:[#allocation8 + $0x600] sm:$0xff]
      %v8144 = vld [vmem:[#allocation8 + $0x608] sm:$0xff]
      %v8145 = vld [vmem:[#allocation8 + $0x610] sm:$0xff]
      %v8146 = vld [vmem:[#allocation8 + $0x618] sm:$0xff]
      %v8147 = vld [vmem:[#allocation8 + $0x620] sm:$0xff]
      %v8148 = vld [vmem:[#allocation8 + $0x628] sm:$0xff]
      %v8149 = vld [vmem:[#allocation8 + $0x630] sm:$0xff]
      %v8150 = vld [vmem:[#allocation8 + $0x638] sm:$0xff]
      %v8151 = vld [vmem:[#allocation8 + $0x640] sm:$0xff]
      %v8152 = vld [vmem:[#allocation8 + $0x648] sm:$0xff]
      %v8153 = vld [vmem:[#allocation8 + $0x650] sm:$0xff]
      %v8154 = vld [vmem:[#allocation8 + $0x658] sm:$0xff]
      %v8155 = vld [vmem:[#allocation8 + $0x660] sm:$0xff]
      %v8156 = vld [vmem:[#allocation8 + $0x668] sm:$0xff]
      %v8157 = vld [vmem:[#allocation8 + $0x670] sm:$0xff]
      %v8158 = vld [vmem:[#allocation8 + $0x678] sm:$0xff]
      %v8159 = vld [vmem:[#allocation8 + $0x680] sm:$0xff]
      %v8160 = vld [vmem:[#allocation8 + $0x688] sm:$0xff]
      %v8161 = vld [vmem:[#allocation8 + $0x690] sm:$0xff]
      %v8162 = vld [vmem:[#allocation8 + $0x698] sm:$0xff]
      %v8163 = vld [vmem:[#allocation8 + $0x6a0] sm:$0xff]
      %v8164 = vld [vmem:[#allocation8 + $0x6a8] sm:$0xff]
      %v8165 = vld [vmem:[#allocation8 + $0x6b0] sm:$0xff]
      %v8166 = vld [vmem:[#allocation8 + $0x6b8] sm:$0xff]
      %v8167 = vld [vmem:[#allocation8 + $0x6c0] sm:$0xff]
      %v8168 = vld [vmem:[#allocation8 + $0x6c8] sm:$0xff]
      %v8169 = vld [vmem:[#allocation8 + $0x6d0] sm:$0xff]
      %v8170 = vld [vmem:[#allocation8 + $0x6d8] sm:$0xff]
      %v8171 = vld [vmem:[#allocation8 + $0x6e0] sm:$0xff]
      %v8172 = vld [vmem:[#allocation8 + $0x6e8] sm:$0xff]
      %v8173 = vld [vmem:[#allocation8 + $0x6f0] sm:$0xff]
      %v8174 = vld [vmem:[#allocation8 + $0x6f8] sm:$0xff]
      %v8175 = vld [vmem:[#allocation8 + $0x700] sm:$0xff]
      %v8176 = vld [vmem:[#allocation8 + $0x708] sm:$0xff]
      %v8177 = vld [vmem:[#allocation8 + $0x710] sm:$0xff]
      %v8178 = vld [vmem:[#allocation8 + $0x718] sm:$0xff]
      %v8179 = vld [vmem:[#allocation8 + $0x720] sm:$0xff]
      %v8180 = vld [vmem:[#allocation8 + $0x728] sm:$0xff]
      %v8181 = vld [vmem:[#allocation8 + $0x730] sm:$0xff]
      %v8182 = vld [vmem:[#allocation8 + $0x738] sm:$0xff]
      %v8183 = vld [vmem:[#allocation8 + $0x740] sm:$0xff]
      %v8184 = vld [vmem:[#allocation8 + $0x748] sm:$0xff]
      %v8185 = vld [vmem:[#allocation8 + $0x750] sm:$0xff]
      %v8186 = vld [vmem:[#allocation8 + $0x758] sm:$0xff]
      %v8187 = vld [vmem:[#allocation8 + $0x760] sm:$0xff]
      %v8188 = vld [vmem:[#allocation8 + $0x768] sm:$0xff]
      %v8189 = vld [vmem:[#allocation8 + $0x770] sm:$0xff]
      %v8190 = vld [vmem:[#allocation8 + $0x778] sm:$0xff]
      %v8191 = vld [vmem:[#allocation8 + $0x780] sm:$0xff]
      %v8192 = vld [vmem:[#allocation8 + $0x788] sm:$0xff]
      %v8193 = vld [vmem:[#allocation8 + $0x790] sm:$0xff]
      %v8194 = vld [vmem:[#allocation8 + $0x798] sm:$0xff]
      %v8195 = vld [vmem:[#allocation8 + $0x7a0] sm:$0xff]
      %v8196 = vld [vmem:[#allocation8 + $0x7a8] sm:$0xff]
      %v8197 = vld [vmem:[#allocation8 + $0x7b0] sm:$0xff]
      %v8198 = vld [vmem:[#allocation8 + $0x7b8] sm:$0xff]
      %v8199 = vld [vmem:[#allocation8 + $0x7c0] sm:$0xff]
      %v8200 = vld [vmem:[#allocation8 + $0x7c8] sm:$0xff]
      %v8201 = vld [vmem:[#allocation8 + $0x7d0] sm:$0xff]
      %v8202 = vld [vmem:[#allocation8 + $0x7d8] sm:$0xff]
      %v8203 = vld [vmem:[#allocation8 + $0x7e0] sm:$0xff]
      %v8204 = vld [vmem:[#allocation8 + $0x7e8] sm:$0xff]
      %v8205 = vld [vmem:[#allocation8 + $0x7f0] sm:$0xff]
      %v8206 = vld [vmem:[#allocation8 + $0x7f8] sm:$0xff]
      %v8207 = vld [vmem:[#allocation9] sm:$0x3]
      %v8209 = vlaneseq
      %v8210 = vshrl.u32 %v8209, 7
      %v8211 = vsub.s32 0, %v8210
      %v8212 = vrot.slane %v8207, %v8211
      %v8213 = vlaneseq
      %v8214 = vshrl.u32 %v8213, 7
      %v8215 = vsub.s32 1, %v8214
      %v8216 = vrot.slane %v8207, %v8215
      %v8475 = vunpack.c.l.b16 %v7951
      %v8476 = vunpack.c.h.b16 %v7951
      %v8477 = vunpack.c.l.b16 %v7952
      %v8478 = vunpack.c.h.b16 %v7952
      %v8479 = vunpack.c.l.b16 %v7953
      %v8480 = vunpack.c.h.b16 %v7953
      %v8481 = vunpack.c.l.b16 %v7954
      %v8482 = vunpack.c.h.b16 %v7954
      %v8483 = vunpack.c.l.b16 %v7955
      %v8484 = vunpack.c.h.b16 %v7955
      %v8485 = vunpack.c.l.b16 %v7956
      %v8486 = vunpack.c.h.b16 %v7956
      %v8487 = vunpack.c.l.b16 %v7957
      %v8488 = vunpack.c.h.b16 %v7957
      %v8489 = vunpack.c.l.b16 %v7958
      %v8490 = vunpack.c.h.b16 %v7958
      %v8491 = vunpack.c.l.b16 %v7959
      %v8492 = vunpack.c.h.b16 %v7959
      %v8493 = vunpack.c.l.b16 %v7960
      %v8494 = vunpack.c.h.b16 %v7960
      %v8495 = vunpack.c.l.b16 %v7961
      %v8496 = vunpack.c.h.b16 %v7961
      %v8497 = vunpack.c.l.b16 %v7962
      %v8498 = vunpack.c.h.b16 %v7962
      %v8499 = vunpack.c.l.b16 %v7963
      %v8500 = vunpack.c.h.b16 %v7963
      %v8501 = vunpack.c.l.b16 %v7964
      %v8502 = vunpack.c.h.b16 %v7964
      %v8503 = vunpack.c.l.b16 %v7965
      %v8504 = vunpack.c.h.b16 %v7965
      %v8505 = vunpack.c.l.b16 %v7966
      %v8506 = vunpack.c.h.b16 %v7966
      %v8507 = vunpack.c.l.b16 %v7967
      %v8508 = vunpack.c.h.b16 %v7967
      %v8509 = vunpack.c.l.b16 %v7968
      %v8510 = vunpack.c.h.b16 %v7968
      %v8511 = vunpack.c.l.b16 %v7969
      %v8512 = vunpack.c.h.b16 %v7969
      %v8513 = vunpack.c.l.b16 %v7970
      %v8514 = vunpack.c.h.b16 %v7970
      %v8515 = vunpack.c.l.b16 %v7971
      %v8516 = vunpack.c.h.b16 %v7971
      %v8517 = vunpack.c.l.b16 %v7972
      %v8518 = vunpack.c.h.b16 %v7972
      %v8519 = vunpack.c.l.b16 %v7973
      %v8520 = vunpack.c.h.b16 %v7973
      %v8521 = vunpack.c.l.b16 %v7974
      %v8522 = vunpack.c.h.b16 %v7974
      %v8523 = vunpack.c.l.b16 %v7975
      %v8524 = vunpack.c.h.b16 %v7975
      %v8525 = vunpack.c.l.b16 %v7976
      %v8526 = vunpack.c.h.b16 %v7976
      %v8527 = vunpack.c.l.b16 %v7977
      %v8528 = vunpack.c.h.b16 %v7977
      %v8529 = vunpack.c.l.b16 %v7978
      %v8530 = vunpack.c.h.b16 %v7978
      %v8531 = vunpack.c.l.b16 %v7979
      %v8532 = vunpack.c.h.b16 %v7979
      %v8533 = vunpack.c.l.b16 %v7980
      %v8534 = vunpack.c.h.b16 %v7980
      %v8535 = vunpack.c.l.b16 %v7981
      %v8536 = vunpack.c.h.b16 %v7981
      %v8537 = vunpack.c.l.b16 %v7982
      %v8538 = vunpack.c.h.b16 %v7982
      %v8539 = vunpack.c.l.b16 %v7983
      %v8540 = vunpack.c.h.b16 %v7983
      %v8541 = vunpack.c.l.b16 %v7984
      %v8542 = vunpack.c.h.b16 %v7984
      %v8543 = vunpack.c.l.b16 %v7985
      %v8544 = vunpack.c.h.b16 %v7985
      %v8545 = vunpack.c.l.b16 %v7986
      %v8546 = vunpack.c.h.b16 %v7986
      %v8547 = vunpack.c.l.b16 %v7987
      %v8548 = vunpack.c.h.b16 %v7987
      %v8549 = vunpack.c.l.b16 %v7988
      %v8550 = vunpack.c.h.b16 %v7988
      %v8551 = vunpack.c.l.b16 %v7989
      %v8552 = vunpack.c.h.b16 %v7989
      %v8553 = vunpack.c.l.b16 %v7990
      %v8554 = vunpack.c.h.b16 %v7990
      %v8555 = vunpack.c.l.b16 %v7991
      %v8556 = vunpack.c.h.b16 %v7991
      %v8557 = vunpack.c.l.b16 %v7992
      %v8558 = vunpack.c.h.b16 %v7992
      %v8559 = vunpack.c.l.b16 %v7993
      %v8560 = vunpack.c.h.b16 %v7993
      %v8561 = vunpack.c.l.b16 %v7994
      %v8562 = vunpack.c.h.b16 %v7994
      %v8563 = vunpack.c.l.b16 %v7995
      %v8564 = vunpack.c.h.b16 %v7995
      %v8565 = vunpack.c.l.b16 %v7996
      %v8566 = vunpack.c.h.b16 %v7996
      %v8567 = vunpack.c.l.b16 %v7997
      %v8568 = vunpack.c.h.b16 %v7997
      %v8569 = vunpack.c.l.b16 %v7998
      %v8570 = vunpack.c.h.b16 %v7998
      %v8571 = vunpack.c.l.b16 %v7999
      %v8572 = vunpack.c.h.b16 %v7999
      %v8573 = vunpack.c.l.b16 %v8000
      %v8574 = vunpack.c.h.b16 %v8000
      %v8575 = vunpack.c.l.b16 %v8001
      %v8576 = vunpack.c.h.b16 %v8001
      %v8577 = vunpack.c.l.b16 %v8002
      %v8578 = vunpack.c.h.b16 %v8002
      %v8579 = vunpack.c.l.b16 %v8003
      %v8580 = vunpack.c.h.b16 %v8003
      %v8581 = vunpack.c.l.b16 %v8004
      %v8582 = vunpack.c.h.b16 %v8004
      %v8583 = vunpack.c.l.b16 %v8005
      %v8584 = vunpack.c.h.b16 %v8005
      %v8585 = vunpack.c.l.b16 %v8006
      %v8586 = vunpack.c.h.b16 %v8006
      %v8587 = vunpack.c.l.b16 %v8007
      %v8588 = vunpack.c.h.b16 %v8007
      %v8589 = vunpack.c.l.b16 %v8008
      %v8590 = vunpack.c.h.b16 %v8008
      %v8591 = vunpack.c.l.b16 %v8009
      %v8592 = vunpack.c.h.b16 %v8009
      %v8593 = vunpack.c.l.b16 %v8010
      %v8594 = vunpack.c.h.b16 %v8010
      %v8595 = vunpack.c.l.b16 %v8011
      %v8596 = vunpack.c.h.b16 %v8011
      %v8597 = vunpack.c.l.b16 %v8012
      %v8598 = vunpack.c.h.b16 %v8012
      %v8599 = vunpack.c.l.b16 %v8013
      %v8600 = vunpack.c.h.b16 %v8013
      %v8601 = vunpack.c.l.b16 %v8014
      %v8602 = vunpack.c.h.b16 %v8014
      %v8603 = vunpack.c.l.b16 %v8015
      %v8604 = vunpack.c.h.b16 %v8015
      %v8605 = vunpack.c.l.b16 %v8016
      %v8606 = vunpack.c.h.b16 %v8016
      %v8607 = vunpack.c.l.b16 %v8017
      %v8608 = vunpack.c.h.b16 %v8017
      %v8609 = vunpack.c.l.b16 %v8018
      %v8610 = vunpack.c.h.b16 %v8018
      %v8611 = vunpack.c.l.b16 %v8019
      %v8612 = vunpack.c.h.b16 %v8019
      %v8613 = vunpack.c.l.b16 %v8020
      %v8614 = vunpack.c.h.b16 %v8020
      %v8615 = vunpack.c.l.b16 %v8021
      %v8616 = vunpack.c.h.b16 %v8021
      %v8617 = vunpack.c.l.b16 %v8022
      %v8618 = vunpack.c.h.b16 %v8022
      %v8619 = vunpack.c.l.b16 %v8023
      %v8620 = vunpack.c.h.b16 %v8023
      %v8621 = vunpack.c.l.b16 %v8024
      %v8622 = vunpack.c.h.b16 %v8024
      %v8623 = vunpack.c.l.b16 %v8025
      %v8624 = vunpack.c.h.b16 %v8025
      %v8625 = vunpack.c.l.b16 %v8026
      %v8626 = vunpack.c.h.b16 %v8026
      %v8627 = vunpack.c.l.b16 %v8027
      %v8628 = vunpack.c.h.b16 %v8027
      %v8629 = vunpack.c.l.b16 %v8028
      %v8630 = vunpack.c.h.b16 %v8028
      %v8631 = vunpack.c.l.b16 %v8029
      %v8632 = vunpack.c.h.b16 %v8029
      %v8633 = vunpack.c.l.b16 %v8030
      %v8634 = vunpack.c.h.b16 %v8030
      %v8635 = vunpack.c.l.b16 %v8031
      %v8636 = vunpack.c.h.b16 %v8031
      %v8637 = vunpack.c.l.b16 %v8032
      %v8638 = vunpack.c.h.b16 %v8032
      %v8639 = vunpack.c.l.b16 %v8033
      %v8640 = vunpack.c.h.b16 %v8033
      %v8641 = vunpack.c.l.b16 %v8034
      %v8642 = vunpack.c.h.b16 %v8034
      %v8643 = vunpack.c.l.b16 %v8035
      %v8644 = vunpack.c.h.b16 %v8035
      %v8645 = vunpack.c.l.b16 %v8036
      %v8646 = vunpack.c.h.b16 %v8036
      %v8647 = vunpack.c.l.b16 %v8037
      %v8648 = vunpack.c.h.b16 %v8037
      %v8649 = vunpack.c.l.b16 %v8038
      %v8650 = vunpack.c.h.b16 %v8038
      %v8651 = vunpack.c.l.b16 %v8039
      %v8652 = vunpack.c.h.b16 %v8039
      %v8653 = vunpack.c.l.b16 %v8040
      %v8654 = vunpack.c.h.b16 %v8040
      %v8655 = vunpack.c.l.b16 %v8041
      %v8656 = vunpack.c.h.b16 %v8041
      %v8657 = vunpack.c.l.b16 %v8042
      %v8658 = vunpack.c.h.b16 %v8042
      %v8659 = vunpack.c.l.b16 %v8043
      %v8660 = vunpack.c.h.b16 %v8043
      %v8661 = vunpack.c.l.b16 %v8044
      %v8662 = vunpack.c.h.b16 %v8044
      %v8663 = vunpack.c.l.b16 %v8045
      %v8664 = vunpack.c.h.b16 %v8045
      %v8665 = vunpack.c.l.b16 %v8046
      %v8666 = vunpack.c.h.b16 %v8046
      %v8667 = vunpack.c.l.b16 %v8047
      %v8668 = vunpack.c.h.b16 %v8047
      %v8669 = vunpack.c.l.b16 %v8048
      %v8670 = vunpack.c.h.b16 %v8048
      %v8671 = vunpack.c.l.b16 %v8049
      %v8672 = vunpack.c.h.b16 %v8049
      %v8673 = vunpack.c.l.b16 %v8050
      %v8674 = vunpack.c.h.b16 %v8050
      %v8675 = vunpack.c.l.b16 %v8051
      %v8676 = vunpack.c.h.b16 %v8051
      %v8677 = vunpack.c.l.b16 %v8052
      %v8678 = vunpack.c.h.b16 %v8052
      %v8679 = vunpack.c.l.b16 %v8053
      %v8680 = vunpack.c.h.b16 %v8053
      %v8681 = vunpack.c.l.b16 %v8054
      %v8682 = vunpack.c.h.b16 %v8054
      %v8683 = vunpack.c.l.b16 %v8055
      %v8684 = vunpack.c.h.b16 %v8055
      %v8685 = vunpack.c.l.b16 %v8056
      %v8686 = vunpack.c.h.b16 %v8056
      %v8687 = vunpack.c.l.b16 %v8057
      %v8688 = vunpack.c.h.b16 %v8057
      %v8689 = vunpack.c.l.b16 %v8058
      %v8690 = vunpack.c.h.b16 %v8058
      %v8691 = vunpack.c.l.b16 %v8059
      %v8692 = vunpack.c.h.b16 %v8059
      %v8693 = vunpack.c.l.b16 %v8060
      %v8694 = vunpack.c.h.b16 %v8060
      %v8695 = vunpack.c.l.b16 %v8061
      %v8696 = vunpack.c.h.b16 %v8061
      %v8697 = vunpack.c.l.b16 %v8062
      %v8698 = vunpack.c.h.b16 %v8062
      %v8699 = vunpack.c.l.b16 %v8063
      %v8700 = vunpack.c.h.b16 %v8063
      %v8701 = vunpack.c.l.b16 %v8064
      %v8702 = vunpack.c.h.b16 %v8064
      %v8703 = vunpack.c.l.b16 %v8065
      %v8704 = vunpack.c.h.b16 %v8065
      %v8705 = vunpack.c.l.b16 %v8066
      %v8706 = vunpack.c.h.b16 %v8066
      %v8707 = vunpack.c.l.b16 %v8067
      %v8708 = vunpack.c.h.b16 %v8067
      %v8709 = vunpack.c.l.b16 %v8068
      %v8710 = vunpack.c.h.b16 %v8068
      %v8711 = vunpack.c.l.b16 %v8069
      %v8712 = vunpack.c.h.b16 %v8069
      %v8713 = vunpack.c.l.b16 %v8070
      %v8714 = vunpack.c.h.b16 %v8070
      %v8715 = vunpack.c.l.b16 %v8071
      %v8716 = vunpack.c.h.b16 %v8071
      %v8717 = vunpack.c.l.b16 %v8072
      %v8718 = vunpack.c.h.b16 %v8072
      %v8719 = vunpack.c.l.b16 %v8073
      %v8720 = vunpack.c.h.b16 %v8073
      %v8721 = vunpack.c.l.b16 %v8074
      %v8722 = vunpack.c.h.b16 %v8074
      %v8723 = vunpack.c.l.b16 %v8075
      %v8724 = vunpack.c.h.b16 %v8075
      %v8725 = vunpack.c.l.b16 %v8076
      %v8726 = vunpack.c.h.b16 %v8076
      %v8727 = vunpack.c.l.b16 %v8077
      %v8728 = vunpack.c.h.b16 %v8077
      %v8729 = vunpack.c.l.b16 %v8078
      %v8730 = vunpack.c.h.b16 %v8078
      %v8731 = vunpack.c.l.b16 %v8079
      %v8732 = vunpack.c.h.b16 %v8079
      %v8733 = vunpack.c.l.b16 %v8080
      %v8734 = vunpack.c.h.b16 %v8080
      %v8735 = vunpack.c.l.b16 %v8081
      %v8736 = vunpack.c.h.b16 %v8081
      %v8737 = vunpack.c.l.b16 %v8082
      %v8738 = vunpack.c.h.b16 %v8082
      %v8739 = vunpack.c.l.b16 %v8083
      %v8740 = vunpack.c.h.b16 %v8083
      %v8741 = vunpack.c.l.b16 %v8084
      %v8742 = vunpack.c.h.b16 %v8084
      %v8743 = vunpack.c.l.b16 %v8085
      %v8744 = vunpack.c.h.b16 %v8085
      %v8745 = vunpack.c.l.b16 %v8086
      %v8746 = vunpack.c.h.b16 %v8086
      %v8747 = vunpack.c.l.b16 %v8087
      %v8748 = vunpack.c.h.b16 %v8087
      %v8749 = vunpack.c.l.b16 %v8088
      %v8750 = vunpack.c.h.b16 %v8088
      %v8751 = vunpack.c.l.b16 %v8089
      %v8752 = vunpack.c.h.b16 %v8089
      %v8753 = vunpack.c.l.b16 %v8090
      %v8754 = vunpack.c.h.b16 %v8090
      %v8755 = vunpack.c.l.b16 %v8091
      %v8756 = vunpack.c.h.b16 %v8091
      %v8757 = vunpack.c.l.b16 %v8092
      %v8758 = vunpack.c.h.b16 %v8092
      %v8759 = vunpack.c.l.b16 %v8093
      %v8760 = vunpack.c.h.b16 %v8093
      %v8761 = vunpack.c.l.b16 %v8094
      %v8762 = vunpack.c.h.b16 %v8094
      %v8763 = vunpack.c.l.b16 %v8095
      %v8764 = vunpack.c.h.b16 %v8095
      %v8765 = vunpack.c.l.b16 %v8096
      %v8766 = vunpack.c.h.b16 %v8096
      %v8767 = vunpack.c.l.b16 %v8097
      %v8768 = vunpack.c.h.b16 %v8097
      %v8769 = vunpack.c.l.b16 %v8098
      %v8770 = vunpack.c.h.b16 %v8098
      %v8771 = vunpack.c.l.b16 %v8099
      %v8772 = vunpack.c.h.b16 %v8099
      %v8773 = vunpack.c.l.b16 %v8100
      %v8774 = vunpack.c.h.b16 %v8100
      %v8775 = vunpack.c.l.b16 %v8101
      %v8776 = vunpack.c.h.b16 %v8101
      %v8777 = vunpack.c.l.b16 %v8102
      %v8778 = vunpack.c.h.b16 %v8102
      %v8779 = vunpack.c.l.b16 %v8103
      %v8780 = vunpack.c.h.b16 %v8103
      %v8781 = vunpack.c.l.b16 %v8104
      %v8782 = vunpack.c.h.b16 %v8104
      %v8783 = vunpack.c.l.b16 %v8105
      %v8784 = vunpack.c.h.b16 %v8105
      %v8785 = vunpack.c.l.b16 %v8106
      %v8786 = vunpack.c.h.b16 %v8106
      %v8787 = vunpack.c.l.b16 %v8107
      %v8788 = vunpack.c.h.b16 %v8107
      %v8789 = vunpack.c.l.b16 %v8108
      %v8790 = vunpack.c.h.b16 %v8108
      %v8791 = vunpack.c.l.b16 %v8109
      %v8792 = vunpack.c.h.b16 %v8109
      %v8793 = vunpack.c.l.b16 %v8110
      %v8794 = vunpack.c.h.b16 %v8110
      %v8795 = vunpack.c.l.b16 %v8111
      %v8796 = vunpack.c.h.b16 %v8111
      %v8797 = vunpack.c.l.b16 %v8112
      %v8798 = vunpack.c.h.b16 %v8112
      %v8799 = vunpack.c.l.b16 %v8113
      %v8800 = vunpack.c.h.b16 %v8113
      %v8801 = vunpack.c.l.b16 %v8114
      %v8802 = vunpack.c.h.b16 %v8114
      %v8803 = vunpack.c.l.b16 %v8115
      %v8804 = vunpack.c.h.b16 %v8115
      %v8805 = vunpack.c.l.b16 %v8116
      %v8806 = vunpack.c.h.b16 %v8116
      %v8807 = vunpack.c.l.b16 %v8117
      %v8808 = vunpack.c.h.b16 %v8117
      %v8809 = vunpack.c.l.b16 %v8118
      %v8810 = vunpack.c.h.b16 %v8118
      %v8811 = vunpack.c.l.b16 %v8119
      %v8812 = vunpack.c.h.b16 %v8119
      %v8813 = vunpack.c.l.b16 %v8120
      %v8814 = vunpack.c.h.b16 %v8120
      %v8815 = vunpack.c.l.b16 %v8121
      %v8816 = vunpack.c.h.b16 %v8121
      %v8817 = vunpack.c.l.b16 %v8122
      %v8818 = vunpack.c.h.b16 %v8122
      %v8819 = vunpack.c.l.b16 %v8123
      %v8820 = vunpack.c.h.b16 %v8123
      %v8821 = vunpack.c.l.b16 %v8124
      %v8822 = vunpack.c.h.b16 %v8124
      %v8823 = vunpack.c.l.b16 %v8125
      %v8824 = vunpack.c.h.b16 %v8125
      %v8825 = vunpack.c.l.b16 %v8126
      %v8826 = vunpack.c.h.b16 %v8126
      %v8827 = vunpack.c.l.b16 %v8127
      %v8828 = vunpack.c.h.b16 %v8127
      %v8829 = vunpack.c.l.b16 %v8128
      %v8830 = vunpack.c.h.b16 %v8128
      %v8831 = vunpack.c.l.b16 %v8129
      %v8832 = vunpack.c.h.b16 %v8129
      %v8833 = vunpack.c.l.b16 %v8130
      %v8834 = vunpack.c.h.b16 %v8130
      %v8835 = vunpack.c.l.b16 %v8131
      %v8836 = vunpack.c.h.b16 %v8131
      %v8837 = vunpack.c.l.b16 %v8132
      %v8838 = vunpack.c.h.b16 %v8132
      %v8839 = vunpack.c.l.b16 %v8133
      %v8840 = vunpack.c.h.b16 %v8133
      %v8841 = vunpack.c.l.b16 %v8134
      %v8842 = vunpack.c.h.b16 %v8134
      %v8843 = vunpack.c.l.b16 %v8135
      %v8844 = vunpack.c.h.b16 %v8135
      %v8845 = vunpack.c.l.b16 %v8136
      %v8846 = vunpack.c.h.b16 %v8136
      %v8847 = vunpack.c.l.b16 %v8137
      %v8848 = vunpack.c.h.b16 %v8137
      %v8849 = vunpack.c.l.b16 %v8138
      %v8850 = vunpack.c.h.b16 %v8138
      %v8851 = vunpack.c.l.b16 %v8139
      %v8852 = vunpack.c.h.b16 %v8139
      %v8853 = vunpack.c.l.b16 %v8140
      %v8854 = vunpack.c.h.b16 %v8140
      %v8855 = vunpack.c.l.b16 %v8141
      %v8856 = vunpack.c.h.b16 %v8141
      %v8857 = vunpack.c.l.b16 %v8142
      %v8858 = vunpack.c.h.b16 %v8142
      %v8859 = vunpack.c.l.b16 %v8143
      %v8860 = vunpack.c.h.b16 %v8143
      %v8861 = vunpack.c.l.b16 %v8144
      %v8862 = vunpack.c.h.b16 %v8144
      %v8863 = vunpack.c.l.b16 %v8145
      %v8864 = vunpack.c.h.b16 %v8145
      %v8865 = vunpack.c.l.b16 %v8146
      %v8866 = vunpack.c.h.b16 %v8146
      %v8867 = vunpack.c.l.b16 %v8147
      %v8868 = vunpack.c.h.b16 %v8147
      %v8869 = vunpack.c.l.b16 %v8148
      %v8870 = vunpack.c.h.b16 %v8148
      %v8871 = vunpack.c.l.b16 %v8149
      %v8872 = vunpack.c.h.b16 %v8149
      %v8873 = vunpack.c.l.b16 %v8150
      %v8874 = vunpack.c.h.b16 %v8150
      %v8875 = vunpack.c.l.b16 %v8151
      %v8876 = vunpack.c.h.b16 %v8151
      %v8877 = vunpack.c.l.b16 %v8152
      %v8878 = vunpack.c.h.b16 %v8152
      %v8879 = vunpack.c.l.b16 %v8153
      %v8880 = vunpack.c.h.b16 %v8153
      %v8881 = vunpack.c.l.b16 %v8154
      %v8882 = vunpack.c.h.b16 %v8154
      %v8883 = vunpack.c.l.b16 %v8155
      %v8884 = vunpack.c.h.b16 %v8155
      %v8885 = vunpack.c.l.b16 %v8156
      %v8886 = vunpack.c.h.b16 %v8156
      %v8887 = vunpack.c.l.b16 %v8157
      %v8888 = vunpack.c.h.b16 %v8157
      %v8889 = vunpack.c.l.b16 %v8158
      %v8890 = vunpack.c.h.b16 %v8158
      %v8891 = vunpack.c.l.b16 %v8159
      %v8892 = vunpack.c.h.b16 %v8159
      %v8893 = vunpack.c.l.b16 %v8160
      %v8894 = vunpack.c.h.b16 %v8160
      %v8895 = vunpack.c.l.b16 %v8161
      %v8896 = vunpack.c.h.b16 %v8161
      %v8897 = vunpack.c.l.b16 %v8162
      %v8898 = vunpack.c.h.b16 %v8162
      %v8899 = vunpack.c.l.b16 %v8163
      %v8900 = vunpack.c.h.b16 %v8163
      %v8901 = vunpack.c.l.b16 %v8164
      %v8902 = vunpack.c.h.b16 %v8164
      %v8903 = vunpack.c.l.b16 %v8165
      %v8904 = vunpack.c.h.b16 %v8165
      %v8905 = vunpack.c.l.b16 %v8166
      %v8906 = vunpack.c.h.b16 %v8166
      %v8907 = vunpack.c.l.b16 %v8167
      %v8908 = vunpack.c.h.b16 %v8167
      %v8909 = vunpack.c.l.b16 %v8168
      %v8910 = vunpack.c.h.b16 %v8168
      %v8911 = vunpack.c.l.b16 %v8169
      %v8912 = vunpack.c.h.b16 %v8169
      %v8913 = vunpack.c.l.b16 %v8170
      %v8914 = vunpack.c.h.b16 %v8170
      %v8915 = vunpack.c.l.b16 %v8171
      %v8916 = vunpack.c.h.b16 %v8171
      %v8917 = vunpack.c.l.b16 %v8172
      %v8918 = vunpack.c.h.b16 %v8172
      %v8919 = vunpack.c.l.b16 %v8173
      %v8920 = vunpack.c.h.b16 %v8173
      %v8921 = vunpack.c.l.b16 %v8174
      %v8922 = vunpack.c.h.b16 %v8174
      %v8923 = vunpack.c.l.b16 %v8175
      %v8924 = vunpack.c.h.b16 %v8175
      %v8925 = vunpack.c.l.b16 %v8176
      %v8926 = vunpack.c.h.b16 %v8176
      %v8927 = vunpack.c.l.b16 %v8177
      %v8928 = vunpack.c.h.b16 %v8177
      %v8929 = vunpack.c.l.b16 %v8178
      %v8930 = vunpack.c.h.b16 %v8178
      %v8931 = vunpack.c.l.b16 %v8179
      %v8932 = vunpack.c.h.b16 %v8179
      %v8933 = vunpack.c.l.b16 %v8180
      %v8934 = vunpack.c.h.b16 %v8180
      %v8935 = vunpack.c.l.b16 %v8181
      %v8936 = vunpack.c.h.b16 %v8181
      %v8937 = vunpack.c.l.b16 %v8182
      %v8938 = vunpack.c.h.b16 %v8182
      %v8939 = vunpack.c.l.b16 %v8183
      %v8940 = vunpack.c.h.b16 %v8183
      %v8941 = vunpack.c.l.b16 %v8184
      %v8942 = vunpack.c.h.b16 %v8184
      %v8943 = vunpack.c.l.b16 %v8185
      %v8944 = vunpack.c.h.b16 %v8185
      %v8945 = vunpack.c.l.b16 %v8186
      %v8946 = vunpack.c.h.b16 %v8186
      %v8947 = vunpack.c.l.b16 %v8187
      %v8948 = vunpack.c.h.b16 %v8187
      %v8949 = vunpack.c.l.b16 %v8188
      %v8950 = vunpack.c.h.b16 %v8188
      %v8951 = vunpack.c.l.b16 %v8189
      %v8952 = vunpack.c.h.b16 %v8189
      %v8953 = vunpack.c.l.b16 %v8190
      %v8954 = vunpack.c.h.b16 %v8190
      %v8955 = vunpack.c.l.b16 %v8191
      %v8956 = vunpack.c.h.b16 %v8191
      %v8957 = vunpack.c.l.b16 %v8192
      %v8958 = vunpack.c.h.b16 %v8192
      %v8959 = vunpack.c.l.b16 %v8193
      %v8960 = vunpack.c.h.b16 %v8193
      %v8961 = vunpack.c.l.b16 %v8194
      %v8962 = vunpack.c.h.b16 %v8194
      %v8963 = vunpack.c.l.b16 %v8195
      %v8964 = vunpack.c.h.b16 %v8195
      %v8965 = vunpack.c.l.b16 %v8196
      %v8966 = vunpack.c.h.b16 %v8196
      %v8967 = vunpack.c.l.b16 %v8197
      %v8968 = vunpack.c.h.b16 %v8197
      %v8969 = vunpack.c.l.b16 %v8198
      %v8970 = vunpack.c.h.b16 %v8198
      %v8971 = vunpack.c.l.b16 %v8199
      %v8972 = vunpack.c.h.b16 %v8199
      %v8973 = vunpack.c.l.b16 %v8200
      %v8974 = vunpack.c.h.b16 %v8200
      %v8975 = vunpack.c.l.b16 %v8201
      %v8976 = vunpack.c.h.b16 %v8201
      %v8977 = vunpack.c.l.b16 %v8202
      %v8978 = vunpack.c.h.b16 %v8202
      %v8979 = vunpack.c.l.b16 %v8203
      %v8980 = vunpack.c.h.b16 %v8203
      %v8981 = vunpack.c.l.b16 %v8204
      %v8982 = vunpack.c.h.b16 %v8204
      %v8983 = vunpack.c.l.b16 %v8205
      %v8984 = vunpack.c.h.b16 %v8205
      %v8985 = vunpack.c.l.b16 %v8206
      %v8986 = vunpack.c.h.b16 %v8206
      %v8987 = vpack.c.b16 %v8477, %v8475
      %v8988 = vpack.c.b16 %v8478, %v8476
      %v8989 = vpack.c.b16 %v8481, %v8479
      %v8990 = vpack.c.b16 %v8482, %v8480
      %v8991 = vpack.c.b16 %v8485, %v8483
      %v8992 = vpack.c.b16 %v8486, %v8484
      %v8993 = vpack.c.b16 %v8489, %v8487
      %v8994 = vpack.c.b16 %v8490, %v8488
      %v8995 = vpack.c.b16 %v8493, %v8491
      %v8996 = vpack.c.b16 %v8494, %v8492
      %v8997 = vpack.c.b16 %v8497, %v8495
      %v8998 = vpack.c.b16 %v8498, %v8496
      %v8999 = vpack.c.b16 %v8501, %v8499
      %v9000 = vpack.c.b16 %v8502, %v8500
      %v9001 = vpack.c.b16 %v8505, %v8503
      %v9002 = vpack.c.b16 %v8506, %v8504
      %v9003 = vpack.c.b16 %v8509, %v8507
      %v9004 = vpack.c.b16 %v8510, %v8508
      %v9005 = vpack.c.b16 %v8513, %v8511
      %v9006 = vpack.c.b16 %v8514, %v8512
      %v9007 = vpack.c.b16 %v8517, %v8515
      %v9008 = vpack.c.b16 %v8518, %v8516
      %v9009 = vpack.c.b16 %v8521, %v8519
      %v9010 = vpack.c.b16 %v8522, %v8520
      %v9011 = vpack.c.b16 %v8525, %v8523
      %v9012 = vpack.c.b16 %v8526, %v8524
      %v9013 = vpack.c.b16 %v8529, %v8527
      %v9014 = vpack.c.b16 %v8530, %v8528
      %v9015 = vpack.c.b16 %v8533, %v8531
      %v9016 = vpack.c.b16 %v8534, %v8532
      %v9017 = vpack.c.b16 %v8537, %v8535
      %v9018 = vpack.c.b16 %v8538, %v8536
      %v9019 = vpack.c.b16 %v8541, %v8539
      %v9020 = vpack.c.b16 %v8542, %v8540
      %v9021 = vpack.c.b16 %v8545, %v8543
      %v9022 = vpack.c.b16 %v8546, %v8544
      %v9023 = vpack.c.b16 %v8549, %v8547
      %v9024 = vpack.c.b16 %v8550, %v8548
      %v9025 = vpack.c.b16 %v8553, %v8551
      %v9026 = vpack.c.b16 %v8554, %v8552
      %v9027 = vpack.c.b16 %v8557, %v8555
      %v9028 = vpack.c.b16 %v8558, %v8556
      %v9029 = vpack.c.b16 %v8561, %v8559
      %v9030 = vpack.c.b16 %v8562, %v8560
      %v9031 = vpack.c.b16 %v8565, %v8563
      %v9032 = vpack.c.b16 %v8566, %v8564
      %v9033 = vpack.c.b16 %v8569, %v8567
      %v9034 = vpack.c.b16 %v8570, %v8568
      %v9035 = vpack.c.b16 %v8573, %v8571
      %v9036 = vpack.c.b16 %v8574, %v8572
      %v9037 = vpack.c.b16 %v8577, %v8575
      %v9038 = vpack.c.b16 %v8578, %v8576
      %v9039 = vpack.c.b16 %v8581, %v8579
      %v9040 = vpack.c.b16 %v8582, %v8580
      %v9041 = vpack.c.b16 %v8585, %v8583
      %v9042 = vpack.c.b16 %v8586, %v8584
      %v9043 = vpack.c.b16 %v8589, %v8587
      %v9044 = vpack.c.b16 %v8590, %v8588
      %v9045 = vpack.c.b16 %v8593, %v8591
      %v9046 = vpack.c.b16 %v8594, %v8592
      %v9047 = vpack.c.b16 %v8597, %v8595
      %v9048 = vpack.c.b16 %v8598, %v8596
      %v9049 = vpack.c.b16 %v8601, %v8599
      %v9050 = vpack.c.b16 %v8602, %v8600
      %v9051 = vpack.c.b16 %v8605, %v8603
      %v9052 = vpack.c.b16 %v8606, %v8604
      %v9053 = vpack.c.b16 %v8609, %v8607
      %v9054 = vpack.c.b16 %v8610, %v8608
      %v9055 = vpack.c.b16 %v8613, %v8611
      %v9056 = vpack.c.b16 %v8614, %v8612
      %v9057 = vpack.c.b16 %v8617, %v8615
      %v9058 = vpack.c.b16 %v8618, %v8616
      %v9059 = vpack.c.b16 %v8621, %v8619
      %v9060 = vpack.c.b16 %v8622, %v8620
      %v9061 = vpack.c.b16 %v8625, %v8623
      %v9062 = vpack.c.b16 %v8626, %v8624
      %v9063 = vpack.c.b16 %v8629, %v8627
      %v9064 = vpack.c.b16 %v8630, %v8628
      %v9065 = vpack.c.b16 %v8633, %v8631
      %v9066 = vpack.c.b16 %v8634, %v8632
      %v9067 = vpack.c.b16 %v8637, %v8635
      %v9068 = vpack.c.b16 %v8638, %v8636
      %v9069 = vpack.c.b16 %v8641, %v8639
      %v9070 = vpack.c.b16 %v8642, %v8640
      %v9071 = vpack.c.b16 %v8645, %v8643
      %v9072 = vpack.c.b16 %v8646, %v8644
      %v9073 = vpack.c.b16 %v8649, %v8647
      %v9074 = vpack.c.b16 %v8650, %v8648
      %v9075 = vpack.c.b16 %v8653, %v8651
      %v9076 = vpack.c.b16 %v8654, %v8652
      %v9077 = vpack.c.b16 %v8657, %v8655
      %v9078 = vpack.c.b16 %v8658, %v8656
      %v9079 = vpack.c.b16 %v8661, %v8659
      %v9080 = vpack.c.b16 %v8662, %v8660
      %v9081 = vpack.c.b16 %v8665, %v8663
      %v9082 = vpack.c.b16 %v8666, %v8664
      %v9083 = vpack.c.b16 %v8669, %v8667
      %v9084 = vpack.c.b16 %v8670, %v8668
      %v9085 = vpack.c.b16 %v8673, %v8671
      %v9086 = vpack.c.b16 %v8674, %v8672
      %v9087 = vpack.c.b16 %v8677, %v8675
      %v9088 = vpack.c.b16 %v8678, %v8676
      %v9089 = vpack.c.b16 %v8681, %v8679
      %v9090 = vpack.c.b16 %v8682, %v8680
      %v9091 = vpack.c.b16 %v8685, %v8683
      %v9092 = vpack.c.b16 %v8686, %v8684
      %v9093 = vpack.c.b16 %v8689, %v8687
      %v9094 = vpack.c.b16 %v8690, %v8688
      %v9095 = vpack.c.b16 %v8693, %v8691
      %v9096 = vpack.c.b16 %v8694, %v8692
      %v9097 = vpack.c.b16 %v8697, %v8695
      %v9098 = vpack.c.b16 %v8698, %v8696
      %v9099 = vpack.c.b16 %v8701, %v8699
      %v9100 = vpack.c.b16 %v8702, %v8700
      %v9101 = vpack.c.b16 %v8705, %v8703
      %v9102 = vpack.c.b16 %v8706, %v8704
      %v9103 = vpack.c.b16 %v8709, %v8707
      %v9104 = vpack.c.b16 %v8710, %v8708
      %v9105 = vpack.c.b16 %v8713, %v8711
      %v9106 = vpack.c.b16 %v8714, %v8712
      %v9107 = vpack.c.b16 %v8717, %v8715
      %v9108 = vpack.c.b16 %v8718, %v8716
      %v9109 = vpack.c.b16 %v8721, %v8719
      %v9110 = vpack.c.b16 %v8722, %v8720
      %v9111 = vpack.c.b16 %v8725, %v8723
      %v9112 = vpack.c.b16 %v8726, %v8724
      %v9113 = vpack.c.b16 %v8729, %v8727
      %v9114 = vpack.c.b16 %v8730, %v8728
      %v9115 = vpack.c.b16 %v8733, %v8731
      %v9116 = vpack.c.b16 %v8734, %v8732
      %v9117 = vpack.c.b16 %v8737, %v8735
      %v9118 = vpack.c.b16 %v8738, %v8736
      %v9119 = vpack.c.b16 %v8741, %v8739
      %v9120 = vpack.c.b16 %v8742, %v8740
      %v9121 = vpack.c.b16 %v8745, %v8743
      %v9122 = vpack.c.b16 %v8746, %v8744
      %v9123 = vpack.c.b16 %v8749, %v8747
      %v9124 = vpack.c.b16 %v8750, %v8748
      %v9125 = vpack.c.b16 %v8753, %v8751
      %v9126 = vpack.c.b16 %v8754, %v8752
      %v9127 = vpack.c.b16 %v8757, %v8755
      %v9128 = vpack.c.b16 %v8758, %v8756
      %v9129 = vpack.c.b16 %v8761, %v8759
      %v9130 = vpack.c.b16 %v8762, %v8760
      %v9131 = vpack.c.b16 %v8765, %v8763
      %v9132 = vpack.c.b16 %v8766, %v8764
      %v9133 = vpack.c.b16 %v8769, %v8767
      %v9134 = vpack.c.b16 %v8770, %v8768
      %v9135 = vpack.c.b16 %v8773, %v8771
      %v9136 = vpack.c.b16 %v8774, %v8772
      %v9137 = vpack.c.b16 %v8777, %v8775
      %v9138 = vpack.c.b16 %v8778, %v8776
      %v9139 = vpack.c.b16 %v8781, %v8779
      %v9140 = vpack.c.b16 %v8782, %v8780
      %v9141 = vpack.c.b16 %v8785, %v8783
      %v9142 = vpack.c.b16 %v8786, %v8784
      %v9143 = vpack.c.b16 %v8789, %v8787
      %v9144 = vpack.c.b16 %v8790, %v8788
      %v9145 = vpack.c.b16 %v8793, %v8791
      %v9146 = vpack.c.b16 %v8794, %v8792
      %v9147 = vpack.c.b16 %v8797, %v8795
      %v9148 = vpack.c.b16 %v8798, %v8796
      %v9149 = vpack.c.b16 %v8801, %v8799
      %v9150 = vpack.c.b16 %v8802, %v8800
      %v9151 = vpack.c.b16 %v8805, %v8803
      %v9152 = vpack.c.b16 %v8806, %v8804
      %v9153 = vpack.c.b16 %v8809, %v8807
      %v9154 = vpack.c.b16 %v8810, %v8808
      %v9155 = vpack.c.b16 %v8813, %v8811
      %v9156 = vpack.c.b16 %v8814, %v8812
      %v9157 = vpack.c.b16 %v8817, %v8815
      %v9158 = vpack.c.b16 %v8818, %v8816
      %v9159 = vpack.c.b16 %v8821, %v8819
      %v9160 = vpack.c.b16 %v8822, %v8820
      %v9161 = vpack.c.b16 %v8825, %v8823
      %v9162 = vpack.c.b16 %v8826, %v8824
      %v9163 = vpack.c.b16 %v8829, %v8827
      %v9164 = vpack.c.b16 %v8830, %v8828
      %v9165 = vpack.c.b16 %v8833, %v8831
      %v9166 = vpack.c.b16 %v8834, %v8832
      %v9167 = vpack.c.b16 %v8837, %v8835
      %v9168 = vpack.c.b16 %v8838, %v8836
      %v9169 = vpack.c.b16 %v8841, %v8839
      %v9170 = vpack.c.b16 %v8842, %v8840
      %v9171 = vpack.c.b16 %v8845, %v8843
      %v9172 = vpack.c.b16 %v8846, %v8844
      %v9173 = vpack.c.b16 %v8849, %v8847
      %v9174 = vpack.c.b16 %v8850, %v8848
      %v9175 = vpack.c.b16 %v8853, %v8851
      %v9176 = vpack.c.b16 %v8854, %v8852
      %v9177 = vpack.c.b16 %v8857, %v8855
      %v9178 = vpack.c.b16 %v8858, %v8856
      %v9179 = vpack.c.b16 %v8861, %v8859
      %v9180 = vpack.c.b16 %v8862, %v8860
      %v9181 = vpack.c.b16 %v8865, %v8863
      %v9182 = vpack.c.b16 %v8866, %v8864
      %v9183 = vpack.c.b16 %v8869, %v8867
      %v9184 = vpack.c.b16 %v8870, %v8868
      %v9185 = vpack.c.b16 %v8873, %v8871
      %v9186 = vpack.c.b16 %v8874, %v8872
      %v9187 = vpack.c.b16 %v8877, %v8875
      %v9188 = vpack.c.b16 %v8878, %v8876
      %v9189 = vpack.c.b16 %v8881, %v8879
      %v9190 = vpack.c.b16 %v8882, %v8880
      %v9191 = vpack.c.b16 %v8885, %v8883
      %v9192 = vpack.c.b16 %v8886, %v8884
      %v9193 = vpack.c.b16 %v8889, %v8887
      %v9194 = vpack.c.b16 %v8890, %v8888
      %v9195 = vpack.c.b16 %v8893, %v8891
      %v9196 = vpack.c.b16 %v8894, %v8892
      %v9197 = vpack.c.b16 %v8897, %v8895
      %v9198 = vpack.c.b16 %v8898, %v8896
      %v9199 = vpack.c.b16 %v8901, %v8899
      %v9200 = vpack.c.b16 %v8902, %v8900
      %v9201 = vpack.c.b16 %v8905, %v8903
      %v9202 = vpack.c.b16 %v8906, %v8904
      %v9203 = vpack.c.b16 %v8909, %v8907
      %v9204 = vpack.c.b16 %v8910, %v8908
      %v9205 = vpack.c.b16 %v8913, %v8911
      %v9206 = vpack.c.b16 %v8914, %v8912
      %v9207 = vpack.c.b16 %v8917, %v8915
      %v9208 = vpack.c.b16 %v8918, %v8916
      %v9209 = vpack.c.b16 %v8921, %v8919
      %v9210 = vpack.c.b16 %v8922, %v8920
      %v9211 = vpack.c.b16 %v8925, %v8923
      %v9212 = vpack.c.b16 %v8926, %v8924
      %v9213 = vpack.c.b16 %v8929, %v8927
      %v9214 = vpack.c.b16 %v8930, %v8928
      %v9215 = vpack.c.b16 %v8933, %v8931
      %v9216 = vpack.c.b16 %v8934, %v8932
      %v9217 = vpack.c.b16 %v8937, %v8935
      %v9218 = vpack.c.b16 %v8938, %v8936
      %v9219 = vpack.c.b16 %v8941, %v8939
      %v9220 = vpack.c.b16 %v8942, %v8940
      %v9221 = vpack.c.b16 %v8945, %v8943
      %v9222 = vpack.c.b16 %v8946, %v8944
      %v9223 = vpack.c.b16 %v8949, %v8947
      %v9224 = vpack.c.b16 %v8950, %v8948
      %v9225 = vpack.c.b16 %v8953, %v8951
      %v9226 = vpack.c.b16 %v8954, %v8952
      %v9227 = vpack.c.b16 %v8957, %v8955
      %v9228 = vpack.c.b16 %v8958, %v8956
      %v9229 = vpack.c.b16 %v8961, %v8959
      %v9230 = vpack.c.b16 %v8962, %v8960
      %v9231 = vpack.c.b16 %v8965, %v8963
      %v9232 = vpack.c.b16 %v8966, %v8964
      %v9233 = vpack.c.b16 %v8969, %v8967
      %v9234 = vpack.c.b16 %v8970, %v8968
      %v9235 = vpack.c.b16 %v8973, %v8971
      %v9236 = vpack.c.b16 %v8974, %v8972
      %v9237 = vpack.c.b16 %v8977, %v8975
      %v9238 = vpack.c.b16 %v8978, %v8976
      %v9239 = vpack.c.b16 %v8981, %v8979
      %v9240 = vpack.c.b16 %v8982, %v8980
      %v9241 = vpack.c.b16 %v8985, %v8983
      %v9242 = vpack.c.b16 %v8986, %v8984
      %9499 = vmatprep.subr.bf16.mxu0 %v9002
      %9500 = vmatpush1.bf16.msra.mxu0 %v9001
      %9501 = vmatprep.subr.bf16.mxu0 %v9000
      %9502 = vmatpush1.bf16.msra.mxu0 %v8999
      %9503 = vmatprep.subr.bf16.mxu0 %v8998
      %9504 = vmatpush1.bf16.msra.mxu0 %v8997
      %9505 = vmatprep.subr.bf16.mxu0 %v8996
      %9506 = vmatpush1.bf16.msra.mxu0 %v8995
      %9507 = vmatprep.subr.bf16.mxu0 %v8994
      %9508 = vmatpush1.bf16.msra.mxu0 %v8993
      %9509 = vmatprep.subr.bf16.mxu0 %v8992
      %9510 = vmatpush1.bf16.msra.mxu0 %v8991
      %9511 = vmatprep.subr.bf16.mxu0 %v8990
      %9512 = vmatpush1.bf16.msra.mxu0 %v8989
      %9513 = vmatprep.subr.bf16.mxu0 %v8988
      %9514 = vmatpush1.bf16.msra.mxu0 %v8987
      %9515 = vmatprep.subr.bf16.mxu0 %v9018
      %9516 = vmatpush2.bf16.msra.mxu0 %v9017
      %9517 = vmatprep.subr.bf16.mxu0 %v9016
      %9518 = vmatpush2.bf16.msra.mxu0 %v9015
      %9519 = vmatprep.subr.bf16.mxu0 %v9014
      %9520 = vmatpush2.bf16.msra.mxu0 %v9013
      %9521 = vmatprep.subr.bf16.mxu0 %v9012
      %9522 = vmatpush2.bf16.msra.mxu0 %v9011
      %9523 = vmatprep.subr.bf16.mxu0 %v9010
      %9524 = vmatpush2.bf16.msra.mxu0 %v9009
      %9525 = vmatprep.subr.bf16.mxu0 %v9008
      %9526 = vmatpush2.bf16.msra.mxu0 %v9007
      %9527 = vmatprep.subr.bf16.mxu0 %v9006
      %9528 = vmatpush2.bf16.msra.mxu0 %v9005
      %9529 = vmatprep.subr.bf16.mxu0 %v9004
      %9530 = vmatpush2.bf16.msra.mxu0 %v9003
      %9531 = vmatprep.mubr.bf16.mxu0 %v7936
      %9532 = vmatmul.mubr.bf16.gmra.mxu0 %v7935
      %v9533 = vpop.f32.mrf.mxu0
      %v9534 = vadd.f32 %v8212, %v9533
      %v9535 = vpop.f32.mrf.mxu0
      %v9536 = vadd.f32 %v8216, %v9535
      %v9537 = vpop.f32.mrf.mxu0
      %v9538 = vpop.f32.mrf.mxu0
      %9539 = vdwg.mxu0
      %9540 = vmatprep.subr.bf16.mxu0 %v9034
      %9541 = vmatpush1.bf16.msra.mxu0 %v9033
      %9542 = vmatprep.subr.bf16.mxu0 %v9032
      %9543 = vmatpush1.bf16.msra.mxu0 %v9031
      %9544 = vmatprep.subr.bf16.mxu0 %v9030
      %9545 = vmatpush1.bf16.msra.mxu0 %v9029
      %9546 = vmatprep.subr.bf16.mxu0 %v9028
      %9547 = vmatpush1.bf16.msra.mxu0 %v9027
      %9548 = vmatprep.subr.bf16.mxu0 %v9026
      %9549 = vmatpush1.bf16.msra.mxu0 %v9025
      %9550 = vmatprep.subr.bf16.mxu0 %v9024
      %9551 = vmatpush1.bf16.msra.mxu0 %v9023
      %9552 = vmatprep.subr.bf16.mxu0 %v9022
      %9553 = vmatpush1.bf16.msra.mxu0 %v9021
      %9554 = vmatprep.subr.bf16.mxu0 %v9020
      %9555 = vmatpush1.bf16.msra.mxu0 %v9019
      %9556 = vmatprep.subr.bf16.mxu0 %v9050
      %9557 = vmatpush2.bf16.msra.mxu0 %v9049
      %9558 = vmatprep.subr.bf16.mxu0 %v9048
      %9559 = vmatpush2.bf16.msra.mxu0 %v9047
      %9560 = vmatprep.subr.bf16.mxu0 %v9046
      %9561 = vmatpush2.bf16.msra.mxu0 %v9045
      %9562 = vmatprep.subr.bf16.mxu0 %v9044
      %9563 = vmatpush2.bf16.msra.mxu0 %v9043
      %9564 = vmatprep.subr.bf16.mxu0 %v9042
      %9565 = vmatpush2.bf16.msra.mxu0 %v9041
      %9566 = vmatprep.subr.bf16.mxu0 %v9040
      %9567 = vmatpush2.bf16.msra.mxu0 %v9039
      %9568 = vmatprep.subr.bf16.mxu0 %v9038
      %9569 = vmatpush2.bf16.msra.mxu0 %v9037
      %9570 = vmatprep.subr.bf16.mxu0 %v9036
      %9571 = vmatpush2.bf16.msra.mxu0 %v9035
      %9572 = vmatprep.mubr.bf16.mxu0 %v7938
      %9573 = vmatmul.mubr.bf16.gmra.mxu0 %v7937
      %v9574 = vpop.f32.mrf.mxu0
      %v9575 = vadd.f32 %v9534, %v9574
      %v9576 = vpop.f32.mrf.mxu0
      %v9577 = vadd.f32 %v9536, %v9576
      %v9578 = vpop.f32.mrf.mxu0
      %v9579 = vpop.f32.mrf.mxu0
      %9580 = vdwg.mxu0
      %9581 = vmatprep.subr.bf16.mxu0 %v9066
      %9582 = vmatpush1.bf16.msra.mxu0 %v9065
      %9583 = vmatprep.subr.bf16.mxu0 %v9064
      %9584 = vmatpush1.bf16.msra.mxu0 %v9063
      %9585 = vmatprep.subr.bf16.mxu0 %v9062
      %9586 = vmatpush1.bf16.msra.mxu0 %v9061
      %9587 = vmatprep.subr.bf16.mxu0 %v9060
      %9588 = vmatpush1.bf16.msra.mxu0 %v9059
      %9589 = vmatprep.subr.bf16.mxu0 %v9058
      %9590 = vmatpush1.bf16.msra.mxu0 %v9057
      %9591 = vmatprep.subr.bf16.mxu0 %v9056
      %9592 = vmatpush1.bf16.msra.mxu0 %v9055
      %9593 = vmatprep.subr.bf16.mxu0 %v9054
      %9594 = vmatpush1.bf16.msra.mxu0 %v9053
      %9595 = vmatprep.subr.bf16.mxu0 %v9052
      %9596 = vmatpush1.bf16.msra.mxu0 %v9051
      %9597 = vmatprep.subr.bf16.mxu0 %v9082
      %9598 = vmatpush2.bf16.msra.mxu0 %v9081
      %9599 = vmatprep.subr.bf16.mxu0 %v9080
      %9600 = vmatpush2.bf16.msra.mxu0 %v9079
      %9601 = vmatprep.subr.bf16.mxu0 %v9078
      %9602 = vmatpush2.bf16.msra.mxu0 %v9077
      %9603 = vmatprep.subr.bf16.mxu0 %v9076
      %9604 = vmatpush2.bf16.msra.mxu0 %v9075
      %9605 = vmatprep.subr.bf16.mxu0 %v9074
      %9606 = vmatpush2.bf16.msra.mxu0 %v9073
      %9607 = vmatprep.subr.bf16.mxu0 %v9072
      %9608 = vmatpush2.bf16.msra.mxu0 %v9071
      %9609 = vmatprep.subr.bf16.mxu0 %v9070
      %9610 = vmatpush2.bf16.msra.mxu0 %v9069
      %9611 = vmatprep.subr.bf16.mxu0 %v9068
      %9612 = vmatpush2.bf16.msra.mxu0 %v9067
      %9613 = vmatprep.mubr.bf16.mxu0 %v7940
      %9614 = vmatmul.mubr.bf16.gmra.mxu0 %v7939
      %v9615 = vpop.f32.mrf.mxu0
      %v9616 = vadd.f32 %v9575, %v9615
      %v9617 = vpop.f32.mrf.mxu0
      %v9618 = vadd.f32 %v9577, %v9617
      %v9619 = vpop.f32.mrf.mxu0
      %v9620 = vpop.f32.mrf.mxu0
      %9621 = vdwg.mxu0
      %9622 = vmatprep.subr.bf16.mxu0 %v9098
      %9623 = vmatpush1.bf16.msra.mxu0 %v9097
      %9624 = vmatprep.subr.bf16.mxu0 %v9096
      %9625 = vmatpush1.bf16.msra.mxu0 %v9095
      %9626 = vmatprep.subr.bf16.mxu0 %v9094
      %9627 = vmatpush1.bf16.msra.mxu0 %v9093
      %9628 = vmatprep.subr.bf16.mxu0 %v9092
      %9629 = vmatpush1.bf16.msra.mxu0 %v9091
      %9630 = vmatprep.subr.bf16.mxu0 %v9090
      %9631 = vmatpush1.bf16.msra.mxu0 %v9089
      %9632 = vmatprep.subr.bf16.mxu0 %v9088
      %9633 = vmatpush1.bf16.msra.mxu0 %v9087
      %9634 = vmatprep.subr.bf16.mxu0 %v9086
      %9635 = vmatpush1.bf16.msra.mxu0 %v9085
      %9636 = vmatprep.subr.bf16.mxu0 %v9084
      %9637 = vmatpush1.bf16.msra.mxu0 %v9083
      %9638 = vmatprep.subr.bf16.mxu0 %v9114
      %9639 = vmatpush2.bf16.msra.mxu0 %v9113
      %9640 = vmatprep.subr.bf16.mxu0 %v9112
      %9641 = vmatpush2.bf16.msra.mxu0 %v9111
      %9642 = vmatprep.subr.bf16.mxu0 %v9110
      %9643 = vmatpush2.bf16.msra.mxu0 %v9109
      %9644 = vmatprep.subr.bf16.mxu0 %v9108
      %9645 = vmatpush2.bf16.msra.mxu0 %v9107
      %9646 = vmatprep.subr.bf16.mxu0 %v9106
      %9647 = vmatpush2.bf16.msra.mxu0 %v9105
      %9648 = vmatprep.subr.bf16.mxu0 %v9104
      %9649 = vmatpush2.bf16.msra.mxu0 %v9103
      %9650 = vmatprep.subr.bf16.mxu0 %v9102
      %9651 = vmatpush2.bf16.msra.mxu0 %v9101
      %9652 = vmatprep.subr.bf16.mxu0 %v9100
      %9653 = vmatpush2.bf16.msra.mxu0 %v9099
      %9654 = vmatprep.mubr.bf16.mxu0 %v7942
      %9655 = vmatmul.mubr.bf16.gmra.mxu0 %v7941
      %v9656 = vpop.f32.mrf.mxu0
      %v9657 = vadd.f32 %v9616, %v9656
      %v9658 = vpop.f32.mrf.mxu0
      %v9659 = vadd.f32 %v9618, %v9658
      %v9660 = vpop.f32.mrf.mxu0
      %v9661 = vpop.f32.mrf.mxu0
      %9662 = vdwg.mxu0
      %9663 = vmatprep.subr.bf16.mxu0 %v9130
      %9664 = vmatpush1.bf16.msra.mxu0 %v9129
      %9665 = vmatprep.subr.bf16.mxu0 %v9128
      %9666 = vmatpush1.bf16.msra.mxu0 %v9127
      %9667 = vmatprep.subr.bf16.mxu0 %v9126
      %9668 = vmatpush1.bf16.msra.mxu0 %v9125
      %9669 = vmatprep.subr.bf16.mxu0 %v9124
      %9670 = vmatpush1.bf16.msra.mxu0 %v9123
      %9671 = vmatprep.subr.bf16.mxu0 %v9122
      %9672 = vmatpush1.bf16.msra.mxu0 %v9121
      %9673 = vmatprep.subr.bf16.mxu0 %v9120
      %9674 = vmatpush1.bf16.msra.mxu0 %v9119
      %9675 = vmatprep.subr.bf16.mxu0 %v9118
      %9676 = vmatpush1.bf16.msra.mxu0 %v9117
      %9677 = vmatprep.subr.bf16.mxu0 %v9116
      %9678 = vmatpush1.bf16.msra.mxu0 %v9115
      %9679 = vmatprep.subr.bf16.mxu0 %v9146
      %9680 = vmatpush2.bf16.msra.mxu0 %v9145
      %9681 = vmatprep.subr.bf16.mxu0 %v9144
      %9682 = vmatpush2.bf16.msra.mxu0 %v9143
      %9683 = vmatprep.subr.bf16.mxu0 %v9142
      %9684 = vmatpush2.bf16.msra.mxu0 %v9141
      %9685 = vmatprep.subr.bf16.mxu0 %v9140
      %9686 = vmatpush2.bf16.msra.mxu0 %v9139
      %9687 = vmatprep.subr.bf16.mxu0 %v9138
      %9688 = vmatpush2.bf16.msra.mxu0 %v9137
      %9689 = vmatprep.subr.bf16.mxu0 %v9136
      %9690 = vmatpush2.bf16.msra.mxu0 %v9135
      %9691 = vmatprep.subr.bf16.mxu0 %v9134
      %9692 = vmatpush2.bf16.msra.mxu0 %v9133
      %9693 = vmatprep.subr.bf16.mxu0 %v9132
      %9694 = vmatpush2.bf16.msra.mxu0 %v9131
      %9695 = vmatprep.mubr.bf16.mxu0 %v7944
      %9696 = vmatmul.mubr.bf16.gmra.mxu0 %v7943
      %v9697 = vpop.f32.mrf.mxu0
      %v9698 = vadd.f32 %v9657, %v9697
      %v9699 = vpop.f32.mrf.mxu0
      %v9700 = vadd.f32 %v9659, %v9699
      %v9701 = vpop.f32.mrf.mxu0
      %v9702 = vpop.f32.mrf.mxu0
      %9703 = vdwg.mxu0
      %9704 = vmatprep.subr.bf16.mxu0 %v9162
      %9705 = vmatpush1.bf16.msra.mxu0 %v9161
      %9706 = vmatprep.subr.bf16.mxu0 %v9160
      %9707 = vmatpush1.bf16.msra.mxu0 %v9159
      %9708 = vmatprep.subr.bf16.mxu0 %v9158
      %9709 = vmatpush1.bf16.msra.mxu0 %v9157
      %9710 = vmatprep.subr.bf16.mxu0 %v9156
      %9711 = vmatpush1.bf16.msra.mxu0 %v9155
      %9712 = vmatprep.subr.bf16.mxu0 %v9154
      %9713 = vmatpush1.bf16.msra.mxu0 %v9153
      %9714 = vmatprep.subr.bf16.mxu0 %v9152
      %9715 = vmatpush1.bf16.msra.mxu0 %v9151
      %9716 = vmatprep.subr.bf16.mxu0 %v9150
      %9717 = vmatpush1.bf16.msra.mxu0 %v9149
      %9718 = vmatprep.subr.bf16.mxu0 %v9148
      %9719 = vmatpush1.bf16.msra.mxu0 %v9147
      %9720 = vmatprep.subr.bf16.mxu0 %v9178
      %9721 = vmatpush2.bf16.msra.mxu0 %v9177
      %9722 = vmatprep.subr.bf16.mxu0 %v9176
      %9723 = vmatpush2.bf16.msra.mxu0 %v9175
      %9724 = vmatprep.subr.bf16.mxu0 %v9174
      %9725 = vmatpush2.bf16.msra.mxu0 %v9173
      %9726 = vmatprep.subr.bf16.mxu0 %v9172
      %9727 = vmatpush2.bf16.msra.mxu0 %v9171
      %9728 = vmatprep.subr.bf16.mxu0 %v9170
      %9729 = vmatpush2.bf16.msra.mxu0 %v9169
      %9730 = vmatprep.subr.bf16.mxu0 %v9168
      %9731 = vmatpush2.bf16.msra.mxu0 %v9167
      %9732 = vmatprep.subr.bf16.mxu0 %v9166
      %9733 = vmatpush2.bf16.msra.mxu0 %v9165
      %9734 = vmatprep.subr.bf16.mxu0 %v9164
      %9735 = vmatpush2.bf16.msra.mxu0 %v9163
      %9736 = vmatprep.mubr.bf16.mxu0 %v7946
      %9737 = vmatmul.mubr.bf16.gmra.mxu0 %v7945
      %v9738 = vpop.f32.mrf.mxu0
      %v9739 = vadd.f32 %v9698, %v9738
      %v9740 = vpop.f32.mrf.mxu0
      %v9741 = vadd.f32 %v9700, %v9740
      %v9742 = vpop.f32.mrf.mxu0
      %v9743 = vpop.f32.mrf.mxu0
      %9744 = vdwg.mxu0
      %9745 = vmatprep.subr.bf16.mxu0 %v9194
      %9746 = vmatpush1.bf16.msra.mxu0 %v9193
      %9747 = vmatprep.subr.bf16.mxu0 %v9192
      %9748 = vmatpush1.bf16.msra.mxu0 %v9191
      %9749 = vmatprep.subr.bf16.mxu0 %v9190
      %9750 = vmatpush1.bf16.msra.mxu0 %v9189
      %9751 = vmatprep.subr.bf16.mxu0 %v9188
      %9752 = vmatpush1.bf16.msra.mxu0 %v9187
      %9753 = vmatprep.subr.bf16.mxu0 %v9186
      %9754 = vmatpush1.bf16.msra.mxu0 %v9185
      %9755 = vmatprep.subr.bf16.mxu0 %v9184
      %9756 = vmatpush1.bf16.msra.mxu0 %v9183
      %9757 = vmatprep.subr.bf16.mxu0 %v9182
      %9758 = vmatpush1.bf16.msra.mxu0 %v9181
      %9759 = vmatprep.subr.bf16.mxu0 %v9180
      %9760 = vmatpush1.bf16.msra.mxu0 %v9179
      %9761 = vmatprep.subr.bf16.mxu0 %v9210
      %9762 = vmatpush2.bf16.msra.mxu0 %v9209
      %9763 = vmatprep.subr.bf16.mxu0 %v9208
      %9764 = vmatpush2.bf16.msra.mxu0 %v9207
      %9765 = vmatprep.subr.bf16.mxu0 %v9206
      %9766 = vmatpush2.bf16.msra.mxu0 %v9205
      %9767 = vmatprep.subr.bf16.mxu0 %v9204
      %9768 = vmatpush2.bf16.msra.mxu0 %v9203
      %9769 = vmatprep.subr.bf16.mxu0 %v9202
      %9770 = vmatpush2.bf16.msra.mxu0 %v9201
      %9771 = vmatprep.subr.bf16.mxu0 %v9200
      %9772 = vmatpush2.bf16.msra.mxu0 %v9199
      %9773 = vmatprep.subr.bf16.mxu0 %v9198
      %9774 = vmatpush2.bf16.msra.mxu0 %v9197
      %9775 = vmatprep.subr.bf16.mxu0 %v9196
      %9776 = vmatpush2.bf16.msra.mxu0 %v9195
      %9777 = vmatprep.mubr.bf16.mxu0 %v7948
      %9778 = vmatmul.mubr.bf16.gmra.mxu0 %v7947
      %v9779 = vpop.f32.mrf.mxu0
      %v9780 = vadd.f32 %v9739, %v9779
      %v9781 = vpop.f32.mrf.mxu0
      %v9782 = vadd.f32 %v9741, %v9781
      %v9783 = vpop.f32.mrf.mxu0
      %v9784 = vpop.f32.mrf.mxu0
      %9785 = vdwg.mxu0
      %9786 = vmatprep.subr.bf16.mxu0 %v9226
      %9787 = vmatpush1.bf16.msra.mxu0 %v9225
      %9788 = vmatprep.subr.bf16.mxu0 %v9224
      %9789 = vmatpush1.bf16.msra.mxu0 %v9223
      %9790 = vmatprep.subr.bf16.mxu0 %v9222
      %9791 = vmatpush1.bf16.msra.mxu0 %v9221
      %9792 = vmatprep.subr.bf16.mxu0 %v9220
      %9793 = vmatpush1.bf16.msra.mxu0 %v9219
      %9794 = vmatprep.subr.bf16.mxu0 %v9218
      %9795 = vmatpush1.bf16.msra.mxu0 %v9217
      %9796 = vmatprep.subr.bf16.mxu0 %v9216
      %9797 = vmatpush1.bf16.msra.mxu0 %v9215
      %9798 = vmatprep.subr.bf16.mxu0 %v9214
      %9799 = vmatpush1.bf16.msra.mxu0 %v9213
      %9800 = vmatprep.subr.bf16.mxu0 %v9212
      %9801 = vmatpush1.bf16.msra.mxu0 %v9211
      %9802 = vmatprep.subr.bf16.mxu0 %v9242
      %9803 = vmatpush2.bf16.msra.mxu0 %v9241
      %9804 = vmatprep.subr.bf16.mxu0 %v9240
      %9805 = vmatpush2.bf16.msra.mxu0 %v9239
      %9806 = vmatprep.subr.bf16.mxu0 %v9238
      %9807 = vmatpush2.bf16.msra.mxu0 %v9237
      %9808 = vmatprep.subr.bf16.mxu0 %v9236
      %9809 = vmatpush2.bf16.msra.mxu0 %v9235
      %9810 = vmatprep.subr.bf16.mxu0 %v9234
      %9811 = vmatpush2.bf16.msra.mxu0 %v9233
      %9812 = vmatprep.subr.bf16.mxu0 %v9232
      %9813 = vmatpush2.bf16.msra.mxu0 %v9231
      %9814 = vmatprep.subr.bf16.mxu0 %v9230
      %9815 = vmatpush2.bf16.msra.mxu0 %v9229
      %9816 = vmatprep.subr.bf16.mxu0 %v9228
      %9817 = vmatpush2.bf16.msra.mxu0 %v9227
      %9818 = vmatprep.mubr.bf16.mxu0 %v7950
      %9819 = vmatmul.mubr.bf16.gmra.mxu0 %v7949
      %v9820 = vpop.f32.mrf.mxu0
      %v9821 = vadd.f32 %v9780, %v9820
      %v9822 = vpop.f32.mrf.mxu0
      %v9823 = vadd.f32 %v9782, %v9822
      %v9824 = vpop.f32.mrf.mxu0
      %v9825 = vpop.f32.mrf.mxu0
      %9826 = vdwg.mxu0
      %v9829 = vcombine.low %v9821, %v9823
      %v9831 = vunpack.c.l.s4 1983009808
      %v9832 = vunpack.c.0.s8 %v9831
      %v9833 = vlaneseq
      %v9834 = vshrl.u32 %v9833, 7
      %v9835 = vsub.s32 %v9832, %v9834
      %v9836 = vrot.slane %v9829, %v9835
      %9838 = vst [vmem:[%s5] sm:$0xf] %v9836
      %v9855 = vcombine.low %v7935, %v7936
      %v9856 = vcombine.low %v7937, %v7938
      %v9857 = vcombine.low %v7939, %v7940
      %v9858 = vcombine.low %v7941, %v7942
      %v9860 = vunpack.c.l.s4 1966171168
      %v9861 = vunpack.c.0.s8 %v9860
      %v9862 = vlaneseq
      %v9863 = vshrl.u32 %v9862, 7
      %v9864 = vsub.s32 %v9861, %v9863
      %v9865 = vrot.slane %v9855, %v9864
      %v9867 = vunpack.c.l.s4 1966171168
      %v9868 = vunpack.c.0.s8 %v9867
      %v9869 = vlaneseq
      %v9870 = vshrl.u32 %v9869, 7
      %v9871 = vsub.s32 %v9868, %v9870
      %v9872 = vrot.slane %v9856, %v9871
      %v9874 = vunpack.c.l.s4 1966171168
      %v9875 = vunpack.c.0.s8 %v9874
      %v9876 = vlaneseq
      %v9877 = vshrl.u32 %v9876, 7
      %v9878 = vsub.s32 %v9875, %v9877
      %v9879 = vrot.slane %v9857, %v9878
      %v9881 = vunpack.c.l.s4 1966171168
      %v9882 = vunpack.c.0.s8 %v9881
      %v9883 = vlaneseq
      %v9884 = vshrl.u32 %v9883, 7
      %v9885 = vsub.s32 %v9882, %v9884
      %v9886 = vrot.slane %v9858, %v9885
      %v9887 = vcombine.low %v9865, %v9872
      %v9888 = vcombine.low %v9879, %v9886
      %v9890 = vunpack.c.l.s4 1966171168
      %v9891 = vunpack.c.0.s8 %v9890
      %v9892 = vlaneseq
      %v9893 = vshrl.u32 %v9892, 7
      %v9894 = vsub.s32 %v9891, %v9893
      %v9895 = vrot.slane %v9887, %v9894
      %v9897 = vunpack.c.l.s4 1966171168
      %v9898 = vunpack.c.0.s8 %v9897
      %v9899 = vlaneseq
      %v9900 = vshrl.u32 %v9899, 7
      %v9901 = vsub.s32 %v9898, %v9900
      %v9902 = vrot.slane %v9888, %v9901
      %v9903 = vcombine.low %v9895, %v9902
      %v9904 = vcombine.low %v7943, %v7944
      %v9905 = vcombine.low %v7945, %v7946
      %v9906 = vcombine.low %v7947, %v7948
      %v9907 = vcombine.low %v7949, %v7950
      %v9909 = vunpack.c.l.s4 1966171168
      %v9910 = vunpack.c.0.s8 %v9909
      %v9911 = vlaneseq
      %v9912 = vshrl.u32 %v9911, 7
      %v9913 = vsub.s32 %v9910, %v9912
      %v9914 = vrot.slane %v9904, %v9913
      %v9916 = vunpack.c.l.s4 1966171168
      %v9917 = vunpack.c.0.s8 %v9916
      %v9918 = vlaneseq
      %v9919 = vshrl.u32 %v9918, 7
      %v9920 = vsub.s32 %v9917, %v9919
      %v9921 = vrot.slane %v9905, %v9920
      %v9923 = vunpack.c.l.s4 1966171168
      %v9924 = vunpack.c.0.s8 %v9923
      %v9925 = vlaneseq
      %v9926 = vshrl.u32 %v9925, 7
      %v9927 = vsub.s32 %v9924, %v9926
      %v9928 = vrot.slane %v9906, %v9927
      %v9930 = vunpack.c.l.s4 1966171168
      %v9931 = vunpack.c.0.s8 %v9930
      %v9932 = vlaneseq
      %v9933 = vshrl.u32 %v9932, 7
      %v9934 = vsub.s32 %v9931, %v9933
      %v9935 = vrot.slane %v9907, %v9934
      %v9936 = vcombine.low %v9914, %v9921
      %v9937 = vcombine.low %v9928, %v9935
      %v9939 = vunpack.c.l.s4 1966171168
      %v9940 = vunpack.c.0.s8 %v9939
      %v9941 = vlaneseq
      %v9942 = vshrl.u32 %v9941, 7
      %v9943 = vsub.s32 %v9940, %v9942
      %v9944 = vrot.slane %v9936, %v9943
      %v9946 = vunpack.c.l.s4 1966171168
      %v9947 = vunpack.c.0.s8 %v9946
      %v9948 = vlaneseq
      %v9949 = vshrl.u32 %v9948, 7
      %v9950 = vsub.s32 %v9947, %v9949
      %v9951 = vrot.slane %v9937, %v9950
      %v9952 = vcombine.low %v9944, %v9951
      %9955 = vst [vmem:[#allocation11] sm:$0xff] %v9903
      %9956 = vst [vmem:[#allocation11 + $0x8] sm:$0xff] %v9952
    $region45: #{pu_iic_net_forward.1} parent=1 // pred_fallthru
      _
    // Predicated region
    $region46: #{pu_iic_net_forward.1} parent=1 // pred_check
      _
    $region47: #{pu_iic_net_forward.1} parent=1 // pred_check_branch
      %9958 = sbr.rel (0) target = $region49
    $region48: #{pu_iic_net_forward.1} parent=1 // pred_region
      _
    $region49: #{pu_iic_net_forward.1} parent=1 // pred_fallthru
      _
    // Predicated region
    $region50: #{pu_iic_net_forward.1} parent=1 // pred_check
      _
    $region51: #{pu_iic_net_forward.1} parent=1 // pred_check_branch
      %9960 = sbr.rel (0) target = $region53
    $region52: #{pu_iic_net_forward.1} parent=1 // pred_region
      %s9962 = ssub.s32 256, 256
      %9963 = vsyncadd [#allocation5], %s9962
      %s9965 = sshll.u32 [#allocation11], 4
      %s9966 = int_to_ptr.vmem [resolvable:$true] %s9965
      %9968 = dma.vmem_to_hbm [thread:$0]  %s9966, 256, %s6, [#allocation5]
    $region53: #{pu_iic_net_forward.1} parent=1 // pred_fallthru
      _
    // Predicated region
    $region54: #{pu_iic_net_forward.1} parent=1 // pred_check
      _
    $region55: #{pu_iic_net_forward.1} parent=1 // pred_check_branch
      %9970 = sbr.rel (0) target = $region57
    $region56: #{pu_iic_net_forward.1} parent=1 // pred_region
      _
    $region57: #{pu_iic_net_forward.1} parent=1 // pred_fallthru
      _
    // Predicated region
    $region58: #{pu_iic_net_forward.1} parent=1 // pred_check
      _
    $region59: #{pu_iic_net_forward.1} parent=1 // pred_check_branch
      %9972 = sbr.rel (0) target = $region61
    $region60: #{pu_iic_net_forward.1} parent=1 // pred_region
      %9973 = dma.done [#allocation5], 256
    $region61: #{pu_iic_net_forward.1} parent=1 // pred_fallthru
      _
    %9974 = vsyncpa [#allocation4], 1
    %9975 = vsyncpa [#allocation7], 1
    %9976 = vsyncpa [#allocation10], 1
    %9977 = vsyncpa [#allocation5], 1

</llo_original>
